<compile_context>
chip_gen: v6e
topology: v6e:2x2x1
jax: 0.10.0
libtpu: 0.0.40
codegen_flags: <defaults>
</compile_context>

<pallas_src>
import jax
import jax.numpy as jnp
import numpy as np
from jax import lax
from jax.experimental import pallas as pl
from jax.experimental.pallas import tpu as pltpu

EMBED = 300
HIDDEN = 512
OUT = 300
OUT_PAD = 384          # 3 * 128 lanes -> lane-dense, unmasked stores
BATCH_TILE = 16        # bf16 MXU LHS packs (16, 128) tiles


def _make_kernel(t_actual, tc, unroll, needs_time_mask):
    """Build the kernel closure (t_actual/tc/unroll are static Python ints)."""

    def kernel(xp_ref, whh_ref, wfc_ref, bfc_ref, out_ref, h_sc, c_sc):
        # xp_ref : (TC, BB, 4H) bf16   precomputed x @ W_ih^T + b_ih + b_hh (time-major chunk)
        # whh_ref: (H, 4H)      bf16   W_hh^T (resident across the grid)
        # wfc_ref: (H, OUT_PAD) bf16   W_fc^T, lane-padded
        # bfc_ref: (1, OUT_PAD) f32    b_fc, lane-padded
        # out_ref: (BB, OUT_PAD) f32
        # h_sc/c_sc: (BB, H) f32 persistent scratch carrying the recurrent state
        ti = pl.program_id(1)
        nt = pl.num_programs(1)

        @pl.when(ti == 0)
        def _():
            h_sc[...] = jnp.zeros_like(h_sc)
            c_sc[...] = jnp.zeros_like(c_sc)

        base_t = ti * tc

        def step(t, carry):
            h, c = carry
            # Only the recurrent matmul is on the sequential critical path; W_hh streams
            # straight from its ref each step (no hoisted copy live across the loop).
            gates = xp_ref[t].astype(jnp.float32) + jnp.dot(
                h.astype(jnp.bfloat16), whh_ref[...],
                preferred_element_type=jnp.float32)                      # (BB, 4H) f32
            # PyTorch gate order: i, f, g, o  (all elementwise math stays f32)
            i = jax.nn.sigmoid(gates[:, 0:HIDDEN])
            f = jax.nn.sigmoid(gates[:, HIDDEN:2 * HIDDEN])
            g = jnp.tanh(gates[:, 2 * HIDDEN:3 * HIDDEN])
            o = jax.nn.sigmoid(gates[:, 3 * HIDDEN:4 * HIDDEN])
            c_new = f * c + i * g
            h_new = o * jnp.tanh(c_new)
            if needs_time_mask:
                valid = (base_t + t) < t_actual
                h_new = jnp.where(valid, h_new, h)
                c_new = jnp.where(valid, c_new, c)
            return h_new, c_new

        h, c = lax.fori_loop(0, tc, step, (h_sc[...], c_sc[...]), unroll=unroll)
        h_sc[...] = h
        c_sc[...] = c

        @pl.when(ti == nt - 1)
        def _():
            out_ref[...] = (jnp.dot(h.astype(jnp.bfloat16), wfc_ref[...],
                                    preferred_element_type=jnp.float32)
                            + bfc_ref[...])

    return kernel


def lstm_encoder_forward(input_ids, params):
    B, T = input_ids.shape

    # ---- plain JAX glue: embedding gather + hoisted, time-major, bf16-MXU input projection ----
    x = jnp.take(params["embedding"], input_ids, axis=0)                  # (B, T, E) f32
    bias = (params["b_ih"] + params["b_hh"]).astype(jnp.float32)          # (4H,)
    xp = jnp.einsum("bte,ge->tbg",
                    x.astype(jnp.bfloat16), params["w_ih"].astype(jnp.bfloat16),
                    preferred_element_type=jnp.float32) + bias            # (T, B, 4H) f32

    # ---- padding: batch to a 16-row bf16 sublane tile, time to a multiple of the chunk ----
    b_pad = max(BATCH_TILE, ((B + BATCH_TILE - 1) // BATCH_TILE) * BATCH_TILE)
    # 2-way batch split gives v7x's second TensorCore work at realistic batch sizes.
    n_b = 2 if (b_pad >= 32 and b_pad % 32 == 0) else 1
    bb = b_pad // n_b

    # Derive the time-chunk size from this chip's VMEM capacity (v7x: 64 MiB, v5e/v6e: 128 MiB).
    try:
        vmem_cap = int(pltpu.get_tpu_info().vmem_capacity_bytes)
    except Exception:
        vmem_cap = 64 * 1024 * 1024
    chunk_budget = max(4 * 1024 * 1024, vmem_cap // 8)
    step_bytes = bb * 4 * HIDDEN * 2                          # one bf16 time step of xp
    tc = int(max(1, min(T, chunk_budget // (2 * step_bytes))))
    t_pad = ((T + tc - 1) // tc) * tc
    n_t = t_pad // tc

    # Streamed tensor goes to the kernel in bf16 (halves DMA bytes); upcast to f32 in-kernel.
    xp = jnp.pad(xp, ((0, t_pad - T), (0, b_pad - B), (0, 0))).astype(jnp.bfloat16)

    whh_bf = params["w_hh"].T.astype(jnp.bfloat16)                         # (H, 4H)
    wfc_pad = jnp.pad(params["w_fc"].T,
                      ((0, 0), (0, OUT_PAD - OUT))).astype(jnp.bfloat16)   # (H, OUT_PAD)
    bfc_pad = jnp.pad(params["b_fc"],
                      (0, OUT_PAD - OUT)).reshape(1, OUT_PAD).astype(jnp.float32)

    # Tight VMEM bound from the actual (double-buffered) footprint.
    footprint = (2 * tc * bb * 4 * HIDDEN * 2        # xp chunk bf16, double buffered
                 + 2 * HIDDEN * 4 * HIDDEN * 2       # W_hh^T bf16
                 + 2 * HIDDEN * OUT_PAD * 2          # W_fc^T bf16
                 + 2 * OUT_PAD * 4                   # b_fc
                 + bb * OUT_PAD * 4                  # output tile
                 + 2 * bb * HIDDEN * 4)              # h/c scratch
    vmem_limit = int(min(max(2 * footprint, 16 * 1024 * 1024), 48 * 1024 * 1024))

    kernel = _make_kernel(T, tc, min(8, tc), t_pad != T)

    out_pad = pl.pallas_call(
        kernel,
        out_shape=jax.ShapeDtypeStruct((b_pad, OUT_PAD), jnp.float32),
        grid_spec=pltpu.PrefetchScalarGridSpec(
            num_scalar_prefetch=0,
            grid=(n_b, n_t),
            in_specs=[
                pl.BlockSpec((tc, bb, 4 * HIDDEN), lambda b, t: (t, b, 0)),   # xp chunk
                pl.BlockSpec((HIDDEN, 4 * HIDDEN), lambda b, t: (0, 0)),      # W_hh^T (resident)
                pl.BlockSpec((HIDDEN, OUT_PAD), lambda b, t: (0, 0)),         # W_fc^T (resident)
                pl.BlockSpec((1, OUT_PAD), lambda b, t: (0, 0)),              # b_fc
            ],
            out_specs=pl.BlockSpec((bb, OUT_PAD), lambda b, t: (b, 0)),
            scratch_shapes=[pltpu.VMEM((bb, HIDDEN), jnp.float32),            # h carry
                            pltpu.VMEM((bb, HIDDEN), jnp.float32)],           # c carry
        ),
        compiler_params=pltpu.CompilerParams(
            dimension_semantics=("parallel", "arbitrary"),
            vmem_limit_bytes=vmem_limit,
        ),
    )(xp, whh_bf, wfc_pad, bfc_pad)

    return out_pad[:B, :OUT]


def reference_forward(input_ids, params):
    """Pure-JAX f32 reference matching PyTorch LSTMEncoder.forward semantics."""
    x = jnp.take(params["embedding"], input_ids, axis=0)    # (B, T, E)
    wih_t = params["w_ih"].T
    whh_t = params["w_hh"].T
    b = params["b_ih"] + params["b_hh"]
    B = x.shape[0]

    def step(carry, x_t):
        h, c = carry
        gates = x_t @ wih_t + h @ whh_t + b
        i, f, g, o = jnp.split(gates, 4, axis=-1)
        i = jax.nn.sigmoid(i)
        f = jax.nn.sigmoid(f)
        g = jnp.tanh(g)
        o = jax.nn.sigmoid(o)
        c = f * c + i * g
        h = o * jnp.tanh(c)
        return (h, c), None

    h0 = jnp.zeros((B, HIDDEN), jnp.float32)
    c0 = jnp.zeros((B, HIDDEN), jnp.float32)
    (h, _), _ = jax.lax.scan(step, (h0, c0), jnp.transpose(x, (1, 0, 2)))
    return h @ params["w_fc"].T + params["b_fc"]


if __name__ == "__main__":
    vocab_size = 50
    B, T = 2, 8

    key = jax.random.PRNGKey(0)
    ks = jax.random.split(key, 8)
    k_hid = 1.0 / np.sqrt(HIDDEN)

    params = {
        # nn.Embedding default ~ N(0, 1)
        "embedding": jax.random.normal(ks[0], (vocab_size, EMBED), jnp.float32),
        # nn.LSTM default ~ U(-1/sqrt(H), 1/sqrt(H))
        "w_ih": jax.random.uniform(ks[1], (4 * HIDDEN, EMBED), jnp.float32, -k_hid, k_hid),
        "w_hh": jax.random.uniform(ks[2], (4 * HIDDEN, HIDDEN), jnp.float32, -k_hid, k_hid),
        "b_ih": jax.random.uniform(ks[3], (4 * HIDDEN,), jnp.float32, -k_hid, k_hid),
        "b_hh": jax.random.uniform(ks[4], (4 * HIDDEN,), jnp.float32, -k_hid, k_hid),
        # fc: xavier_uniform-ish weight scale + normal bias (per init_weights)
        "w_fc": jax.random.normal(ks[5], (OUT, HIDDEN), jnp.float32)
                * np.sqrt(2.0 / (HIDDEN + OUT)),
        "b_fc": jax.random.normal(ks[6], (OUT,), jnp.float32),
    }

    input_ids = jax.random.randint(ks[7], (B, T), 0, vocab_size, dtype=jnp.int32)

    out = lstm_encoder_forward(input_ids, params)
    out = jax.block_until_ready(out)
    assert out.shape == (B, OUT) and out.dtype == jnp.float32

    ref = reference_forward(input_ids, params)
    np.testing.assert_allclose(np.asarray(out), np.asarray(ref), rtol=2e-2, atol=2e-2)

    print("KERNEL_OK")
</pallas_src>

<mosaic_0001>
module attributes {stable_mosaic.version = 11 : i64} {
  func.func @kernel(%arg0: i32, %arg1: i32, %arg2: memref<8x16x2048xbf16, #tpu.memory_space<vmem>>, %arg3: memref<512x2048xbf16, #tpu.memory_space<vmem>>, %arg4: memref<512x384xbf16, #tpu.memory_space<vmem>>, %arg5: memref<1x384xf32, #tpu.memory_space<vmem>>, %arg6: memref<16x384xf32, #tpu.memory_space<vmem>>, %arg7: memref<16x512xf32, #tpu.memory_space<vmem>>, %arg8: memref<16x512xf32, #tpu.memory_space<vmem>>) attributes {dimension_semantics = [#tpu.dimension_semantics<parallel>, #tpu.dimension_semantics<arbitrary>], iteration_bounds = array<i64: 1, 1>, scalar_prefetch = 0 : i64, scratch_operands = 2 : i64, tpu.core_type = #tpu.core_type<tc>, window_params = [{transform_indices = @transform_0, window_bounds = array<i64: 8, 16, 2048>}, {pipeline_mode = #tpu.pipeline_mode<synchronous>, transform_indices = @transform_1, window_bounds = array<i64: 512, 2048>}, {pipeline_mode = #tpu.pipeline_mode<synchronous>, transform_indices = @transform_2, window_bounds = array<i64: 512, 384>}, {pipeline_mode = #tpu.pipeline_mode<synchronous>, transform_indices = @transform_3, window_bounds = array<i64: 1, 384>}, {transform_indices = @transform_4, window_bounds = array<i64: 16, 384>}]} {
    %c0_i32 = arith.constant 0 : i32
    %0 = arith.cmpi eq, %arg1, %c0_i32 : i32
    %1 = arith.extui %0 : i1 to i32
    %c0_i32_0 = arith.constant 0 : i32
    %2 = arith.cmpi ne, %1, %c0_i32_0 : i32
    scf.if %2 {
      %cst_74 = arith.constant 0.000000e+00 : f32
      %274 = vector.broadcast %cst_74 : f32 to vector<16x512xf32>
      %c0_75 = arith.constant 0 : index
      %c0_76 = arith.constant 0 : index
      %275 = vector.load %arg7[%c0_75, %c0_76] : memref<16x512xf32, #tpu.memory_space<vmem>>, vector<16x512xf32>
      tpu.vector_store %arg7[%c0_75, %c0_76], %274 {strides = array<i32>} : memref<16x512xf32, #tpu.memory_space<vmem>>, vector<16x512xf32>,
      %cst_77 = arith.constant 0.000000e+00 : f32
      %276 = vector.broadcast %cst_77 : f32 to vector<16x512xf32>
      %c0_78 = arith.constant 0 : index
      %c0_79 = arith.constant 0 : index
      %277 = vector.load %arg8[%c0_78, %c0_79] : memref<16x512xf32, #tpu.memory_space<vmem>>, vector<16x512xf32>
      tpu.vector_store %arg8[%c0_78, %c0_79], %276 {strides = array<i32>} : memref<16x512xf32, #tpu.memory_space<vmem>>, vector<16x512xf32>,
    } else {
    }
    %c0 = arith.constant 0 : index
    %c0_1 = arith.constant 0 : index
    %3 = vector.load %arg7[%c0, %c0_1] : memref<16x512xf32, #tpu.memory_space<vmem>>, vector<16x512xf32>
    %c0_2 = arith.constant 0 : index
    %c0_3 = arith.constant 0 : index
    %4 = vector.load %arg8[%c0_2, %c0_3] : memref<16x512xf32, #tpu.memory_space<vmem>>, vector<16x512xf32>
    %c0_i32_4 = arith.constant 0 : i32
    %5 = arith.index_cast %c0_i32_4 : i32 to index
    %c0_5 = arith.constant 0 : index
    %c0_6 = arith.constant 0 : index
    %6 = vector.load %arg2[%5, %c0_5, %c0_6] : memref<8x16x2048xbf16, #tpu.memory_space<vmem>>, vector<1x16x2048xbf16>
    %7 = vector.shape_cast %6 : vector<1x16x2048xbf16> to vector<16x2048xbf16>
    %8 = arith.extf %7 : vector<16x2048xbf16> to vector<16x2048xf32>
    %9 = arith.truncf %3 : vector<16x512xf32> to vector<16x512xbf16>
    %c0_7 = arith.constant 0 : index
    %c0_8 = arith.constant 0 : index
    %10 = vector.load %arg3[%c0_7, %c0_8] : memref<512x2048xbf16, #tpu.memory_space<vmem>>, vector<512x2048xbf16>
    %cst = arith.constant dense<0.000000e+00> : vector<16x2048xf32>
    %11 = tpu.matmul %9, %10, %cst {dimension_numbers = #tpu.dot_dimension_numbers<[1], [0], [0], [1], [0, 0, 1, 1], [], []>} : vector<16x512xbf16>, vector<512x2048xbf16>, vector<16x2048xf32> -> vector<16x2048xf32>
    %12 = arith.addf %8, %11 : vector<16x2048xf32>
    %13 = vector.extract_strided_slice %12 {offsets = [0, 0], sizes = [16, 512], strides = [1, 1]} : vector<16x2048xf32> to vector<16x512xf32>
    %14 = arith.negf %13 : vector<16x512xf32>
    %15 = math.exp %14 : vector<16x512xf32>
    %cst_9 = arith.constant 1.000000e+00 : f32
    %16 = vector.broadcast %cst_9 : f32 to vector<16x512xf32>
    %17 = arith.addf %16, %15 : vector<16x512xf32>
    %18 = arith.divf %16, %17 : vector<16x512xf32>
    %19 = vector.extract_strided_slice %12 {offsets = [0, 512], sizes = [16, 512], strides = [1, 1]} : vector<16x2048xf32> to vector<16x512xf32>
    %20 = arith.negf %19 : vector<16x512xf32>
    %21 = math.exp %20 : vector<16x512xf32>
    %cst_10 = arith.constant 1.000000e+00 : f32
    %22 = vector.broadcast %cst_10 : f32 to vector<16x512xf32>
    %23 = arith.addf %22, %21 : vector<16x512xf32>
    %24 = arith.divf %22, %23 : vector<16x512xf32>
    %25 = vector.extract_strided_slice %12 {offsets = [0, 1024], sizes = [16, 512], strides = [1, 1]} : vector<16x2048xf32> to vector<16x512xf32>
    %26 = math.tanh %25 : vector<16x512xf32>
    %27 = vector.extract_strided_slice %12 {offsets = [0, 1536], sizes = [16, 512], strides = [1, 1]} : vector<16x2048xf32> to vector<16x512xf32>
    %28 = arith.negf %27 : vector<16x512xf32>
    %29 = math.exp %28 : vector<16x512xf32>
    %cst_11 = arith.constant 1.000000e+00 : f32
    %30 = vector.broadcast %cst_11 : f32 to vector<16x512xf32>
    %31 = arith.addf %30, %29 : vector<16x512xf32>
    %32 = arith.divf %30, %31 : vector<16x512xf32>
    %33 = arith.mulf %24, %4 : vector<16x512xf32>
    %34 = arith.mulf %18, %26 : vector<16x512xf32>
    %35 = arith.addf %33, %34 : vector<16x512xf32>
    %36 = math.tanh %35 : vector<16x512xf32>
    %37 = arith.mulf %32, %36 : vector<16x512xf32>
    %c1_i32 = arith.constant 1 : i32
    %38 = arith.index_cast %c1_i32 : i32 to index
    %c0_12 = arith.constant 0 : index
    %c0_13 = arith.constant 0 : index
    %39 = vector.load %arg2[%38, %c0_12, %c0_13] : memref<8x16x2048xbf16, #tpu.memory_space<vmem>>, vector<1x16x2048xbf16>
    %40 = vector.shape_cast %39 : vector<1x16x2048xbf16> to vector<16x2048xbf16>
    %41 = arith.extf %40 : vector<16x2048xbf16> to vector<16x2048xf32>
    %42 = arith.truncf %37 : vector<16x512xf32> to vector<16x512xbf16>
    %c0_14 = arith.constant 0 : index
    %c0_15 = arith.constant 0 : index
    %43 = vector.load %arg3[%c0_14, %c0_15] : memref<512x2048xbf16, #tpu.memory_space<vmem>>, vector<512x2048xbf16>
    %cst_16 = arith.constant dense<0.000000e+00> : vector<16x2048xf32>
    %44 = tpu.matmul %42, %43, %cst_16 {dimension_numbers = #tpu.dot_dimension_numbers<[1], [0], [0], [1], [0, 0, 1, 1], [], []>} : vector<16x512xbf16>, vector<512x2048xbf16>, vector<16x2048xf32> -> vector<16x2048xf32>
    %45 = arith.addf %41, %44 : vector<16x2048xf32>
    %46 = vector.extract_strided_slice %45 {offsets = [0, 0], sizes = [16, 512], strides = [1, 1]} : vector<16x2048xf32> to vector<16x512xf32>
    %47 = arith.negf %46 : vector<16x512xf32>
    %48 = math.exp %47 : vector<16x512xf32>
    %cst_17 = arith.constant 1.000000e+00 : f32
    %49 = vector.broadcast %cst_17 : f32 to vector<16x512xf32>
    %50 = arith.addf %49, %48 : vector<16x512xf32>
    %51 = arith.divf %49, %50 : vector<16x512xf32>
    %52 = vector.extract_strided_slice %45 {offsets = [0, 512], sizes = [16, 512], strides = [1, 1]} : vector<16x2048xf32> to vector<16x512xf32>
    %53 = arith.negf %52 : vector<16x512xf32>
    %54 = math.exp %53 : vector<16x512xf32>
    %cst_18 = arith.constant 1.000000e+00 : f32
    %55 = vector.broadcast %cst_18 : f32 to vector<16x512xf32>
    %56 = arith.addf %55, %54 : vector<16x512xf32>
    %57 = arith.divf %55, %56 : vector<16x512xf32>
    %58 = vector.extract_strided_slice %45 {offsets = [0, 1024], sizes = [16, 512], strides = [1, 1]} : vector<16x2048xf32> to vector<16x512xf32>
    %59 = math.tanh %58 : vector<16x512xf32>
    %60 = vector.extract_strided_slice %45 {offsets = [0, 1536], sizes = [16, 512], strides = [1, 1]} : vector<16x2048xf32> to vector<16x512xf32>
    %61 = arith.negf %60 : vector<16x512xf32>
    %62 = math.exp %61 : vector<16x512xf32>
    %cst_19 = arith.constant 1.000000e+00 : f32
    %63 = vector.broadcast %cst_19 : f32 to vector<16x512xf32>
    %64 = arith.addf %63, %62 : vector<16x512xf32>
    %65 = arith.divf %63, %64 : vector<16x512xf32>
    %66 = arith.mulf %57, %35 : vector<16x512xf32>
    %67 = arith.mulf %51, %59 : vector<16x512xf32>
    %68 = arith.addf %66, %67 : vector<16x512xf32>
    %69 = math.tanh %68 : vector<16x512xf32>
    %70 = arith.mulf %65, %69 : vector<16x512xf32>
    %c2_i32 = arith.constant 2 : i32
    %71 = arith.index_cast %c2_i32 : i32 to index
    %c0_20 = arith.constant 0 : index
    %c0_21 = arith.constant 0 : index
    %72 = vector.load %arg2[%71, %c0_20, %c0_21] : memref<8x16x2048xbf16, #tpu.memory_space<vmem>>, vector<1x16x2048xbf16>
    %73 = vector.shape_cast %72 : vector<1x16x2048xbf16> to vector<16x2048xbf16>
    %74 = arith.extf %73 : vector<16x2048xbf16> to vector<16x2048xf32>
    %75 = arith.truncf %70 : vector<16x512xf32> to vector<16x512xbf16>
    %c0_22 = arith.constant 0 : index
    %c0_23 = arith.constant 0 : index
    %76 = vector.load %arg3[%c0_22, %c0_23] : memref<512x2048xbf16, #tpu.memory_space<vmem>>, vector<512x2048xbf16>
    %cst_24 = arith.constant dense<0.000000e+00> : vector<16x2048xf32>
    %77 = tpu.matmul %75, %76, %cst_24 {dimension_numbers = #tpu.dot_dimension_numbers<[1], [0], [0], [1], [0, 0, 1, 1], [], []>} : vector<16x512xbf16>, vector<512x2048xbf16>, vector<16x2048xf32> -> vector<16x2048xf32>
    %78 = arith.addf %74, %77 : vector<16x2048xf32>
    %79 = vector.extract_strided_slice %78 {offsets = [0, 0], sizes = [16, 512], strides = [1, 1]} : vector<16x2048xf32> to vector<16x512xf32>
    %80 = arith.negf %79 : vector<16x512xf32>
    %81 = math.exp %80 : vector<16x512xf32>
    %cst_25 = arith.constant 1.000000e+00 : f32
    %82 = vector.broadcast %cst_25 : f32 to vector<16x512xf32>
    %83 = arith.addf %82, %81 : vector<16x512xf32>
    %84 = arith.divf %82, %83 : vector<16x512xf32>
    %85 = vector.extract_strided_slice %78 {offsets = [0, 512], sizes = [16, 512], strides = [1, 1]} : vector<16x2048xf32> to vector<16x512xf32>
    %86 = arith.negf %85 : vector<16x512xf32>
    %87 = math.exp %86 : vector<16x512xf32>
    %cst_26 = arith.constant 1.000000e+00 : f32
    %88 = vector.broadcast %cst_26 : f32 to vector<16x512xf32>
    %89 = arith.addf %88, %87 : vector<16x512xf32>
    %90 = arith.divf %88, %89 : vector<16x512xf32>
    %91 = vector.extract_strided_slice %78 {offsets = [0, 1024], sizes = [16, 512], strides = [1, 1]} : vector<16x2048xf32> to vector<16x512xf32>
    %92 = math.tanh %91 : vector<16x512xf32>
    %93 = vector.extract_strided_slice %78 {offsets = [0, 1536], sizes = [16, 512], strides = [1, 1]} : vector<16x2048xf32> to vector<16x512xf32>
    %94 = arith.negf %93 : vector<16x512xf32>
    %95 = math.exp %94 : vector<16x512xf32>
    %cst_27 = arith.constant 1.000000e+00 : f32
    %96 = vector.broadcast %cst_27 : f32 to vector<16x512xf32>
    %97 = arith.addf %96, %95 : vector<16x512xf32>
    %98 = arith.divf %96, %97 : vector<16x512xf32>
    %99 = arith.mulf %90, %68 : vector<16x512xf32>
    %100 = arith.mulf %84, %92 : vector<16x512xf32>
    %101 = arith.addf %99, %100 : vector<16x512xf32>
    %102 = math.tanh %101 : vector<16x512xf32>
    %103 = arith.mulf %98, %102 : vector<16x512xf32>
    %c3_i32 = arith.constant 3 : i32
    %104 = arith.index_cast %c3_i32 : i32 to index
    %c0_28 = arith.constant 0 : index
    %c0_29 = arith.constant 0 : index
    %105 = vector.load %arg2[%104, %c0_28, %c0_29] : memref<8x16x2048xbf16, #tpu.memory_space<vmem>>, vector<1x16x2048xbf16>
    %106 = vector.shape_cast %105 : vector<1x16x2048xbf16> to vector<16x2048xbf16>
    %107 = arith.extf %106 : vector<16x2048xbf16> to vector<16x2048xf32>
    %108 = arith.truncf %103 : vector<16x512xf32> to vector<16x512xbf16>
    %c0_30 = arith.constant 0 : index
    %c0_31 = arith.constant 0 : index
    %109 = vector.load %arg3[%c0_30, %c0_31] : memref<512x2048xbf16, #tpu.memory_space<vmem>>, vector<512x2048xbf16>
    %cst_32 = arith.constant dense<0.000000e+00> : vector<16x2048xf32>
    %110 = tpu.matmul %108, %109, %cst_32 {dimension_numbers = #tpu.dot_dimension_numbers<[1], [0], [0], [1], [0, 0, 1, 1], [], []>} : vector<16x512xbf16>, vector<512x2048xbf16>, vector<16x2048xf32> -> vector<16x2048xf32>
    %111 = arith.addf %107, %110 : vector<16x2048xf32>
    %112 = vector.extract_strided_slice %111 {offsets = [0, 0], sizes = [16, 512], strides = [1, 1]} : vector<16x2048xf32> to vector<16x512xf32>
    %113 = arith.negf %112 : vector<16x512xf32>
    %114 = math.exp %113 : vector<16x512xf32>
    %cst_33 = arith.constant 1.000000e+00 : f32
    %115 = vector.broadcast %cst_33 : f32 to vector<16x512xf32>
    %116 = arith.addf %115, %114 : vector<16x512xf32>
    %117 = arith.divf %115, %116 : vector<16x512xf32>
    %118 = vector.extract_strided_slice %111 {offsets = [0, 512], sizes = [16, 512], strides = [1, 1]} : vector<16x2048xf32> to vector<16x512xf32>
    %119 = arith.negf %118 : vector<16x512xf32>
    %120 = math.exp %119 : vector<16x512xf32>
    %cst_34 = arith.constant 1.000000e+00 : f32
    %121 = vector.broadcast %cst_34 : f32 to vector<16x512xf32>
    %122 = arith.addf %121, %120 : vector<16x512xf32>
    %123 = arith.divf %121, %122 : vector<16x512xf32>
    %124 = vector.extract_strided_slice %111 {offsets = [0, 1024], sizes = [16, 512], strides = [1, 1]} : vector<16x2048xf32> to vector<16x512xf32>
    %125 = math.tanh %124 : vector<16x512xf32>
    %126 = vector.extract_strided_slice %111 {offsets = [0, 1536], sizes = [16, 512], strides = [1, 1]} : vector<16x2048xf32> to vector<16x512xf32>
    %127 = arith.negf %126 : vector<16x512xf32>
    %128 = math.exp %127 : vector<16x512xf32>
    %cst_35 = arith.constant 1.000000e+00 : f32
    %129 = vector.broadcast %cst_35 : f32 to vector<16x512xf32>
    %130 = arith.addf %129, %128 : vector<16x512xf32>
    %131 = arith.divf %129, %130 : vector<16x512xf32>
    %132 = arith.mulf %123, %101 : vector<16x512xf32>
    %133 = arith.mulf %117, %125 : vector<16x512xf32>
    %134 = arith.addf %132, %133 : vector<16x512xf32>
    %135 = math.tanh %134 : vector<16x512xf32>
    %136 = arith.mulf %131, %135 : vector<16x512xf32>
    %c4_i32 = arith.constant 4 : i32
    %137 = arith.index_cast %c4_i32 : i32 to index
    %c0_36 = arith.constant 0 : index
    %c0_37 = arith.constant 0 : index
    %138 = vector.load %arg2[%137, %c0_36, %c0_37] : memref<8x16x2048xbf16, #tpu.memory_space<vmem>>, vector<1x16x2048xbf16>
    %139 = vector.shape_cast %138 : vector<1x16x2048xbf16> to vector<16x2048xbf16>
    %140 = arith.extf %139 : vector<16x2048xbf16> to vector<16x2048xf32>
    %141 = arith.truncf %136 : vector<16x512xf32> to vector<16x512xbf16>
    %c0_38 = arith.constant 0 : index
    %c0_39 = arith.constant 0 : index
    %142 = vector.load %arg3[%c0_38, %c0_39] : memref<512x2048xbf16, #tpu.memory_space<vmem>>, vector<512x2048xbf16>
    %cst_40 = arith.constant dense<0.000000e+00> : vector<16x2048xf32>
    %143 = tpu.matmul %141, %142, %cst_40 {dimension_numbers = #tpu.dot_dimension_numbers<[1], [0], [0], [1], [0, 0, 1, 1], [], []>} : vector<16x512xbf16>, vector<512x2048xbf16>, vector<16x2048xf32> -> vector<16x2048xf32>
    %144 = arith.addf %140, %143 : vector<16x2048xf32>
    %145 = vector.extract_strided_slice %144 {offsets = [0, 0], sizes = [16, 512], strides = [1, 1]} : vector<16x2048xf32> to vector<16x512xf32>
    %146 = arith.negf %145 : vector<16x512xf32>
    %147 = math.exp %146 : vector<16x512xf32>
    %cst_41 = arith.constant 1.000000e+00 : f32
    %148 = vector.broadcast %cst_41 : f32 to vector<16x512xf32>
    %149 = arith.addf %148, %147 : vector<16x512xf32>
    %150 = arith.divf %148, %149 : vector<16x512xf32>
    %151 = vector.extract_strided_slice %144 {offsets = [0, 512], sizes = [16, 512], strides = [1, 1]} : vector<16x2048xf32> to vector<16x512xf32>
    %152 = arith.negf %151 : vector<16x512xf32>
    %153 = math.exp %152 : vector<16x512xf32>
    %cst_42 = arith.constant 1.000000e+00 : f32
    %154 = vector.broadcast %cst_42 : f32 to vector<16x512xf32>
    %155 = arith.addf %154, %153 : vector<16x512xf32>
    %156 = arith.divf %154, %155 : vector<16x512xf32>
    %157 = vector.extract_strided_slice %144 {offsets = [0, 1024], sizes = [16, 512], strides = [1, 1]} : vector<16x2048xf32> to vector<16x512xf32>
    %158 = math.tanh %157 : vector<16x512xf32>
    %159 = vector.extract_strided_slice %144 {offsets = [0, 1536], sizes = [16, 512], strides = [1, 1]} : vector<16x2048xf32> to vector<16x512xf32>
    %160 = arith.negf %159 : vector<16x512xf32>
    %161 = math.exp %160 : vector<16x512xf32>
    %cst_43 = arith.constant 1.000000e+00 : f32
    %162 = vector.broadcast %cst_43 : f32 to vector<16x512xf32>
    %163 = arith.addf %162, %161 : vector<16x512xf32>
    %164 = arith.divf %162, %163 : vector<16x512xf32>
    %165 = arith.mulf %156, %134 : vector<16x512xf32>
    %166 = arith.mulf %150, %158 : vector<16x512xf32>
    %167 = arith.addf %165, %166 : vector<16x512xf32>
    %168 = math.tanh %167 : vector<16x512xf32>
    %169 = arith.mulf %164, %168 : vector<16x512xf32>
    %c5_i32 = arith.constant 5 : i32
    %170 = arith.index_cast %c5_i32 : i32 to index
    %c0_44 = arith.constant 0 : index
    %c0_45 = arith.constant 0 : index
    %171 = vector.load %arg2[%170, %c0_44, %c0_45] : memref<8x16x2048xbf16, #tpu.memory_space<vmem>>, vector<1x16x2048xbf16>
    %172 = vector.shape_cast %171 : vector<1x16x2048xbf16> to vector<16x2048xbf16>
    %173 = arith.extf %172 : vector<16x2048xbf16> to vector<16x2048xf32>
    %174 = arith.truncf %169 : vector<16x512xf32> to vector<16x512xbf16>
    %c0_46 = arith.constant 0 : index
    %c0_47 = arith.constant 0 : index
    %175 = vector.load %arg3[%c0_46, %c0_47] : memref<512x2048xbf16, #tpu.memory_space<vmem>>, vector<512x2048xbf16>
    %cst_48 = arith.constant dense<0.000000e+00> : vector<16x2048xf32>
    %176 = tpu.matmul %174, %175, %cst_48 {dimension_numbers = #tpu.dot_dimension_numbers<[1], [0], [0], [1], [0, 0, 1, 1], [], []>} : vector<16x512xbf16>, vector<512x2048xbf16>, vector<16x2048xf32> -> vector<16x2048xf32>
    %177 = arith.addf %173, %176 : vector<16x2048xf32>
    %178 = vector.extract_strided_slice %177 {offsets = [0, 0], sizes = [16, 512], strides = [1, 1]} : vector<16x2048xf32> to vector<16x512xf32>
    %179 = arith.negf %178 : vector<16x512xf32>
    %180 = math.exp %179 : vector<16x512xf32>
    %cst_49 = arith.constant 1.000000e+00 : f32
    %181 = vector.broadcast %cst_49 : f32 to vector<16x512xf32>
    %182 = arith.addf %181, %180 : vector<16x512xf32>
    %183 = arith.divf %181, %182 : vector<16x512xf32>
    %184 = vector.extract_strided_slice %177 {offsets = [0, 512], sizes = [16, 512], strides = [1, 1]} : vector<16x2048xf32> to vector<16x512xf32>
    %185 = arith.negf %184 : vector<16x512xf32>
    %186 = math.exp %185 : vector<16x512xf32>
    %cst_50 = arith.constant 1.000000e+00 : f32
    %187 = vector.broadcast %cst_50 : f32 to vector<16x512xf32>
    %188 = arith.addf %187, %186 : vector<16x512xf32>
    %189 = arith.divf %187, %188 : vector<16x512xf32>
    %190 = vector.extract_strided_slice %177 {offsets = [0, 1024], sizes = [16, 512], strides = [1, 1]} : vector<16x2048xf32> to vector<16x512xf32>
    %191 = math.tanh %190 : vector<16x512xf32>
    %192 = vector.extract_strided_slice %177 {offsets = [0, 1536], sizes = [16, 512], strides = [1, 1]} : vector<16x2048xf32> to vector<16x512xf32>
    %193 = arith.negf %192 : vector<16x512xf32>
    %194 = math.exp %193 : vector<16x512xf32>
    %cst_51 = arith.constant 1.000000e+00 : f32
    %195 = vector.broadcast %cst_51 : f32 to vector<16x512xf32>
    %196 = arith.addf %195, %194 : vector<16x512xf32>
    %197 = arith.divf %195, %196 : vector<16x512xf32>
    %198 = arith.mulf %189, %167 : vector<16x512xf32>
    %199 = arith.mulf %183, %191 : vector<16x512xf32>
    %200 = arith.addf %198, %199 : vector<16x512xf32>
    %201 = math.tanh %200 : vector<16x512xf32>
    %202 = arith.mulf %197, %201 : vector<16x512xf32>
    %c6_i32 = arith.constant 6 : i32
    %203 = arith.index_cast %c6_i32 : i32 to index
    %c0_52 = arith.constant 0 : index
    %c0_53 = arith.constant 0 : index
    %204 = vector.load %arg2[%203, %c0_52, %c0_53] : memref<8x16x2048xbf16, #tpu.memory_space<vmem>>, vector<1x16x2048xbf16>
    %205 = vector.shape_cast %204 : vector<1x16x2048xbf16> to vector<16x2048xbf16>
    %206 = arith.extf %205 : vector<16x2048xbf16> to vector<16x2048xf32>
    %207 = arith.truncf %202 : vector<16x512xf32> to vector<16x512xbf16>
    %c0_54 = arith.constant 0 : index
    %c0_55 = arith.constant 0 : index
    %208 = vector.load %arg3[%c0_54, %c0_55] : memref<512x2048xbf16, #tpu.memory_space<vmem>>, vector<512x2048xbf16>
    %cst_56 = arith.constant dense<0.000000e+00> : vector<16x2048xf32>
    %209 = tpu.matmul %207, %208, %cst_56 {dimension_numbers = #tpu.dot_dimension_numbers<[1], [0], [0], [1], [0, 0, 1, 1], [], []>} : vector<16x512xbf16>, vector<512x2048xbf16>, vector<16x2048xf32> -> vector<16x2048xf32>
    %210 = arith.addf %206, %209 : vector<16x2048xf32>
    %211 = vector.extract_strided_slice %210 {offsets = [0, 0], sizes = [16, 512], strides = [1, 1]} : vector<16x2048xf32> to vector<16x512xf32>
    %212 = arith.negf %211 : vector<16x512xf32>
    %213 = math.exp %212 : vector<16x512xf32>
    %cst_57 = arith.constant 1.000000e+00 : f32
    %214 = vector.broadcast %cst_57 : f32 to vector<16x512xf32>
    %215 = arith.addf %214, %213 : vector<16x512xf32>
    %216 = arith.divf %214, %215 : vector<16x512xf32>
    %217 = vector.extract_strided_slice %210 {offsets = [0, 512], sizes = [16, 512], strides = [1, 1]} : vector<16x2048xf32> to vector<16x512xf32>
    %218 = arith.negf %217 : vector<16x512xf32>
    %219 = math.exp %218 : vector<16x512xf32>
    %cst_58 = arith.constant 1.000000e+00 : f32
    %220 = vector.broadcast %cst_58 : f32 to vector<16x512xf32>
    %221 = arith.addf %220, %219 : vector<16x512xf32>
    %222 = arith.divf %220, %221 : vector<16x512xf32>
    %223 = vector.extract_strided_slice %210 {offsets = [0, 1024], sizes = [16, 512], strides = [1, 1]} : vector<16x2048xf32> to vector<16x512xf32>
    %224 = math.tanh %223 : vector<16x512xf32>
    %225 = vector.extract_strided_slice %210 {offsets = [0, 1536], sizes = [16, 512], strides = [1, 1]} : vector<16x2048xf32> to vector<16x512xf32>
    %226 = arith.negf %225 : vector<16x512xf32>
    %227 = math.exp %226 : vector<16x512xf32>
    %cst_59 = arith.constant 1.000000e+00 : f32
    %228 = vector.broadcast %cst_59 : f32 to vector<16x512xf32>
    %229 = arith.addf %228, %227 : vector<16x512xf32>
    %230 = arith.divf %228, %229 : vector<16x512xf32>
    %231 = arith.mulf %222, %200 : vector<16x512xf32>
    %232 = arith.mulf %216, %224 : vector<16x512xf32>
    %233 = arith.addf %231, %232 : vector<16x512xf32>
    %234 = math.tanh %233 : vector<16x512xf32>
    %235 = arith.mulf %230, %234 : vector<16x512xf32>
    %c7_i32 = arith.constant 7 : i32
    %236 = arith.index_cast %c7_i32 : i32 to index
    %c0_60 = arith.constant 0 : index
    %c0_61 = arith.constant 0 : index
    %237 = vector.load %arg2[%236, %c0_60, %c0_61] : memref<8x16x2048xbf16, #tpu.memory_space<vmem>>, vector<1x16x2048xbf16>
    %238 = vector.shape_cast %237 : vector<1x16x2048xbf16> to vector<16x2048xbf16>
    %239 = arith.extf %238 : vector<16x2048xbf16> to vector<16x2048xf32>
    %240 = arith.truncf %235 : vector<16x512xf32> to vector<16x512xbf16>
    %c0_62 = arith.constant 0 : index
    %c0_63 = arith.constant 0 : index
    %241 = vector.load %arg3[%c0_62, %c0_63] : memref<512x2048xbf16, #tpu.memory_space<vmem>>, vector<512x2048xbf16>
    %cst_64 = arith.constant dense<0.000000e+00> : vector<16x2048xf32>
    %242 = tpu.matmul %240, %241, %cst_64 {dimension_numbers = #tpu.dot_dimension_numbers<[1], [0], [0], [1], [0, 0, 1, 1], [], []>} : vector<16x512xbf16>, vector<512x2048xbf16>, vector<16x2048xf32> -> vector<16x2048xf32>
    %243 = arith.addf %239, %242 : vector<16x2048xf32>
    %244 = vector.extract_strided_slice %243 {offsets = [0, 0], sizes = [16, 512], strides = [1, 1]} : vector<16x2048xf32> to vector<16x512xf32>
    %245 = arith.negf %244 : vector<16x512xf32>
    %246 = math.exp %245 : vector<16x512xf32>
    %cst_65 = arith.constant 1.000000e+00 : f32
    %247 = vector.broadcast %cst_65 : f32 to vector<16x512xf32>
    %248 = arith.addf %247, %246 : vector<16x512xf32>
    %249 = arith.divf %247, %248 : vector<16x512xf32>
    %250 = vector.extract_strided_slice %243 {offsets = [0, 512], sizes = [16, 512], strides = [1, 1]} : vector<16x2048xf32> to vector<16x512xf32>
    %251 = arith.negf %250 : vector<16x512xf32>
    %252 = math.exp %251 : vector<16x512xf32>
    %cst_66 = arith.constant 1.000000e+00 : f32
    %253 = vector.broadcast %cst_66 : f32 to vector<16x512xf32>
    %254 = arith.addf %253, %252 : vector<16x512xf32>
    %255 = arith.divf %253, %254 : vector<16x512xf32>
    %256 = vector.extract_strided_slice %243 {offsets = [0, 1024], sizes = [16, 512], strides = [1, 1]} : vector<16x2048xf32> to vector<16x512xf32>
    %257 = math.tanh %256 : vector<16x512xf32>
    %258 = vector.extract_strided_slice %243 {offsets = [0, 1536], sizes = [16, 512], strides = [1, 1]} : vector<16x2048xf32> to vector<16x512xf32>
    %259 = arith.negf %258 : vector<16x512xf32>
    %260 = math.exp %259 : vector<16x512xf32>
    %cst_67 = arith.constant 1.000000e+00 : f32
    %261 = vector.broadcast %cst_67 : f32 to vector<16x512xf32>
    %262 = arith.addf %261, %260 : vector<16x512xf32>
    %263 = arith.divf %261, %262 : vector<16x512xf32>
    %264 = arith.mulf %255, %233 : vector<16x512xf32>
    %265 = arith.mulf %249, %257 : vector<16x512xf32>
    %266 = arith.addf %264, %265 : vector<16x512xf32>
    %267 = math.tanh %266 : vector<16x512xf32>
    %268 = arith.mulf %263, %267 : vector<16x512xf32>
    %c8_i32 = arith.constant 8 : i32
    %c0_68 = arith.constant 0 : index
    %c0_69 = arith.constant 0 : index
    %269 = vector.load %arg7[%c0_68, %c0_69] : memref<16x512xf32, #tpu.memory_space<vmem>>, vector<16x512xf32>
    tpu.vector_store %arg7[%c0_68, %c0_69], %268 {strides = array<i32>} : memref<16x512xf32, #tpu.memory_space<vmem>>, vector<16x512xf32>,
    %c0_70 = arith.constant 0 : index
    %c0_71 = arith.constant 0 : index
    %270 = vector.load %arg8[%c0_70, %c0_71] : memref<16x512xf32, #tpu.memory_space<vmem>>, vector<16x512xf32>
    tpu.vector_store %arg8[%c0_70, %c0_71], %266 {strides = array<i32>} : memref<16x512xf32, #tpu.memory_space<vmem>>, vector<16x512xf32>,
    %c0_i32_72 = arith.constant 0 : i32
    %271 = arith.cmpi eq, %arg1, %c0_i32_72 : i32
    %272 = arith.extui %271 : i1 to i32
    %c0_i32_73 = arith.constant 0 : i32
    %273 = arith.cmpi ne, %272, %c0_i32_73 : i32
    scf.if %273 {
      %274 = arith.truncf %268 : vector<16x512xf32> to vector<16x512xbf16>
      %c0_74 = arith.constant 0 : index
      %c0_75 = arith.constant 0 : index
      %275 = vector.load %arg4[%c0_74, %c0_75] : memref<512x384xbf16, #tpu.memory_space<vmem>>, vector<512x384xbf16>
      %cst_76 = arith.constant dense<0.000000e+00> : vector<16x384xf32>
      %276 = tpu.matmul %274, %275, %cst_76 {dimension_numbers = #tpu.dot_dimension_numbers<[1], [0], [0], [1], [0, 0, 1, 1], [], []>} : vector<16x512xbf16>, vector<512x384xbf16>, vector<16x384xf32> -> vector<16x384xf32>
      %c0_77 = arith.constant 0 : index
      %c0_78 = arith.constant 0 : index
      %277 = vector.load %arg5[%c0_77, %c0_78] : memref<1x384xf32, #tpu.memory_space<vmem>>, vector<1x384xf32>
      %278 = vector.broadcast %277 : vector<1x384xf32> to vector<16x384xf32>
      %279 = arith.addf %276, %278 : vector<16x384xf32>
      %c0_79 = arith.constant 0 : index
      %c0_80 = arith.constant 0 : index
      %280 = vector.load %arg6[%c0_79, %c0_80] : memref<16x384xf32, #tpu.memory_space<vmem>>, vector<16x384xf32>
      tpu.vector_store %arg6[%c0_79, %c0_80], %279 {strides = array<i32>} : memref<16x384xf32, #tpu.memory_space<vmem>>, vector<16x384xf32>,
    } else {
    }
    return
  }
  func.func @transform_0(%arg0: i32, %arg1: i32) -> (i32, i32, i32) {
    %c0_i32 = arith.constant 0 : i32
    %c0_i32_0 = arith.constant 0 : i32
    return %arg1, %arg0, %c0_i32 : i32, i32, i32
  }
  func.func @transform_1(%arg0: i32, %arg1: i32) -> (i32, i32) {
    %c0_i32 = arith.constant 0 : i32
    %c0_i32_0 = arith.constant 0 : i32
    %c0_i32_1 = arith.constant 0 : i32
    return %c0_i32, %c0_i32_0 : i32, i32
  }
  func.func @transform_2(%arg0: i32, %arg1: i32) -> (i32, i32) {
    %c0_i32 = arith.constant 0 : i32
    %c0_i32_0 = arith.constant 0 : i32
    %c0_i32_1 = arith.constant 0 : i32
    return %c0_i32, %c0_i32_0 : i32, i32
  }
  func.func @transform_3(%arg0: i32, %arg1: i32) -> (i32, i32) {
    %c0_i32 = arith.constant 0 : i32
    %c0_i32_0 = arith.constant 0 : i32
    %c0_i32_1 = arith.constant 0 : i32
    return %c0_i32, %c0_i32_0 : i32, i32
  }
  func.func @transform_4(%arg0: i32, %arg1: i32) -> (i32, i32) {
    %c0_i32 = arith.constant 0 : i32
    %c0_i32_0 = arith.constant 0 : i32
    return %arg0, %c0_i32 : i32, i32
  }
}

</mosaic_0001>

<llo_original>
// kernel: tpu_custom_call.1
$region0: #{tpu_custom_call.1}
  #allocation0 [shape = 'u32[]', space=smem, size = 0x4, offset = 0x4, fixed_abs, tag = 'smem constant byte address 0x4 - core index']
  #allocation1 [shape = 'u32[144,128]{1,0:T(1,128)}', space=vmem, size = 0x12000, scoped, tag = 'internal scratch']
  #allocation2 [shape = 'f32[16,512]{1,0:T(8,128)}', space=vmem, size = 0x8000, scoped, tag = 'scratch operand']
  #allocation3 [shape = 'f32[16,512]{1,0:T(8,128)}', space=vmem, size = 0x8000, scoped, tag = 'scratch operand']
  %s0 = inlined_call_operand.hbm [shape: bf16[8,16,2048], index: 0, kind: input, shape index: {}]
  %s1 = inlined_call_operand.hbm [shape: bf16[512,2048], index: 1, kind: input, shape index: {}]
  %s2 = inlined_call_operand.hbm [shape: bf16[512,384], index: 2, kind: input, shape index: {}]
  %s3 = inlined_call_operand.hbm [shape: f32[1,384], index: 3, kind: input, shape index: {}]
  %s4 = inlined_call_operand.hbm [shape: f32[16,384], index: 4, kind: output, shape index: {}]
  %s5 = sld [smem:[#allocation0]]
  $region50: #{tpu_custom_call.1} parent=0
    _
  %s7 = ssub.s32 1, %s5
  %s8 = scalar_select 0, %s7, %s5
  $region1: #{tpu_custom_call.1} parent=0
    #allocation4 [shape = 'u8[524288]{0}', space=vmem, size = 0x80000, scoped, tag = 'input window, operand 0, single buffered']
    #allocation5 [shape = 's32[1]{0}', space=sflag, size = 0x4, scoped, tag = 'scoped memory for tpu_custom_call.1']
    #allocation6 [shape = 's32[1]{0}', space=sflag, size = 0x4, scoped, tag = 'scoped memory for tpu_custom_call.1']
    #allocation7 [shape = 'u8[2097152]{0}', space=vmem, size = 0x200000, scoped, tag = 'input window, operand 1, single buffered']
    #allocation8 [shape = 's32[1]{0}', space=sflag, size = 0x4, scoped, tag = 'scoped memory for tpu_custom_call.1']
    #allocation9 [shape = 'u8[393216]{0}', space=vmem, size = 0x60000, scoped, tag = 'input window, operand 2, single buffered']
    #allocation10 [shape = 'u8[1536]{0}', space=vmem, size = 0x800, scoped, tag = 'input window, operand 3, single buffered']
    #allocation11 [shape = 's32[1]{0}', space=sflag, size = 0x4, scoped, tag = 'scoped memory for tpu_custom_call.1']
    #allocation12 [shape = 'u8[24576]{0}', space=vmem, size = 0x6000, scoped, tag = 'output window, operand 0, single buffered']
    %9 = vsyncpa [#allocation5], 0
    %10 = vsyncpa [#allocation8], 0
    %11 = vsyncpa [#allocation11], 0
    %12 = vsyncpa [#allocation6], 0
    // Predicated region
    $region2: #{tpu_custom_call.1} parent=1 // pred_check
      _
    $region3: #{tpu_custom_call.1} parent=1 // pred_check_branch
      %14 = sbr.rel (0) target = $region5
    $region4: #{tpu_custom_call.1} parent=1 // pred_region
      %s16 = ssub.s32 16384, 16384
      %17 = vsyncadd [#allocation5], %s16
      %s18 = sshll.u32 [#allocation4], 4
      %s19 = int_to_ptr.vmem [resolvable:$true] %s18
      %24 = dma.hbm_to_vmem [thread:$0]  %s0, 16384, %s19, [#allocation5], 1024, 1024, 64
    $region5: #{tpu_custom_call.1} parent=1 // pred_fallthru
      _
    // Predicated region
    $region6: #{tpu_custom_call.1} parent=1 // pred_check
      _
    $region7: #{tpu_custom_call.1} parent=1 // pred_check_branch
      %26 = sbr.rel (0) target = $region9
    $region8: #{tpu_custom_call.1} parent=1 // pred_region
      %s28 = ssub.s32 65536, 65536
      %29 = vsyncadd [#allocation8], %s28
      %s30 = sshll.u32 [#allocation7], 4
      %s31 = int_to_ptr.vmem [resolvable:$true] %s30
      %36 = dma.hbm_to_vmem [thread:$0]  %s1, 65536, %s31, [#allocation8], 1024, 1024, 64
    $region9: #{tpu_custom_call.1} parent=1 // pred_fallthru
      _
    // Predicated region
    $region10: #{tpu_custom_call.1} parent=1 // pred_check
      _
    $region11: #{tpu_custom_call.1} parent=1 // pred_check_branch
      %38 = sbr.rel (0) target = $region13
    $region12: #{tpu_custom_call.1} parent=1 // pred_region
      %s40 = ssub.s32 12288, 12288
      %41 = vsyncadd [#allocation8], %s40
      %s42 = sshll.u32 [#allocation9], 4
      %s43 = int_to_ptr.vmem [resolvable:$true] %s42
      %48 = dma.hbm_to_vmem [thread:$0]  %s2, 12288, %s43, [#allocation8], 192, 192, 12
    $region13: #{tpu_custom_call.1} parent=1 // pred_fallthru
      _
    // Predicated region
    $region14: #{tpu_custom_call.1} parent=1 // pred_check
      _
    $region15: #{tpu_custom_call.1} parent=1 // pred_check_branch
      %50 = sbr.rel (0) target = $region17
    $region16: #{tpu_custom_call.1} parent=1 // pred_region
      %s52 = ssub.s32 48, 48
      %53 = vsyncadd [#allocation11], %s52
      %s55 = sshll.u32 [#allocation10], 4
      %s56 = int_to_ptr.vmem [resolvable:$true] %s55
      %58 = dma.hbm_to_vmem [thread:$0]  %s3, 48, %s56, [#allocation11]
    $region17: #{tpu_custom_call.1} parent=1 // pred_fallthru
      _
    // Predicated region
    $region18: #{tpu_custom_call.1} parent=1 // pred_check
      _
    $region19: #{tpu_custom_call.1} parent=1 // pred_check_branch
      %60 = sbr.rel (0) target = $region21
    $region20: #{tpu_custom_call.1} parent=1 // pred_region
      %61 = dma.done [#allocation5], 16384
    $region21: #{tpu_custom_call.1} parent=1 // pred_fallthru
      _
    // Predicated region
    $region22: #{tpu_custom_call.1} parent=1 // pred_check
      _
    $region23: #{tpu_custom_call.1} parent=1 // pred_check_branch
      %63 = sbr.rel (0) target = $region25
    $region24: #{tpu_custom_call.1} parent=1 // pred_region
      %64 = dma.done [#allocation8], 65536
    $region25: #{tpu_custom_call.1} parent=1 // pred_fallthru
      _
    // Predicated region
    $region26: #{tpu_custom_call.1} parent=1 // pred_check
      _
    $region27: #{tpu_custom_call.1} parent=1 // pred_check_branch
      %66 = sbr.rel (0) target = $region29
    $region28: #{tpu_custom_call.1} parent=1 // pred_region
      %67 = dma.done [#allocation8], 12288
    $region29: #{tpu_custom_call.1} parent=1 // pred_fallthru
      _
    // Predicated region
    $region30: #{tpu_custom_call.1} parent=1 // pred_check
      _
    $region31: #{tpu_custom_call.1} parent=1 // pred_check_branch
      %69 = sbr.rel (0) target = $region33
    $region32: #{tpu_custom_call.1} parent=1 // pred_region
      %70 = dma.done [#allocation11], 48
    $region33: #{tpu_custom_call.1} parent=1 // pred_fallthru
      _
    %p72 = scmp.eq.s32.totalorder 0, 0
    // Predicated region
    $region34: #{tpu_custom_call.1} parent=1 // pred_check
      %p73 = pneg %p72
    $region35: #{tpu_custom_call.1} parent=1 // pred_check_branch
      %75 = sbr.rel (%p73) target = $region37
    $region36: #{tpu_custom_call.1} parent=1 // pred_region
      %76 = vst [vmem:[#allocation2] sm:$0xff] 0.0
      %77 = vst [vmem:[#allocation2 + $0x8] sm:$0xff] 0.0
      %78 = vst [vmem:[#allocation2 + $0x10] sm:$0xff] 0.0
      %79 = vst [vmem:[#allocation2 + $0x18] sm:$0xff] 0.0
      %80 = vst [vmem:[#allocation2 + $0x20] sm:$0xff] 0.0
      %81 = vst [vmem:[#allocation2 + $0x28] sm:$0xff] 0.0
      %82 = vst [vmem:[#allocation2 + $0x30] sm:$0xff] 0.0
      %83 = vst [vmem:[#allocation2 + $0x38] sm:$0xff] 0.0
      %84 = vst [vmem:[#allocation3] sm:$0xff] 0.0
      %85 = vst [vmem:[#allocation3 + $0x8] sm:$0xff] 0.0
      %86 = vst [vmem:[#allocation3 + $0x10] sm:$0xff] 0.0
      %87 = vst [vmem:[#allocation3 + $0x18] sm:$0xff] 0.0
      %88 = vst [vmem:[#allocation3 + $0x20] sm:$0xff] 0.0
      %89 = vst [vmem:[#allocation3 + $0x28] sm:$0xff] 0.0
      %90 = vst [vmem:[#allocation3 + $0x30] sm:$0xff] 0.0
      %91 = vst [vmem:[#allocation3 + $0x38] sm:$0xff] 0.0
    $region37: #{tpu_custom_call.1} parent=1 // pred_fallthru
      _
    %v92 = vld [vmem:[#allocation2] sm:$0xff]
    %v93 = vld [vmem:[#allocation2 + $0x8] sm:$0xff]
    %v94 = vld [vmem:[#allocation2 + $0x10] sm:$0xff]
    %v95 = vld [vmem:[#allocation2 + $0x18] sm:$0xff]
    %v96 = vld [vmem:[#allocation2 + $0x20] sm:$0xff]
    %v97 = vld [vmem:[#allocation2 + $0x28] sm:$0xff]
    %v98 = vld [vmem:[#allocation2 + $0x30] sm:$0xff]
    %v99 = vld [vmem:[#allocation2 + $0x38] sm:$0xff]
    %v100 = vld [vmem:[#allocation3] sm:$0xff]
    %v101 = vld [vmem:[#allocation3 + $0x8] sm:$0xff]
    %v102 = vld [vmem:[#allocation3 + $0x10] sm:$0xff]
    %v103 = vld [vmem:[#allocation3 + $0x18] sm:$0xff]
    %v104 = vld [vmem:[#allocation3 + $0x20] sm:$0xff]
    %v105 = vld [vmem:[#allocation3 + $0x28] sm:$0xff]
    %v106 = vld [vmem:[#allocation3 + $0x30] sm:$0xff]
    %v107 = vld [vmem:[#allocation3 + $0x38] sm:$0xff]
    %v108 = vld [vmem:[#allocation4] sm:$0xff]
    %v109 = vld [vmem:[#allocation4 + $0x8] sm:$0xff]
    %v110 = vld [vmem:[#allocation4 + $0x10] sm:$0xff]
    %v111 = vld [vmem:[#allocation4 + $0x18] sm:$0xff]
    %v112 = vld [vmem:[#allocation4 + $0x20] sm:$0xff]
    %v113 = vld [vmem:[#allocation4 + $0x28] sm:$0xff]
    %v114 = vld [vmem:[#allocation4 + $0x30] sm:$0xff]
    %v115 = vld [vmem:[#allocation4 + $0x38] sm:$0xff]
    %v116 = vld [vmem:[#allocation4 + $0x40] sm:$0xff]
    %v117 = vld [vmem:[#allocation4 + $0x48] sm:$0xff]
    %v118 = vld [vmem:[#allocation4 + $0x50] sm:$0xff]
    %v119 = vld [vmem:[#allocation4 + $0x58] sm:$0xff]
    %v120 = vld [vmem:[#allocation4 + $0x60] sm:$0xff]
    %v121 = vld [vmem:[#allocation4 + $0x68] sm:$0xff]
    %v122 = vld [vmem:[#allocation4 + $0x70] sm:$0xff]
    %v123 = vld [vmem:[#allocation4 + $0x78] sm:$0xff]
    %v124 = vunpack.c.l.bf16 %v108
    %v125 = vunpack.c.h.bf16 %v108
    %v126 = vunpack.c.l.bf16 %v109
    %v127 = vunpack.c.h.bf16 %v109
    %v128 = vunpack.c.l.bf16 %v110
    %v129 = vunpack.c.h.bf16 %v110
    %v130 = vunpack.c.l.bf16 %v111
    %v131 = vunpack.c.h.bf16 %v111
    %v132 = vunpack.c.l.bf16 %v112
    %v133 = vunpack.c.h.bf16 %v112
    %v134 = vunpack.c.l.bf16 %v113
    %v135 = vunpack.c.h.bf16 %v113
    %v136 = vunpack.c.l.bf16 %v114
    %v137 = vunpack.c.h.bf16 %v114
    %v138 = vunpack.c.l.bf16 %v115
    %v139 = vunpack.c.h.bf16 %v115
    %v140 = vunpack.c.l.bf16 %v116
    %v141 = vunpack.c.h.bf16 %v116
    %v142 = vunpack.c.l.bf16 %v117
    %v143 = vunpack.c.h.bf16 %v117
    %v144 = vunpack.c.l.bf16 %v118
    %v145 = vunpack.c.h.bf16 %v118
    %v146 = vunpack.c.l.bf16 %v119
    %v147 = vunpack.c.h.bf16 %v119
    %v148 = vunpack.c.l.bf16 %v120
    %v149 = vunpack.c.h.bf16 %v120
    %v150 = vunpack.c.l.bf16 %v121
    %v151 = vunpack.c.h.bf16 %v121
    %v152 = vunpack.c.l.bf16 %v122
    %v153 = vunpack.c.h.bf16 %v122
    %v154 = vunpack.c.l.bf16 %v123
    %v155 = vunpack.c.h.bf16 %v123
    %v156 = vpack.c.bf16 %v96, %v92
    %v157 = vpack.c.bf16 %v97, %v93
    %v158 = vpack.c.bf16 %v98, %v94
    %v159 = vpack.c.bf16 %v99, %v95
    %v160 = vld [vmem:[#allocation7] sm:$0xff]
    %v161 = vld [vmem:[#allocation7 + $0x8] sm:$0xff]
    %v162 = vld [vmem:[#allocation7 + $0x10] sm:$0xff]
    %v163 = vld [vmem:[#allocation7 + $0x18] sm:$0xff]
    %v164 = vld [vmem:[#allocation7 + $0x20] sm:$0xff]
    %v165 = vld [vmem:[#allocation7 + $0x28] sm:$0xff]
    %v166 = vld [vmem:[#allocation7 + $0x30] sm:$0xff]
    %v167 = vld [vmem:[#allocation7 + $0x38] sm:$0xff]
    %v168 = vld [vmem:[#allocation7 + $0x40] sm:$0xff]
    %v169 = vld [vmem:[#allocation7 + $0x48] sm:$0xff]
    %v170 = vld [vmem:[#allocation7 + $0x50] sm:$0xff]
    %v171 = vld [vmem:[#allocation7 + $0x58] sm:$0xff]
    %v172 = vld [vmem:[#allocation7 + $0x60] sm:$0xff]
    %v173 = vld [vmem:[#allocation7 + $0x68] sm:$0xff]
    %v174 = vld [vmem:[#allocation7 + $0x70] sm:$0xff]
    %v175 = vld [vmem:[#allocation7 + $0x78] sm:$0xff]
    %v176 = vld [vmem:[#allocation7 + $0x80] sm:$0xff]
    %v177 = vld [vmem:[#allocation7 + $0x88] sm:$0xff]
    %v178 = vld [vmem:[#allocation7 + $0x90] sm:$0xff]
    %v179 = vld [vmem:[#allocation7 + $0x98] sm:$0xff]
    %v180 = vld [vmem:[#allocation7 + $0xa0] sm:$0xff]
    %v181 = vld [vmem:[#allocation7 + $0xa8] sm:$0xff]
    %v182 = vld [vmem:[#allocation7 + $0xb0] sm:$0xff]
    %v183 = vld [vmem:[#allocation7 + $0xb8] sm:$0xff]
    %v184 = vld [vmem:[#allocation7 + $0xc0] sm:$0xff]
    %v185 = vld [vmem:[#allocation7 + $0xc8] sm:$0xff]
    %v186 = vld [vmem:[#allocation7 + $0xd0] sm:$0xff]
    %v187 = vld [vmem:[#allocation7 + $0xd8] sm:$0xff]
    %v188 = vld [vmem:[#allocation7 + $0xe0] sm:$0xff]
    %v189 = vld [vmem:[#allocation7 + $0xe8] sm:$0xff]
    %v190 = vld [vmem:[#allocation7 + $0xf0] sm:$0xff]
    %v191 = vld [vmem:[#allocation7 + $0xf8] sm:$0xff]
    %v192 = vld [vmem:[#allocation7 + $0x100] sm:$0xff]
    %v193 = vld [vmem:[#allocation7 + $0x108] sm:$0xff]
    %v194 = vld [vmem:[#allocation7 + $0x110] sm:$0xff]
    %v195 = vld [vmem:[#allocation7 + $0x118] sm:$0xff]
    %v196 = vld [vmem:[#allocation7 + $0x120] sm:$0xff]
    %v197 = vld [vmem:[#allocation7 + $0x128] sm:$0xff]
    %v198 = vld [vmem:[#allocation7 + $0x130] sm:$0xff]
    %v199 = vld [vmem:[#allocation7 + $0x138] sm:$0xff]
    %v200 = vld [vmem:[#allocation7 + $0x140] sm:$0xff]
    %v201 = vld [vmem:[#allocation7 + $0x148] sm:$0xff]
    %v202 = vld [vmem:[#allocation7 + $0x150] sm:$0xff]
    %v203 = vld [vmem:[#allocation7 + $0x158] sm:$0xff]
    %v204 = vld [vmem:[#allocation7 + $0x160] sm:$0xff]
    %v205 = vld [vmem:[#allocation7 + $0x168] sm:$0xff]
    %v206 = vld [vmem:[#allocation7 + $0x170] sm:$0xff]
    %v207 = vld [vmem:[#allocation7 + $0x178] sm:$0xff]
    %v208 = vld [vmem:[#allocation7 + $0x180] sm:$0xff]
    %v209 = vld [vmem:[#allocation7 + $0x188] sm:$0xff]
    %v210 = vld [vmem:[#allocation7 + $0x190] sm:$0xff]
    %v211 = vld [vmem:[#allocation7 + $0x198] sm:$0xff]
    %v212 = vld [vmem:[#allocation7 + $0x1a0] sm:$0xff]
    %v213 = vld [vmem:[#allocation7 + $0x1a8] sm:$0xff]
    %v214 = vld [vmem:[#allocation7 + $0x1b0] sm:$0xff]
    %v215 = vld [vmem:[#allocation7 + $0x1b8] sm:$0xff]
    %v216 = vld [vmem:[#allocation7 + $0x1c0] sm:$0xff]
    %v217 = vld [vmem:[#allocation7 + $0x1c8] sm:$0xff]
    %v218 = vld [vmem:[#allocation7 + $0x1d0] sm:$0xff]
    %v219 = vld [vmem:[#allocation7 + $0x1d8] sm:$0xff]
    %v220 = vld [vmem:[#allocation7 + $0x1e0] sm:$0xff]
    %v221 = vld [vmem:[#allocation7 + $0x1e8] sm:$0xff]
    %v222 = vld [vmem:[#allocation7 + $0x1f0] sm:$0xff]
    %v223 = vld [vmem:[#allocation7 + $0x1f8] sm:$0xff]
    %v224 = vld [vmem:[#allocation7 + $0x200] sm:$0xff]
    %v225 = vld [vmem:[#allocation7 + $0x208] sm:$0xff]
    %v226 = vld [vmem:[#allocation7 + $0x210] sm:$0xff]
    %v227 = vld [vmem:[#allocation7 + $0x218] sm:$0xff]
    %v228 = vld [vmem:[#allocation7 + $0x220] sm:$0xff]
    %v229 = vld [vmem:[#allocation7 + $0x228] sm:$0xff]
    %v230 = vld [vmem:[#allocation7 + $0x230] sm:$0xff]
    %v231 = vld [vmem:[#allocation7 + $0x238] sm:$0xff]
    %v232 = vld [vmem:[#allocation7 + $0x240] sm:$0xff]
    %v233 = vld [vmem:[#allocation7 + $0x248] sm:$0xff]
    %v234 = vld [vmem:[#allocation7 + $0x250] sm:$0xff]
    %v235 = vld [vmem:[#allocation7 + $0x258] sm:$0xff]
    %v236 = vld [vmem:[#allocation7 + $0x260] sm:$0xff]
    %v237 = vld [vmem:[#allocation7 + $0x268] sm:$0xff]
    %v238 = vld [vmem:[#allocation7 + $0x270] sm:$0xff]
    %v239 = vld [vmem:[#allocation7 + $0x278] sm:$0xff]
    %v240 = vld [vmem:[#allocation7 + $0x280] sm:$0xff]
    %v241 = vld [vmem:[#allocation7 + $0x288] sm:$0xff]
    %v242 = vld [vmem:[#allocation7 + $0x290] sm:$0xff]
    %v243 = vld [vmem:[#allocation7 + $0x298] sm:$0xff]
    %v244 = vld [vmem:[#allocation7 + $0x2a0] sm:$0xff]
    %v245 = vld [vmem:[#allocation7 + $0x2a8] sm:$0xff]
    %v246 = vld [vmem:[#allocation7 + $0x2b0] sm:$0xff]
    %v247 = vld [vmem:[#allocation7 + $0x2b8] sm:$0xff]
    %v248 = vld [vmem:[#allocation7 + $0x2c0] sm:$0xff]
    %v249 = vld [vmem:[#allocation7 + $0x2c8] sm:$0xff]
    %v250 = vld [vmem:[#allocation7 + $0x2d0] sm:$0xff]
    %v251 = vld [vmem:[#allocation7 + $0x2d8] sm:$0xff]
    %v252 = vld [vmem:[#allocation7 + $0x2e0] sm:$0xff]
    %v253 = vld [vmem:[#allocation7 + $0x2e8] sm:$0xff]
    %v254 = vld [vmem:[#allocation7 + $0x2f0] sm:$0xff]
    %v255 = vld [vmem:[#allocation7 + $0x2f8] sm:$0xff]
    %v256 = vld [vmem:[#allocation7 + $0x300] sm:$0xff]
    %v257 = vld [vmem:[#allocation7 + $0x308] sm:$0xff]
    %v258 = vld [vmem:[#allocation7 + $0x310] sm:$0xff]
    %v259 = vld [vmem:[#allocation7 + $0x318] sm:$0xff]
    %v260 = vld [vmem:[#allocation7 + $0x320] sm:$0xff]
    %v261 = vld [vmem:[#allocation7 + $0x328] sm:$0xff]
    %v262 = vld [vmem:[#allocation7 + $0x330] sm:$0xff]
    %v263 = vld [vmem:[#allocation7 + $0x338] sm:$0xff]
    %v264 = vld [vmem:[#allocation7 + $0x340] sm:$0xff]
    %v265 = vld [vmem:[#allocation7 + $0x348] sm:$0xff]
    %v266 = vld [vmem:[#allocation7 + $0x350] sm:$0xff]
    %v267 = vld [vmem:[#allocation7 + $0x358] sm:$0xff]
    %v268 = vld [vmem:[#allocation7 + $0x360] sm:$0xff]
    %v269 = vld [vmem:[#allocation7 + $0x368] sm:$0xff]
    %v270 = vld [vmem:[#allocation7 + $0x370] sm:$0xff]
    %v271 = vld [vmem:[#allocation7 + $0x378] sm:$0xff]
    %v272 = vld [vmem:[#allocation7 + $0x380] sm:$0xff]
    %v273 = vld [vmem:[#allocation7 + $0x388] sm:$0xff]
    %v274 = vld [vmem:[#allocation7 + $0x390] sm:$0xff]
    %v275 = vld [vmem:[#allocation7 + $0x398] sm:$0xff]
    %v276 = vld [vmem:[#allocation7 + $0x3a0] sm:$0xff]
    %v277 = vld [vmem:[#allocation7 + $0x3a8] sm:$0xff]
    %v278 = vld [vmem:[#allocation7 + $0x3b0] sm:$0xff]
    %v279 = vld [vmem:[#allocation7 + $0x3b8] sm:$0xff]
    %v280 = vld [vmem:[#allocation7 + $0x3c0] sm:$0xff]
    %v281 = vld [vmem:[#allocation7 + $0x3c8] sm:$0xff]
    %v282 = vld [vmem:[#allocation7 + $0x3d0] sm:$0xff]
    %v283 = vld [vmem:[#allocation7 + $0x3d8] sm:$0xff]
    %v284 = vld [vmem:[#allocation7 + $0x3e0] sm:$0xff]
    %v285 = vld [vmem:[#allocation7 + $0x3e8] sm:$0xff]
    %v286 = vld [vmem:[#allocation7 + $0x3f0] sm:$0xff]
    %v287 = vld [vmem:[#allocation7 + $0x3f8] sm:$0xff]
    %v288 = vld [vmem:[#allocation7 + $0x400] sm:$0xff]
    %v289 = vld [vmem:[#allocation7 + $0x408] sm:$0xff]
    %v290 = vld [vmem:[#allocation7 + $0x410] sm:$0xff]
    %v291 = vld [vmem:[#allocation7 + $0x418] sm:$0xff]
    %v292 = vld [vmem:[#allocation7 + $0x420] sm:$0xff]
    %v293 = vld [vmem:[#allocation7 + $0x428] sm:$0xff]
    %v294 = vld [vmem:[#allocation7 + $0x430] sm:$0xff]
    %v295 = vld [vmem:[#allocation7 + $0x438] sm:$0xff]
    %v296 = vld [vmem:[#allocation7 + $0x440] sm:$0xff]
    %v297 = vld [vmem:[#allocation7 + $0x448] sm:$0xff]
    %v298 = vld [vmem:[#allocation7 + $0x450] sm:$0xff]
    %v299 = vld [vmem:[#allocation7 + $0x458] sm:$0xff]
    %v300 = vld [vmem:[#allocation7 + $0x460] sm:$0xff]
    %v301 = vld [vmem:[#allocation7 + $0x468] sm:$0xff]
    %v302 = vld [vmem:[#allocation7 + $0x470] sm:$0xff]
    %v303 = vld [vmem:[#allocation7 + $0x478] sm:$0xff]
    %v304 = vld [vmem:[#allocation7 + $0x480] sm:$0xff]
    %v305 = vld [vmem:[#allocation7 + $0x488] sm:$0xff]
    %v306 = vld [vmem:[#allocation7 + $0x490] sm:$0xff]
    %v307 = vld [vmem:[#allocation7 + $0x498] sm:$0xff]
    %v308 = vld [vmem:[#allocation7 + $0x4a0] sm:$0xff]
    %v309 = vld [vmem:[#allocation7 + $0x4a8] sm:$0xff]
    %v310 = vld [vmem:[#allocation7 + $0x4b0] sm:$0xff]
    %v311 = vld [vmem:[#allocation7 + $0x4b8] sm:$0xff]
    %v312 = vld [vmem:[#allocation7 + $0x4c0] sm:$0xff]
    %v313 = vld [vmem:[#allocation7 + $0x4c8] sm:$0xff]
    %v314 = vld [vmem:[#allocation7 + $0x4d0] sm:$0xff]
    %v315 = vld [vmem:[#allocation7 + $0x4d8] sm:$0xff]
    %v316 = vld [vmem:[#allocation7 + $0x4e0] sm:$0xff]
    %v317 = vld [vmem:[#allocation7 + $0x4e8] sm:$0xff]
    %v318 = vld [vmem:[#allocation7 + $0x4f0] sm:$0xff]
    %v319 = vld [vmem:[#allocation7 + $0x4f8] sm:$0xff]
    %v320 = vld [vmem:[#allocation7 + $0x500] sm:$0xff]
    %v321 = vld [vmem:[#allocation7 + $0x508] sm:$0xff]
    %v322 = vld [vmem:[#allocation7 + $0x510] sm:$0xff]
    %v323 = vld [vmem:[#allocation7 + $0x518] sm:$0xff]
    %v324 = vld [vmem:[#allocation7 + $0x520] sm:$0xff]
    %v325 = vld [vmem:[#allocation7 + $0x528] sm:$0xff]
    %v326 = vld [vmem:[#allocation7 + $0x530] sm:$0xff]
    %v327 = vld [vmem:[#allocation7 + $0x538] sm:$0xff]
    %v328 = vld [vmem:[#allocation7 + $0x540] sm:$0xff]
    %v329 = vld [vmem:[#allocation7 + $0x548] sm:$0xff]
    %v330 = vld [vmem:[#allocation7 + $0x550] sm:$0xff]
    %v331 = vld [vmem:[#allocation7 + $0x558] sm:$0xff]
    %v332 = vld [vmem:[#allocation7 + $0x560] sm:$0xff]
    %v333 = vld [vmem:[#allocation7 + $0x568] sm:$0xff]
    %v334 = vld [vmem:[#allocation7 + $0x570] sm:$0xff]
    %v335 = vld [vmem:[#allocation7 + $0x578] sm:$0xff]
    %v336 = vld [vmem:[#allocation7 + $0x580] sm:$0xff]
    %v337 = vld [vmem:[#allocation7 + $0x588] sm:$0xff]
    %v338 = vld [vmem:[#allocation7 + $0x590] sm:$0xff]
    %v339 = vld [vmem:[#allocation7 + $0x598] sm:$0xff]
    %v340 = vld [vmem:[#allocation7 + $0x5a0] sm:$0xff]
    %v341 = vld [vmem:[#allocation7 + $0x5a8] sm:$0xff]
    %v342 = vld [vmem:[#allocation7 + $0x5b0] sm:$0xff]
    %v343 = vld [vmem:[#allocation7 + $0x5b8] sm:$0xff]
    %v344 = vld [vmem:[#allocation7 + $0x5c0] sm:$0xff]
    %v345 = vld [vmem:[#allocation7 + $0x5c8] sm:$0xff]
    %v346 = vld [vmem:[#allocation7 + $0x5d0] sm:$0xff]
    %v347 = vld [vmem:[#allocation7 + $0x5d8] sm:$0xff]
    %v348 = vld [vmem:[#allocation7 + $0x5e0] sm:$0xff]
    %v349 = vld [vmem:[#allocation7 + $0x5e8] sm:$0xff]
    %v350 = vld [vmem:[#allocation7 + $0x5f0] sm:$0xff]
    %v351 = vld [vmem:[#allocation7 + $0x5f8] sm:$0xff]
    %v352 = vld [vmem:[#allocation7 + $0x600] sm:$0xff]
    %v353 = vld [vmem:[#allocation7 + $0x608] sm:$0xff]
    %v354 = vld [vmem:[#allocation7 + $0x610] sm:$0xff]
    %v355 = vld [vmem:[#allocation7 + $0x618] sm:$0xff]
    %v356 = vld [vmem:[#allocation7 + $0x620] sm:$0xff]
    %v357 = vld [vmem:[#allocation7 + $0x628] sm:$0xff]
    %v358 = vld [vmem:[#allocation7 + $0x630] sm:$0xff]
    %v359 = vld [vmem:[#allocation7 + $0x638] sm:$0xff]
    %v360 = vld [vmem:[#allocation7 + $0x640] sm:$0xff]
    %v361 = vld [vmem:[#allocation7 + $0x648] sm:$0xff]
    %v362 = vld [vmem:[#allocation7 + $0x650] sm:$0xff]
    %v363 = vld [vmem:[#allocation7 + $0x658] sm:$0xff]
    %v364 = vld [vmem:[#allocation7 + $0x660] sm:$0xff]
    %v365 = vld [vmem:[#allocation7 + $0x668] sm:$0xff]
    %v366 = vld [vmem:[#allocation7 + $0x670] sm:$0xff]
    %v367 = vld [vmem:[#allocation7 + $0x678] sm:$0xff]
    %v368 = vld [vmem:[#allocation7 + $0x680] sm:$0xff]
    %v369 = vld [vmem:[#allocation7 + $0x688] sm:$0xff]
    %v370 = vld [vmem:[#allocation7 + $0x690] sm:$0xff]
    %v371 = vld [vmem:[#allocation7 + $0x698] sm:$0xff]
    %v372 = vld [vmem:[#allocation7 + $0x6a0] sm:$0xff]
    %v373 = vld [vmem:[#allocation7 + $0x6a8] sm:$0xff]
    %v374 = vld [vmem:[#allocation7 + $0x6b0] sm:$0xff]
    %v375 = vld [vmem:[#allocation7 + $0x6b8] sm:$0xff]
    %v376 = vld [vmem:[#allocation7 + $0x6c0] sm:$0xff]
    %v377 = vld [vmem:[#allocation7 + $0x6c8] sm:$0xff]
    %v378 = vld [vmem:[#allocation7 + $0x6d0] sm:$0xff]
    %v379 = vld [vmem:[#allocation7 + $0x6d8] sm:$0xff]
    %v380 = vld [vmem:[#allocation7 + $0x6e0] sm:$0xff]
    %v381 = vld [vmem:[#allocation7 + $0x6e8] sm:$0xff]
    %v382 = vld [vmem:[#allocation7 + $0x6f0] sm:$0xff]
    %v383 = vld [vmem:[#allocation7 + $0x6f8] sm:$0xff]
    %v384 = vld [vmem:[#allocation7 + $0x700] sm:$0xff]
    %v385 = vld [vmem:[#allocation7 + $0x708] sm:$0xff]
    %v386 = vld [vmem:[#allocation7 + $0x710] sm:$0xff]
    %v387 = vld [vmem:[#allocation7 + $0x718] sm:$0xff]
    %v388 = vld [vmem:[#allocation7 + $0x720] sm:$0xff]
    %v389 = vld [vmem:[#allocation7 + $0x728] sm:$0xff]
    %v390 = vld [vmem:[#allocation7 + $0x730] sm:$0xff]
    %v391 = vld [vmem:[#allocation7 + $0x738] sm:$0xff]
    %v392 = vld [vmem:[#allocation7 + $0x740] sm:$0xff]
    %v393 = vld [vmem:[#allocation7 + $0x748] sm:$0xff]
    %v394 = vld [vmem:[#allocation7 + $0x750] sm:$0xff]
    %v395 = vld [vmem:[#allocation7 + $0x758] sm:$0xff]
    %v396 = vld [vmem:[#allocation7 + $0x760] sm:$0xff]
    %v397 = vld [vmem:[#allocation7 + $0x768] sm:$0xff]
    %v398 = vld [vmem:[#allocation7 + $0x770] sm:$0xff]
    %v399 = vld [vmem:[#allocation7 + $0x778] sm:$0xff]
    %v400 = vld [vmem:[#allocation7 + $0x780] sm:$0xff]
    %v401 = vld [vmem:[#allocation7 + $0x788] sm:$0xff]
    %v402 = vld [vmem:[#allocation7 + $0x790] sm:$0xff]
    %v403 = vld [vmem:[#allocation7 + $0x798] sm:$0xff]
    %v404 = vld [vmem:[#allocation7 + $0x7a0] sm:$0xff]
    %v405 = vld [vmem:[#allocation7 + $0x7a8] sm:$0xff]
    %v406 = vld [vmem:[#allocation7 + $0x7b0] sm:$0xff]
    %v407 = vld [vmem:[#allocation7 + $0x7b8] sm:$0xff]
    %v408 = vld [vmem:[#allocation7 + $0x7c0] sm:$0xff]
    %v409 = vld [vmem:[#allocation7 + $0x7c8] sm:$0xff]
    %v410 = vld [vmem:[#allocation7 + $0x7d0] sm:$0xff]
    %v411 = vld [vmem:[#allocation7 + $0x7d8] sm:$0xff]
    %v412 = vld [vmem:[#allocation7 + $0x7e0] sm:$0xff]
    %v413 = vld [vmem:[#allocation7 + $0x7e8] sm:$0xff]
    %v414 = vld [vmem:[#allocation7 + $0x7f0] sm:$0xff]
    %v415 = vld [vmem:[#allocation7 + $0x7f8] sm:$0xff]
    %v416 = vld [vmem:[#allocation7 + $0x800] sm:$0xff]
    %v417 = vld [vmem:[#allocation7 + $0x808] sm:$0xff]
    %v418 = vld [vmem:[#allocation7 + $0x810] sm:$0xff]
    %v419 = vld [vmem:[#allocation7 + $0x818] sm:$0xff]
    %v420 = vld [vmem:[#allocation7 + $0x820] sm:$0xff]
    %v421 = vld [vmem:[#allocation7 + $0x828] sm:$0xff]
    %v422 = vld [vmem:[#allocation7 + $0x830] sm:$0xff]
    %v423 = vld [vmem:[#allocation7 + $0x838] sm:$0xff]
    %v424 = vld [vmem:[#allocation7 + $0x840] sm:$0xff]
    %v425 = vld [vmem:[#allocation7 + $0x848] sm:$0xff]
    %v426 = vld [vmem:[#allocation7 + $0x850] sm:$0xff]
    %v427 = vld [vmem:[#allocation7 + $0x858] sm:$0xff]
    %v428 = vld [vmem:[#allocation7 + $0x860] sm:$0xff]
    %v429 = vld [vmem:[#allocation7 + $0x868] sm:$0xff]
    %v430 = vld [vmem:[#allocation7 + $0x870] sm:$0xff]
    %v431 = vld [vmem:[#allocation7 + $0x878] sm:$0xff]
    %v432 = vld [vmem:[#allocation7 + $0x880] sm:$0xff]
    %v433 = vld [vmem:[#allocation7 + $0x888] sm:$0xff]
    %v434 = vld [vmem:[#allocation7 + $0x890] sm:$0xff]
    %v435 = vld [vmem:[#allocation7 + $0x898] sm:$0xff]
    %v436 = vld [vmem:[#allocation7 + $0x8a0] sm:$0xff]
    %v437 = vld [vmem:[#allocation7 + $0x8a8] sm:$0xff]
    %v438 = vld [vmem:[#allocation7 + $0x8b0] sm:$0xff]
    %v439 = vld [vmem:[#allocation7 + $0x8b8] sm:$0xff]
    %v440 = vld [vmem:[#allocation7 + $0x8c0] sm:$0xff]
    %v441 = vld [vmem:[#allocation7 + $0x8c8] sm:$0xff]
    %v442 = vld [vmem:[#allocation7 + $0x8d0] sm:$0xff]
    %v443 = vld [vmem:[#allocation7 + $0x8d8] sm:$0xff]
    %v444 = vld [vmem:[#allocation7 + $0x8e0] sm:$0xff]
    %v445 = vld [vmem:[#allocation7 + $0x8e8] sm:$0xff]
    %v446 = vld [vmem:[#allocation7 + $0x8f0] sm:$0xff]
    %v447 = vld [vmem:[#allocation7 + $0x8f8] sm:$0xff]
    %v448 = vld [vmem:[#allocation7 + $0x900] sm:$0xff]
    %v449 = vld [vmem:[#allocation7 + $0x908] sm:$0xff]
    %v450 = vld [vmem:[#allocation7 + $0x910] sm:$0xff]
    %v451 = vld [vmem:[#allocation7 + $0x918] sm:$0xff]
    %v452 = vld [vmem:[#allocation7 + $0x920] sm:$0xff]
    %v453 = vld [vmem:[#allocation7 + $0x928] sm:$0xff]
    %v454 = vld [vmem:[#allocation7 + $0x930] sm:$0xff]
    %v455 = vld [vmem:[#allocation7 + $0x938] sm:$0xff]
    %v456 = vld [vmem:[#allocation7 + $0x940] sm:$0xff]
    %v457 = vld [vmem:[#allocation7 + $0x948] sm:$0xff]
    %v458 = vld [vmem:[#allocation7 + $0x950] sm:$0xff]
    %v459 = vld [vmem:[#allocation7 + $0x958] sm:$0xff]
    %v460 = vld [vmem:[#allocation7 + $0x960] sm:$0xff]
    %v461 = vld [vmem:[#allocation7 + $0x968] sm:$0xff]
    %v462 = vld [vmem:[#allocation7 + $0x970] sm:$0xff]
    %v463 = vld [vmem:[#allocation7 + $0x978] sm:$0xff]
    %v464 = vld [vmem:[#allocation7 + $0x980] sm:$0xff]
    %v465 = vld [vmem:[#allocation7 + $0x988] sm:$0xff]
    %v466 = vld [vmem:[#allocation7 + $0x990] sm:$0xff]
    %v467 = vld [vmem:[#allocation7 + $0x998] sm:$0xff]
    %v468 = vld [vmem:[#allocation7 + $0x9a0] sm:$0xff]
    %v469 = vld [vmem:[#allocation7 + $0x9a8] sm:$0xff]
    %v470 = vld [vmem:[#allocation7 + $0x9b0] sm:$0xff]
    %v471 = vld [vmem:[#allocation7 + $0x9b8] sm:$0xff]
    %v472 = vld [vmem:[#allocation7 + $0x9c0] sm:$0xff]
    %v473 = vld [vmem:[#allocation7 + $0x9c8] sm:$0xff]
    %v474 = vld [vmem:[#allocation7 + $0x9d0] sm:$0xff]
    %v475 = vld [vmem:[#allocation7 + $0x9d8] sm:$0xff]
    %v476 = vld [vmem:[#allocation7 + $0x9e0] sm:$0xff]
    %v477 = vld [vmem:[#allocation7 + $0x9e8] sm:$0xff]
    %v478 = vld [vmem:[#allocation7 + $0x9f0] sm:$0xff]
    %v479 = vld [vmem:[#allocation7 + $0x9f8] sm:$0xff]
    %v480 = vld [vmem:[#allocation7 + $0xa00] sm:$0xff]
    %v481 = vld [vmem:[#allocation7 + $0xa08] sm:$0xff]
    %v482 = vld [vmem:[#allocation7 + $0xa10] sm:$0xff]
    %v483 = vld [vmem:[#allocation7 + $0xa18] sm:$0xff]
    %v484 = vld [vmem:[#allocation7 + $0xa20] sm:$0xff]
    %v485 = vld [vmem:[#allocation7 + $0xa28] sm:$0xff]
    %v486 = vld [vmem:[#allocation7 + $0xa30] sm:$0xff]
    %v487 = vld [vmem:[#allocation7 + $0xa38] sm:$0xff]
    %v488 = vld [vmem:[#allocation7 + $0xa40] sm:$0xff]
    %v489 = vld [vmem:[#allocation7 + $0xa48] sm:$0xff]
    %v490 = vld [vmem:[#allocation7 + $0xa50] sm:$0xff]
    %v491 = vld [vmem:[#allocation7 + $0xa58] sm:$0xff]
    %v492 = vld [vmem:[#allocation7 + $0xa60] sm:$0xff]
    %v493 = vld [vmem:[#allocation7 + $0xa68] sm:$0xff]
    %v494 = vld [vmem:[#allocation7 + $0xa70] sm:$0xff]
    %v495 = vld [vmem:[#allocation7 + $0xa78] sm:$0xff]
    %v496 = vld [vmem:[#allocation7 + $0xa80] sm:$0xff]
    %v497 = vld [vmem:[#allocation7 + $0xa88] sm:$0xff]
    %v498 = vld [vmem:[#allocation7 + $0xa90] sm:$0xff]
    %v499 = vld [vmem:[#allocation7 + $0xa98] sm:$0xff]
    %v500 = vld [vmem:[#allocation7 + $0xaa0] sm:$0xff]
    %v501 = vld [vmem:[#allocation7 + $0xaa8] sm:$0xff]
    %v502 = vld [vmem:[#allocation7 + $0xab0] sm:$0xff]
    %v503 = vld [vmem:[#allocation7 + $0xab8] sm:$0xff]
    %v504 = vld [vmem:[#allocation7 + $0xac0] sm:$0xff]
    %v505 = vld [vmem:[#allocation7 + $0xac8] sm:$0xff]
    %v506 = vld [vmem:[#allocation7 + $0xad0] sm:$0xff]
    %v507 = vld [vmem:[#allocation7 + $0xad8] sm:$0xff]
    %v508 = vld [vmem:[#allocation7 + $0xae0] sm:$0xff]
    %v509 = vld [vmem:[#allocation7 + $0xae8] sm:$0xff]
    %v510 = vld [vmem:[#allocation7 + $0xaf0] sm:$0xff]
    %v511 = vld [vmem:[#allocation7 + $0xaf8] sm:$0xff]
    %v512 = vld [vmem:[#allocation7 + $0xb00] sm:$0xff]
    %v513 = vld [vmem:[#allocation7 + $0xb08] sm:$0xff]
    %v514 = vld [vmem:[#allocation7 + $0xb10] sm:$0xff]
    %v515 = vld [vmem:[#allocation7 + $0xb18] sm:$0xff]
    %v516 = vld [vmem:[#allocation7 + $0xb20] sm:$0xff]
    %v517 = vld [vmem:[#allocation7 + $0xb28] sm:$0xff]
    %v518 = vld [vmem:[#allocation7 + $0xb30] sm:$0xff]
    %v519 = vld [vmem:[#allocation7 + $0xb38] sm:$0xff]
    %v520 = vld [vmem:[#allocation7 + $0xb40] sm:$0xff]
    %v521 = vld [vmem:[#allocation7 + $0xb48] sm:$0xff]
    %v522 = vld [vmem:[#allocation7 + $0xb50] sm:$0xff]
    %v523 = vld [vmem:[#allocation7 + $0xb58] sm:$0xff]
    %v524 = vld [vmem:[#allocation7 + $0xb60] sm:$0xff]
    %v525 = vld [vmem:[#allocation7 + $0xb68] sm:$0xff]
    %v526 = vld [vmem:[#allocation7 + $0xb70] sm:$0xff]
    %v527 = vld [vmem:[#allocation7 + $0xb78] sm:$0xff]
    %v528 = vld [vmem:[#allocation7 + $0xb80] sm:$0xff]
    %v529 = vld [vmem:[#allocation7 + $0xb88] sm:$0xff]
    %v530 = vld [vmem:[#allocation7 + $0xb90] sm:$0xff]
    %v531 = vld [vmem:[#allocation7 + $0xb98] sm:$0xff]
    %v532 = vld [vmem:[#allocation7 + $0xba0] sm:$0xff]
    %v533 = vld [vmem:[#allocation7 + $0xba8] sm:$0xff]
    %v534 = vld [vmem:[#allocation7 + $0xbb0] sm:$0xff]
    %v535 = vld [vmem:[#allocation7 + $0xbb8] sm:$0xff]
    %v536 = vld [vmem:[#allocation7 + $0xbc0] sm:$0xff]
    %v537 = vld [vmem:[#allocation7 + $0xbc8] sm:$0xff]
    %v538 = vld [vmem:[#allocation7 + $0xbd0] sm:$0xff]
    %v539 = vld [vmem:[#allocation7 + $0xbd8] sm:$0xff]
    %v540 = vld [vmem:[#allocation7 + $0xbe0] sm:$0xff]
    %v541 = vld [vmem:[#allocation7 + $0xbe8] sm:$0xff]
    %v542 = vld [vmem:[#allocation7 + $0xbf0] sm:$0xff]
    %v543 = vld [vmem:[#allocation7 + $0xbf8] sm:$0xff]
    %v544 = vld [vmem:[#allocation7 + $0xc00] sm:$0xff]
    %v545 = vld [vmem:[#allocation7 + $0xc08] sm:$0xff]
    %v546 = vld [vmem:[#allocation7 + $0xc10] sm:$0xff]
    %v547 = vld [vmem:[#allocation7 + $0xc18] sm:$0xff]
    %v548 = vld [vmem:[#allocation7 + $0xc20] sm:$0xff]
    %v549 = vld [vmem:[#allocation7 + $0xc28] sm:$0xff]
    %v550 = vld [vmem:[#allocation7 + $0xc30] sm:$0xff]
    %v551 = vld [vmem:[#allocation7 + $0xc38] sm:$0xff]
    %v552 = vld [vmem:[#allocation7 + $0xc40] sm:$0xff]
    %v553 = vld [vmem:[#allocation7 + $0xc48] sm:$0xff]
    %v554 = vld [vmem:[#allocation7 + $0xc50] sm:$0xff]
    %v555 = vld [vmem:[#allocation7 + $0xc58] sm:$0xff]
    %v556 = vld [vmem:[#allocation7 + $0xc60] sm:$0xff]
    %v557 = vld [vmem:[#allocation7 + $0xc68] sm:$0xff]
    %v558 = vld [vmem:[#allocation7 + $0xc70] sm:$0xff]
    %v559 = vld [vmem:[#allocation7 + $0xc78] sm:$0xff]
    %v560 = vld [vmem:[#allocation7 + $0xc80] sm:$0xff]
    %v561 = vld [vmem:[#allocation7 + $0xc88] sm:$0xff]
    %v562 = vld [vmem:[#allocation7 + $0xc90] sm:$0xff]
    %v563 = vld [vmem:[#allocation7 + $0xc98] sm:$0xff]
    %v564 = vld [vmem:[#allocation7 + $0xca0] sm:$0xff]
    %v565 = vld [vmem:[#allocation7 + $0xca8] sm:$0xff]
    %v566 = vld [vmem:[#allocation7 + $0xcb0] sm:$0xff]
    %v567 = vld [vmem:[#allocation7 + $0xcb8] sm:$0xff]
    %v568 = vld [vmem:[#allocation7 + $0xcc0] sm:$0xff]
    %v569 = vld [vmem:[#allocation7 + $0xcc8] sm:$0xff]
    %v570 = vld [vmem:[#allocation7 + $0xcd0] sm:$0xff]
    %v571 = vld [vmem:[#allocation7 + $0xcd8] sm:$0xff]
    %v572 = vld [vmem:[#allocation7 + $0xce0] sm:$0xff]
    %v573 = vld [vmem:[#allocation7 + $0xce8] sm:$0xff]
    %v574 = vld [vmem:[#allocation7 + $0xcf0] sm:$0xff]
    %v575 = vld [vmem:[#allocation7 + $0xcf8] sm:$0xff]
    %v576 = vld [vmem:[#allocation7 + $0xd00] sm:$0xff]
    %v577 = vld [vmem:[#allocation7 + $0xd08] sm:$0xff]
    %v578 = vld [vmem:[#allocation7 + $0xd10] sm:$0xff]
    %v579 = vld [vmem:[#allocation7 + $0xd18] sm:$0xff]
    %v580 = vld [vmem:[#allocation7 + $0xd20] sm:$0xff]
    %v581 = vld [vmem:[#allocation7 + $0xd28] sm:$0xff]
    %v582 = vld [vmem:[#allocation7 + $0xd30] sm:$0xff]
    %v583 = vld [vmem:[#allocation7 + $0xd38] sm:$0xff]
    %v584 = vld [vmem:[#allocation7 + $0xd40] sm:$0xff]
    %v585 = vld [vmem:[#allocation7 + $0xd48] sm:$0xff]
    %v586 = vld [vmem:[#allocation7 + $0xd50] sm:$0xff]
    %v587 = vld [vmem:[#allocation7 + $0xd58] sm:$0xff]
    %v588 = vld [vmem:[#allocation7 + $0xd60] sm:$0xff]
    %v589 = vld [vmem:[#allocation7 + $0xd68] sm:$0xff]
    %v590 = vld [vmem:[#allocation7 + $0xd70] sm:$0xff]
    %v591 = vld [vmem:[#allocation7 + $0xd78] sm:$0xff]
    %v592 = vld [vmem:[#allocation7 + $0xd80] sm:$0xff]
    %v593 = vld [vmem:[#allocation7 + $0xd88] sm:$0xff]
    %v594 = vld [vmem:[#allocation7 + $0xd90] sm:$0xff]
    %v595 = vld [vmem:[#allocation7 + $0xd98] sm:$0xff]
    %v596 = vld [vmem:[#allocation7 + $0xda0] sm:$0xff]
    %v597 = vld [vmem:[#allocation7 + $0xda8] sm:$0xff]
    %v598 = vld [vmem:[#allocation7 + $0xdb0] sm:$0xff]
    %v599 = vld [vmem:[#allocation7 + $0xdb8] sm:$0xff]
    %v600 = vld [vmem:[#allocation7 + $0xdc0] sm:$0xff]
    %v601 = vld [vmem:[#allocation7 + $0xdc8] sm:$0xff]
    %v602 = vld [vmem:[#allocation7 + $0xdd0] sm:$0xff]
    %v603 = vld [vmem:[#allocation7 + $0xdd8] sm:$0xff]
    %v604 = vld [vmem:[#allocation7 + $0xde0] sm:$0xff]
    %v605 = vld [vmem:[#allocation7 + $0xde8] sm:$0xff]
    %v606 = vld [vmem:[#allocation7 + $0xdf0] sm:$0xff]
    %v607 = vld [vmem:[#allocation7 + $0xdf8] sm:$0xff]
    %v608 = vld [vmem:[#allocation7 + $0xe00] sm:$0xff]
    %v609 = vld [vmem:[#allocation7 + $0xe08] sm:$0xff]
    %v610 = vld [vmem:[#allocation7 + $0xe10] sm:$0xff]
    %v611 = vld [vmem:[#allocation7 + $0xe18] sm:$0xff]
    %v612 = vld [vmem:[#allocation7 + $0xe20] sm:$0xff]
    %v613 = vld [vmem:[#allocation7 + $0xe28] sm:$0xff]
    %v614 = vld [vmem:[#allocation7 + $0xe30] sm:$0xff]
    %v615 = vld [vmem:[#allocation7 + $0xe38] sm:$0xff]
    %v616 = vld [vmem:[#allocation7 + $0xe40] sm:$0xff]
    %v617 = vld [vmem:[#allocation7 + $0xe48] sm:$0xff]
    %v618 = vld [vmem:[#allocation7 + $0xe50] sm:$0xff]
    %v619 = vld [vmem:[#allocation7 + $0xe58] sm:$0xff]
    %v620 = vld [vmem:[#allocation7 + $0xe60] sm:$0xff]
    %v621 = vld [vmem:[#allocation7 + $0xe68] sm:$0xff]
    %v622 = vld [vmem:[#allocation7 + $0xe70] sm:$0xff]
    %v623 = vld [vmem:[#allocation7 + $0xe78] sm:$0xff]
    %v624 = vld [vmem:[#allocation7 + $0xe80] sm:$0xff]
    %v625 = vld [vmem:[#allocation7 + $0xe88] sm:$0xff]
    %v626 = vld [vmem:[#allocation7 + $0xe90] sm:$0xff]
    %v627 = vld [vmem:[#allocation7 + $0xe98] sm:$0xff]
    %v628 = vld [vmem:[#allocation7 + $0xea0] sm:$0xff]
    %v629 = vld [vmem:[#allocation7 + $0xea8] sm:$0xff]
    %v630 = vld [vmem:[#allocation7 + $0xeb0] sm:$0xff]
    %v631 = vld [vmem:[#allocation7 + $0xeb8] sm:$0xff]
    %v632 = vld [vmem:[#allocation7 + $0xec0] sm:$0xff]
    %v633 = vld [vmem:[#allocation7 + $0xec8] sm:$0xff]
    %v634 = vld [vmem:[#allocation7 + $0xed0] sm:$0xff]
    %v635 = vld [vmem:[#allocation7 + $0xed8] sm:$0xff]
    %v636 = vld [vmem:[#allocation7 + $0xee0] sm:$0xff]
    %v637 = vld [vmem:[#allocation7 + $0xee8] sm:$0xff]
    %v638 = vld [vmem:[#allocation7 + $0xef0] sm:$0xff]
    %v639 = vld [vmem:[#allocation7 + $0xef8] sm:$0xff]
    %v640 = vld [vmem:[#allocation7 + $0xf00] sm:$0xff]
    %v641 = vld [vmem:[#allocation7 + $0xf08] sm:$0xff]
    %v642 = vld [vmem:[#allocation7 + $0xf10] sm:$0xff]
    %v643 = vld [vmem:[#allocation7 + $0xf18] sm:$0xff]
    %v644 = vld [vmem:[#allocation7 + $0xf20] sm:$0xff]
    %v645 = vld [vmem:[#allocation7 + $0xf28] sm:$0xff]
    %v646 = vld [vmem:[#allocation7 + $0xf30] sm:$0xff]
    %v647 = vld [vmem:[#allocation7 + $0xf38] sm:$0xff]
    %v648 = vld [vmem:[#allocation7 + $0xf40] sm:$0xff]
    %v649 = vld [vmem:[#allocation7 + $0xf48] sm:$0xff]
    %v650 = vld [vmem:[#allocation7 + $0xf50] sm:$0xff]
    %v651 = vld [vmem:[#allocation7 + $0xf58] sm:$0xff]
    %v652 = vld [vmem:[#allocation7 + $0xf60] sm:$0xff]
    %v653 = vld [vmem:[#allocation7 + $0xf68] sm:$0xff]
    %v654 = vld [vmem:[#allocation7 + $0xf70] sm:$0xff]
    %v655 = vld [vmem:[#allocation7 + $0xf78] sm:$0xff]
    %v656 = vld [vmem:[#allocation7 + $0xf80] sm:$0xff]
    %v657 = vld [vmem:[#allocation7 + $0xf88] sm:$0xff]
    %v658 = vld [vmem:[#allocation7 + $0xf90] sm:$0xff]
    %v659 = vld [vmem:[#allocation7 + $0xf98] sm:$0xff]
    %v660 = vld [vmem:[#allocation7 + $0xfa0] sm:$0xff]
    %v661 = vld [vmem:[#allocation7 + $0xfa8] sm:$0xff]
    %v662 = vld [vmem:[#allocation7 + $0xfb0] sm:$0xff]
    %v663 = vld [vmem:[#allocation7 + $0xfb8] sm:$0xff]
    %v664 = vld [vmem:[#allocation7 + $0xfc0] sm:$0xff]
    %v665 = vld [vmem:[#allocation7 + $0xfc8] sm:$0xff]
    %v666 = vld [vmem:[#allocation7 + $0xfd0] sm:$0xff]
    %v667 = vld [vmem:[#allocation7 + $0xfd8] sm:$0xff]
    %v668 = vld [vmem:[#allocation7 + $0xfe0] sm:$0xff]
    %v669 = vld [vmem:[#allocation7 + $0xfe8] sm:$0xff]
    %v670 = vld [vmem:[#allocation7 + $0xff0] sm:$0xff]
    %v671 = vld [vmem:[#allocation7 + $0xff8] sm:$0xff]
    %v1184 = vunpack.c.l.b16 %v160
    %v1185 = vunpack.c.h.b16 %v160
    %v1186 = vunpack.c.l.b16 %v161
    %v1187 = vunpack.c.h.b16 %v161
    %v1188 = vunpack.c.l.b16 %v162
    %v1189 = vunpack.c.h.b16 %v162
    %v1190 = vunpack.c.l.b16 %v163
    %v1191 = vunpack.c.h.b16 %v163
    %v1192 = vunpack.c.l.b16 %v164
    %v1193 = vunpack.c.h.b16 %v164
    %v1194 = vunpack.c.l.b16 %v165
    %v1195 = vunpack.c.h.b16 %v165
    %v1196 = vunpack.c.l.b16 %v166
    %v1197 = vunpack.c.h.b16 %v166
    %v1198 = vunpack.c.l.b16 %v167
    %v1199 = vunpack.c.h.b16 %v167
    %v1200 = vunpack.c.l.b16 %v168
    %v1201 = vunpack.c.h.b16 %v168
    %v1202 = vunpack.c.l.b16 %v169
    %v1203 = vunpack.c.h.b16 %v169
    %v1204 = vunpack.c.l.b16 %v170
    %v1205 = vunpack.c.h.b16 %v170
    %v1206 = vunpack.c.l.b16 %v171
    %v1207 = vunpack.c.h.b16 %v171
    %v1208 = vunpack.c.l.b16 %v172
    %v1209 = vunpack.c.h.b16 %v172
    %v1210 = vunpack.c.l.b16 %v173
    %v1211 = vunpack.c.h.b16 %v173
    %v1212 = vunpack.c.l.b16 %v174
    %v1213 = vunpack.c.h.b16 %v174
    %v1214 = vunpack.c.l.b16 %v175
    %v1215 = vunpack.c.h.b16 %v175
    %v1216 = vunpack.c.l.b16 %v176
    %v1217 = vunpack.c.h.b16 %v176
    %v1218 = vunpack.c.l.b16 %v177
    %v1219 = vunpack.c.h.b16 %v177
    %v1220 = vunpack.c.l.b16 %v178
    %v1221 = vunpack.c.h.b16 %v178
    %v1222 = vunpack.c.l.b16 %v179
    %v1223 = vunpack.c.h.b16 %v179
    %v1224 = vunpack.c.l.b16 %v180
    %v1225 = vunpack.c.h.b16 %v180
    %v1226 = vunpack.c.l.b16 %v181
    %v1227 = vunpack.c.h.b16 %v181
    %v1228 = vunpack.c.l.b16 %v182
    %v1229 = vunpack.c.h.b16 %v182
    %v1230 = vunpack.c.l.b16 %v183
    %v1231 = vunpack.c.h.b16 %v183
    %v1232 = vunpack.c.l.b16 %v184
    %v1233 = vunpack.c.h.b16 %v184
    %v1234 = vunpack.c.l.b16 %v185
    %v1235 = vunpack.c.h.b16 %v185
    %v1236 = vunpack.c.l.b16 %v186
    %v1237 = vunpack.c.h.b16 %v186
    %v1238 = vunpack.c.l.b16 %v187
    %v1239 = vunpack.c.h.b16 %v187
    %v1240 = vunpack.c.l.b16 %v188
    %v1241 = vunpack.c.h.b16 %v188
    %v1242 = vunpack.c.l.b16 %v189
    %v1243 = vunpack.c.h.b16 %v189
    %v1244 = vunpack.c.l.b16 %v190
    %v1245 = vunpack.c.h.b16 %v190
    %v1246 = vunpack.c.l.b16 %v191
    %v1247 = vunpack.c.h.b16 %v191
    %v1248 = vunpack.c.l.b16 %v192
    %v1249 = vunpack.c.h.b16 %v192
    %v1250 = vunpack.c.l.b16 %v193
    %v1251 = vunpack.c.h.b16 %v193
    %v1252 = vunpack.c.l.b16 %v194
    %v1253 = vunpack.c.h.b16 %v194
    %v1254 = vunpack.c.l.b16 %v195
    %v1255 = vunpack.c.h.b16 %v195
    %v1256 = vunpack.c.l.b16 %v196
    %v1257 = vunpack.c.h.b16 %v196
    %v1258 = vunpack.c.l.b16 %v197
    %v1259 = vunpack.c.h.b16 %v197
    %v1260 = vunpack.c.l.b16 %v198
    %v1261 = vunpack.c.h.b16 %v198
    %v1262 = vunpack.c.l.b16 %v199
    %v1263 = vunpack.c.h.b16 %v199
    %v1264 = vunpack.c.l.b16 %v200
    %v1265 = vunpack.c.h.b16 %v200
    %v1266 = vunpack.c.l.b16 %v201
    %v1267 = vunpack.c.h.b16 %v201
    %v1268 = vunpack.c.l.b16 %v202
    %v1269 = vunpack.c.h.b16 %v202
    %v1270 = vunpack.c.l.b16 %v203
    %v1271 = vunpack.c.h.b16 %v203
    %v1272 = vunpack.c.l.b16 %v204
    %v1273 = vunpack.c.h.b16 %v204
    %v1274 = vunpack.c.l.b16 %v205
    %v1275 = vunpack.c.h.b16 %v205
    %v1276 = vunpack.c.l.b16 %v206
    %v1277 = vunpack.c.h.b16 %v206
    %v1278 = vunpack.c.l.b16 %v207
    %v1279 = vunpack.c.h.b16 %v207
    %v1280 = vunpack.c.l.b16 %v208
    %v1281 = vunpack.c.h.b16 %v208
    %v1282 = vunpack.c.l.b16 %v209
    %v1283 = vunpack.c.h.b16 %v209
    %v1284 = vunpack.c.l.b16 %v210
    %v1285 = vunpack.c.h.b16 %v210
    %v1286 = vunpack.c.l.b16 %v211
    %v1287 = vunpack.c.h.b16 %v211
    %v1288 = vunpack.c.l.b16 %v212
    %v1289 = vunpack.c.h.b16 %v212
    %v1290 = vunpack.c.l.b16 %v213
    %v1291 = vunpack.c.h.b16 %v213
    %v1292 = vunpack.c.l.b16 %v214
    %v1293 = vunpack.c.h.b16 %v214
    %v1294 = vunpack.c.l.b16 %v215
    %v1295 = vunpack.c.h.b16 %v215
    %v1296 = vunpack.c.l.b16 %v216
    %v1297 = vunpack.c.h.b16 %v216
    %v1298 = vunpack.c.l.b16 %v217
    %v1299 = vunpack.c.h.b16 %v217
    %v1300 = vunpack.c.l.b16 %v218
    %v1301 = vunpack.c.h.b16 %v218
    %v1302 = vunpack.c.l.b16 %v219
    %v1303 = vunpack.c.h.b16 %v219
    %v1304 = vunpack.c.l.b16 %v220
    %v1305 = vunpack.c.h.b16 %v220
    %v1306 = vunpack.c.l.b16 %v221
    %v1307 = vunpack.c.h.b16 %v221
    %v1308 = vunpack.c.l.b16 %v222
    %v1309 = vunpack.c.h.b16 %v222
    %v1310 = vunpack.c.l.b16 %v223
    %v1311 = vunpack.c.h.b16 %v223
    %v1312 = vunpack.c.l.b16 %v224
    %v1313 = vunpack.c.h.b16 %v224
    %v1314 = vunpack.c.l.b16 %v225
    %v1315 = vunpack.c.h.b16 %v225
    %v1316 = vunpack.c.l.b16 %v226
    %v1317 = vunpack.c.h.b16 %v226
    %v1318 = vunpack.c.l.b16 %v227
    %v1319 = vunpack.c.h.b16 %v227
    %v1320 = vunpack.c.l.b16 %v228
    %v1321 = vunpack.c.h.b16 %v228
    %v1322 = vunpack.c.l.b16 %v229
    %v1323 = vunpack.c.h.b16 %v229
    %v1324 = vunpack.c.l.b16 %v230
    %v1325 = vunpack.c.h.b16 %v230
    %v1326 = vunpack.c.l.b16 %v231
    %v1327 = vunpack.c.h.b16 %v231
    %v1328 = vunpack.c.l.b16 %v232
    %v1329 = vunpack.c.h.b16 %v232
    %v1330 = vunpack.c.l.b16 %v233
    %v1331 = vunpack.c.h.b16 %v233
    %v1332 = vunpack.c.l.b16 %v234
    %v1333 = vunpack.c.h.b16 %v234
    %v1334 = vunpack.c.l.b16 %v235
    %v1335 = vunpack.c.h.b16 %v235
    %v1336 = vunpack.c.l.b16 %v236
    %v1337 = vunpack.c.h.b16 %v236
    %v1338 = vunpack.c.l.b16 %v237
    %v1339 = vunpack.c.h.b16 %v237
    %v1340 = vunpack.c.l.b16 %v238
    %v1341 = vunpack.c.h.b16 %v238
    %v1342 = vunpack.c.l.b16 %v239
    %v1343 = vunpack.c.h.b16 %v239
    %v1344 = vunpack.c.l.b16 %v240
    %v1345 = vunpack.c.h.b16 %v240
    %v1346 = vunpack.c.l.b16 %v241
    %v1347 = vunpack.c.h.b16 %v241
    %v1348 = vunpack.c.l.b16 %v242
    %v1349 = vunpack.c.h.b16 %v242
    %v1350 = vunpack.c.l.b16 %v243
    %v1351 = vunpack.c.h.b16 %v243
    %v1352 = vunpack.c.l.b16 %v244
    %v1353 = vunpack.c.h.b16 %v244
    %v1354 = vunpack.c.l.b16 %v245
    %v1355 = vunpack.c.h.b16 %v245
    %v1356 = vunpack.c.l.b16 %v246
    %v1357 = vunpack.c.h.b16 %v246
    %v1358 = vunpack.c.l.b16 %v247
    %v1359 = vunpack.c.h.b16 %v247
    %v1360 = vunpack.c.l.b16 %v248
    %v1361 = vunpack.c.h.b16 %v248
    %v1362 = vunpack.c.l.b16 %v249
    %v1363 = vunpack.c.h.b16 %v249
    %v1364 = vunpack.c.l.b16 %v250
    %v1365 = vunpack.c.h.b16 %v250
    %v1366 = vunpack.c.l.b16 %v251
    %v1367 = vunpack.c.h.b16 %v251
    %v1368 = vunpack.c.l.b16 %v252
    %v1369 = vunpack.c.h.b16 %v252
    %v1370 = vunpack.c.l.b16 %v253
    %v1371 = vunpack.c.h.b16 %v253
    %v1372 = vunpack.c.l.b16 %v254
    %v1373 = vunpack.c.h.b16 %v254
    %v1374 = vunpack.c.l.b16 %v255
    %v1375 = vunpack.c.h.b16 %v255
    %v1376 = vunpack.c.l.b16 %v256
    %v1377 = vunpack.c.h.b16 %v256
    %v1378 = vunpack.c.l.b16 %v257
    %v1379 = vunpack.c.h.b16 %v257
    %v1380 = vunpack.c.l.b16 %v258
    %v1381 = vunpack.c.h.b16 %v258
    %v1382 = vunpack.c.l.b16 %v259
    %v1383 = vunpack.c.h.b16 %v259
    %v1384 = vunpack.c.l.b16 %v260
    %v1385 = vunpack.c.h.b16 %v260
    %v1386 = vunpack.c.l.b16 %v261
    %v1387 = vunpack.c.h.b16 %v261
    %v1388 = vunpack.c.l.b16 %v262
    %v1389 = vunpack.c.h.b16 %v262
    %v1390 = vunpack.c.l.b16 %v263
    %v1391 = vunpack.c.h.b16 %v263
    %v1392 = vunpack.c.l.b16 %v264
    %v1393 = vunpack.c.h.b16 %v264
    %v1394 = vunpack.c.l.b16 %v265
    %v1395 = vunpack.c.h.b16 %v265
    %v1396 = vunpack.c.l.b16 %v266
    %v1397 = vunpack.c.h.b16 %v266
    %v1398 = vunpack.c.l.b16 %v267
    %v1399 = vunpack.c.h.b16 %v267
    %v1400 = vunpack.c.l.b16 %v268
    %v1401 = vunpack.c.h.b16 %v268
    %v1402 = vunpack.c.l.b16 %v269
    %v1403 = vunpack.c.h.b16 %v269
    %v1404 = vunpack.c.l.b16 %v270
    %v1405 = vunpack.c.h.b16 %v270
    %v1406 = vunpack.c.l.b16 %v271
    %v1407 = vunpack.c.h.b16 %v271
    %v1408 = vunpack.c.l.b16 %v272
    %v1409 = vunpack.c.h.b16 %v272
    %v1410 = vunpack.c.l.b16 %v273
    %v1411 = vunpack.c.h.b16 %v273
    %v1412 = vunpack.c.l.b16 %v274
    %v1413 = vunpack.c.h.b16 %v274
    %v1414 = vunpack.c.l.b16 %v275
    %v1415 = vunpack.c.h.b16 %v275
    %v1416 = vunpack.c.l.b16 %v276
    %v1417 = vunpack.c.h.b16 %v276
    %v1418 = vunpack.c.l.b16 %v277
    %v1419 = vunpack.c.h.b16 %v277
    %v1420 = vunpack.c.l.b16 %v278
    %v1421 = vunpack.c.h.b16 %v278
    %v1422 = vunpack.c.l.b16 %v279
    %v1423 = vunpack.c.h.b16 %v279
    %v1424 = vunpack.c.l.b16 %v280
    %v1425 = vunpack.c.h.b16 %v280
    %v1426 = vunpack.c.l.b16 %v281
    %v1427 = vunpack.c.h.b16 %v281
    %v1428 = vunpack.c.l.b16 %v282
    %v1429 = vunpack.c.h.b16 %v282
    %v1430 = vunpack.c.l.b16 %v283
    %v1431 = vunpack.c.h.b16 %v283
    %v1432 = vunpack.c.l.b16 %v284
    %v1433 = vunpack.c.h.b16 %v284
    %v1434 = vunpack.c.l.b16 %v285
    %v1435 = vunpack.c.h.b16 %v285
    %v1436 = vunpack.c.l.b16 %v286
    %v1437 = vunpack.c.h.b16 %v286
    %v1438 = vunpack.c.l.b16 %v287
    %v1439 = vunpack.c.h.b16 %v287
    %v1440 = vunpack.c.l.b16 %v288
    %v1441 = vunpack.c.h.b16 %v288
    %v1442 = vunpack.c.l.b16 %v289
    %v1443 = vunpack.c.h.b16 %v289
    %v1444 = vunpack.c.l.b16 %v290
    %v1445 = vunpack.c.h.b16 %v290
    %v1446 = vunpack.c.l.b16 %v291
    %v1447 = vunpack.c.h.b16 %v291
    %v1448 = vunpack.c.l.b16 %v292
    %v1449 = vunpack.c.h.b16 %v292
    %v1450 = vunpack.c.l.b16 %v293
    %v1451 = vunpack.c.h.b16 %v293
    %v1452 = vunpack.c.l.b16 %v294
    %v1453 = vunpack.c.h.b16 %v294
    %v1454 = vunpack.c.l.b16 %v295
    %v1455 = vunpack.c.h.b16 %v295
    %v1456 = vunpack.c.l.b16 %v296
    %v1457 = vunpack.c.h.b16 %v296
    %v1458 = vunpack.c.l.b16 %v297
    %v1459 = vunpack.c.h.b16 %v297
    %v1460 = vunpack.c.l.b16 %v298
    %v1461 = vunpack.c.h.b16 %v298
    %v1462 = vunpack.c.l.b16 %v299
    %v1463 = vunpack.c.h.b16 %v299
    %v1464 = vunpack.c.l.b16 %v300
    %v1465 = vunpack.c.h.b16 %v300
    %v1466 = vunpack.c.l.b16 %v301
    %v1467 = vunpack.c.h.b16 %v301
    %v1468 = vunpack.c.l.b16 %v302
    %v1469 = vunpack.c.h.b16 %v302
    %v1470 = vunpack.c.l.b16 %v303
    %v1471 = vunpack.c.h.b16 %v303
    %v1472 = vunpack.c.l.b16 %v304
    %v1473 = vunpack.c.h.b16 %v304
    %v1474 = vunpack.c.l.b16 %v305
    %v1475 = vunpack.c.h.b16 %v305
    %v1476 = vunpack.c.l.b16 %v306
    %v1477 = vunpack.c.h.b16 %v306
    %v1478 = vunpack.c.l.b16 %v307
    %v1479 = vunpack.c.h.b16 %v307
    %v1480 = vunpack.c.l.b16 %v308
    %v1481 = vunpack.c.h.b16 %v308
    %v1482 = vunpack.c.l.b16 %v309
    %v1483 = vunpack.c.h.b16 %v309
    %v1484 = vunpack.c.l.b16 %v310
    %v1485 = vunpack.c.h.b16 %v310
    %v1486 = vunpack.c.l.b16 %v311
    %v1487 = vunpack.c.h.b16 %v311
    %v1488 = vunpack.c.l.b16 %v312
    %v1489 = vunpack.c.h.b16 %v312
    %v1490 = vunpack.c.l.b16 %v313
    %v1491 = vunpack.c.h.b16 %v313
    %v1492 = vunpack.c.l.b16 %v314
    %v1493 = vunpack.c.h.b16 %v314
    %v1494 = vunpack.c.l.b16 %v315
    %v1495 = vunpack.c.h.b16 %v315
    %v1496 = vunpack.c.l.b16 %v316
    %v1497 = vunpack.c.h.b16 %v316
    %v1498 = vunpack.c.l.b16 %v317
    %v1499 = vunpack.c.h.b16 %v317
    %v1500 = vunpack.c.l.b16 %v318
    %v1501 = vunpack.c.h.b16 %v318
    %v1502 = vunpack.c.l.b16 %v319
    %v1503 = vunpack.c.h.b16 %v319
    %v1504 = vunpack.c.l.b16 %v320
    %v1505 = vunpack.c.h.b16 %v320
    %v1506 = vunpack.c.l.b16 %v321
    %v1507 = vunpack.c.h.b16 %v321
    %v1508 = vunpack.c.l.b16 %v322
    %v1509 = vunpack.c.h.b16 %v322
    %v1510 = vunpack.c.l.b16 %v323
    %v1511 = vunpack.c.h.b16 %v323
    %v1512 = vunpack.c.l.b16 %v324
    %v1513 = vunpack.c.h.b16 %v324
    %v1514 = vunpack.c.l.b16 %v325
    %v1515 = vunpack.c.h.b16 %v325
    %v1516 = vunpack.c.l.b16 %v326
    %v1517 = vunpack.c.h.b16 %v326
    %v1518 = vunpack.c.l.b16 %v327
    %v1519 = vunpack.c.h.b16 %v327
    %v1520 = vunpack.c.l.b16 %v328
    %v1521 = vunpack.c.h.b16 %v328
    %v1522 = vunpack.c.l.b16 %v329
    %v1523 = vunpack.c.h.b16 %v329
    %v1524 = vunpack.c.l.b16 %v330
    %v1525 = vunpack.c.h.b16 %v330
    %v1526 = vunpack.c.l.b16 %v331
    %v1527 = vunpack.c.h.b16 %v331
    %v1528 = vunpack.c.l.b16 %v332
    %v1529 = vunpack.c.h.b16 %v332
    %v1530 = vunpack.c.l.b16 %v333
    %v1531 = vunpack.c.h.b16 %v333
    %v1532 = vunpack.c.l.b16 %v334
    %v1533 = vunpack.c.h.b16 %v334
    %v1534 = vunpack.c.l.b16 %v335
    %v1535 = vunpack.c.h.b16 %v335
    %v1536 = vunpack.c.l.b16 %v336
    %v1537 = vunpack.c.h.b16 %v336
    %v1538 = vunpack.c.l.b16 %v337
    %v1539 = vunpack.c.h.b16 %v337
    %v1540 = vunpack.c.l.b16 %v338
    %v1541 = vunpack.c.h.b16 %v338
    %v1542 = vunpack.c.l.b16 %v339
    %v1543 = vunpack.c.h.b16 %v339
    %v1544 = vunpack.c.l.b16 %v340
    %v1545 = vunpack.c.h.b16 %v340
    %v1546 = vunpack.c.l.b16 %v341
    %v1547 = vunpack.c.h.b16 %v341
    %v1548 = vunpack.c.l.b16 %v342
    %v1549 = vunpack.c.h.b16 %v342
    %v1550 = vunpack.c.l.b16 %v343
    %v1551 = vunpack.c.h.b16 %v343
    %v1552 = vunpack.c.l.b16 %v344
    %v1553 = vunpack.c.h.b16 %v344
    %v1554 = vunpack.c.l.b16 %v345
    %v1555 = vunpack.c.h.b16 %v345
    %v1556 = vunpack.c.l.b16 %v346
    %v1557 = vunpack.c.h.b16 %v346
    %v1558 = vunpack.c.l.b16 %v347
    %v1559 = vunpack.c.h.b16 %v347
    %v1560 = vunpack.c.l.b16 %v348
    %v1561 = vunpack.c.h.b16 %v348
    %v1562 = vunpack.c.l.b16 %v349
    %v1563 = vunpack.c.h.b16 %v349
    %v1564 = vunpack.c.l.b16 %v350
    %v1565 = vunpack.c.h.b16 %v350
    %v1566 = vunpack.c.l.b16 %v351
    %v1567 = vunpack.c.h.b16 %v351
    %v1568 = vunpack.c.l.b16 %v352
    %v1569 = vunpack.c.h.b16 %v352
    %v1570 = vunpack.c.l.b16 %v353
    %v1571 = vunpack.c.h.b16 %v353
    %v1572 = vunpack.c.l.b16 %v354
    %v1573 = vunpack.c.h.b16 %v354
    %v1574 = vunpack.c.l.b16 %v355
    %v1575 = vunpack.c.h.b16 %v355
    %v1576 = vunpack.c.l.b16 %v356
    %v1577 = vunpack.c.h.b16 %v356
    %v1578 = vunpack.c.l.b16 %v357
    %v1579 = vunpack.c.h.b16 %v357
    %v1580 = vunpack.c.l.b16 %v358
    %v1581 = vunpack.c.h.b16 %v358
    %v1582 = vunpack.c.l.b16 %v359
    %v1583 = vunpack.c.h.b16 %v359
    %v1584 = vunpack.c.l.b16 %v360
    %v1585 = vunpack.c.h.b16 %v360
    %v1586 = vunpack.c.l.b16 %v361
    %v1587 = vunpack.c.h.b16 %v361
    %v1588 = vunpack.c.l.b16 %v362
    %v1589 = vunpack.c.h.b16 %v362
    %v1590 = vunpack.c.l.b16 %v363
    %v1591 = vunpack.c.h.b16 %v363
    %v1592 = vunpack.c.l.b16 %v364
    %v1593 = vunpack.c.h.b16 %v364
    %v1594 = vunpack.c.l.b16 %v365
    %v1595 = vunpack.c.h.b16 %v365
    %v1596 = vunpack.c.l.b16 %v366
    %v1597 = vunpack.c.h.b16 %v366
    %v1598 = vunpack.c.l.b16 %v367
    %v1599 = vunpack.c.h.b16 %v367
    %v1600 = vunpack.c.l.b16 %v368
    %v1601 = vunpack.c.h.b16 %v368
    %v1602 = vunpack.c.l.b16 %v369
    %v1603 = vunpack.c.h.b16 %v369
    %v1604 = vunpack.c.l.b16 %v370
    %v1605 = vunpack.c.h.b16 %v370
    %v1606 = vunpack.c.l.b16 %v371
    %v1607 = vunpack.c.h.b16 %v371
    %v1608 = vunpack.c.l.b16 %v372
    %v1609 = vunpack.c.h.b16 %v372
    %v1610 = vunpack.c.l.b16 %v373
    %v1611 = vunpack.c.h.b16 %v373
    %v1612 = vunpack.c.l.b16 %v374
    %v1613 = vunpack.c.h.b16 %v374
    %v1614 = vunpack.c.l.b16 %v375
    %v1615 = vunpack.c.h.b16 %v375
    %v1616 = vunpack.c.l.b16 %v376
    %v1617 = vunpack.c.h.b16 %v376
    %v1618 = vunpack.c.l.b16 %v377
    %v1619 = vunpack.c.h.b16 %v377
    %v1620 = vunpack.c.l.b16 %v378
    %v1621 = vunpack.c.h.b16 %v378
    %v1622 = vunpack.c.l.b16 %v379
    %v1623 = vunpack.c.h.b16 %v379
    %v1624 = vunpack.c.l.b16 %v380
    %v1625 = vunpack.c.h.b16 %v380
    %v1626 = vunpack.c.l.b16 %v381
    %v1627 = vunpack.c.h.b16 %v381
    %v1628 = vunpack.c.l.b16 %v382
    %v1629 = vunpack.c.h.b16 %v382
    %v1630 = vunpack.c.l.b16 %v383
    %v1631 = vunpack.c.h.b16 %v383
    %v1632 = vunpack.c.l.b16 %v384
    %v1633 = vunpack.c.h.b16 %v384
    %v1634 = vunpack.c.l.b16 %v385
    %v1635 = vunpack.c.h.b16 %v385
    %v1636 = vunpack.c.l.b16 %v386
    %v1637 = vunpack.c.h.b16 %v386
    %v1638 = vunpack.c.l.b16 %v387
    %v1639 = vunpack.c.h.b16 %v387
    %v1640 = vunpack.c.l.b16 %v388
    %v1641 = vunpack.c.h.b16 %v388
    %v1642 = vunpack.c.l.b16 %v389
    %v1643 = vunpack.c.h.b16 %v389
    %v1644 = vunpack.c.l.b16 %v390
    %v1645 = vunpack.c.h.b16 %v390
    %v1646 = vunpack.c.l.b16 %v391
    %v1647 = vunpack.c.h.b16 %v391
    %v1648 = vunpack.c.l.b16 %v392
    %v1649 = vunpack.c.h.b16 %v392
    %v1650 = vunpack.c.l.b16 %v393
    %v1651 = vunpack.c.h.b16 %v393
    %v1652 = vunpack.c.l.b16 %v394
    %v1653 = vunpack.c.h.b16 %v394
    %v1654 = vunpack.c.l.b16 %v395
    %v1655 = vunpack.c.h.b16 %v395
    %v1656 = vunpack.c.l.b16 %v396
    %v1657 = vunpack.c.h.b16 %v396
    %v1658 = vunpack.c.l.b16 %v397
    %v1659 = vunpack.c.h.b16 %v397
    %v1660 = vunpack.c.l.b16 %v398
    %v1661 = vunpack.c.h.b16 %v398
    %v1662 = vunpack.c.l.b16 %v399
    %v1663 = vunpack.c.h.b16 %v399
    %v1664 = vunpack.c.l.b16 %v400
    %v1665 = vunpack.c.h.b16 %v400
    %v1666 = vunpack.c.l.b16 %v401
    %v1667 = vunpack.c.h.b16 %v401
    %v1668 = vunpack.c.l.b16 %v402
    %v1669 = vunpack.c.h.b16 %v402
    %v1670 = vunpack.c.l.b16 %v403
    %v1671 = vunpack.c.h.b16 %v403
    %v1672 = vunpack.c.l.b16 %v404
    %v1673 = vunpack.c.h.b16 %v404
    %v1674 = vunpack.c.l.b16 %v405
    %v1675 = vunpack.c.h.b16 %v405
    %v1676 = vunpack.c.l.b16 %v406
    %v1677 = vunpack.c.h.b16 %v406
    %v1678 = vunpack.c.l.b16 %v407
    %v1679 = vunpack.c.h.b16 %v407
    %v1680 = vunpack.c.l.b16 %v408
    %v1681 = vunpack.c.h.b16 %v408
    %v1682 = vunpack.c.l.b16 %v409
    %v1683 = vunpack.c.h.b16 %v409
    %v1684 = vunpack.c.l.b16 %v410
    %v1685 = vunpack.c.h.b16 %v410
    %v1686 = vunpack.c.l.b16 %v411
    %v1687 = vunpack.c.h.b16 %v411
    %v1688 = vunpack.c.l.b16 %v412
    %v1689 = vunpack.c.h.b16 %v412
    %v1690 = vunpack.c.l.b16 %v413
    %v1691 = vunpack.c.h.b16 %v413
    %v1692 = vunpack.c.l.b16 %v414
    %v1693 = vunpack.c.h.b16 %v414
    %v1694 = vunpack.c.l.b16 %v415
    %v1695 = vunpack.c.h.b16 %v415
    %v1696 = vunpack.c.l.b16 %v416
    %v1697 = vunpack.c.h.b16 %v416
    %v1698 = vunpack.c.l.b16 %v417
    %v1699 = vunpack.c.h.b16 %v417
    %v1700 = vunpack.c.l.b16 %v418
    %v1701 = vunpack.c.h.b16 %v418
    %v1702 = vunpack.c.l.b16 %v419
    %v1703 = vunpack.c.h.b16 %v419
    %v1704 = vunpack.c.l.b16 %v420
    %v1705 = vunpack.c.h.b16 %v420
    %v1706 = vunpack.c.l.b16 %v421
    %v1707 = vunpack.c.h.b16 %v421
    %v1708 = vunpack.c.l.b16 %v422
    %v1709 = vunpack.c.h.b16 %v422
    %v1710 = vunpack.c.l.b16 %v423
    %v1711 = vunpack.c.h.b16 %v423
    %v1712 = vunpack.c.l.b16 %v424
    %v1713 = vunpack.c.h.b16 %v424
    %v1714 = vunpack.c.l.b16 %v425
    %v1715 = vunpack.c.h.b16 %v425
    %v1716 = vunpack.c.l.b16 %v426
    %v1717 = vunpack.c.h.b16 %v426
    %v1718 = vunpack.c.l.b16 %v427
    %v1719 = vunpack.c.h.b16 %v427
    %v1720 = vunpack.c.l.b16 %v428
    %v1721 = vunpack.c.h.b16 %v428
    %v1722 = vunpack.c.l.b16 %v429
    %v1723 = vunpack.c.h.b16 %v429
    %v1724 = vunpack.c.l.b16 %v430
    %v1725 = vunpack.c.h.b16 %v430
    %v1726 = vunpack.c.l.b16 %v431
    %v1727 = vunpack.c.h.b16 %v431
    %v1728 = vunpack.c.l.b16 %v432
    %v1729 = vunpack.c.h.b16 %v432
    %v1730 = vunpack.c.l.b16 %v433
    %v1731 = vunpack.c.h.b16 %v433
    %v1732 = vunpack.c.l.b16 %v434
    %v1733 = vunpack.c.h.b16 %v434
    %v1734 = vunpack.c.l.b16 %v435
    %v1735 = vunpack.c.h.b16 %v435
    %v1736 = vunpack.c.l.b16 %v436
    %v1737 = vunpack.c.h.b16 %v436
    %v1738 = vunpack.c.l.b16 %v437
    %v1739 = vunpack.c.h.b16 %v437
    %v1740 = vunpack.c.l.b16 %v438
    %v1741 = vunpack.c.h.b16 %v438
    %v1742 = vunpack.c.l.b16 %v439
    %v1743 = vunpack.c.h.b16 %v439
    %v1744 = vunpack.c.l.b16 %v440
    %v1745 = vunpack.c.h.b16 %v440
    %v1746 = vunpack.c.l.b16 %v441
    %v1747 = vunpack.c.h.b16 %v441
    %v1748 = vunpack.c.l.b16 %v442
    %v1749 = vunpack.c.h.b16 %v442
    %v1750 = vunpack.c.l.b16 %v443
    %v1751 = vunpack.c.h.b16 %v443
    %v1752 = vunpack.c.l.b16 %v444
    %v1753 = vunpack.c.h.b16 %v444
    %v1754 = vunpack.c.l.b16 %v445
    %v1755 = vunpack.c.h.b16 %v445
    %v1756 = vunpack.c.l.b16 %v446
    %v1757 = vunpack.c.h.b16 %v446
    %v1758 = vunpack.c.l.b16 %v447
    %v1759 = vunpack.c.h.b16 %v447
    %v1760 = vunpack.c.l.b16 %v448
    %v1761 = vunpack.c.h.b16 %v448
    %v1762 = vunpack.c.l.b16 %v449
    %v1763 = vunpack.c.h.b16 %v449
    %v1764 = vunpack.c.l.b16 %v450
    %v1765 = vunpack.c.h.b16 %v450
    %v1766 = vunpack.c.l.b16 %v451
    %v1767 = vunpack.c.h.b16 %v451
    %v1768 = vunpack.c.l.b16 %v452
    %v1769 = vunpack.c.h.b16 %v452
    %v1770 = vunpack.c.l.b16 %v453
    %v1771 = vunpack.c.h.b16 %v453
    %v1772 = vunpack.c.l.b16 %v454
    %v1773 = vunpack.c.h.b16 %v454
    %v1774 = vunpack.c.l.b16 %v455
    %v1775 = vunpack.c.h.b16 %v455
    %v1776 = vunpack.c.l.b16 %v456
    %v1777 = vunpack.c.h.b16 %v456
    %v1778 = vunpack.c.l.b16 %v457
    %v1779 = vunpack.c.h.b16 %v457
    %v1780 = vunpack.c.l.b16 %v458
    %v1781 = vunpack.c.h.b16 %v458
    %v1782 = vunpack.c.l.b16 %v459
    %v1783 = vunpack.c.h.b16 %v459
    %v1784 = vunpack.c.l.b16 %v460
    %v1785 = vunpack.c.h.b16 %v460
    %v1786 = vunpack.c.l.b16 %v461
    %v1787 = vunpack.c.h.b16 %v461
    %v1788 = vunpack.c.l.b16 %v462
    %v1789 = vunpack.c.h.b16 %v462
    %v1790 = vunpack.c.l.b16 %v463
    %v1791 = vunpack.c.h.b16 %v463
    %v1792 = vunpack.c.l.b16 %v464
    %v1793 = vunpack.c.h.b16 %v464
    %v1794 = vunpack.c.l.b16 %v465
    %v1795 = vunpack.c.h.b16 %v465
    %v1796 = vunpack.c.l.b16 %v466
    %v1797 = vunpack.c.h.b16 %v466
    %v1798 = vunpack.c.l.b16 %v467
    %v1799 = vunpack.c.h.b16 %v467
    %v1800 = vunpack.c.l.b16 %v468
    %v1801 = vunpack.c.h.b16 %v468
    %v1802 = vunpack.c.l.b16 %v469
    %v1803 = vunpack.c.h.b16 %v469
    %v1804 = vunpack.c.l.b16 %v470
    %v1805 = vunpack.c.h.b16 %v470
    %v1806 = vunpack.c.l.b16 %v471
    %v1807 = vunpack.c.h.b16 %v471
    %v1808 = vunpack.c.l.b16 %v472
    %v1809 = vunpack.c.h.b16 %v472
    %v1810 = vunpack.c.l.b16 %v473
    %v1811 = vunpack.c.h.b16 %v473
    %v1812 = vunpack.c.l.b16 %v474
    %v1813 = vunpack.c.h.b16 %v474
    %v1814 = vunpack.c.l.b16 %v475
    %v1815 = vunpack.c.h.b16 %v475
    %v1816 = vunpack.c.l.b16 %v476
    %v1817 = vunpack.c.h.b16 %v476
    %v1818 = vunpack.c.l.b16 %v477
    %v1819 = vunpack.c.h.b16 %v477
    %v1820 = vunpack.c.l.b16 %v478
    %v1821 = vunpack.c.h.b16 %v478
    %v1822 = vunpack.c.l.b16 %v479
    %v1823 = vunpack.c.h.b16 %v479
    %v1824 = vunpack.c.l.b16 %v480
    %v1825 = vunpack.c.h.b16 %v480
    %v1826 = vunpack.c.l.b16 %v481
    %v1827 = vunpack.c.h.b16 %v481
    %v1828 = vunpack.c.l.b16 %v482
    %v1829 = vunpack.c.h.b16 %v482
    %v1830 = vunpack.c.l.b16 %v483
    %v1831 = vunpack.c.h.b16 %v483
    %v1832 = vunpack.c.l.b16 %v484
    %v1833 = vunpack.c.h.b16 %v484
    %v1834 = vunpack.c.l.b16 %v485
    %v1835 = vunpack.c.h.b16 %v485
    %v1836 = vunpack.c.l.b16 %v486
    %v1837 = vunpack.c.h.b16 %v486
    %v1838 = vunpack.c.l.b16 %v487
    %v1839 = vunpack.c.h.b16 %v487
    %v1840 = vunpack.c.l.b16 %v488
    %v1841 = vunpack.c.h.b16 %v488
    %v1842 = vunpack.c.l.b16 %v489
    %v1843 = vunpack.c.h.b16 %v489
    %v1844 = vunpack.c.l.b16 %v490
    %v1845 = vunpack.c.h.b16 %v490
    %v1846 = vunpack.c.l.b16 %v491
    %v1847 = vunpack.c.h.b16 %v491
    %v1848 = vunpack.c.l.b16 %v492
    %v1849 = vunpack.c.h.b16 %v492
    %v1850 = vunpack.c.l.b16 %v493
    %v1851 = vunpack.c.h.b16 %v493
    %v1852 = vunpack.c.l.b16 %v494
    %v1853 = vunpack.c.h.b16 %v494
    %v1854 = vunpack.c.l.b16 %v495
    %v1855 = vunpack.c.h.b16 %v495
    %v1856 = vunpack.c.l.b16 %v496
    %v1857 = vunpack.c.h.b16 %v496
    %v1858 = vunpack.c.l.b16 %v497
    %v1859 = vunpack.c.h.b16 %v497
    %v1860 = vunpack.c.l.b16 %v498
    %v1861 = vunpack.c.h.b16 %v498
    %v1862 = vunpack.c.l.b16 %v499
    %v1863 = vunpack.c.h.b16 %v499
    %v1864 = vunpack.c.l.b16 %v500
    %v1865 = vunpack.c.h.b16 %v500
    %v1866 = vunpack.c.l.b16 %v501
    %v1867 = vunpack.c.h.b16 %v501
    %v1868 = vunpack.c.l.b16 %v502
    %v1869 = vunpack.c.h.b16 %v502
    %v1870 = vunpack.c.l.b16 %v503
    %v1871 = vunpack.c.h.b16 %v503
    %v1872 = vunpack.c.l.b16 %v504
    %v1873 = vunpack.c.h.b16 %v504
    %v1874 = vunpack.c.l.b16 %v505
    %v1875 = vunpack.c.h.b16 %v505
    %v1876 = vunpack.c.l.b16 %v506
    %v1877 = vunpack.c.h.b16 %v506
    %v1878 = vunpack.c.l.b16 %v507
    %v1879 = vunpack.c.h.b16 %v507
    %v1880 = vunpack.c.l.b16 %v508
    %v1881 = vunpack.c.h.b16 %v508
    %v1882 = vunpack.c.l.b16 %v509
    %v1883 = vunpack.c.h.b16 %v509
    %v1884 = vunpack.c.l.b16 %v510
    %v1885 = vunpack.c.h.b16 %v510
    %v1886 = vunpack.c.l.b16 %v511
    %v1887 = vunpack.c.h.b16 %v511
    %v1888 = vunpack.c.l.b16 %v512
    %v1889 = vunpack.c.h.b16 %v512
    %v1890 = vunpack.c.l.b16 %v513
    %v1891 = vunpack.c.h.b16 %v513
    %v1892 = vunpack.c.l.b16 %v514
    %v1893 = vunpack.c.h.b16 %v514
    %v1894 = vunpack.c.l.b16 %v515
    %v1895 = vunpack.c.h.b16 %v515
    %v1896 = vunpack.c.l.b16 %v516
    %v1897 = vunpack.c.h.b16 %v516
    %v1898 = vunpack.c.l.b16 %v517
    %v1899 = vunpack.c.h.b16 %v517
    %v1900 = vunpack.c.l.b16 %v518
    %v1901 = vunpack.c.h.b16 %v518
    %v1902 = vunpack.c.l.b16 %v519
    %v1903 = vunpack.c.h.b16 %v519
    %v1904 = vunpack.c.l.b16 %v520
    %v1905 = vunpack.c.h.b16 %v520
    %v1906 = vunpack.c.l.b16 %v521
    %v1907 = vunpack.c.h.b16 %v521
    %v1908 = vunpack.c.l.b16 %v522
    %v1909 = vunpack.c.h.b16 %v522
    %v1910 = vunpack.c.l.b16 %v523
    %v1911 = vunpack.c.h.b16 %v523
    %v1912 = vunpack.c.l.b16 %v524
    %v1913 = vunpack.c.h.b16 %v524
    %v1914 = vunpack.c.l.b16 %v525
    %v1915 = vunpack.c.h.b16 %v525
    %v1916 = vunpack.c.l.b16 %v526
    %v1917 = vunpack.c.h.b16 %v526
    %v1918 = vunpack.c.l.b16 %v527
    %v1919 = vunpack.c.h.b16 %v527
    %v1920 = vunpack.c.l.b16 %v528
    %v1921 = vunpack.c.h.b16 %v528
    %v1922 = vunpack.c.l.b16 %v529
    %v1923 = vunpack.c.h.b16 %v529
    %v1924 = vunpack.c.l.b16 %v530
    %v1925 = vunpack.c.h.b16 %v530
    %v1926 = vunpack.c.l.b16 %v531
    %v1927 = vunpack.c.h.b16 %v531
    %v1928 = vunpack.c.l.b16 %v532
    %v1929 = vunpack.c.h.b16 %v532
    %v1930 = vunpack.c.l.b16 %v533
    %v1931 = vunpack.c.h.b16 %v533
    %v1932 = vunpack.c.l.b16 %v534
    %v1933 = vunpack.c.h.b16 %v534
    %v1934 = vunpack.c.l.b16 %v535
    %v1935 = vunpack.c.h.b16 %v535
    %v1936 = vunpack.c.l.b16 %v536
    %v1937 = vunpack.c.h.b16 %v536
    %v1938 = vunpack.c.l.b16 %v537
    %v1939 = vunpack.c.h.b16 %v537
    %v1940 = vunpack.c.l.b16 %v538
    %v1941 = vunpack.c.h.b16 %v538
    %v1942 = vunpack.c.l.b16 %v539
    %v1943 = vunpack.c.h.b16 %v539
    %v1944 = vunpack.c.l.b16 %v540
    %v1945 = vunpack.c.h.b16 %v540
    %v1946 = vunpack.c.l.b16 %v541
    %v1947 = vunpack.c.h.b16 %v541
    %v1948 = vunpack.c.l.b16 %v542
    %v1949 = vunpack.c.h.b16 %v542
    %v1950 = vunpack.c.l.b16 %v543
    %v1951 = vunpack.c.h.b16 %v543
    %v1952 = vunpack.c.l.b16 %v544
    %v1953 = vunpack.c.h.b16 %v544
    %v1954 = vunpack.c.l.b16 %v545
    %v1955 = vunpack.c.h.b16 %v545
    %v1956 = vunpack.c.l.b16 %v546
    %v1957 = vunpack.c.h.b16 %v546
    %v1958 = vunpack.c.l.b16 %v547
    %v1959 = vunpack.c.h.b16 %v547
    %v1960 = vunpack.c.l.b16 %v548
    %v1961 = vunpack.c.h.b16 %v548
    %v1962 = vunpack.c.l.b16 %v549
    %v1963 = vunpack.c.h.b16 %v549
    %v1964 = vunpack.c.l.b16 %v550
    %v1965 = vunpack.c.h.b16 %v550
    %v1966 = vunpack.c.l.b16 %v551
    %v1967 = vunpack.c.h.b16 %v551
    %v1968 = vunpack.c.l.b16 %v552
    %v1969 = vunpack.c.h.b16 %v552
    %v1970 = vunpack.c.l.b16 %v553
    %v1971 = vunpack.c.h.b16 %v553
    %v1972 = vunpack.c.l.b16 %v554
    %v1973 = vunpack.c.h.b16 %v554
    %v1974 = vunpack.c.l.b16 %v555
    %v1975 = vunpack.c.h.b16 %v555
    %v1976 = vunpack.c.l.b16 %v556
    %v1977 = vunpack.c.h.b16 %v556
    %v1978 = vunpack.c.l.b16 %v557
    %v1979 = vunpack.c.h.b16 %v557
    %v1980 = vunpack.c.l.b16 %v558
    %v1981 = vunpack.c.h.b16 %v558
    %v1982 = vunpack.c.l.b16 %v559
    %v1983 = vunpack.c.h.b16 %v559
    %v1984 = vunpack.c.l.b16 %v560
    %v1985 = vunpack.c.h.b16 %v560
    %v1986 = vunpack.c.l.b16 %v561
    %v1987 = vunpack.c.h.b16 %v561
    %v1988 = vunpack.c.l.b16 %v562
    %v1989 = vunpack.c.h.b16 %v562
    %v1990 = vunpack.c.l.b16 %v563
    %v1991 = vunpack.c.h.b16 %v563
    %v1992 = vunpack.c.l.b16 %v564
    %v1993 = vunpack.c.h.b16 %v564
    %v1994 = vunpack.c.l.b16 %v565
    %v1995 = vunpack.c.h.b16 %v565
    %v1996 = vunpack.c.l.b16 %v566
    %v1997 = vunpack.c.h.b16 %v566
    %v1998 = vunpack.c.l.b16 %v567
    %v1999 = vunpack.c.h.b16 %v567
    %v2000 = vunpack.c.l.b16 %v568
    %v2001 = vunpack.c.h.b16 %v568
    %v2002 = vunpack.c.l.b16 %v569
    %v2003 = vunpack.c.h.b16 %v569
    %v2004 = vunpack.c.l.b16 %v570
    %v2005 = vunpack.c.h.b16 %v570
    %v2006 = vunpack.c.l.b16 %v571
    %v2007 = vunpack.c.h.b16 %v571
    %v2008 = vunpack.c.l.b16 %v572
    %v2009 = vunpack.c.h.b16 %v572
    %v2010 = vunpack.c.l.b16 %v573
    %v2011 = vunpack.c.h.b16 %v573
    %v2012 = vunpack.c.l.b16 %v574
    %v2013 = vunpack.c.h.b16 %v574
    %v2014 = vunpack.c.l.b16 %v575
    %v2015 = vunpack.c.h.b16 %v575
    %v2016 = vunpack.c.l.b16 %v576
    %v2017 = vunpack.c.h.b16 %v576
    %v2018 = vunpack.c.l.b16 %v577
    %v2019 = vunpack.c.h.b16 %v577
    %v2020 = vunpack.c.l.b16 %v578
    %v2021 = vunpack.c.h.b16 %v578
    %v2022 = vunpack.c.l.b16 %v579
    %v2023 = vunpack.c.h.b16 %v579
    %v2024 = vunpack.c.l.b16 %v580
    %v2025 = vunpack.c.h.b16 %v580
    %v2026 = vunpack.c.l.b16 %v581
    %v2027 = vunpack.c.h.b16 %v581
    %v2028 = vunpack.c.l.b16 %v582
    %v2029 = vunpack.c.h.b16 %v582
    %v2030 = vunpack.c.l.b16 %v583
    %v2031 = vunpack.c.h.b16 %v583
    %v2032 = vunpack.c.l.b16 %v584
    %v2033 = vunpack.c.h.b16 %v584
    %v2034 = vunpack.c.l.b16 %v585
    %v2035 = vunpack.c.h.b16 %v585
    %v2036 = vunpack.c.l.b16 %v586
    %v2037 = vunpack.c.h.b16 %v586
    %v2038 = vunpack.c.l.b16 %v587
    %v2039 = vunpack.c.h.b16 %v587
    %v2040 = vunpack.c.l.b16 %v588
    %v2041 = vunpack.c.h.b16 %v588
    %v2042 = vunpack.c.l.b16 %v589
    %v2043 = vunpack.c.h.b16 %v589
    %v2044 = vunpack.c.l.b16 %v590
    %v2045 = vunpack.c.h.b16 %v590
    %v2046 = vunpack.c.l.b16 %v591
    %v2047 = vunpack.c.h.b16 %v591
    %v2048 = vunpack.c.l.b16 %v592
    %v2049 = vunpack.c.h.b16 %v592
    %v2050 = vunpack.c.l.b16 %v593
    %v2051 = vunpack.c.h.b16 %v593
    %v2052 = vunpack.c.l.b16 %v594
    %v2053 = vunpack.c.h.b16 %v594
    %v2054 = vunpack.c.l.b16 %v595
    %v2055 = vunpack.c.h.b16 %v595
    %v2056 = vunpack.c.l.b16 %v596
    %v2057 = vunpack.c.h.b16 %v596
    %v2058 = vunpack.c.l.b16 %v597
    %v2059 = vunpack.c.h.b16 %v597
    %v2060 = vunpack.c.l.b16 %v598
    %v2061 = vunpack.c.h.b16 %v598
    %v2062 = vunpack.c.l.b16 %v599
    %v2063 = vunpack.c.h.b16 %v599
    %v2064 = vunpack.c.l.b16 %v600
    %v2065 = vunpack.c.h.b16 %v600
    %v2066 = vunpack.c.l.b16 %v601
    %v2067 = vunpack.c.h.b16 %v601
    %v2068 = vunpack.c.l.b16 %v602
    %v2069 = vunpack.c.h.b16 %v602
    %v2070 = vunpack.c.l.b16 %v603
    %v2071 = vunpack.c.h.b16 %v603
    %v2072 = vunpack.c.l.b16 %v604
    %v2073 = vunpack.c.h.b16 %v604
    %v2074 = vunpack.c.l.b16 %v605
    %v2075 = vunpack.c.h.b16 %v605
    %v2076 = vunpack.c.l.b16 %v606
    %v2077 = vunpack.c.h.b16 %v606
    %v2078 = vunpack.c.l.b16 %v607
    %v2079 = vunpack.c.h.b16 %v607
    %v2080 = vunpack.c.l.b16 %v608
    %v2081 = vunpack.c.h.b16 %v608
    %v2082 = vunpack.c.l.b16 %v609
    %v2083 = vunpack.c.h.b16 %v609
    %v2084 = vunpack.c.l.b16 %v610
    %v2085 = vunpack.c.h.b16 %v610
    %v2086 = vunpack.c.l.b16 %v611
    %v2087 = vunpack.c.h.b16 %v611
    %v2088 = vunpack.c.l.b16 %v612
    %v2089 = vunpack.c.h.b16 %v612
    %v2090 = vunpack.c.l.b16 %v613
    %v2091 = vunpack.c.h.b16 %v613
    %v2092 = vunpack.c.l.b16 %v614
    %v2093 = vunpack.c.h.b16 %v614
    %v2094 = vunpack.c.l.b16 %v615
    %v2095 = vunpack.c.h.b16 %v615
    %v2096 = vunpack.c.l.b16 %v616
    %v2097 = vunpack.c.h.b16 %v616
    %v2098 = vunpack.c.l.b16 %v617
    %v2099 = vunpack.c.h.b16 %v617
    %v2100 = vunpack.c.l.b16 %v618
    %v2101 = vunpack.c.h.b16 %v618
    %v2102 = vunpack.c.l.b16 %v619
    %v2103 = vunpack.c.h.b16 %v619
    %v2104 = vunpack.c.l.b16 %v620
    %v2105 = vunpack.c.h.b16 %v620
    %v2106 = vunpack.c.l.b16 %v621
    %v2107 = vunpack.c.h.b16 %v621
    %v2108 = vunpack.c.l.b16 %v622
    %v2109 = vunpack.c.h.b16 %v622
    %v2110 = vunpack.c.l.b16 %v623
    %v2111 = vunpack.c.h.b16 %v623
    %v2112 = vunpack.c.l.b16 %v624
    %v2113 = vunpack.c.h.b16 %v624
    %v2114 = vunpack.c.l.b16 %v625
    %v2115 = vunpack.c.h.b16 %v625
    %v2116 = vunpack.c.l.b16 %v626
    %v2117 = vunpack.c.h.b16 %v626
    %v2118 = vunpack.c.l.b16 %v627
    %v2119 = vunpack.c.h.b16 %v627
    %v2120 = vunpack.c.l.b16 %v628
    %v2121 = vunpack.c.h.b16 %v628
    %v2122 = vunpack.c.l.b16 %v629
    %v2123 = vunpack.c.h.b16 %v629
    %v2124 = vunpack.c.l.b16 %v630
    %v2125 = vunpack.c.h.b16 %v630
    %v2126 = vunpack.c.l.b16 %v631
    %v2127 = vunpack.c.h.b16 %v631
    %v2128 = vunpack.c.l.b16 %v632
    %v2129 = vunpack.c.h.b16 %v632
    %v2130 = vunpack.c.l.b16 %v633
    %v2131 = vunpack.c.h.b16 %v633
    %v2132 = vunpack.c.l.b16 %v634
    %v2133 = vunpack.c.h.b16 %v634
    %v2134 = vunpack.c.l.b16 %v635
    %v2135 = vunpack.c.h.b16 %v635
    %v2136 = vunpack.c.l.b16 %v636
    %v2137 = vunpack.c.h.b16 %v636
    %v2138 = vunpack.c.l.b16 %v637
    %v2139 = vunpack.c.h.b16 %v637
    %v2140 = vunpack.c.l.b16 %v638
    %v2141 = vunpack.c.h.b16 %v638
    %v2142 = vunpack.c.l.b16 %v639
    %v2143 = vunpack.c.h.b16 %v639
    %v2144 = vunpack.c.l.b16 %v640
    %v2145 = vunpack.c.h.b16 %v640
    %v2146 = vunpack.c.l.b16 %v641
    %v2147 = vunpack.c.h.b16 %v641
    %v2148 = vunpack.c.l.b16 %v642
    %v2149 = vunpack.c.h.b16 %v642
    %v2150 = vunpack.c.l.b16 %v643
    %v2151 = vunpack.c.h.b16 %v643
    %v2152 = vunpack.c.l.b16 %v644
    %v2153 = vunpack.c.h.b16 %v644
    %v2154 = vunpack.c.l.b16 %v645
    %v2155 = vunpack.c.h.b16 %v645
    %v2156 = vunpack.c.l.b16 %v646
    %v2157 = vunpack.c.h.b16 %v646
    %v2158 = vunpack.c.l.b16 %v647
    %v2159 = vunpack.c.h.b16 %v647
    %v2160 = vunpack.c.l.b16 %v648
    %v2161 = vunpack.c.h.b16 %v648
    %v2162 = vunpack.c.l.b16 %v649
    %v2163 = vunpack.c.h.b16 %v649
    %v2164 = vunpack.c.l.b16 %v650
    %v2165 = vunpack.c.h.b16 %v650
    %v2166 = vunpack.c.l.b16 %v651
    %v2167 = vunpack.c.h.b16 %v651
    %v2168 = vunpack.c.l.b16 %v652
    %v2169 = vunpack.c.h.b16 %v652
    %v2170 = vunpack.c.l.b16 %v653
    %v2171 = vunpack.c.h.b16 %v653
    %v2172 = vunpack.c.l.b16 %v654
    %v2173 = vunpack.c.h.b16 %v654
    %v2174 = vunpack.c.l.b16 %v655
    %v2175 = vunpack.c.h.b16 %v655
    %v2176 = vunpack.c.l.b16 %v656
    %v2177 = vunpack.c.h.b16 %v656
    %v2178 = vunpack.c.l.b16 %v657
    %v2179 = vunpack.c.h.b16 %v657
    %v2180 = vunpack.c.l.b16 %v658
    %v2181 = vunpack.c.h.b16 %v658
    %v2182 = vunpack.c.l.b16 %v659
    %v2183 = vunpack.c.h.b16 %v659
    %v2184 = vunpack.c.l.b16 %v660
    %v2185 = vunpack.c.h.b16 %v660
    %v2186 = vunpack.c.l.b16 %v661
    %v2187 = vunpack.c.h.b16 %v661
    %v2188 = vunpack.c.l.b16 %v662
    %v2189 = vunpack.c.h.b16 %v662
    %v2190 = vunpack.c.l.b16 %v663
    %v2191 = vunpack.c.h.b16 %v663
    %v2192 = vunpack.c.l.b16 %v664
    %v2193 = vunpack.c.h.b16 %v664
    %v2194 = vunpack.c.l.b16 %v665
    %v2195 = vunpack.c.h.b16 %v665
    %v2196 = vunpack.c.l.b16 %v666
    %v2197 = vunpack.c.h.b16 %v666
    %v2198 = vunpack.c.l.b16 %v667
    %v2199 = vunpack.c.h.b16 %v667
    %v2200 = vunpack.c.l.b16 %v668
    %v2201 = vunpack.c.h.b16 %v668
    %v2202 = vunpack.c.l.b16 %v669
    %v2203 = vunpack.c.h.b16 %v669
    %v2204 = vunpack.c.l.b16 %v670
    %v2205 = vunpack.c.h.b16 %v670
    %v2206 = vunpack.c.l.b16 %v671
    %v2207 = vunpack.c.h.b16 %v671
    %v2208 = vpack.c.b16 %v1200, %v1184
    %v2209 = vpack.c.b16 %v1201, %v1185
    %v2210 = vpack.c.b16 %v1202, %v1186
    %v2211 = vpack.c.b16 %v1203, %v1187
    %v2212 = vpack.c.b16 %v1204, %v1188
    %v2213 = vpack.c.b16 %v1205, %v1189
    %v2214 = vpack.c.b16 %v1206, %v1190
    %v2215 = vpack.c.b16 %v1207, %v1191
    %v2216 = vpack.c.b16 %v1208, %v1192
    %v2217 = vpack.c.b16 %v1209, %v1193
    %v2218 = vpack.c.b16 %v1210, %v1194
    %v2219 = vpack.c.b16 %v1211, %v1195
    %v2220 = vpack.c.b16 %v1212, %v1196
    %v2221 = vpack.c.b16 %v1213, %v1197
    %v2222 = vpack.c.b16 %v1214, %v1198
    %v2223 = vpack.c.b16 %v1215, %v1199
    %v2224 = vpack.c.b16 %v1232, %v1216
    %v2225 = vpack.c.b16 %v1233, %v1217
    %v2226 = vpack.c.b16 %v1234, %v1218
    %v2227 = vpack.c.b16 %v1235, %v1219
    %v2228 = vpack.c.b16 %v1236, %v1220
    %v2229 = vpack.c.b16 %v1237, %v1221
    %v2230 = vpack.c.b16 %v1238, %v1222
    %v2231 = vpack.c.b16 %v1239, %v1223
    %v2232 = vpack.c.b16 %v1240, %v1224
    %v2233 = vpack.c.b16 %v1241, %v1225
    %v2234 = vpack.c.b16 %v1242, %v1226
    %v2235 = vpack.c.b16 %v1243, %v1227
    %v2236 = vpack.c.b16 %v1244, %v1228
    %v2237 = vpack.c.b16 %v1245, %v1229
    %v2238 = vpack.c.b16 %v1246, %v1230
    %v2239 = vpack.c.b16 %v1247, %v1231
    %v2240 = vpack.c.b16 %v1264, %v1248
    %v2241 = vpack.c.b16 %v1265, %v1249
    %v2242 = vpack.c.b16 %v1266, %v1250
    %v2243 = vpack.c.b16 %v1267, %v1251
    %v2244 = vpack.c.b16 %v1268, %v1252
    %v2245 = vpack.c.b16 %v1269, %v1253
    %v2246 = vpack.c.b16 %v1270, %v1254
    %v2247 = vpack.c.b16 %v1271, %v1255
    %v2248 = vpack.c.b16 %v1272, %v1256
    %v2249 = vpack.c.b16 %v1273, %v1257
    %v2250 = vpack.c.b16 %v1274, %v1258
    %v2251 = vpack.c.b16 %v1275, %v1259
    %v2252 = vpack.c.b16 %v1276, %v1260
    %v2253 = vpack.c.b16 %v1277, %v1261
    %v2254 = vpack.c.b16 %v1278, %v1262
    %v2255 = vpack.c.b16 %v1279, %v1263
    %v2256 = vpack.c.b16 %v1296, %v1280
    %v2257 = vpack.c.b16 %v1297, %v1281
    %v2258 = vpack.c.b16 %v1298, %v1282
    %v2259 = vpack.c.b16 %v1299, %v1283
    %v2260 = vpack.c.b16 %v1300, %v1284
    %v2261 = vpack.c.b16 %v1301, %v1285
    %v2262 = vpack.c.b16 %v1302, %v1286
    %v2263 = vpack.c.b16 %v1303, %v1287
    %v2264 = vpack.c.b16 %v1304, %v1288
    %v2265 = vpack.c.b16 %v1305, %v1289
    %v2266 = vpack.c.b16 %v1306, %v1290
    %v2267 = vpack.c.b16 %v1307, %v1291
    %v2268 = vpack.c.b16 %v1308, %v1292
    %v2269 = vpack.c.b16 %v1309, %v1293
    %v2270 = vpack.c.b16 %v1310, %v1294
    %v2271 = vpack.c.b16 %v1311, %v1295
    %v2272 = vpack.c.b16 %v1328, %v1312
    %v2273 = vpack.c.b16 %v1329, %v1313
    %v2274 = vpack.c.b16 %v1330, %v1314
    %v2275 = vpack.c.b16 %v1331, %v1315
    %v2276 = vpack.c.b16 %v1332, %v1316
    %v2277 = vpack.c.b16 %v1333, %v1317
    %v2278 = vpack.c.b16 %v1334, %v1318
    %v2279 = vpack.c.b16 %v1335, %v1319
    %v2280 = vpack.c.b16 %v1336, %v1320
    %v2281 = vpack.c.b16 %v1337, %v1321
    %v2282 = vpack.c.b16 %v1338, %v1322
    %v2283 = vpack.c.b16 %v1339, %v1323
    %v2284 = vpack.c.b16 %v1340, %v1324
    %v2285 = vpack.c.b16 %v1341, %v1325
    %v2286 = vpack.c.b16 %v1342, %v1326
    %v2287 = vpack.c.b16 %v1343, %v1327
    %v2288 = vpack.c.b16 %v1360, %v1344
    %v2289 = vpack.c.b16 %v1361, %v1345
    %v2290 = vpack.c.b16 %v1362, %v1346
    %v2291 = vpack.c.b16 %v1363, %v1347
    %v2292 = vpack.c.b16 %v1364, %v1348
    %v2293 = vpack.c.b16 %v1365, %v1349
    %v2294 = vpack.c.b16 %v1366, %v1350
    %v2295 = vpack.c.b16 %v1367, %v1351
    %v2296 = vpack.c.b16 %v1368, %v1352
    %v2297 = vpack.c.b16 %v1369, %v1353
    %v2298 = vpack.c.b16 %v1370, %v1354
    %v2299 = vpack.c.b16 %v1371, %v1355
    %v2300 = vpack.c.b16 %v1372, %v1356
    %v2301 = vpack.c.b16 %v1373, %v1357
    %v2302 = vpack.c.b16 %v1374, %v1358
    %v2303 = vpack.c.b16 %v1375, %v1359
    %v2304 = vpack.c.b16 %v1392, %v1376
    %v2305 = vpack.c.b16 %v1393, %v1377
    %v2306 = vpack.c.b16 %v1394, %v1378
    %v2307 = vpack.c.b16 %v1395, %v1379
    %v2308 = vpack.c.b16 %v1396, %v1380
    %v2309 = vpack.c.b16 %v1397, %v1381
    %v2310 = vpack.c.b16 %v1398, %v1382
    %v2311 = vpack.c.b16 %v1399, %v1383
    %v2312 = vpack.c.b16 %v1400, %v1384
    %v2313 = vpack.c.b16 %v1401, %v1385
    %v2314 = vpack.c.b16 %v1402, %v1386
    %v2315 = vpack.c.b16 %v1403, %v1387
    %v2316 = vpack.c.b16 %v1404, %v1388
    %v2317 = vpack.c.b16 %v1405, %v1389
    %v2318 = vpack.c.b16 %v1406, %v1390
    %v2319 = vpack.c.b16 %v1407, %v1391
    %v2320 = vpack.c.b16 %v1424, %v1408
    %v2321 = vpack.c.b16 %v1425, %v1409
    %v2322 = vpack.c.b16 %v1426, %v1410
    %v2323 = vpack.c.b16 %v1427, %v1411
    %v2324 = vpack.c.b16 %v1428, %v1412
    %v2325 = vpack.c.b16 %v1429, %v1413
    %v2326 = vpack.c.b16 %v1430, %v1414
    %v2327 = vpack.c.b16 %v1431, %v1415
    %v2328 = vpack.c.b16 %v1432, %v1416
    %v2329 = vpack.c.b16 %v1433, %v1417
    %v2330 = vpack.c.b16 %v1434, %v1418
    %v2331 = vpack.c.b16 %v1435, %v1419
    %v2332 = vpack.c.b16 %v1436, %v1420
    %v2333 = vpack.c.b16 %v1437, %v1421
    %v2334 = vpack.c.b16 %v1438, %v1422
    %v2335 = vpack.c.b16 %v1439, %v1423
    %v2336 = vpack.c.b16 %v1456, %v1440
    %v2337 = vpack.c.b16 %v1457, %v1441
    %v2338 = vpack.c.b16 %v1458, %v1442
    %v2339 = vpack.c.b16 %v1459, %v1443
    %v2340 = vpack.c.b16 %v1460, %v1444
    %v2341 = vpack.c.b16 %v1461, %v1445
    %v2342 = vpack.c.b16 %v1462, %v1446
    %v2343 = vpack.c.b16 %v1463, %v1447
    %v2344 = vpack.c.b16 %v1464, %v1448
    %v2345 = vpack.c.b16 %v1465, %v1449
    %v2346 = vpack.c.b16 %v1466, %v1450
    %v2347 = vpack.c.b16 %v1467, %v1451
    %v2348 = vpack.c.b16 %v1468, %v1452
    %v2349 = vpack.c.b16 %v1469, %v1453
    %v2350 = vpack.c.b16 %v1470, %v1454
    %v2351 = vpack.c.b16 %v1471, %v1455
    %v2352 = vpack.c.b16 %v1488, %v1472
    %v2353 = vpack.c.b16 %v1489, %v1473
    %v2354 = vpack.c.b16 %v1490, %v1474
    %v2355 = vpack.c.b16 %v1491, %v1475
    %v2356 = vpack.c.b16 %v1492, %v1476
    %v2357 = vpack.c.b16 %v1493, %v1477
    %v2358 = vpack.c.b16 %v1494, %v1478
    %v2359 = vpack.c.b16 %v1495, %v1479
    %v2360 = vpack.c.b16 %v1496, %v1480
    %v2361 = vpack.c.b16 %v1497, %v1481
    %v2362 = vpack.c.b16 %v1498, %v1482
    %v2363 = vpack.c.b16 %v1499, %v1483
    %v2364 = vpack.c.b16 %v1500, %v1484
    %v2365 = vpack.c.b16 %v1501, %v1485
    %v2366 = vpack.c.b16 %v1502, %v1486
    %v2367 = vpack.c.b16 %v1503, %v1487
    %v2368 = vpack.c.b16 %v1520, %v1504
    %v2369 = vpack.c.b16 %v1521, %v1505
    %v2370 = vpack.c.b16 %v1522, %v1506
    %v2371 = vpack.c.b16 %v1523, %v1507
    %v2372 = vpack.c.b16 %v1524, %v1508
    %v2373 = vpack.c.b16 %v1525, %v1509
    %v2374 = vpack.c.b16 %v1526, %v1510
    %v2375 = vpack.c.b16 %v1527, %v1511
    %v2376 = vpack.c.b16 %v1528, %v1512
    %v2377 = vpack.c.b16 %v1529, %v1513
    %v2378 = vpack.c.b16 %v1530, %v1514
    %v2379 = vpack.c.b16 %v1531, %v1515
    %v2380 = vpack.c.b16 %v1532, %v1516
    %v2381 = vpack.c.b16 %v1533, %v1517
    %v2382 = vpack.c.b16 %v1534, %v1518
    %v2383 = vpack.c.b16 %v1535, %v1519
    %v2384 = vpack.c.b16 %v1552, %v1536
    %v2385 = vpack.c.b16 %v1553, %v1537
    %v2386 = vpack.c.b16 %v1554, %v1538
    %v2387 = vpack.c.b16 %v1555, %v1539
    %v2388 = vpack.c.b16 %v1556, %v1540
    %v2389 = vpack.c.b16 %v1557, %v1541
    %v2390 = vpack.c.b16 %v1558, %v1542
    %v2391 = vpack.c.b16 %v1559, %v1543
    %v2392 = vpack.c.b16 %v1560, %v1544
    %v2393 = vpack.c.b16 %v1561, %v1545
    %v2394 = vpack.c.b16 %v1562, %v1546
    %v2395 = vpack.c.b16 %v1563, %v1547
    %v2396 = vpack.c.b16 %v1564, %v1548
    %v2397 = vpack.c.b16 %v1565, %v1549
    %v2398 = vpack.c.b16 %v1566, %v1550
    %v2399 = vpack.c.b16 %v1567, %v1551
    %v2400 = vpack.c.b16 %v1584, %v1568
    %v2401 = vpack.c.b16 %v1585, %v1569
    %v2402 = vpack.c.b16 %v1586, %v1570
    %v2403 = vpack.c.b16 %v1587, %v1571
    %v2404 = vpack.c.b16 %v1588, %v1572
    %v2405 = vpack.c.b16 %v1589, %v1573
    %v2406 = vpack.c.b16 %v1590, %v1574
    %v2407 = vpack.c.b16 %v1591, %v1575
    %v2408 = vpack.c.b16 %v1592, %v1576
    %v2409 = vpack.c.b16 %v1593, %v1577
    %v2410 = vpack.c.b16 %v1594, %v1578
    %v2411 = vpack.c.b16 %v1595, %v1579
    %v2412 = vpack.c.b16 %v1596, %v1580
    %v2413 = vpack.c.b16 %v1597, %v1581
    %v2414 = vpack.c.b16 %v1598, %v1582
    %v2415 = vpack.c.b16 %v1599, %v1583
    %v2416 = vpack.c.b16 %v1616, %v1600
    %v2417 = vpack.c.b16 %v1617, %v1601
    %v2418 = vpack.c.b16 %v1618, %v1602
    %v2419 = vpack.c.b16 %v1619, %v1603
    %v2420 = vpack.c.b16 %v1620, %v1604
    %v2421 = vpack.c.b16 %v1621, %v1605
    %v2422 = vpack.c.b16 %v1622, %v1606
    %v2423 = vpack.c.b16 %v1623, %v1607
    %v2424 = vpack.c.b16 %v1624, %v1608
    %v2425 = vpack.c.b16 %v1625, %v1609
    %v2426 = vpack.c.b16 %v1626, %v1610
    %v2427 = vpack.c.b16 %v1627, %v1611
    %v2428 = vpack.c.b16 %v1628, %v1612
    %v2429 = vpack.c.b16 %v1629, %v1613
    %v2430 = vpack.c.b16 %v1630, %v1614
    %v2431 = vpack.c.b16 %v1631, %v1615
    %v2432 = vpack.c.b16 %v1648, %v1632
    %v2433 = vpack.c.b16 %v1649, %v1633
    %v2434 = vpack.c.b16 %v1650, %v1634
    %v2435 = vpack.c.b16 %v1651, %v1635
    %v2436 = vpack.c.b16 %v1652, %v1636
    %v2437 = vpack.c.b16 %v1653, %v1637
    %v2438 = vpack.c.b16 %v1654, %v1638
    %v2439 = vpack.c.b16 %v1655, %v1639
    %v2440 = vpack.c.b16 %v1656, %v1640
    %v2441 = vpack.c.b16 %v1657, %v1641
    %v2442 = vpack.c.b16 %v1658, %v1642
    %v2443 = vpack.c.b16 %v1659, %v1643
    %v2444 = vpack.c.b16 %v1660, %v1644
    %v2445 = vpack.c.b16 %v1661, %v1645
    %v2446 = vpack.c.b16 %v1662, %v1646
    %v2447 = vpack.c.b16 %v1663, %v1647
    %v2448 = vpack.c.b16 %v1680, %v1664
    %v2449 = vpack.c.b16 %v1681, %v1665
    %v2450 = vpack.c.b16 %v1682, %v1666
    %v2451 = vpack.c.b16 %v1683, %v1667
    %v2452 = vpack.c.b16 %v1684, %v1668
    %v2453 = vpack.c.b16 %v1685, %v1669
    %v2454 = vpack.c.b16 %v1686, %v1670
    %v2455 = vpack.c.b16 %v1687, %v1671
    %v2456 = vpack.c.b16 %v1688, %v1672
    %v2457 = vpack.c.b16 %v1689, %v1673
    %v2458 = vpack.c.b16 %v1690, %v1674
    %v2459 = vpack.c.b16 %v1691, %v1675
    %v2460 = vpack.c.b16 %v1692, %v1676
    %v2461 = vpack.c.b16 %v1693, %v1677
    %v2462 = vpack.c.b16 %v1694, %v1678
    %v2463 = vpack.c.b16 %v1695, %v1679
    %v2464 = vpack.c.b16 %v1712, %v1696
    %v2465 = vpack.c.b16 %v1713, %v1697
    %v2466 = vpack.c.b16 %v1714, %v1698
    %v2467 = vpack.c.b16 %v1715, %v1699
    %v2468 = vpack.c.b16 %v1716, %v1700
    %v2469 = vpack.c.b16 %v1717, %v1701
    %v2470 = vpack.c.b16 %v1718, %v1702
    %v2471 = vpack.c.b16 %v1719, %v1703
    %v2472 = vpack.c.b16 %v1720, %v1704
    %v2473 = vpack.c.b16 %v1721, %v1705
    %v2474 = vpack.c.b16 %v1722, %v1706
    %v2475 = vpack.c.b16 %v1723, %v1707
    %v2476 = vpack.c.b16 %v1724, %v1708
    %v2477 = vpack.c.b16 %v1725, %v1709
    %v2478 = vpack.c.b16 %v1726, %v1710
    %v2479 = vpack.c.b16 %v1727, %v1711
    %v2480 = vpack.c.b16 %v1744, %v1728
    %v2481 = vpack.c.b16 %v1745, %v1729
    %v2482 = vpack.c.b16 %v1746, %v1730
    %v2483 = vpack.c.b16 %v1747, %v1731
    %v2484 = vpack.c.b16 %v1748, %v1732
    %v2485 = vpack.c.b16 %v1749, %v1733
    %v2486 = vpack.c.b16 %v1750, %v1734
    %v2487 = vpack.c.b16 %v1751, %v1735
    %v2488 = vpack.c.b16 %v1752, %v1736
    %v2489 = vpack.c.b16 %v1753, %v1737
    %v2490 = vpack.c.b16 %v1754, %v1738
    %v2491 = vpack.c.b16 %v1755, %v1739
    %v2492 = vpack.c.b16 %v1756, %v1740
    %v2493 = vpack.c.b16 %v1757, %v1741
    %v2494 = vpack.c.b16 %v1758, %v1742
    %v2495 = vpack.c.b16 %v1759, %v1743
    %v2496 = vpack.c.b16 %v1776, %v1760
    %v2497 = vpack.c.b16 %v1777, %v1761
    %v2498 = vpack.c.b16 %v1778, %v1762
    %v2499 = vpack.c.b16 %v1779, %v1763
    %v2500 = vpack.c.b16 %v1780, %v1764
    %v2501 = vpack.c.b16 %v1781, %v1765
    %v2502 = vpack.c.b16 %v1782, %v1766
    %v2503 = vpack.c.b16 %v1783, %v1767
    %v2504 = vpack.c.b16 %v1784, %v1768
    %v2505 = vpack.c.b16 %v1785, %v1769
    %v2506 = vpack.c.b16 %v1786, %v1770
    %v2507 = vpack.c.b16 %v1787, %v1771
    %v2508 = vpack.c.b16 %v1788, %v1772
    %v2509 = vpack.c.b16 %v1789, %v1773
    %v2510 = vpack.c.b16 %v1790, %v1774
    %v2511 = vpack.c.b16 %v1791, %v1775
    %v2512 = vpack.c.b16 %v1808, %v1792
    %v2513 = vpack.c.b16 %v1809, %v1793
    %v2514 = vpack.c.b16 %v1810, %v1794
    %v2515 = vpack.c.b16 %v1811, %v1795
    %v2516 = vpack.c.b16 %v1812, %v1796
    %v2517 = vpack.c.b16 %v1813, %v1797
    %v2518 = vpack.c.b16 %v1814, %v1798
    %v2519 = vpack.c.b16 %v1815, %v1799
    %v2520 = vpack.c.b16 %v1816, %v1800
    %v2521 = vpack.c.b16 %v1817, %v1801
    %v2522 = vpack.c.b16 %v1818, %v1802
    %v2523 = vpack.c.b16 %v1819, %v1803
    %v2524 = vpack.c.b16 %v1820, %v1804
    %v2525 = vpack.c.b16 %v1821, %v1805
    %v2526 = vpack.c.b16 %v1822, %v1806
    %v2527 = vpack.c.b16 %v1823, %v1807
    %v2528 = vpack.c.b16 %v1840, %v1824
    %v2529 = vpack.c.b16 %v1841, %v1825
    %v2530 = vpack.c.b16 %v1842, %v1826
    %v2531 = vpack.c.b16 %v1843, %v1827
    %v2532 = vpack.c.b16 %v1844, %v1828
    %v2533 = vpack.c.b16 %v1845, %v1829
    %v2534 = vpack.c.b16 %v1846, %v1830
    %v2535 = vpack.c.b16 %v1847, %v1831
    %v2536 = vpack.c.b16 %v1848, %v1832
    %v2537 = vpack.c.b16 %v1849, %v1833
    %v2538 = vpack.c.b16 %v1850, %v1834
    %v2539 = vpack.c.b16 %v1851, %v1835
    %v2540 = vpack.c.b16 %v1852, %v1836
    %v2541 = vpack.c.b16 %v1853, %v1837
    %v2542 = vpack.c.b16 %v1854, %v1838
    %v2543 = vpack.c.b16 %v1855, %v1839
    %v2544 = vpack.c.b16 %v1872, %v1856
    %v2545 = vpack.c.b16 %v1873, %v1857
    %v2546 = vpack.c.b16 %v1874, %v1858
    %v2547 = vpack.c.b16 %v1875, %v1859
    %v2548 = vpack.c.b16 %v1876, %v1860
    %v2549 = vpack.c.b16 %v1877, %v1861
    %v2550 = vpack.c.b16 %v1878, %v1862
    %v2551 = vpack.c.b16 %v1879, %v1863
    %v2552 = vpack.c.b16 %v1880, %v1864
    %v2553 = vpack.c.b16 %v1881, %v1865
    %v2554 = vpack.c.b16 %v1882, %v1866
    %v2555 = vpack.c.b16 %v1883, %v1867
    %v2556 = vpack.c.b16 %v1884, %v1868
    %v2557 = vpack.c.b16 %v1885, %v1869
    %v2558 = vpack.c.b16 %v1886, %v1870
    %v2559 = vpack.c.b16 %v1887, %v1871
    %v2560 = vpack.c.b16 %v1904, %v1888
    %v2561 = vpack.c.b16 %v1905, %v1889
    %v2562 = vpack.c.b16 %v1906, %v1890
    %v2563 = vpack.c.b16 %v1907, %v1891
    %v2564 = vpack.c.b16 %v1908, %v1892
    %v2565 = vpack.c.b16 %v1909, %v1893
    %v2566 = vpack.c.b16 %v1910, %v1894
    %v2567 = vpack.c.b16 %v1911, %v1895
    %v2568 = vpack.c.b16 %v1912, %v1896
    %v2569 = vpack.c.b16 %v1913, %v1897
    %v2570 = vpack.c.b16 %v1914, %v1898
    %v2571 = vpack.c.b16 %v1915, %v1899
    %v2572 = vpack.c.b16 %v1916, %v1900
    %v2573 = vpack.c.b16 %v1917, %v1901
    %v2574 = vpack.c.b16 %v1918, %v1902
    %v2575 = vpack.c.b16 %v1919, %v1903
    %v2576 = vpack.c.b16 %v1936, %v1920
    %v2577 = vpack.c.b16 %v1937, %v1921
    %v2578 = vpack.c.b16 %v1938, %v1922
    %v2579 = vpack.c.b16 %v1939, %v1923
    %v2580 = vpack.c.b16 %v1940, %v1924
    %v2581 = vpack.c.b16 %v1941, %v1925
    %v2582 = vpack.c.b16 %v1942, %v1926
    %v2583 = vpack.c.b16 %v1943, %v1927
    %v2584 = vpack.c.b16 %v1944, %v1928
    %v2585 = vpack.c.b16 %v1945, %v1929
    %v2586 = vpack.c.b16 %v1946, %v1930
    %v2587 = vpack.c.b16 %v1947, %v1931
    %v2588 = vpack.c.b16 %v1948, %v1932
    %v2589 = vpack.c.b16 %v1949, %v1933
    %v2590 = vpack.c.b16 %v1950, %v1934
    %v2591 = vpack.c.b16 %v1951, %v1935
    %v2592 = vpack.c.b16 %v1968, %v1952
    %v2593 = vpack.c.b16 %v1969, %v1953
    %v2594 = vpack.c.b16 %v1970, %v1954
    %v2595 = vpack.c.b16 %v1971, %v1955
    %v2596 = vpack.c.b16 %v1972, %v1956
    %v2597 = vpack.c.b16 %v1973, %v1957
    %v2598 = vpack.c.b16 %v1974, %v1958
    %v2599 = vpack.c.b16 %v1975, %v1959
    %v2600 = vpack.c.b16 %v1976, %v1960
    %v2601 = vpack.c.b16 %v1977, %v1961
    %v2602 = vpack.c.b16 %v1978, %v1962
    %v2603 = vpack.c.b16 %v1979, %v1963
    %v2604 = vpack.c.b16 %v1980, %v1964
    %v2605 = vpack.c.b16 %v1981, %v1965
    %v2606 = vpack.c.b16 %v1982, %v1966
    %v2607 = vpack.c.b16 %v1983, %v1967
    %v2608 = vpack.c.b16 %v2000, %v1984
    %v2609 = vpack.c.b16 %v2001, %v1985
    %v2610 = vpack.c.b16 %v2002, %v1986
    %v2611 = vpack.c.b16 %v2003, %v1987
    %v2612 = vpack.c.b16 %v2004, %v1988
    %v2613 = vpack.c.b16 %v2005, %v1989
    %v2614 = vpack.c.b16 %v2006, %v1990
    %v2615 = vpack.c.b16 %v2007, %v1991
    %v2616 = vpack.c.b16 %v2008, %v1992
    %v2617 = vpack.c.b16 %v2009, %v1993
    %v2618 = vpack.c.b16 %v2010, %v1994
    %v2619 = vpack.c.b16 %v2011, %v1995
    %v2620 = vpack.c.b16 %v2012, %v1996
    %v2621 = vpack.c.b16 %v2013, %v1997
    %v2622 = vpack.c.b16 %v2014, %v1998
    %v2623 = vpack.c.b16 %v2015, %v1999
    %v2624 = vpack.c.b16 %v2032, %v2016
    %v2625 = vpack.c.b16 %v2033, %v2017
    %v2626 = vpack.c.b16 %v2034, %v2018
    %v2627 = vpack.c.b16 %v2035, %v2019
    %v2628 = vpack.c.b16 %v2036, %v2020
    %v2629 = vpack.c.b16 %v2037, %v2021
    %v2630 = vpack.c.b16 %v2038, %v2022
    %v2631 = vpack.c.b16 %v2039, %v2023
    %v2632 = vpack.c.b16 %v2040, %v2024
    %v2633 = vpack.c.b16 %v2041, %v2025
    %v2634 = vpack.c.b16 %v2042, %v2026
    %v2635 = vpack.c.b16 %v2043, %v2027
    %v2636 = vpack.c.b16 %v2044, %v2028
    %v2637 = vpack.c.b16 %v2045, %v2029
    %v2638 = vpack.c.b16 %v2046, %v2030
    %v2639 = vpack.c.b16 %v2047, %v2031
    %v2640 = vpack.c.b16 %v2064, %v2048
    %v2641 = vpack.c.b16 %v2065, %v2049
    %v2642 = vpack.c.b16 %v2066, %v2050
    %v2643 = vpack.c.b16 %v2067, %v2051
    %v2644 = vpack.c.b16 %v2068, %v2052
    %v2645 = vpack.c.b16 %v2069, %v2053
    %v2646 = vpack.c.b16 %v2070, %v2054
    %v2647 = vpack.c.b16 %v2071, %v2055
    %v2648 = vpack.c.b16 %v2072, %v2056
    %v2649 = vpack.c.b16 %v2073, %v2057
    %v2650 = vpack.c.b16 %v2074, %v2058
    %v2651 = vpack.c.b16 %v2075, %v2059
    %v2652 = vpack.c.b16 %v2076, %v2060
    %v2653 = vpack.c.b16 %v2077, %v2061
    %v2654 = vpack.c.b16 %v2078, %v2062
    %v2655 = vpack.c.b16 %v2079, %v2063
    %v2656 = vpack.c.b16 %v2096, %v2080
    %v2657 = vpack.c.b16 %v2097, %v2081
    %v2658 = vpack.c.b16 %v2098, %v2082
    %v2659 = vpack.c.b16 %v2099, %v2083
    %v2660 = vpack.c.b16 %v2100, %v2084
    %v2661 = vpack.c.b16 %v2101, %v2085
    %v2662 = vpack.c.b16 %v2102, %v2086
    %v2663 = vpack.c.b16 %v2103, %v2087
    %v2664 = vpack.c.b16 %v2104, %v2088
    %v2665 = vpack.c.b16 %v2105, %v2089
    %v2666 = vpack.c.b16 %v2106, %v2090
    %v2667 = vpack.c.b16 %v2107, %v2091
    %v2668 = vpack.c.b16 %v2108, %v2092
    %v2669 = vpack.c.b16 %v2109, %v2093
    %v2670 = vpack.c.b16 %v2110, %v2094
    %v2671 = vpack.c.b16 %v2111, %v2095
    %v2672 = vpack.c.b16 %v2128, %v2112
    %v2673 = vpack.c.b16 %v2129, %v2113
    %v2674 = vpack.c.b16 %v2130, %v2114
    %v2675 = vpack.c.b16 %v2131, %v2115
    %v2676 = vpack.c.b16 %v2132, %v2116
    %v2677 = vpack.c.b16 %v2133, %v2117
    %v2678 = vpack.c.b16 %v2134, %v2118
    %v2679 = vpack.c.b16 %v2135, %v2119
    %v2680 = vpack.c.b16 %v2136, %v2120
    %v2681 = vpack.c.b16 %v2137, %v2121
    %v2682 = vpack.c.b16 %v2138, %v2122
    %v2683 = vpack.c.b16 %v2139, %v2123
    %v2684 = vpack.c.b16 %v2140, %v2124
    %v2685 = vpack.c.b16 %v2141, %v2125
    %v2686 = vpack.c.b16 %v2142, %v2126
    %v2687 = vpack.c.b16 %v2143, %v2127
    %v2688 = vpack.c.b16 %v2160, %v2144
    %v2689 = vpack.c.b16 %v2161, %v2145
    %v2690 = vpack.c.b16 %v2162, %v2146
    %v2691 = vpack.c.b16 %v2163, %v2147
    %v2692 = vpack.c.b16 %v2164, %v2148
    %v2693 = vpack.c.b16 %v2165, %v2149
    %v2694 = vpack.c.b16 %v2166, %v2150
    %v2695 = vpack.c.b16 %v2167, %v2151
    %v2696 = vpack.c.b16 %v2168, %v2152
    %v2697 = vpack.c.b16 %v2169, %v2153
    %v2698 = vpack.c.b16 %v2170, %v2154
    %v2699 = vpack.c.b16 %v2171, %v2155
    %v2700 = vpack.c.b16 %v2172, %v2156
    %v2701 = vpack.c.b16 %v2173, %v2157
    %v2702 = vpack.c.b16 %v2174, %v2158
    %v2703 = vpack.c.b16 %v2175, %v2159
    %v2704 = vpack.c.b16 %v2192, %v2176
    %v2705 = vpack.c.b16 %v2193, %v2177
    %v2706 = vpack.c.b16 %v2194, %v2178
    %v2707 = vpack.c.b16 %v2195, %v2179
    %v2708 = vpack.c.b16 %v2196, %v2180
    %v2709 = vpack.c.b16 %v2197, %v2181
    %v2710 = vpack.c.b16 %v2198, %v2182
    %v2711 = vpack.c.b16 %v2199, %v2183
    %v2712 = vpack.c.b16 %v2200, %v2184
    %v2713 = vpack.c.b16 %v2201, %v2185
    %v2714 = vpack.c.b16 %v2202, %v2186
    %v2715 = vpack.c.b16 %v2203, %v2187
    %v2716 = vpack.c.b16 %v2204, %v2188
    %v2717 = vpack.c.b16 %v2205, %v2189
    %v2718 = vpack.c.b16 %v2206, %v2190
    %v2719 = vpack.c.b16 %v2207, %v2191
    %3232 = vmatprep.subr.bf16.mxu0 %v2321
    %3233 = vmatpush1.bf16.msra.mxu0 %v2320
    %3234 = vmatprep.subr.bf16.mxu0 %v2305
    %3235 = vmatpush1.bf16.msra.mxu0 %v2304
    %3236 = vmatprep.subr.bf16.mxu0 %v2289
    %3237 = vmatpush1.bf16.msra.mxu0 %v2288
    %3238 = vmatprep.subr.bf16.mxu0 %v2273
    %3239 = vmatpush1.bf16.msra.mxu0 %v2272
    %3240 = vmatprep.subr.bf16.mxu0 %v2257
    %3241 = vmatpush1.bf16.msra.mxu0 %v2256
    %3242 = vmatprep.subr.bf16.mxu0 %v2241
    %3243 = vmatpush1.bf16.msra.mxu0 %v2240
    %3244 = vmatprep.subr.bf16.mxu0 %v2225
    %3245 = vmatpush1.bf16.msra.mxu0 %v2224
    %3246 = vmatprep.subr.bf16.mxu0 %v2209
    %3247 = vmatpush1.bf16.msra.mxu0 %v2208
    %3248 = vmatprep.subr.bf16.mxu0 %v2449
    %3249 = vmatpush2.bf16.msra.mxu0 %v2448
    %3250 = vmatprep.subr.bf16.mxu0 %v2433
    %3251 = vmatpush2.bf16.msra.mxu0 %v2432
    %3252 = vmatprep.subr.bf16.mxu0 %v2417
    %3253 = vmatpush2.bf16.msra.mxu0 %v2416
    %3254 = vmatprep.subr.bf16.mxu0 %v2401
    %3255 = vmatpush2.bf16.msra.mxu0 %v2400
    %3256 = vmatprep.subr.bf16.mxu0 %v2385
    %3257 = vmatpush2.bf16.msra.mxu0 %v2384
    %3258 = vmatprep.subr.bf16.mxu0 %v2369
    %3259 = vmatpush2.bf16.msra.mxu0 %v2368
    %3260 = vmatprep.subr.bf16.mxu0 %v2353
    %3261 = vmatpush2.bf16.msra.mxu0 %v2352
    %3262 = vmatprep.subr.bf16.mxu0 %v2337
    %3263 = vmatpush2.bf16.msra.mxu0 %v2336
    %3264 = vmatprep.mubr.bf16.mxu0 %v157
    %3265 = vmatmul.mubr.bf16.gmra.mxu0 %v156
    %v3266 = vpop.f32.mrf.mxu0
    %v3267 = vadd.f32 0.0, %v3266
    %v3268 = vpop.f32.mrf.mxu0
    %v3269 = vadd.f32 0.0, %v3268
    %v3270 = vpop.f32.mrf.mxu0
    %v3271 = vadd.f32 0.0, %v3270
    %v3272 = vpop.f32.mrf.mxu0
    %v3273 = vadd.f32 0.0, %v3272
    %3274 = vdwg.mxu0
    %3275 = vmatprep.subr.bf16.mxu0 %v2577
    %3276 = vmatpush1.bf16.msra.mxu0 %v2576
    %3277 = vmatprep.subr.bf16.mxu0 %v2561
    %3278 = vmatpush1.bf16.msra.mxu0 %v2560
    %3279 = vmatprep.subr.bf16.mxu0 %v2545
    %3280 = vmatpush1.bf16.msra.mxu0 %v2544
    %3281 = vmatprep.subr.bf16.mxu0 %v2529
    %3282 = vmatpush1.bf16.msra.mxu0 %v2528
    %3283 = vmatprep.subr.bf16.mxu0 %v2513
    %3284 = vmatpush1.bf16.msra.mxu0 %v2512
    %3285 = vmatprep.subr.bf16.mxu0 %v2497
    %3286 = vmatpush1.bf16.msra.mxu0 %v2496
    %3287 = vmatprep.subr.bf16.mxu0 %v2481
    %3288 = vmatpush1.bf16.msra.mxu0 %v2480
    %3289 = vmatprep.subr.bf16.mxu0 %v2465
    %3290 = vmatpush1.bf16.msra.mxu0 %v2464
    %3291 = vmatprep.subr.bf16.mxu0 %v2705
    %3292 = vmatpush2.bf16.msra.mxu0 %v2704
    %3293 = vmatprep.subr.bf16.mxu0 %v2689
    %3294 = vmatpush2.bf16.msra.mxu0 %v2688
    %3295 = vmatprep.subr.bf16.mxu0 %v2673
    %3296 = vmatpush2.bf16.msra.mxu0 %v2672
    %3297 = vmatprep.subr.bf16.mxu0 %v2657
    %3298 = vmatpush2.bf16.msra.mxu0 %v2656
    %3299 = vmatprep.subr.bf16.mxu0 %v2641
    %3300 = vmatpush2.bf16.msra.mxu0 %v2640
    %3301 = vmatprep.subr.bf16.mxu0 %v2625
    %3302 = vmatpush2.bf16.msra.mxu0 %v2624
    %3303 = vmatprep.subr.bf16.mxu0 %v2609
    %3304 = vmatpush2.bf16.msra.mxu0 %v2608
    %3305 = vmatprep.subr.bf16.mxu0 %v2593
    %3306 = vmatpush2.bf16.msra.mxu0 %v2592
    %3307 = vmatprep.mubr.bf16.mxu0 %v159
    %3308 = vmatmul.mubr.bf16.gmra.mxu0 %v158
    %v3309 = vpop.f32.mrf.mxu0
    %v3310 = vadd.f32 %v3267, %v3309
    %v3311 = vpop.f32.mrf.mxu0
    %v3312 = vadd.f32 %v3269, %v3311
    %v3313 = vpop.f32.mrf.mxu0
    %v3314 = vadd.f32 %v3271, %v3313
    %v3315 = vpop.f32.mrf.mxu0
    %v3316 = vadd.f32 %v3273, %v3315
    %3317 = vdwg.mxu0
    %3318 = vmatprep.subr.bf16.mxu0 %v2323
    %3319 = vmatpush1.bf16.msra.mxu0 %v2322
    %3320 = vmatprep.subr.bf16.mxu0 %v2307
    %3321 = vmatpush1.bf16.msra.mxu0 %v2306
    %3322 = vmatprep.subr.bf16.mxu0 %v2291
    %3323 = vmatpush1.bf16.msra.mxu0 %v2290
    %3324 = vmatprep.subr.bf16.mxu0 %v2275
    %3325 = vmatpush1.bf16.msra.mxu0 %v2274
    %3326 = vmatprep.subr.bf16.mxu0 %v2259
    %3327 = vmatpush1.bf16.msra.mxu0 %v2258
    %3328 = vmatprep.subr.bf16.mxu0 %v2243
    %3329 = vmatpush1.bf16.msra.mxu0 %v2242
    %3330 = vmatprep.subr.bf16.mxu0 %v2227
    %3331 = vmatpush1.bf16.msra.mxu0 %v2226
    %3332 = vmatprep.subr.bf16.mxu0 %v2211
    %3333 = vmatpush1.bf16.msra.mxu0 %v2210
    %3334 = vmatprep.subr.bf16.mxu0 %v2451
    %3335 = vmatpush2.bf16.msra.mxu0 %v2450
    %3336 = vmatprep.subr.bf16.mxu0 %v2435
    %3337 = vmatpush2.bf16.msra.mxu0 %v2434
    %3338 = vmatprep.subr.bf16.mxu0 %v2419
    %3339 = vmatpush2.bf16.msra.mxu0 %v2418
    %3340 = vmatprep.subr.bf16.mxu0 %v2403
    %3341 = vmatpush2.bf16.msra.mxu0 %v2402
    %3342 = vmatprep.subr.bf16.mxu0 %v2387
    %3343 = vmatpush2.bf16.msra.mxu0 %v2386
    %3344 = vmatprep.subr.bf16.mxu0 %v2371
    %3345 = vmatpush2.bf16.msra.mxu0 %v2370
    %3346 = vmatprep.subr.bf16.mxu0 %v2355
    %3347 = vmatpush2.bf16.msra.mxu0 %v2354
    %3348 = vmatprep.subr.bf16.mxu0 %v2339
    %3349 = vmatpush2.bf16.msra.mxu0 %v2338
    %3350 = vmatprep.mubr.bf16.mxu0 %v157
    %3351 = vmatmul.mubr.bf16.gmra.mxu0 %v156
    %v3352 = vpop.f32.mrf.mxu0
    %v3353 = vadd.f32 0.0, %v3352
    %v3354 = vpop.f32.mrf.mxu0
    %v3355 = vadd.f32 0.0, %v3354
    %v3356 = vpop.f32.mrf.mxu0
    %v3357 = vadd.f32 0.0, %v3356
    %v3358 = vpop.f32.mrf.mxu0
    %v3359 = vadd.f32 0.0, %v3358
    %3360 = vdwg.mxu0
    %3361 = vmatprep.subr.bf16.mxu0 %v2579
    %3362 = vmatpush1.bf16.msra.mxu0 %v2578
    %3363 = vmatprep.subr.bf16.mxu0 %v2563
    %3364 = vmatpush1.bf16.msra.mxu0 %v2562
    %3365 = vmatprep.subr.bf16.mxu0 %v2547
    %3366 = vmatpush1.bf16.msra.mxu0 %v2546
    %3367 = vmatprep.subr.bf16.mxu0 %v2531
    %3368 = vmatpush1.bf16.msra.mxu0 %v2530
    %3369 = vmatprep.subr.bf16.mxu0 %v2515
    %3370 = vmatpush1.bf16.msra.mxu0 %v2514
    %3371 = vmatprep.subr.bf16.mxu0 %v2499
    %3372 = vmatpush1.bf16.msra.mxu0 %v2498
    %3373 = vmatprep.subr.bf16.mxu0 %v2483
    %3374 = vmatpush1.bf16.msra.mxu0 %v2482
    %3375 = vmatprep.subr.bf16.mxu0 %v2467
    %3376 = vmatpush1.bf16.msra.mxu0 %v2466
    %3377 = vmatprep.subr.bf16.mxu0 %v2707
    %3378 = vmatpush2.bf16.msra.mxu0 %v2706
    %3379 = vmatprep.subr.bf16.mxu0 %v2691
    %3380 = vmatpush2.bf16.msra.mxu0 %v2690
    %3381 = vmatprep.subr.bf16.mxu0 %v2675
    %3382 = vmatpush2.bf16.msra.mxu0 %v2674
    %3383 = vmatprep.subr.bf16.mxu0 %v2659
    %3384 = vmatpush2.bf16.msra.mxu0 %v2658
    %3385 = vmatprep.subr.bf16.mxu0 %v2643
    %3386 = vmatpush2.bf16.msra.mxu0 %v2642
    %3387 = vmatprep.subr.bf16.mxu0 %v2627
    %3388 = vmatpush2.bf16.msra.mxu0 %v2626
    %3389 = vmatprep.subr.bf16.mxu0 %v2611
    %3390 = vmatpush2.bf16.msra.mxu0 %v2610
    %3391 = vmatprep.subr.bf16.mxu0 %v2595
    %3392 = vmatpush2.bf16.msra.mxu0 %v2594
    %3393 = vmatprep.mubr.bf16.mxu0 %v159
    %3394 = vmatmul.mubr.bf16.gmra.mxu0 %v158
    %v3395 = vpop.f32.mrf.mxu0
    %v3396 = vadd.f32 %v3353, %v3395
    %v3397 = vpop.f32.mrf.mxu0
    %v3398 = vadd.f32 %v3355, %v3397
    %v3399 = vpop.f32.mrf.mxu0
    %v3400 = vadd.f32 %v3357, %v3399
    %v3401 = vpop.f32.mrf.mxu0
    %v3402 = vadd.f32 %v3359, %v3401
    %3403 = vdwg.mxu0
    %3404 = vmatprep.subr.bf16.mxu0 %v2325
    %3405 = vmatpush1.bf16.msra.mxu0 %v2324
    %3406 = vmatprep.subr.bf16.mxu0 %v2309
    %3407 = vmatpush1.bf16.msra.mxu0 %v2308
    %3408 = vmatprep.subr.bf16.mxu0 %v2293
    %3409 = vmatpush1.bf16.msra.mxu0 %v2292
    %3410 = vmatprep.subr.bf16.mxu0 %v2277
    %3411 = vmatpush1.bf16.msra.mxu0 %v2276
    %3412 = vmatprep.subr.bf16.mxu0 %v2261
    %3413 = vmatpush1.bf16.msra.mxu0 %v2260
    %3414 = vmatprep.subr.bf16.mxu0 %v2245
    %3415 = vmatpush1.bf16.msra.mxu0 %v2244
    %3416 = vmatprep.subr.bf16.mxu0 %v2229
    %3417 = vmatpush1.bf16.msra.mxu0 %v2228
    %3418 = vmatprep.subr.bf16.mxu0 %v2213
    %3419 = vmatpush1.bf16.msra.mxu0 %v2212
    %3420 = vmatprep.subr.bf16.mxu0 %v2453
    %3421 = vmatpush2.bf16.msra.mxu0 %v2452
    %3422 = vmatprep.subr.bf16.mxu0 %v2437
    %3423 = vmatpush2.bf16.msra.mxu0 %v2436
    %3424 = vmatprep.subr.bf16.mxu0 %v2421
    %3425 = vmatpush2.bf16.msra.mxu0 %v2420
    %3426 = vmatprep.subr.bf16.mxu0 %v2405
    %3427 = vmatpush2.bf16.msra.mxu0 %v2404
    %3428 = vmatprep.subr.bf16.mxu0 %v2389
    %3429 = vmatpush2.bf16.msra.mxu0 %v2388
    %3430 = vmatprep.subr.bf16.mxu0 %v2373
    %3431 = vmatpush2.bf16.msra.mxu0 %v2372
    %3432 = vmatprep.subr.bf16.mxu0 %v2357
    %3433 = vmatpush2.bf16.msra.mxu0 %v2356
    %3434 = vmatprep.subr.bf16.mxu0 %v2341
    %3435 = vmatpush2.bf16.msra.mxu0 %v2340
    %3436 = vmatprep.mubr.bf16.mxu0 %v157
    %3437 = vmatmul.mubr.bf16.gmra.mxu0 %v156
    %v3438 = vpop.f32.mrf.mxu0
    %v3439 = vadd.f32 0.0, %v3438
    %v3440 = vpop.f32.mrf.mxu0
    %v3441 = vadd.f32 0.0, %v3440
    %v3442 = vpop.f32.mrf.mxu0
    %v3443 = vadd.f32 0.0, %v3442
    %v3444 = vpop.f32.mrf.mxu0
    %v3445 = vadd.f32 0.0, %v3444
    %3446 = vdwg.mxu0
    %3447 = vmatprep.subr.bf16.mxu0 %v2581
    %3448 = vmatpush1.bf16.msra.mxu0 %v2580
    %3449 = vmatprep.subr.bf16.mxu0 %v2565
    %3450 = vmatpush1.bf16.msra.mxu0 %v2564
    %3451 = vmatprep.subr.bf16.mxu0 %v2549
    %3452 = vmatpush1.bf16.msra.mxu0 %v2548
    %3453 = vmatprep.subr.bf16.mxu0 %v2533
    %3454 = vmatpush1.bf16.msra.mxu0 %v2532
    %3455 = vmatprep.subr.bf16.mxu0 %v2517
    %3456 = vmatpush1.bf16.msra.mxu0 %v2516
    %3457 = vmatprep.subr.bf16.mxu0 %v2501
    %3458 = vmatpush1.bf16.msra.mxu0 %v2500
    %3459 = vmatprep.subr.bf16.mxu0 %v2485
    %3460 = vmatpush1.bf16.msra.mxu0 %v2484
    %3461 = vmatprep.subr.bf16.mxu0 %v2469
    %3462 = vmatpush1.bf16.msra.mxu0 %v2468
    %3463 = vmatprep.subr.bf16.mxu0 %v2709
    %3464 = vmatpush2.bf16.msra.mxu0 %v2708
    %3465 = vmatprep.subr.bf16.mxu0 %v2693
    %3466 = vmatpush2.bf16.msra.mxu0 %v2692
    %3467 = vmatprep.subr.bf16.mxu0 %v2677
    %3468 = vmatpush2.bf16.msra.mxu0 %v2676
    %3469 = vmatprep.subr.bf16.mxu0 %v2661
    %3470 = vmatpush2.bf16.msra.mxu0 %v2660
    %3471 = vmatprep.subr.bf16.mxu0 %v2645
    %3472 = vmatpush2.bf16.msra.mxu0 %v2644
    %3473 = vmatprep.subr.bf16.mxu0 %v2629
    %3474 = vmatpush2.bf16.msra.mxu0 %v2628
    %3475 = vmatprep.subr.bf16.mxu0 %v2613
    %3476 = vmatpush2.bf16.msra.mxu0 %v2612
    %3477 = vmatprep.subr.bf16.mxu0 %v2597
    %3478 = vmatpush2.bf16.msra.mxu0 %v2596
    %3479 = vmatprep.mubr.bf16.mxu0 %v159
    %3480 = vmatmul.mubr.bf16.gmra.mxu0 %v158
    %v3481 = vpop.f32.mrf.mxu0
    %v3482 = vadd.f32 %v3439, %v3481
    %v3483 = vpop.f32.mrf.mxu0
    %v3484 = vadd.f32 %v3441, %v3483
    %v3485 = vpop.f32.mrf.mxu0
    %v3486 = vadd.f32 %v3443, %v3485
    %v3487 = vpop.f32.mrf.mxu0
    %v3488 = vadd.f32 %v3445, %v3487
    %3489 = vdwg.mxu0
    %3490 = vmatprep.subr.bf16.mxu0 %v2327
    %3491 = vmatpush1.bf16.msra.mxu0 %v2326
    %3492 = vmatprep.subr.bf16.mxu0 %v2311
    %3493 = vmatpush1.bf16.msra.mxu0 %v2310
    %3494 = vmatprep.subr.bf16.mxu0 %v2295
    %3495 = vmatpush1.bf16.msra.mxu0 %v2294
    %3496 = vmatprep.subr.bf16.mxu0 %v2279
    %3497 = vmatpush1.bf16.msra.mxu0 %v2278
    %3498 = vmatprep.subr.bf16.mxu0 %v2263
    %3499 = vmatpush1.bf16.msra.mxu0 %v2262
    %3500 = vmatprep.subr.bf16.mxu0 %v2247
    %3501 = vmatpush1.bf16.msra.mxu0 %v2246
    %3502 = vmatprep.subr.bf16.mxu0 %v2231
    %3503 = vmatpush1.bf16.msra.mxu0 %v2230
    %3504 = vmatprep.subr.bf16.mxu0 %v2215
    %3505 = vmatpush1.bf16.msra.mxu0 %v2214
    %3506 = vmatprep.subr.bf16.mxu0 %v2455
    %3507 = vmatpush2.bf16.msra.mxu0 %v2454
    %3508 = vmatprep.subr.bf16.mxu0 %v2439
    %3509 = vmatpush2.bf16.msra.mxu0 %v2438
    %3510 = vmatprep.subr.bf16.mxu0 %v2423
    %3511 = vmatpush2.bf16.msra.mxu0 %v2422
    %3512 = vmatprep.subr.bf16.mxu0 %v2407
    %3513 = vmatpush2.bf16.msra.mxu0 %v2406
    %3514 = vmatprep.subr.bf16.mxu0 %v2391
    %3515 = vmatpush2.bf16.msra.mxu0 %v2390
    %3516 = vmatprep.subr.bf16.mxu0 %v2375
    %3517 = vmatpush2.bf16.msra.mxu0 %v2374
    %3518 = vmatprep.subr.bf16.mxu0 %v2359
    %3519 = vmatpush2.bf16.msra.mxu0 %v2358
    %3520 = vmatprep.subr.bf16.mxu0 %v2343
    %3521 = vmatpush2.bf16.msra.mxu0 %v2342
    %3522 = vmatprep.mubr.bf16.mxu0 %v157
    %3523 = vmatmul.mubr.bf16.gmra.mxu0 %v156
    %v3524 = vpop.f32.mrf.mxu0
    %v3525 = vadd.f32 0.0, %v3524
    %v3526 = vpop.f32.mrf.mxu0
    %v3527 = vadd.f32 0.0, %v3526
    %v3528 = vpop.f32.mrf.mxu0
    %v3529 = vadd.f32 0.0, %v3528
    %v3530 = vpop.f32.mrf.mxu0
    %v3531 = vadd.f32 0.0, %v3530
    %3532 = vdwg.mxu0
    %3533 = vmatprep.subr.bf16.mxu0 %v2583
    %3534 = vmatpush1.bf16.msra.mxu0 %v2582
    %3535 = vmatprep.subr.bf16.mxu0 %v2567
    %3536 = vmatpush1.bf16.msra.mxu0 %v2566
    %3537 = vmatprep.subr.bf16.mxu0 %v2551
    %3538 = vmatpush1.bf16.msra.mxu0 %v2550
    %3539 = vmatprep.subr.bf16.mxu0 %v2535
    %3540 = vmatpush1.bf16.msra.mxu0 %v2534
    %3541 = vmatprep.subr.bf16.mxu0 %v2519
    %3542 = vmatpush1.bf16.msra.mxu0 %v2518
    %3543 = vmatprep.subr.bf16.mxu0 %v2503
    %3544 = vmatpush1.bf16.msra.mxu0 %v2502
    %3545 = vmatprep.subr.bf16.mxu0 %v2487
    %3546 = vmatpush1.bf16.msra.mxu0 %v2486
    %3547 = vmatprep.subr.bf16.mxu0 %v2471
    %3548 = vmatpush1.bf16.msra.mxu0 %v2470
    %3549 = vmatprep.subr.bf16.mxu0 %v2711
    %3550 = vmatpush2.bf16.msra.mxu0 %v2710
    %3551 = vmatprep.subr.bf16.mxu0 %v2695
    %3552 = vmatpush2.bf16.msra.mxu0 %v2694
    %3553 = vmatprep.subr.bf16.mxu0 %v2679
    %3554 = vmatpush2.bf16.msra.mxu0 %v2678
    %3555 = vmatprep.subr.bf16.mxu0 %v2663
    %3556 = vmatpush2.bf16.msra.mxu0 %v2662
    %3557 = vmatprep.subr.bf16.mxu0 %v2647
    %3558 = vmatpush2.bf16.msra.mxu0 %v2646
    %3559 = vmatprep.subr.bf16.mxu0 %v2631
    %3560 = vmatpush2.bf16.msra.mxu0 %v2630
    %3561 = vmatprep.subr.bf16.mxu0 %v2615
    %3562 = vmatpush2.bf16.msra.mxu0 %v2614
    %3563 = vmatprep.subr.bf16.mxu0 %v2599
    %3564 = vmatpush2.bf16.msra.mxu0 %v2598
    %3565 = vmatprep.mubr.bf16.mxu0 %v159
    %3566 = vmatmul.mubr.bf16.gmra.mxu0 %v158
    %v3567 = vpop.f32.mrf.mxu0
    %v3568 = vadd.f32 %v3525, %v3567
    %v3569 = vpop.f32.mrf.mxu0
    %v3570 = vadd.f32 %v3527, %v3569
    %v3571 = vpop.f32.mrf.mxu0
    %v3572 = vadd.f32 %v3529, %v3571
    %v3573 = vpop.f32.mrf.mxu0
    %v3574 = vadd.f32 %v3531, %v3573
    %3575 = vdwg.mxu0
    %3576 = vmatprep.subr.bf16.mxu0 %v2329
    %3577 = vmatpush1.bf16.msra.mxu0 %v2328
    %3578 = vmatprep.subr.bf16.mxu0 %v2313
    %3579 = vmatpush1.bf16.msra.mxu0 %v2312
    %3580 = vmatprep.subr.bf16.mxu0 %v2297
    %3581 = vmatpush1.bf16.msra.mxu0 %v2296
    %3582 = vmatprep.subr.bf16.mxu0 %v2281
    %3583 = vmatpush1.bf16.msra.mxu0 %v2280
    %3584 = vmatprep.subr.bf16.mxu0 %v2265
    %3585 = vmatpush1.bf16.msra.mxu0 %v2264
    %3586 = vmatprep.subr.bf16.mxu0 %v2249
    %3587 = vmatpush1.bf16.msra.mxu0 %v2248
    %3588 = vmatprep.subr.bf16.mxu0 %v2233
    %3589 = vmatpush1.bf16.msra.mxu0 %v2232
    %3590 = vmatprep.subr.bf16.mxu0 %v2217
    %3591 = vmatpush1.bf16.msra.mxu0 %v2216
    %3592 = vmatprep.subr.bf16.mxu0 %v2457
    %3593 = vmatpush2.bf16.msra.mxu0 %v2456
    %3594 = vmatprep.subr.bf16.mxu0 %v2441
    %3595 = vmatpush2.bf16.msra.mxu0 %v2440
    %3596 = vmatprep.subr.bf16.mxu0 %v2425
    %3597 = vmatpush2.bf16.msra.mxu0 %v2424
    %3598 = vmatprep.subr.bf16.mxu0 %v2409
    %3599 = vmatpush2.bf16.msra.mxu0 %v2408
    %3600 = vmatprep.subr.bf16.mxu0 %v2393
    %3601 = vmatpush2.bf16.msra.mxu0 %v2392
    %3602 = vmatprep.subr.bf16.mxu0 %v2377
    %3603 = vmatpush2.bf16.msra.mxu0 %v2376
    %3604 = vmatprep.subr.bf16.mxu0 %v2361
    %3605 = vmatpush2.bf16.msra.mxu0 %v2360
    %3606 = vmatprep.subr.bf16.mxu0 %v2345
    %3607 = vmatpush2.bf16.msra.mxu0 %v2344
    %3608 = vmatprep.mubr.bf16.mxu0 %v157
    %3609 = vmatmul.mubr.bf16.gmra.mxu0 %v156
    %v3610 = vpop.f32.mrf.mxu0
    %v3611 = vadd.f32 0.0, %v3610
    %v3612 = vpop.f32.mrf.mxu0
    %v3613 = vadd.f32 0.0, %v3612
    %v3614 = vpop.f32.mrf.mxu0
    %v3615 = vadd.f32 0.0, %v3614
    %v3616 = vpop.f32.mrf.mxu0
    %v3617 = vadd.f32 0.0, %v3616
    %3618 = vdwg.mxu0
    %3619 = vmatprep.subr.bf16.mxu0 %v2585
    %3620 = vmatpush1.bf16.msra.mxu0 %v2584
    %3621 = vmatprep.subr.bf16.mxu0 %v2569
    %3622 = vmatpush1.bf16.msra.mxu0 %v2568
    %3623 = vmatprep.subr.bf16.mxu0 %v2553
    %3624 = vmatpush1.bf16.msra.mxu0 %v2552
    %3625 = vmatprep.subr.bf16.mxu0 %v2537
    %3626 = vmatpush1.bf16.msra.mxu0 %v2536
    %3627 = vmatprep.subr.bf16.mxu0 %v2521
    %3628 = vmatpush1.bf16.msra.mxu0 %v2520
    %3629 = vmatprep.subr.bf16.mxu0 %v2505
    %3630 = vmatpush1.bf16.msra.mxu0 %v2504
    %3631 = vmatprep.subr.bf16.mxu0 %v2489
    %3632 = vmatpush1.bf16.msra.mxu0 %v2488
    %3633 = vmatprep.subr.bf16.mxu0 %v2473
    %3634 = vmatpush1.bf16.msra.mxu0 %v2472
    %3635 = vmatprep.subr.bf16.mxu0 %v2713
    %3636 = vmatpush2.bf16.msra.mxu0 %v2712
    %3637 = vmatprep.subr.bf16.mxu0 %v2697
    %3638 = vmatpush2.bf16.msra.mxu0 %v2696
    %3639 = vmatprep.subr.bf16.mxu0 %v2681
    %3640 = vmatpush2.bf16.msra.mxu0 %v2680
    %3641 = vmatprep.subr.bf16.mxu0 %v2665
    %3642 = vmatpush2.bf16.msra.mxu0 %v2664
    %3643 = vmatprep.subr.bf16.mxu0 %v2649
    %3644 = vmatpush2.bf16.msra.mxu0 %v2648
    %3645 = vmatprep.subr.bf16.mxu0 %v2633
    %3646 = vmatpush2.bf16.msra.mxu0 %v2632
    %3647 = vmatprep.subr.bf16.mxu0 %v2617
    %3648 = vmatpush2.bf16.msra.mxu0 %v2616
    %3649 = vmatprep.subr.bf16.mxu0 %v2601
    %3650 = vmatpush2.bf16.msra.mxu0 %v2600
    %3651 = vmatprep.mubr.bf16.mxu0 %v159
    %3652 = vmatmul.mubr.bf16.gmra.mxu0 %v158
    %v3653 = vpop.f32.mrf.mxu0
    %v3654 = vadd.f32 %v3611, %v3653
    %v3655 = vpop.f32.mrf.mxu0
    %v3656 = vadd.f32 %v3613, %v3655
    %v3657 = vpop.f32.mrf.mxu0
    %v3658 = vadd.f32 %v3615, %v3657
    %v3659 = vpop.f32.mrf.mxu0
    %v3660 = vadd.f32 %v3617, %v3659
    %3661 = vdwg.mxu0
    %3662 = vmatprep.subr.bf16.mxu0 %v2331
    %3663 = vmatpush1.bf16.msra.mxu0 %v2330
    %3664 = vmatprep.subr.bf16.mxu0 %v2315
    %3665 = vmatpush1.bf16.msra.mxu0 %v2314
    %3666 = vmatprep.subr.bf16.mxu0 %v2299
    %3667 = vmatpush1.bf16.msra.mxu0 %v2298
    %3668 = vmatprep.subr.bf16.mxu0 %v2283
    %3669 = vmatpush1.bf16.msra.mxu0 %v2282
    %3670 = vmatprep.subr.bf16.mxu0 %v2267
    %3671 = vmatpush1.bf16.msra.mxu0 %v2266
    %3672 = vmatprep.subr.bf16.mxu0 %v2251
    %3673 = vmatpush1.bf16.msra.mxu0 %v2250
    %3674 = vmatprep.subr.bf16.mxu0 %v2235
    %3675 = vmatpush1.bf16.msra.mxu0 %v2234
    %3676 = vmatprep.subr.bf16.mxu0 %v2219
    %3677 = vmatpush1.bf16.msra.mxu0 %v2218
    %3678 = vmatprep.subr.bf16.mxu0 %v2459
    %3679 = vmatpush2.bf16.msra.mxu0 %v2458
    %3680 = vmatprep.subr.bf16.mxu0 %v2443
    %3681 = vmatpush2.bf16.msra.mxu0 %v2442
    %3682 = vmatprep.subr.bf16.mxu0 %v2427
    %3683 = vmatpush2.bf16.msra.mxu0 %v2426
    %3684 = vmatprep.subr.bf16.mxu0 %v2411
    %3685 = vmatpush2.bf16.msra.mxu0 %v2410
    %3686 = vmatprep.subr.bf16.mxu0 %v2395
    %3687 = vmatpush2.bf16.msra.mxu0 %v2394
    %3688 = vmatprep.subr.bf16.mxu0 %v2379
    %3689 = vmatpush2.bf16.msra.mxu0 %v2378
    %3690 = vmatprep.subr.bf16.mxu0 %v2363
    %3691 = vmatpush2.bf16.msra.mxu0 %v2362
    %3692 = vmatprep.subr.bf16.mxu0 %v2347
    %3693 = vmatpush2.bf16.msra.mxu0 %v2346
    %3694 = vmatprep.mubr.bf16.mxu0 %v157
    %3695 = vmatmul.mubr.bf16.gmra.mxu0 %v156
    %v3696 = vpop.f32.mrf.mxu0
    %v3697 = vadd.f32 0.0, %v3696
    %v3698 = vpop.f32.mrf.mxu0
    %v3699 = vadd.f32 0.0, %v3698
    %v3700 = vpop.f32.mrf.mxu0
    %v3701 = vadd.f32 0.0, %v3700
    %v3702 = vpop.f32.mrf.mxu0
    %v3703 = vadd.f32 0.0, %v3702
    %3704 = vdwg.mxu0
    %3705 = vmatprep.subr.bf16.mxu0 %v2587
    %3706 = vmatpush1.bf16.msra.mxu0 %v2586
    %3707 = vmatprep.subr.bf16.mxu0 %v2571
    %3708 = vmatpush1.bf16.msra.mxu0 %v2570
    %3709 = vmatprep.subr.bf16.mxu0 %v2555
    %3710 = vmatpush1.bf16.msra.mxu0 %v2554
    %3711 = vmatprep.subr.bf16.mxu0 %v2539
    %3712 = vmatpush1.bf16.msra.mxu0 %v2538
    %3713 = vmatprep.subr.bf16.mxu0 %v2523
    %3714 = vmatpush1.bf16.msra.mxu0 %v2522
    %3715 = vmatprep.subr.bf16.mxu0 %v2507
    %3716 = vmatpush1.bf16.msra.mxu0 %v2506
    %3717 = vmatprep.subr.bf16.mxu0 %v2491
    %3718 = vmatpush1.bf16.msra.mxu0 %v2490
    %3719 = vmatprep.subr.bf16.mxu0 %v2475
    %3720 = vmatpush1.bf16.msra.mxu0 %v2474
    %3721 = vmatprep.subr.bf16.mxu0 %v2715
    %3722 = vmatpush2.bf16.msra.mxu0 %v2714
    %3723 = vmatprep.subr.bf16.mxu0 %v2699
    %3724 = vmatpush2.bf16.msra.mxu0 %v2698
    %3725 = vmatprep.subr.bf16.mxu0 %v2683
    %3726 = vmatpush2.bf16.msra.mxu0 %v2682
    %3727 = vmatprep.subr.bf16.mxu0 %v2667
    %3728 = vmatpush2.bf16.msra.mxu0 %v2666
    %3729 = vmatprep.subr.bf16.mxu0 %v2651
    %3730 = vmatpush2.bf16.msra.mxu0 %v2650
    %3731 = vmatprep.subr.bf16.mxu0 %v2635
    %3732 = vmatpush2.bf16.msra.mxu0 %v2634
    %3733 = vmatprep.subr.bf16.mxu0 %v2619
    %3734 = vmatpush2.bf16.msra.mxu0 %v2618
    %3735 = vmatprep.subr.bf16.mxu0 %v2603
    %3736 = vmatpush2.bf16.msra.mxu0 %v2602
    %3737 = vmatprep.mubr.bf16.mxu0 %v159
    %3738 = vmatmul.mubr.bf16.gmra.mxu0 %v158
    %v3739 = vpop.f32.mrf.mxu0
    %v3740 = vadd.f32 %v3697, %v3739
    %v3741 = vpop.f32.mrf.mxu0
    %v3742 = vadd.f32 %v3699, %v3741
    %v3743 = vpop.f32.mrf.mxu0
    %v3744 = vadd.f32 %v3701, %v3743
    %v3745 = vpop.f32.mrf.mxu0
    %v3746 = vadd.f32 %v3703, %v3745
    %3747 = vdwg.mxu0
    %3748 = vmatprep.subr.bf16.mxu0 %v2333
    %3749 = vmatpush1.bf16.msra.mxu0 %v2332
    %3750 = vmatprep.subr.bf16.mxu0 %v2317
    %3751 = vmatpush1.bf16.msra.mxu0 %v2316
    %3752 = vmatprep.subr.bf16.mxu0 %v2301
    %3753 = vmatpush1.bf16.msra.mxu0 %v2300
    %3754 = vmatprep.subr.bf16.mxu0 %v2285
    %3755 = vmatpush1.bf16.msra.mxu0 %v2284
    %3756 = vmatprep.subr.bf16.mxu0 %v2269
    %3757 = vmatpush1.bf16.msra.mxu0 %v2268
    %3758 = vmatprep.subr.bf16.mxu0 %v2253
    %3759 = vmatpush1.bf16.msra.mxu0 %v2252
    %3760 = vmatprep.subr.bf16.mxu0 %v2237
    %3761 = vmatpush1.bf16.msra.mxu0 %v2236
    %3762 = vmatprep.subr.bf16.mxu0 %v2221
    %3763 = vmatpush1.bf16.msra.mxu0 %v2220
    %3764 = vmatprep.subr.bf16.mxu0 %v2461
    %3765 = vmatpush2.bf16.msra.mxu0 %v2460
    %3766 = vmatprep.subr.bf16.mxu0 %v2445
    %3767 = vmatpush2.bf16.msra.mxu0 %v2444
    %3768 = vmatprep.subr.bf16.mxu0 %v2429
    %3769 = vmatpush2.bf16.msra.mxu0 %v2428
    %3770 = vmatprep.subr.bf16.mxu0 %v2413
    %3771 = vmatpush2.bf16.msra.mxu0 %v2412
    %3772 = vmatprep.subr.bf16.mxu0 %v2397
    %3773 = vmatpush2.bf16.msra.mxu0 %v2396
    %3774 = vmatprep.subr.bf16.mxu0 %v2381
    %3775 = vmatpush2.bf16.msra.mxu0 %v2380
    %3776 = vmatprep.subr.bf16.mxu0 %v2365
    %3777 = vmatpush2.bf16.msra.mxu0 %v2364
    %3778 = vmatprep.subr.bf16.mxu0 %v2349
    %3779 = vmatpush2.bf16.msra.mxu0 %v2348
    %3780 = vmatprep.mubr.bf16.mxu0 %v157
    %3781 = vmatmul.mubr.bf16.gmra.mxu0 %v156
    %v3782 = vpop.f32.mrf.mxu0
    %v3783 = vadd.f32 0.0, %v3782
    %v3784 = vpop.f32.mrf.mxu0
    %v3785 = vadd.f32 0.0, %v3784
    %v3786 = vpop.f32.mrf.mxu0
    %v3787 = vadd.f32 0.0, %v3786
    %v3788 = vpop.f32.mrf.mxu0
    %v3789 = vadd.f32 0.0, %v3788
    %3790 = vdwg.mxu0
    %3791 = vmatprep.subr.bf16.mxu0 %v2589
    %3792 = vmatpush1.bf16.msra.mxu0 %v2588
    %3793 = vmatprep.subr.bf16.mxu0 %v2573
    %3794 = vmatpush1.bf16.msra.mxu0 %v2572
    %3795 = vmatprep.subr.bf16.mxu0 %v2557
    %3796 = vmatpush1.bf16.msra.mxu0 %v2556
    %3797 = vmatprep.subr.bf16.mxu0 %v2541
    %3798 = vmatpush1.bf16.msra.mxu0 %v2540
    %3799 = vmatprep.subr.bf16.mxu0 %v2525
    %3800 = vmatpush1.bf16.msra.mxu0 %v2524
    %3801 = vmatprep.subr.bf16.mxu0 %v2509
    %3802 = vmatpush1.bf16.msra.mxu0 %v2508
    %3803 = vmatprep.subr.bf16.mxu0 %v2493
    %3804 = vmatpush1.bf16.msra.mxu0 %v2492
    %3805 = vmatprep.subr.bf16.mxu0 %v2477
    %3806 = vmatpush1.bf16.msra.mxu0 %v2476
    %3807 = vmatprep.subr.bf16.mxu0 %v2717
    %3808 = vmatpush2.bf16.msra.mxu0 %v2716
    %3809 = vmatprep.subr.bf16.mxu0 %v2701
    %3810 = vmatpush2.bf16.msra.mxu0 %v2700
    %3811 = vmatprep.subr.bf16.mxu0 %v2685
    %3812 = vmatpush2.bf16.msra.mxu0 %v2684
    %3813 = vmatprep.subr.bf16.mxu0 %v2669
    %3814 = vmatpush2.bf16.msra.mxu0 %v2668
    %3815 = vmatprep.subr.bf16.mxu0 %v2653
    %3816 = vmatpush2.bf16.msra.mxu0 %v2652
    %3817 = vmatprep.subr.bf16.mxu0 %v2637
    %3818 = vmatpush2.bf16.msra.mxu0 %v2636
    %3819 = vmatprep.subr.bf16.mxu0 %v2621
    %3820 = vmatpush2.bf16.msra.mxu0 %v2620
    %3821 = vmatprep.subr.bf16.mxu0 %v2605
    %3822 = vmatpush2.bf16.msra.mxu0 %v2604
    %3823 = vmatprep.mubr.bf16.mxu0 %v159
    %3824 = vmatmul.mubr.bf16.gmra.mxu0 %v158
    %v3825 = vpop.f32.mrf.mxu0
    %v3826 = vadd.f32 %v3783, %v3825
    %v3827 = vpop.f32.mrf.mxu0
    %v3828 = vadd.f32 %v3785, %v3827
    %v3829 = vpop.f32.mrf.mxu0
    %v3830 = vadd.f32 %v3787, %v3829
    %v3831 = vpop.f32.mrf.mxu0
    %v3832 = vadd.f32 %v3789, %v3831
    %3833 = vdwg.mxu0
    %3834 = vmatprep.subr.bf16.mxu0 %v2335
    %3835 = vmatpush1.bf16.msra.mxu0 %v2334
    %3836 = vmatprep.subr.bf16.mxu0 %v2319
    %3837 = vmatpush1.bf16.msra.mxu0 %v2318
    %3838 = vmatprep.subr.bf16.mxu0 %v2303
    %3839 = vmatpush1.bf16.msra.mxu0 %v2302
    %3840 = vmatprep.subr.bf16.mxu0 %v2287
    %3841 = vmatpush1.bf16.msra.mxu0 %v2286
    %3842 = vmatprep.subr.bf16.mxu0 %v2271
    %3843 = vmatpush1.bf16.msra.mxu0 %v2270
    %3844 = vmatprep.subr.bf16.mxu0 %v2255
    %3845 = vmatpush1.bf16.msra.mxu0 %v2254
    %3846 = vmatprep.subr.bf16.mxu0 %v2239
    %3847 = vmatpush1.bf16.msra.mxu0 %v2238
    %3848 = vmatprep.subr.bf16.mxu0 %v2223
    %3849 = vmatpush1.bf16.msra.mxu0 %v2222
    %3850 = vmatprep.subr.bf16.mxu0 %v2463
    %3851 = vmatpush2.bf16.msra.mxu0 %v2462
    %3852 = vmatprep.subr.bf16.mxu0 %v2447
    %3853 = vmatpush2.bf16.msra.mxu0 %v2446
    %3854 = vmatprep.subr.bf16.mxu0 %v2431
    %3855 = vmatpush2.bf16.msra.mxu0 %v2430
    %3856 = vmatprep.subr.bf16.mxu0 %v2415
    %3857 = vmatpush2.bf16.msra.mxu0 %v2414
    %3858 = vmatprep.subr.bf16.mxu0 %v2399
    %3859 = vmatpush2.bf16.msra.mxu0 %v2398
    %3860 = vmatprep.subr.bf16.mxu0 %v2383
    %3861 = vmatpush2.bf16.msra.mxu0 %v2382
    %3862 = vmatprep.subr.bf16.mxu0 %v2367
    %3863 = vmatpush2.bf16.msra.mxu0 %v2366
    %3864 = vmatprep.subr.bf16.mxu0 %v2351
    %3865 = vmatpush2.bf16.msra.mxu0 %v2350
    %3866 = vmatprep.mubr.bf16.mxu0 %v157
    %3867 = vmatmul.mubr.bf16.gmra.mxu0 %v156
    %v3868 = vpop.f32.mrf.mxu0
    %v3869 = vadd.f32 0.0, %v3868
    %v3870 = vpop.f32.mrf.mxu0
    %v3871 = vadd.f32 0.0, %v3870
    %v3872 = vpop.f32.mrf.mxu0
    %v3873 = vadd.f32 0.0, %v3872
    %v3874 = vpop.f32.mrf.mxu0
    %v3875 = vadd.f32 0.0, %v3874
    %3876 = vdwg.mxu0
    %3877 = vmatprep.subr.bf16.mxu0 %v2591
    %3878 = vmatpush1.bf16.msra.mxu0 %v2590
    %3879 = vmatprep.subr.bf16.mxu0 %v2575
    %3880 = vmatpush1.bf16.msra.mxu0 %v2574
    %3881 = vmatprep.subr.bf16.mxu0 %v2559
    %3882 = vmatpush1.bf16.msra.mxu0 %v2558
    %3883 = vmatprep.subr.bf16.mxu0 %v2543
    %3884 = vmatpush1.bf16.msra.mxu0 %v2542
    %3885 = vmatprep.subr.bf16.mxu0 %v2527
    %3886 = vmatpush1.bf16.msra.mxu0 %v2526
    %3887 = vmatprep.subr.bf16.mxu0 %v2511
    %3888 = vmatpush1.bf16.msra.mxu0 %v2510
    %3889 = vmatprep.subr.bf16.mxu0 %v2495
    %3890 = vmatpush1.bf16.msra.mxu0 %v2494
    %3891 = vmatprep.subr.bf16.mxu0 %v2479
    %3892 = vmatpush1.bf16.msra.mxu0 %v2478
    %3893 = vmatprep.subr.bf16.mxu0 %v2719
    %3894 = vmatpush2.bf16.msra.mxu0 %v2718
    %3895 = vmatprep.subr.bf16.mxu0 %v2703
    %3896 = vmatpush2.bf16.msra.mxu0 %v2702
    %3897 = vmatprep.subr.bf16.mxu0 %v2687
    %3898 = vmatpush2.bf16.msra.mxu0 %v2686
    %3899 = vmatprep.subr.bf16.mxu0 %v2671
    %3900 = vmatpush2.bf16.msra.mxu0 %v2670
    %3901 = vmatprep.subr.bf16.mxu0 %v2655
    %3902 = vmatpush2.bf16.msra.mxu0 %v2654
    %3903 = vmatprep.subr.bf16.mxu0 %v2639
    %3904 = vmatpush2.bf16.msra.mxu0 %v2638
    %3905 = vmatprep.subr.bf16.mxu0 %v2623
    %3906 = vmatpush2.bf16.msra.mxu0 %v2622
    %3907 = vmatprep.subr.bf16.mxu0 %v2607
    %3908 = vmatpush2.bf16.msra.mxu0 %v2606
    %3909 = vmatprep.mubr.bf16.mxu0 %v159
    %3910 = vmatmul.mubr.bf16.gmra.mxu0 %v158
    %v3911 = vpop.f32.mrf.mxu0
    %v3912 = vadd.f32 %v3869, %v3911
    %v3913 = vpop.f32.mrf.mxu0
    %v3914 = vadd.f32 %v3871, %v3913
    %v3915 = vpop.f32.mrf.mxu0
    %v3916 = vadd.f32 %v3873, %v3915
    %v3917 = vpop.f32.mrf.mxu0
    %v3918 = vadd.f32 %v3875, %v3917
    %3919 = vdwg.mxu0
    %v3920 = vadd.f32 %v124, %v3310
    %v3921 = vadd.f32 %v125, %v3312
    %v3922 = vadd.f32 %v126, %v3396
    %v3923 = vadd.f32 %v127, %v3398
    %v3924 = vadd.f32 %v128, %v3482
    %v3925 = vadd.f32 %v129, %v3484
    %v3926 = vadd.f32 %v130, %v3568
    %v3927 = vadd.f32 %v131, %v3570
    %v3928 = vadd.f32 %v132, %v3654
    %v3929 = vadd.f32 %v133, %v3656
    %v3930 = vadd.f32 %v134, %v3740
    %v3931 = vadd.f32 %v135, %v3742
    %v3932 = vadd.f32 %v136, %v3826
    %v3933 = vadd.f32 %v137, %v3828
    %v3934 = vadd.f32 %v138, %v3912
    %v3935 = vadd.f32 %v139, %v3914
    %v3936 = vadd.f32 %v140, %v3314
    %v3937 = vadd.f32 %v141, %v3316
    %v3938 = vadd.f32 %v142, %v3400
    %v3939 = vadd.f32 %v143, %v3402
    %v3940 = vadd.f32 %v144, %v3486
    %v3941 = vadd.f32 %v145, %v3488
    %v3942 = vadd.f32 %v146, %v3572
    %v3943 = vadd.f32 %v147, %v3574
    %v3944 = vadd.f32 %v148, %v3658
    %v3945 = vadd.f32 %v149, %v3660
    %v3946 = vadd.f32 %v150, %v3744
    %v3947 = vadd.f32 %v151, %v3746
    %v3948 = vadd.f32 %v152, %v3830
    %v3949 = vadd.f32 %v153, %v3832
    %v3950 = vadd.f32 %v154, %v3916
    %v3951 = vadd.f32 %v155, %v3918
    %v3952 = vxor.u32 %v3920, 2147483648
    %v3953 = vxor.u32 %v3921, 2147483648
    %v3954 = vxor.u32 %v3922, 2147483648
    %v3955 = vxor.u32 %v3923, 2147483648
    %v3956 = vxor.u32 %v3936, 2147483648
    %v3957 = vxor.u32 %v3937, 2147483648
    %v3958 = vxor.u32 %v3938, 2147483648
    %v3959 = vxor.u32 %v3939, 2147483648
    %v3960 = vmul.f32 %v3952, 1.442695
    %v3961 = vpow.pop %v3960
    %v3962 = vmul.f32 %v3953, 1.442695
    %v3963 = vpow.pop %v3962
    %v3964 = vmul.f32 %v3954, 1.442695
    %v3965 = vpow.pop %v3964
    %v3966 = vmul.f32 %v3955, 1.442695
    %v3967 = vpow.pop %v3966
    %v3968 = vmul.f32 %v3956, 1.442695
    %v3969 = vpow.pop %v3968
    %v3970 = vmul.f32 %v3957, 1.442695
    %v3971 = vpow.pop %v3970
    %v3972 = vmul.f32 %v3958, 1.442695
    %v3973 = vpow.pop %v3972
    %v3974 = vmul.f32 %v3959, 1.442695
    %v3975 = vpow.pop %v3974
    %v3976 = vadd.f32 %v3961, 1.0
    %v3977 = vadd.f32 %v3963, 1.0
    %v3978 = vadd.f32 %v3965, 1.0
    %v3979 = vadd.f32 %v3967, 1.0
    %v3980 = vadd.f32 %v3969, 1.0
    %v3981 = vadd.f32 %v3971, 1.0
    %v3982 = vadd.f32 %v3973, 1.0
    %v3983 = vadd.f32 %v3975, 1.0
    %v3984 = vrcp.pop %v3976
    %v3985 = vmul.f32 1.0, %v3984
    %v3986 = vrcp.pop %v3977
    %v3987 = vmul.f32 1.0, %v3986
    %v3988 = vrcp.pop %v3978
    %v3989 = vmul.f32 1.0, %v3988
    %v3990 = vrcp.pop %v3979
    %v3991 = vmul.f32 1.0, %v3990
    %v3992 = vrcp.pop %v3980
    %v3993 = vmul.f32 1.0, %v3992
    %v3994 = vrcp.pop %v3981
    %v3995 = vmul.f32 1.0, %v3994
    %v3996 = vrcp.pop %v3982
    %v3997 = vmul.f32 1.0, %v3996
    %v3998 = vrcp.pop %v3983
    %v3999 = vmul.f32 1.0, %v3998
    %v4000 = vxor.u32 %v3924, 2147483648
    %v4001 = vxor.u32 %v3925, 2147483648
    %v4002 = vxor.u32 %v3926, 2147483648
    %v4003 = vxor.u32 %v3927, 2147483648
    %v4004 = vxor.u32 %v3940, 2147483648
    %v4005 = vxor.u32 %v3941, 2147483648
    %v4006 = vxor.u32 %v3942, 2147483648
    %v4007 = vxor.u32 %v3943, 2147483648
    %v4008 = vmul.f32 %v4000, 1.442695
    %v4009 = vpow.pop %v4008
    %v4010 = vmul.f32 %v4001, 1.442695
    %v4011 = vpow.pop %v4010
    %v4012 = vmul.f32 %v4002, 1.442695
    %v4013 = vpow.pop %v4012
    %v4014 = vmul.f32 %v4003, 1.442695
    %v4015 = vpow.pop %v4014
    %v4016 = vmul.f32 %v4004, 1.442695
    %v4017 = vpow.pop %v4016
    %v4018 = vmul.f32 %v4005, 1.442695
    %v4019 = vpow.pop %v4018
    %v4020 = vmul.f32 %v4006, 1.442695
    %v4021 = vpow.pop %v4020
    %v4022 = vmul.f32 %v4007, 1.442695
    %v4023 = vpow.pop %v4022
    %v4024 = vadd.f32 %v4009, 1.0
    %v4025 = vadd.f32 %v4011, 1.0
    %v4026 = vadd.f32 %v4013, 1.0
    %v4027 = vadd.f32 %v4015, 1.0
    %v4028 = vadd.f32 %v4017, 1.0
    %v4029 = vadd.f32 %v4019, 1.0
    %v4030 = vadd.f32 %v4021, 1.0
    %v4031 = vadd.f32 %v4023, 1.0
    %v4032 = vrcp.pop %v4024
    %v4033 = vmul.f32 1.0, %v4032
    %v4034 = vrcp.pop %v4025
    %v4035 = vmul.f32 1.0, %v4034
    %v4036 = vrcp.pop %v4026
    %v4037 = vmul.f32 1.0, %v4036
    %v4038 = vrcp.pop %v4027
    %v4039 = vmul.f32 1.0, %v4038
    %v4040 = vrcp.pop %v4028
    %v4041 = vmul.f32 1.0, %v4040
    %v4042 = vrcp.pop %v4029
    %v4043 = vmul.f32 1.0, %v4042
    %v4044 = vrcp.pop %v4030
    %v4045 = vmul.f32 1.0, %v4044
    %v4046 = vrcp.pop %v4031
    %v4047 = vmul.f32 1.0, %v4046
    %v4048 = vtanh.pop %v3928
    %v4049 = vtanh.pop %v3929
    %v4050 = vtanh.pop %v3930
    %v4051 = vtanh.pop %v3931
    %v4052 = vtanh.pop %v3944
    %v4053 = vtanh.pop %v3945
    %v4054 = vtanh.pop %v3946
    %v4055 = vtanh.pop %v3947
    %v4056 = vxor.u32 %v3932, 2147483648
    %v4057 = vxor.u32 %v3933, 2147483648
    %v4058 = vxor.u32 %v3934, 2147483648
    %v4059 = vxor.u32 %v3935, 2147483648
    %v4060 = vxor.u32 %v3948, 2147483648
    %v4061 = vxor.u32 %v3949, 2147483648
    %v4062 = vxor.u32 %v3950, 2147483648
    %v4063 = vxor.u32 %v3951, 2147483648
    %v4064 = vmul.f32 %v4056, 1.442695
    %v4065 = vpow.pop %v4064
    %v4066 = vmul.f32 %v4057, 1.442695
    %v4067 = vpow.pop %v4066
    %v4068 = vmul.f32 %v4058, 1.442695
    %v4069 = vpow.pop %v4068
    %v4070 = vmul.f32 %v4059, 1.442695
    %v4071 = vpow.pop %v4070
    %v4072 = vmul.f32 %v4060, 1.442695
    %v4073 = vpow.pop %v4072
    %v4074 = vmul.f32 %v4061, 1.442695
    %v4075 = vpow.pop %v4074
    %v4076 = vmul.f32 %v4062, 1.442695
    %v4077 = vpow.pop %v4076
    %v4078 = vmul.f32 %v4063, 1.442695
    %v4079 = vpow.pop %v4078
    %v4080 = vadd.f32 %v4065, 1.0
    %v4081 = vadd.f32 %v4067, 1.0
    %v4082 = vadd.f32 %v4069, 1.0
    %v4083 = vadd.f32 %v4071, 1.0
    %v4084 = vadd.f32 %v4073, 1.0
    %v4085 = vadd.f32 %v4075, 1.0
    %v4086 = vadd.f32 %v4077, 1.0
    %v4087 = vadd.f32 %v4079, 1.0
    %v4088 = vrcp.pop %v4080
    %v4089 = vmul.f32 1.0, %v4088
    %v4090 = vrcp.pop %v4081
    %v4091 = vmul.f32 1.0, %v4090
    %v4092 = vrcp.pop %v4082
    %v4093 = vmul.f32 1.0, %v4092
    %v4094 = vrcp.pop %v4083
    %v4095 = vmul.f32 1.0, %v4094
    %v4096 = vrcp.pop %v4084
    %v4097 = vmul.f32 1.0, %v4096
    %v4098 = vrcp.pop %v4085
    %v4099 = vmul.f32 1.0, %v4098
    %v4100 = vrcp.pop %v4086
    %v4101 = vmul.f32 1.0, %v4100
    %v4102 = vrcp.pop %v4087
    %v4103 = vmul.f32 1.0, %v4102
    %v4104 = vmul.f32 %v4033, %v100
    %v4105 = vmul.f32 %v4035, %v101
    %v4106 = vmul.f32 %v4037, %v102
    %v4107 = vmul.f32 %v4039, %v103
    %v4108 = vmul.f32 %v4041, %v104
    %v4109 = vmul.f32 %v4043, %v105
    %v4110 = vmul.f32 %v4045, %v106
    %v4111 = vmul.f32 %v4047, %v107
    %v4112 = vmul.f32 %v3985, %v4048
    %v4113 = vmul.f32 %v3987, %v4049
    %v4114 = vmul.f32 %v3989, %v4050
    %v4115 = vmul.f32 %v3991, %v4051
    %v4116 = vmul.f32 %v3993, %v4052
    %v4117 = vmul.f32 %v3995, %v4053
    %v4118 = vmul.f32 %v3997, %v4054
    %v4119 = vmul.f32 %v3999, %v4055
    %v4120 = vadd.f32 %v4104, %v4112
    %v4121 = vadd.f32 %v4105, %v4113
    %v4122 = vadd.f32 %v4106, %v4114
    %v4123 = vadd.f32 %v4107, %v4115
    %v4124 = vadd.f32 %v4108, %v4116
    %v4125 = vadd.f32 %v4109, %v4117
    %v4126 = vadd.f32 %v4110, %v4118
    %v4127 = vadd.f32 %v4111, %v4119
    %v4128 = vtanh.pop %v4120
    %v4129 = vtanh.pop %v4121
    %v4130 = vtanh.pop %v4122
    %v4131 = vtanh.pop %v4123
    %v4132 = vtanh.pop %v4124
    %v4133 = vtanh.pop %v4125
    %v4134 = vtanh.pop %v4126
    %v4135 = vtanh.pop %v4127
    %v4136 = vmul.f32 %v4089, %v4128
    %v4137 = vmul.f32 %v4091, %v4129
    %v4138 = vmul.f32 %v4093, %v4130
    %v4139 = vmul.f32 %v4095, %v4131
    %v4140 = vmul.f32 %v4097, %v4132
    %v4141 = vmul.f32 %v4099, %v4133
    %v4142 = vmul.f32 %v4101, %v4134
    %v4143 = vmul.f32 %v4103, %v4135
    %s4144 = scalar_lea.vmem [#allocation4], 128
    %v4145 = vld [vmem:[%s4144] sm:$0xff]
    %v4146 = vld [vmem:[%s4144 + $0x8] sm:$0xff]
    %v4147 = vld [vmem:[%s4144 + $0x10] sm:$0xff]
    %v4148 = vld [vmem:[%s4144 + $0x18] sm:$0xff]
    %v4149 = vld [vmem:[%s4144 + $0x20] sm:$0xff]
    %v4150 = vld [vmem:[%s4144 + $0x28] sm:$0xff]
    %v4151 = vld [vmem:[%s4144 + $0x30] sm:$0xff]
    %v4152 = vld [vmem:[%s4144 + $0x38] sm:$0xff]
    %v4153 = vld [vmem:[%s4144 + $0x40] sm:$0xff]
    %v4154 = vld [vmem:[%s4144 + $0x48] sm:$0xff]
    %v4155 = vld [vmem:[%s4144 + $0x50] sm:$0xff]
    %v4156 = vld [vmem:[%s4144 + $0x58] sm:$0xff]
    %v4157 = vld [vmem:[%s4144 + $0x60] sm:$0xff]
    %v4158 = vld [vmem:[%s4144 + $0x68] sm:$0xff]
    %v4159 = vld [vmem:[%s4144 + $0x70] sm:$0xff]
    %v4160 = vld [vmem:[%s4144 + $0x78] sm:$0xff]
    %v4161 = vunpack.c.l.bf16 %v4145
    %v4162 = vunpack.c.h.bf16 %v4145
    %v4163 = vunpack.c.l.bf16 %v4146
    %v4164 = vunpack.c.h.bf16 %v4146
    %v4165 = vunpack.c.l.bf16 %v4147
    %v4166 = vunpack.c.h.bf16 %v4147
    %v4167 = vunpack.c.l.bf16 %v4148
    %v4168 = vunpack.c.h.bf16 %v4148
    %v4169 = vunpack.c.l.bf16 %v4149
    %v4170 = vunpack.c.h.bf16 %v4149
    %v4171 = vunpack.c.l.bf16 %v4150
    %v4172 = vunpack.c.h.bf16 %v4150
    %v4173 = vunpack.c.l.bf16 %v4151
    %v4174 = vunpack.c.h.bf16 %v4151
    %v4175 = vunpack.c.l.bf16 %v4152
    %v4176 = vunpack.c.h.bf16 %v4152
    %v4177 = vunpack.c.l.bf16 %v4153
    %v4178 = vunpack.c.h.bf16 %v4153
    %v4179 = vunpack.c.l.bf16 %v4154
    %v4180 = vunpack.c.h.bf16 %v4154
    %v4181 = vunpack.c.l.bf16 %v4155
    %v4182 = vunpack.c.h.bf16 %v4155
    %v4183 = vunpack.c.l.bf16 %v4156
    %v4184 = vunpack.c.h.bf16 %v4156
    %v4185 = vunpack.c.l.bf16 %v4157
    %v4186 = vunpack.c.h.bf16 %v4157
    %v4187 = vunpack.c.l.bf16 %v4158
    %v4188 = vunpack.c.h.bf16 %v4158
    %v4189 = vunpack.c.l.bf16 %v4159
    %v4190 = vunpack.c.h.bf16 %v4159
    %v4191 = vunpack.c.l.bf16 %v4160
    %v4192 = vunpack.c.h.bf16 %v4160
    %v4193 = vpack.c.bf16 %v4140, %v4136
    %v4194 = vpack.c.bf16 %v4141, %v4137
    %v4195 = vpack.c.bf16 %v4142, %v4138
    %v4196 = vpack.c.bf16 %v4143, %v4139
    %4197 = vmatprep.subr.bf16.mxu0 %v2321
    %4198 = vmatpush1.bf16.msra.mxu0 %v2320
    %4199 = vmatprep.subr.bf16.mxu0 %v2305
    %4200 = vmatpush1.bf16.msra.mxu0 %v2304
    %4201 = vmatprep.subr.bf16.mxu0 %v2289
    %4202 = vmatpush1.bf16.msra.mxu0 %v2288
    %4203 = vmatprep.subr.bf16.mxu0 %v2273
    %4204 = vmatpush1.bf16.msra.mxu0 %v2272
    %4205 = vmatprep.subr.bf16.mxu0 %v2257
    %4206 = vmatpush1.bf16.msra.mxu0 %v2256
    %4207 = vmatprep.subr.bf16.mxu0 %v2241
    %4208 = vmatpush1.bf16.msra.mxu0 %v2240
    %4209 = vmatprep.subr.bf16.mxu0 %v2225
    %4210 = vmatpush1.bf16.msra.mxu0 %v2224
    %4211 = vmatprep.subr.bf16.mxu0 %v2209
    %4212 = vmatpush1.bf16.msra.mxu0 %v2208
    %4213 = vmatprep.subr.bf16.mxu0 %v2449
    %4214 = vmatpush2.bf16.msra.mxu0 %v2448
    %4215 = vmatprep.subr.bf16.mxu0 %v2433
    %4216 = vmatpush2.bf16.msra.mxu0 %v2432
    %4217 = vmatprep.subr.bf16.mxu0 %v2417
    %4218 = vmatpush2.bf16.msra.mxu0 %v2416
    %4219 = vmatprep.subr.bf16.mxu0 %v2401
    %4220 = vmatpush2.bf16.msra.mxu0 %v2400
    %4221 = vmatprep.subr.bf16.mxu0 %v2385
    %4222 = vmatpush2.bf16.msra.mxu0 %v2384
    %4223 = vmatprep.subr.bf16.mxu0 %v2369
    %4224 = vmatpush2.bf16.msra.mxu0 %v2368
    %4225 = vmatprep.subr.bf16.mxu0 %v2353
    %4226 = vmatpush2.bf16.msra.mxu0 %v2352
    %4227 = vmatprep.subr.bf16.mxu0 %v2337
    %4228 = vmatpush2.bf16.msra.mxu0 %v2336
    %4229 = vmatprep.mubr.bf16.mxu0 %v4194
    %4230 = vmatmul.mubr.bf16.gmra.mxu0 %v4193
    %v4231 = vpop.f32.mrf.mxu0
    %v4232 = vadd.f32 0.0, %v4231
    %v4233 = vpop.f32.mrf.mxu0
    %v4234 = vadd.f32 0.0, %v4233
    %v4235 = vpop.f32.mrf.mxu0
    %v4236 = vadd.f32 0.0, %v4235
    %v4237 = vpop.f32.mrf.mxu0
    %v4238 = vadd.f32 0.0, %v4237
    %4239 = vdwg.mxu0
    %4240 = vmatprep.subr.bf16.mxu0 %v2577
    %4241 = vmatpush1.bf16.msra.mxu0 %v2576
    %4242 = vmatprep.subr.bf16.mxu0 %v2561
    %4243 = vmatpush1.bf16.msra.mxu0 %v2560
    %4244 = vmatprep.subr.bf16.mxu0 %v2545
    %4245 = vmatpush1.bf16.msra.mxu0 %v2544
    %4246 = vmatprep.subr.bf16.mxu0 %v2529
    %4247 = vmatpush1.bf16.msra.mxu0 %v2528
    %4248 = vmatprep.subr.bf16.mxu0 %v2513
    %4249 = vmatpush1.bf16.msra.mxu0 %v2512
    %4250 = vmatprep.subr.bf16.mxu0 %v2497
    %4251 = vmatpush1.bf16.msra.mxu0 %v2496
    %4252 = vmatprep.subr.bf16.mxu0 %v2481
    %4253 = vmatpush1.bf16.msra.mxu0 %v2480
    %4254 = vmatprep.subr.bf16.mxu0 %v2465
    %4255 = vmatpush1.bf16.msra.mxu0 %v2464
    %4256 = vmatprep.subr.bf16.mxu0 %v2705
    %4257 = vmatpush2.bf16.msra.mxu0 %v2704
    %4258 = vmatprep.subr.bf16.mxu0 %v2689
    %4259 = vmatpush2.bf16.msra.mxu0 %v2688
    %4260 = vmatprep.subr.bf16.mxu0 %v2673
    %4261 = vmatpush2.bf16.msra.mxu0 %v2672
    %4262 = vmatprep.subr.bf16.mxu0 %v2657
    %4263 = vmatpush2.bf16.msra.mxu0 %v2656
    %4264 = vmatprep.subr.bf16.mxu0 %v2641
    %4265 = vmatpush2.bf16.msra.mxu0 %v2640
    %4266 = vmatprep.subr.bf16.mxu0 %v2625
    %4267 = vmatpush2.bf16.msra.mxu0 %v2624
    %4268 = vmatprep.subr.bf16.mxu0 %v2609
    %4269 = vmatpush2.bf16.msra.mxu0 %v2608
    %4270 = vmatprep.subr.bf16.mxu0 %v2593
    %4271 = vmatpush2.bf16.msra.mxu0 %v2592
    %4272 = vmatprep.mubr.bf16.mxu0 %v4196
    %4273 = vmatmul.mubr.bf16.gmra.mxu0 %v4195
    %v4274 = vpop.f32.mrf.mxu0
    %v4275 = vadd.f32 %v4232, %v4274
    %v4276 = vpop.f32.mrf.mxu0
    %v4277 = vadd.f32 %v4234, %v4276
    %v4278 = vpop.f32.mrf.mxu0
    %v4279 = vadd.f32 %v4236, %v4278
    %v4280 = vpop.f32.mrf.mxu0
    %v4281 = vadd.f32 %v4238, %v4280
    %4282 = vdwg.mxu0
    %4283 = vmatprep.subr.bf16.mxu0 %v2323
    %4284 = vmatpush1.bf16.msra.mxu0 %v2322
    %4285 = vmatprep.subr.bf16.mxu0 %v2307
    %4286 = vmatpush1.bf16.msra.mxu0 %v2306
    %4287 = vmatprep.subr.bf16.mxu0 %v2291
    %4288 = vmatpush1.bf16.msra.mxu0 %v2290
    %4289 = vmatprep.subr.bf16.mxu0 %v2275
    %4290 = vmatpush1.bf16.msra.mxu0 %v2274
    %4291 = vmatprep.subr.bf16.mxu0 %v2259
    %4292 = vmatpush1.bf16.msra.mxu0 %v2258
    %4293 = vmatprep.subr.bf16.mxu0 %v2243
    %4294 = vmatpush1.bf16.msra.mxu0 %v2242
    %4295 = vmatprep.subr.bf16.mxu0 %v2227
    %4296 = vmatpush1.bf16.msra.mxu0 %v2226
    %4297 = vmatprep.subr.bf16.mxu0 %v2211
    %4298 = vmatpush1.bf16.msra.mxu0 %v2210
    %4299 = vmatprep.subr.bf16.mxu0 %v2451
    %4300 = vmatpush2.bf16.msra.mxu0 %v2450
    %4301 = vmatprep.subr.bf16.mxu0 %v2435
    %4302 = vmatpush2.bf16.msra.mxu0 %v2434
    %4303 = vmatprep.subr.bf16.mxu0 %v2419
    %4304 = vmatpush2.bf16.msra.mxu0 %v2418
    %4305 = vmatprep.subr.bf16.mxu0 %v2403
    %4306 = vmatpush2.bf16.msra.mxu0 %v2402
    %4307 = vmatprep.subr.bf16.mxu0 %v2387
    %4308 = vmatpush2.bf16.msra.mxu0 %v2386
    %4309 = vmatprep.subr.bf16.mxu0 %v2371
    %4310 = vmatpush2.bf16.msra.mxu0 %v2370
    %4311 = vmatprep.subr.bf16.mxu0 %v2355
    %4312 = vmatpush2.bf16.msra.mxu0 %v2354
    %4313 = vmatprep.subr.bf16.mxu0 %v2339
    %4314 = vmatpush2.bf16.msra.mxu0 %v2338
    %4315 = vmatprep.mubr.bf16.mxu0 %v4194
    %4316 = vmatmul.mubr.bf16.gmra.mxu0 %v4193
    %v4317 = vpop.f32.mrf.mxu0
    %v4318 = vadd.f32 0.0, %v4317
    %v4319 = vpop.f32.mrf.mxu0
    %v4320 = vadd.f32 0.0, %v4319
    %v4321 = vpop.f32.mrf.mxu0
    %v4322 = vadd.f32 0.0, %v4321
    %v4323 = vpop.f32.mrf.mxu0
    %v4324 = vadd.f32 0.0, %v4323
    %4325 = vdwg.mxu0
    %4326 = vmatprep.subr.bf16.mxu0 %v2579
    %4327 = vmatpush1.bf16.msra.mxu0 %v2578
    %4328 = vmatprep.subr.bf16.mxu0 %v2563
    %4329 = vmatpush1.bf16.msra.mxu0 %v2562
    %4330 = vmatprep.subr.bf16.mxu0 %v2547
    %4331 = vmatpush1.bf16.msra.mxu0 %v2546
    %4332 = vmatprep.subr.bf16.mxu0 %v2531
    %4333 = vmatpush1.bf16.msra.mxu0 %v2530
    %4334 = vmatprep.subr.bf16.mxu0 %v2515
    %4335 = vmatpush1.bf16.msra.mxu0 %v2514
    %4336 = vmatprep.subr.bf16.mxu0 %v2499
    %4337 = vmatpush1.bf16.msra.mxu0 %v2498
    %4338 = vmatprep.subr.bf16.mxu0 %v2483
    %4339 = vmatpush1.bf16.msra.mxu0 %v2482
    %4340 = vmatprep.subr.bf16.mxu0 %v2467
    %4341 = vmatpush1.bf16.msra.mxu0 %v2466
    %4342 = vmatprep.subr.bf16.mxu0 %v2707
    %4343 = vmatpush2.bf16.msra.mxu0 %v2706
    %4344 = vmatprep.subr.bf16.mxu0 %v2691
    %4345 = vmatpush2.bf16.msra.mxu0 %v2690
    %4346 = vmatprep.subr.bf16.mxu0 %v2675
    %4347 = vmatpush2.bf16.msra.mxu0 %v2674
    %4348 = vmatprep.subr.bf16.mxu0 %v2659
    %4349 = vmatpush2.bf16.msra.mxu0 %v2658
    %4350 = vmatprep.subr.bf16.mxu0 %v2643
    %4351 = vmatpush2.bf16.msra.mxu0 %v2642
    %4352 = vmatprep.subr.bf16.mxu0 %v2627
    %4353 = vmatpush2.bf16.msra.mxu0 %v2626
    %4354 = vmatprep.subr.bf16.mxu0 %v2611
    %4355 = vmatpush2.bf16.msra.mxu0 %v2610
    %4356 = vmatprep.subr.bf16.mxu0 %v2595
    %4357 = vmatpush2.bf16.msra.mxu0 %v2594
    %4358 = vmatprep.mubr.bf16.mxu0 %v4196
    %4359 = vmatmul.mubr.bf16.gmra.mxu0 %v4195
    %v4360 = vpop.f32.mrf.mxu0
    %v4361 = vadd.f32 %v4318, %v4360
    %v4362 = vpop.f32.mrf.mxu0
    %v4363 = vadd.f32 %v4320, %v4362
    %v4364 = vpop.f32.mrf.mxu0
    %v4365 = vadd.f32 %v4322, %v4364
    %v4366 = vpop.f32.mrf.mxu0
    %v4367 = vadd.f32 %v4324, %v4366
    %4368 = vdwg.mxu0
    %4369 = vmatprep.subr.bf16.mxu0 %v2325
    %4370 = vmatpush1.bf16.msra.mxu0 %v2324
    %4371 = vmatprep.subr.bf16.mxu0 %v2309
    %4372 = vmatpush1.bf16.msra.mxu0 %v2308
    %4373 = vmatprep.subr.bf16.mxu0 %v2293
    %4374 = vmatpush1.bf16.msra.mxu0 %v2292
    %4375 = vmatprep.subr.bf16.mxu0 %v2277
    %4376 = vmatpush1.bf16.msra.mxu0 %v2276
    %4377 = vmatprep.subr.bf16.mxu0 %v2261
    %4378 = vmatpush1.bf16.msra.mxu0 %v2260
    %4379 = vmatprep.subr.bf16.mxu0 %v2245
    %4380 = vmatpush1.bf16.msra.mxu0 %v2244
    %4381 = vmatprep.subr.bf16.mxu0 %v2229
    %4382 = vmatpush1.bf16.msra.mxu0 %v2228
    %4383 = vmatprep.subr.bf16.mxu0 %v2213
    %4384 = vmatpush1.bf16.msra.mxu0 %v2212
    %4385 = vmatprep.subr.bf16.mxu0 %v2453
    %4386 = vmatpush2.bf16.msra.mxu0 %v2452
    %4387 = vmatprep.subr.bf16.mxu0 %v2437
    %4388 = vmatpush2.bf16.msra.mxu0 %v2436
    %4389 = vmatprep.subr.bf16.mxu0 %v2421
    %4390 = vmatpush2.bf16.msra.mxu0 %v2420
    %4391 = vmatprep.subr.bf16.mxu0 %v2405
    %4392 = vmatpush2.bf16.msra.mxu0 %v2404
    %4393 = vmatprep.subr.bf16.mxu0 %v2389
    %4394 = vmatpush2.bf16.msra.mxu0 %v2388
    %4395 = vmatprep.subr.bf16.mxu0 %v2373
    %4396 = vmatpush2.bf16.msra.mxu0 %v2372
    %4397 = vmatprep.subr.bf16.mxu0 %v2357
    %4398 = vmatpush2.bf16.msra.mxu0 %v2356
    %4399 = vmatprep.subr.bf16.mxu0 %v2341
    %4400 = vmatpush2.bf16.msra.mxu0 %v2340
    %4401 = vmatprep.mubr.bf16.mxu0 %v4194
    %4402 = vmatmul.mubr.bf16.gmra.mxu0 %v4193
    %v4403 = vpop.f32.mrf.mxu0
    %v4404 = vadd.f32 0.0, %v4403
    %v4405 = vpop.f32.mrf.mxu0
    %v4406 = vadd.f32 0.0, %v4405
    %v4407 = vpop.f32.mrf.mxu0
    %v4408 = vadd.f32 0.0, %v4407
    %v4409 = vpop.f32.mrf.mxu0
    %v4410 = vadd.f32 0.0, %v4409
    %4411 = vdwg.mxu0
    %4412 = vmatprep.subr.bf16.mxu0 %v2581
    %4413 = vmatpush1.bf16.msra.mxu0 %v2580
    %4414 = vmatprep.subr.bf16.mxu0 %v2565
    %4415 = vmatpush1.bf16.msra.mxu0 %v2564
    %4416 = vmatprep.subr.bf16.mxu0 %v2549
    %4417 = vmatpush1.bf16.msra.mxu0 %v2548
    %4418 = vmatprep.subr.bf16.mxu0 %v2533
    %4419 = vmatpush1.bf16.msra.mxu0 %v2532
    %4420 = vmatprep.subr.bf16.mxu0 %v2517
    %4421 = vmatpush1.bf16.msra.mxu0 %v2516
    %4422 = vmatprep.subr.bf16.mxu0 %v2501
    %4423 = vmatpush1.bf16.msra.mxu0 %v2500
    %4424 = vmatprep.subr.bf16.mxu0 %v2485
    %4425 = vmatpush1.bf16.msra.mxu0 %v2484
    %4426 = vmatprep.subr.bf16.mxu0 %v2469
    %4427 = vmatpush1.bf16.msra.mxu0 %v2468
    %4428 = vmatprep.subr.bf16.mxu0 %v2709
    %4429 = vmatpush2.bf16.msra.mxu0 %v2708
    %4430 = vmatprep.subr.bf16.mxu0 %v2693
    %4431 = vmatpush2.bf16.msra.mxu0 %v2692
    %4432 = vmatprep.subr.bf16.mxu0 %v2677
    %4433 = vmatpush2.bf16.msra.mxu0 %v2676
    %4434 = vmatprep.subr.bf16.mxu0 %v2661
    %4435 = vmatpush2.bf16.msra.mxu0 %v2660
    %4436 = vmatprep.subr.bf16.mxu0 %v2645
    %4437 = vmatpush2.bf16.msra.mxu0 %v2644
    %4438 = vmatprep.subr.bf16.mxu0 %v2629
    %4439 = vmatpush2.bf16.msra.mxu0 %v2628
    %4440 = vmatprep.subr.bf16.mxu0 %v2613
    %4441 = vmatpush2.bf16.msra.mxu0 %v2612
    %4442 = vmatprep.subr.bf16.mxu0 %v2597
    %4443 = vmatpush2.bf16.msra.mxu0 %v2596
    %4444 = vmatprep.mubr.bf16.mxu0 %v4196
    %4445 = vmatmul.mubr.bf16.gmra.mxu0 %v4195
    %v4446 = vpop.f32.mrf.mxu0
    %v4447 = vadd.f32 %v4404, %v4446
    %v4448 = vpop.f32.mrf.mxu0
    %v4449 = vadd.f32 %v4406, %v4448
    %v4450 = vpop.f32.mrf.mxu0
    %v4451 = vadd.f32 %v4408, %v4450
    %v4452 = vpop.f32.mrf.mxu0
    %v4453 = vadd.f32 %v4410, %v4452
    %4454 = vdwg.mxu0
    %4455 = vmatprep.subr.bf16.mxu0 %v2327
    %4456 = vmatpush1.bf16.msra.mxu0 %v2326
    %4457 = vmatprep.subr.bf16.mxu0 %v2311
    %4458 = vmatpush1.bf16.msra.mxu0 %v2310
    %4459 = vmatprep.subr.bf16.mxu0 %v2295
    %4460 = vmatpush1.bf16.msra.mxu0 %v2294
    %4461 = vmatprep.subr.bf16.mxu0 %v2279
    %4462 = vmatpush1.bf16.msra.mxu0 %v2278
    %4463 = vmatprep.subr.bf16.mxu0 %v2263
    %4464 = vmatpush1.bf16.msra.mxu0 %v2262
    %4465 = vmatprep.subr.bf16.mxu0 %v2247
    %4466 = vmatpush1.bf16.msra.mxu0 %v2246
    %4467 = vmatprep.subr.bf16.mxu0 %v2231
    %4468 = vmatpush1.bf16.msra.mxu0 %v2230
    %4469 = vmatprep.subr.bf16.mxu0 %v2215
    %4470 = vmatpush1.bf16.msra.mxu0 %v2214
    %4471 = vmatprep.subr.bf16.mxu0 %v2455
    %4472 = vmatpush2.bf16.msra.mxu0 %v2454
    %4473 = vmatprep.subr.bf16.mxu0 %v2439
    %4474 = vmatpush2.bf16.msra.mxu0 %v2438
    %4475 = vmatprep.subr.bf16.mxu0 %v2423
    %4476 = vmatpush2.bf16.msra.mxu0 %v2422
    %4477 = vmatprep.subr.bf16.mxu0 %v2407
    %4478 = vmatpush2.bf16.msra.mxu0 %v2406
    %4479 = vmatprep.subr.bf16.mxu0 %v2391
    %4480 = vmatpush2.bf16.msra.mxu0 %v2390
    %4481 = vmatprep.subr.bf16.mxu0 %v2375
    %4482 = vmatpush2.bf16.msra.mxu0 %v2374
    %4483 = vmatprep.subr.bf16.mxu0 %v2359
    %4484 = vmatpush2.bf16.msra.mxu0 %v2358
    %4485 = vmatprep.subr.bf16.mxu0 %v2343
    %4486 = vmatpush2.bf16.msra.mxu0 %v2342
    %4487 = vmatprep.mubr.bf16.mxu0 %v4194
    %4488 = vmatmul.mubr.bf16.gmra.mxu0 %v4193
    %v4489 = vpop.f32.mrf.mxu0
    %v4490 = vadd.f32 0.0, %v4489
    %v4491 = vpop.f32.mrf.mxu0
    %v4492 = vadd.f32 0.0, %v4491
    %v4493 = vpop.f32.mrf.mxu0
    %v4494 = vadd.f32 0.0, %v4493
    %v4495 = vpop.f32.mrf.mxu0
    %v4496 = vadd.f32 0.0, %v4495
    %4497 = vdwg.mxu0
    %4498 = vmatprep.subr.bf16.mxu0 %v2583
    %4499 = vmatpush1.bf16.msra.mxu0 %v2582
    %4500 = vmatprep.subr.bf16.mxu0 %v2567
    %4501 = vmatpush1.bf16.msra.mxu0 %v2566
    %4502 = vmatprep.subr.bf16.mxu0 %v2551
    %4503 = vmatpush1.bf16.msra.mxu0 %v2550
    %4504 = vmatprep.subr.bf16.mxu0 %v2535
    %4505 = vmatpush1.bf16.msra.mxu0 %v2534
    %4506 = vmatprep.subr.bf16.mxu0 %v2519
    %4507 = vmatpush1.bf16.msra.mxu0 %v2518
    %4508 = vmatprep.subr.bf16.mxu0 %v2503
    %4509 = vmatpush1.bf16.msra.mxu0 %v2502
    %4510 = vmatprep.subr.bf16.mxu0 %v2487
    %4511 = vmatpush1.bf16.msra.mxu0 %v2486
    %4512 = vmatprep.subr.bf16.mxu0 %v2471
    %4513 = vmatpush1.bf16.msra.mxu0 %v2470
    %4514 = vmatprep.subr.bf16.mxu0 %v2711
    %4515 = vmatpush2.bf16.msra.mxu0 %v2710
    %4516 = vmatprep.subr.bf16.mxu0 %v2695
    %4517 = vmatpush2.bf16.msra.mxu0 %v2694
    %4518 = vmatprep.subr.bf16.mxu0 %v2679
    %4519 = vmatpush2.bf16.msra.mxu0 %v2678
    %4520 = vmatprep.subr.bf16.mxu0 %v2663
    %4521 = vmatpush2.bf16.msra.mxu0 %v2662
    %4522 = vmatprep.subr.bf16.mxu0 %v2647
    %4523 = vmatpush2.bf16.msra.mxu0 %v2646
    %4524 = vmatprep.subr.bf16.mxu0 %v2631
    %4525 = vmatpush2.bf16.msra.mxu0 %v2630
    %4526 = vmatprep.subr.bf16.mxu0 %v2615
    %4527 = vmatpush2.bf16.msra.mxu0 %v2614
    %4528 = vmatprep.subr.bf16.mxu0 %v2599
    %4529 = vmatpush2.bf16.msra.mxu0 %v2598
    %4530 = vmatprep.mubr.bf16.mxu0 %v4196
    %4531 = vmatmul.mubr.bf16.gmra.mxu0 %v4195
    %v4532 = vpop.f32.mrf.mxu0
    %v4533 = vadd.f32 %v4490, %v4532
    %v4534 = vpop.f32.mrf.mxu0
    %v4535 = vadd.f32 %v4492, %v4534
    %v4536 = vpop.f32.mrf.mxu0
    %v4537 = vadd.f32 %v4494, %v4536
    %v4538 = vpop.f32.mrf.mxu0
    %v4539 = vadd.f32 %v4496, %v4538
    %4540 = vdwg.mxu0
    %4541 = vmatprep.subr.bf16.mxu0 %v2329
    %4542 = vmatpush1.bf16.msra.mxu0 %v2328
    %4543 = vmatprep.subr.bf16.mxu0 %v2313
    %4544 = vmatpush1.bf16.msra.mxu0 %v2312
    %4545 = vmatprep.subr.bf16.mxu0 %v2297
    %4546 = vmatpush1.bf16.msra.mxu0 %v2296
    %4547 = vmatprep.subr.bf16.mxu0 %v2281
    %4548 = vmatpush1.bf16.msra.mxu0 %v2280
    %4549 = vmatprep.subr.bf16.mxu0 %v2265
    %4550 = vmatpush1.bf16.msra.mxu0 %v2264
    %4551 = vmatprep.subr.bf16.mxu0 %v2249
    %4552 = vmatpush1.bf16.msra.mxu0 %v2248
    %4553 = vmatprep.subr.bf16.mxu0 %v2233
    %4554 = vmatpush1.bf16.msra.mxu0 %v2232
    %4555 = vmatprep.subr.bf16.mxu0 %v2217
    %4556 = vmatpush1.bf16.msra.mxu0 %v2216
    %4557 = vmatprep.subr.bf16.mxu0 %v2457
    %4558 = vmatpush2.bf16.msra.mxu0 %v2456
    %4559 = vmatprep.subr.bf16.mxu0 %v2441
    %4560 = vmatpush2.bf16.msra.mxu0 %v2440
    %4561 = vmatprep.subr.bf16.mxu0 %v2425
    %4562 = vmatpush2.bf16.msra.mxu0 %v2424
    %4563 = vmatprep.subr.bf16.mxu0 %v2409
    %4564 = vmatpush2.bf16.msra.mxu0 %v2408
    %4565 = vmatprep.subr.bf16.mxu0 %v2393
    %4566 = vmatpush2.bf16.msra.mxu0 %v2392
    %4567 = vmatprep.subr.bf16.mxu0 %v2377
    %4568 = vmatpush2.bf16.msra.mxu0 %v2376
    %4569 = vmatprep.subr.bf16.mxu0 %v2361
    %4570 = vmatpush2.bf16.msra.mxu0 %v2360
    %4571 = vmatprep.subr.bf16.mxu0 %v2345
    %4572 = vmatpush2.bf16.msra.mxu0 %v2344
    %4573 = vmatprep.mubr.bf16.mxu0 %v4194
    %4574 = vmatmul.mubr.bf16.gmra.mxu0 %v4193
    %v4575 = vpop.f32.mrf.mxu0
    %v4576 = vadd.f32 0.0, %v4575
    %v4577 = vpop.f32.mrf.mxu0
    %v4578 = vadd.f32 0.0, %v4577
    %v4579 = vpop.f32.mrf.mxu0
    %v4580 = vadd.f32 0.0, %v4579
    %v4581 = vpop.f32.mrf.mxu0
    %v4582 = vadd.f32 0.0, %v4581
    %4583 = vdwg.mxu0
    %4584 = vmatprep.subr.bf16.mxu0 %v2585
    %4585 = vmatpush1.bf16.msra.mxu0 %v2584
    %4586 = vmatprep.subr.bf16.mxu0 %v2569
    %4587 = vmatpush1.bf16.msra.mxu0 %v2568
    %4588 = vmatprep.subr.bf16.mxu0 %v2553
    %4589 = vmatpush1.bf16.msra.mxu0 %v2552
    %4590 = vmatprep.subr.bf16.mxu0 %v2537
    %4591 = vmatpush1.bf16.msra.mxu0 %v2536
    %4592 = vmatprep.subr.bf16.mxu0 %v2521
    %4593 = vmatpush1.bf16.msra.mxu0 %v2520
    %4594 = vmatprep.subr.bf16.mxu0 %v2505
    %4595 = vmatpush1.bf16.msra.mxu0 %v2504
    %4596 = vmatprep.subr.bf16.mxu0 %v2489
    %4597 = vmatpush1.bf16.msra.mxu0 %v2488
    %4598 = vmatprep.subr.bf16.mxu0 %v2473
    %4599 = vmatpush1.bf16.msra.mxu0 %v2472
    %4600 = vmatprep.subr.bf16.mxu0 %v2713
    %4601 = vmatpush2.bf16.msra.mxu0 %v2712
    %4602 = vmatprep.subr.bf16.mxu0 %v2697
    %4603 = vmatpush2.bf16.msra.mxu0 %v2696
    %4604 = vmatprep.subr.bf16.mxu0 %v2681
    %4605 = vmatpush2.bf16.msra.mxu0 %v2680
    %4606 = vmatprep.subr.bf16.mxu0 %v2665
    %4607 = vmatpush2.bf16.msra.mxu0 %v2664
    %4608 = vmatprep.subr.bf16.mxu0 %v2649
    %4609 = vmatpush2.bf16.msra.mxu0 %v2648
    %4610 = vmatprep.subr.bf16.mxu0 %v2633
    %4611 = vmatpush2.bf16.msra.mxu0 %v2632
    %4612 = vmatprep.subr.bf16.mxu0 %v2617
    %4613 = vmatpush2.bf16.msra.mxu0 %v2616
    %4614 = vmatprep.subr.bf16.mxu0 %v2601
    %4615 = vmatpush2.bf16.msra.mxu0 %v2600
    %4616 = vmatprep.mubr.bf16.mxu0 %v4196
    %4617 = vmatmul.mubr.bf16.gmra.mxu0 %v4195
    %v4618 = vpop.f32.mrf.mxu0
    %v4619 = vadd.f32 %v4576, %v4618
    %v4620 = vpop.f32.mrf.mxu0
    %v4621 = vadd.f32 %v4578, %v4620
    %v4622 = vpop.f32.mrf.mxu0
    %v4623 = vadd.f32 %v4580, %v4622
    %v4624 = vpop.f32.mrf.mxu0
    %v4625 = vadd.f32 %v4582, %v4624
    %4626 = vdwg.mxu0
    %4627 = vmatprep.subr.bf16.mxu0 %v2331
    %4628 = vmatpush1.bf16.msra.mxu0 %v2330
    %4629 = vmatprep.subr.bf16.mxu0 %v2315
    %4630 = vmatpush1.bf16.msra.mxu0 %v2314
    %4631 = vmatprep.subr.bf16.mxu0 %v2299
    %4632 = vmatpush1.bf16.msra.mxu0 %v2298
    %4633 = vmatprep.subr.bf16.mxu0 %v2283
    %4634 = vmatpush1.bf16.msra.mxu0 %v2282
    %4635 = vmatprep.subr.bf16.mxu0 %v2267
    %4636 = vmatpush1.bf16.msra.mxu0 %v2266
    %4637 = vmatprep.subr.bf16.mxu0 %v2251
    %4638 = vmatpush1.bf16.msra.mxu0 %v2250
    %4639 = vmatprep.subr.bf16.mxu0 %v2235
    %4640 = vmatpush1.bf16.msra.mxu0 %v2234
    %4641 = vmatprep.subr.bf16.mxu0 %v2219
    %4642 = vmatpush1.bf16.msra.mxu0 %v2218
    %4643 = vmatprep.subr.bf16.mxu0 %v2459
    %4644 = vmatpush2.bf16.msra.mxu0 %v2458
    %4645 = vmatprep.subr.bf16.mxu0 %v2443
    %4646 = vmatpush2.bf16.msra.mxu0 %v2442
    %4647 = vmatprep.subr.bf16.mxu0 %v2427
    %4648 = vmatpush2.bf16.msra.mxu0 %v2426
    %4649 = vmatprep.subr.bf16.mxu0 %v2411
    %4650 = vmatpush2.bf16.msra.mxu0 %v2410
    %4651 = vmatprep.subr.bf16.mxu0 %v2395
    %4652 = vmatpush2.bf16.msra.mxu0 %v2394
    %4653 = vmatprep.subr.bf16.mxu0 %v2379
    %4654 = vmatpush2.bf16.msra.mxu0 %v2378
    %4655 = vmatprep.subr.bf16.mxu0 %v2363
    %4656 = vmatpush2.bf16.msra.mxu0 %v2362
    %4657 = vmatprep.subr.bf16.mxu0 %v2347
    %4658 = vmatpush2.bf16.msra.mxu0 %v2346
    %4659 = vmatprep.mubr.bf16.mxu0 %v4194
    %4660 = vmatmul.mubr.bf16.gmra.mxu0 %v4193
    %v4661 = vpop.f32.mrf.mxu0
    %v4662 = vadd.f32 0.0, %v4661
    %v4663 = vpop.f32.mrf.mxu0
    %v4664 = vadd.f32 0.0, %v4663
    %v4665 = vpop.f32.mrf.mxu0
    %v4666 = vadd.f32 0.0, %v4665
    %v4667 = vpop.f32.mrf.mxu0
    %v4668 = vadd.f32 0.0, %v4667
    %4669 = vdwg.mxu0
    %4670 = vmatprep.subr.bf16.mxu0 %v2587
    %4671 = vmatpush1.bf16.msra.mxu0 %v2586
    %4672 = vmatprep.subr.bf16.mxu0 %v2571
    %4673 = vmatpush1.bf16.msra.mxu0 %v2570
    %4674 = vmatprep.subr.bf16.mxu0 %v2555
    %4675 = vmatpush1.bf16.msra.mxu0 %v2554
    %4676 = vmatprep.subr.bf16.mxu0 %v2539
    %4677 = vmatpush1.bf16.msra.mxu0 %v2538
    %4678 = vmatprep.subr.bf16.mxu0 %v2523
    %4679 = vmatpush1.bf16.msra.mxu0 %v2522
    %4680 = vmatprep.subr.bf16.mxu0 %v2507
    %4681 = vmatpush1.bf16.msra.mxu0 %v2506
    %4682 = vmatprep.subr.bf16.mxu0 %v2491
    %4683 = vmatpush1.bf16.msra.mxu0 %v2490
    %4684 = vmatprep.subr.bf16.mxu0 %v2475
    %4685 = vmatpush1.bf16.msra.mxu0 %v2474
    %4686 = vmatprep.subr.bf16.mxu0 %v2715
    %4687 = vmatpush2.bf16.msra.mxu0 %v2714
    %4688 = vmatprep.subr.bf16.mxu0 %v2699
    %4689 = vmatpush2.bf16.msra.mxu0 %v2698
    %4690 = vmatprep.subr.bf16.mxu0 %v2683
    %4691 = vmatpush2.bf16.msra.mxu0 %v2682
    %4692 = vmatprep.subr.bf16.mxu0 %v2667
    %4693 = vmatpush2.bf16.msra.mxu0 %v2666
    %4694 = vmatprep.subr.bf16.mxu0 %v2651
    %4695 = vmatpush2.bf16.msra.mxu0 %v2650
    %4696 = vmatprep.subr.bf16.mxu0 %v2635
    %4697 = vmatpush2.bf16.msra.mxu0 %v2634
    %4698 = vmatprep.subr.bf16.mxu0 %v2619
    %4699 = vmatpush2.bf16.msra.mxu0 %v2618
    %4700 = vmatprep.subr.bf16.mxu0 %v2603
    %4701 = vmatpush2.bf16.msra.mxu0 %v2602
    %4702 = vmatprep.mubr.bf16.mxu0 %v4196
    %4703 = vmatmul.mubr.bf16.gmra.mxu0 %v4195
    %v4704 = vpop.f32.mrf.mxu0
    %v4705 = vadd.f32 %v4662, %v4704
    %v4706 = vpop.f32.mrf.mxu0
    %v4707 = vadd.f32 %v4664, %v4706
    %v4708 = vpop.f32.mrf.mxu0
    %v4709 = vadd.f32 %v4666, %v4708
    %v4710 = vpop.f32.mrf.mxu0
    %v4711 = vadd.f32 %v4668, %v4710
    %4712 = vdwg.mxu0
    %4713 = vmatprep.subr.bf16.mxu0 %v2333
    %4714 = vmatpush1.bf16.msra.mxu0 %v2332
    %4715 = vmatprep.subr.bf16.mxu0 %v2317
    %4716 = vmatpush1.bf16.msra.mxu0 %v2316
    %4717 = vmatprep.subr.bf16.mxu0 %v2301
    %4718 = vmatpush1.bf16.msra.mxu0 %v2300
    %4719 = vmatprep.subr.bf16.mxu0 %v2285
    %4720 = vmatpush1.bf16.msra.mxu0 %v2284
    %4721 = vmatprep.subr.bf16.mxu0 %v2269
    %4722 = vmatpush1.bf16.msra.mxu0 %v2268
    %4723 = vmatprep.subr.bf16.mxu0 %v2253
    %4724 = vmatpush1.bf16.msra.mxu0 %v2252
    %4725 = vmatprep.subr.bf16.mxu0 %v2237
    %4726 = vmatpush1.bf16.msra.mxu0 %v2236
    %4727 = vmatprep.subr.bf16.mxu0 %v2221
    %4728 = vmatpush1.bf16.msra.mxu0 %v2220
    %4729 = vmatprep.subr.bf16.mxu0 %v2461
    %4730 = vmatpush2.bf16.msra.mxu0 %v2460
    %4731 = vmatprep.subr.bf16.mxu0 %v2445
    %4732 = vmatpush2.bf16.msra.mxu0 %v2444
    %4733 = vmatprep.subr.bf16.mxu0 %v2429
    %4734 = vmatpush2.bf16.msra.mxu0 %v2428
    %4735 = vmatprep.subr.bf16.mxu0 %v2413
    %4736 = vmatpush2.bf16.msra.mxu0 %v2412
    %4737 = vmatprep.subr.bf16.mxu0 %v2397
    %4738 = vmatpush2.bf16.msra.mxu0 %v2396
    %4739 = vmatprep.subr.bf16.mxu0 %v2381
    %4740 = vmatpush2.bf16.msra.mxu0 %v2380
    %4741 = vmatprep.subr.bf16.mxu0 %v2365
    %4742 = vmatpush2.bf16.msra.mxu0 %v2364
    %4743 = vmatprep.subr.bf16.mxu0 %v2349
    %4744 = vmatpush2.bf16.msra.mxu0 %v2348
    %4745 = vmatprep.mubr.bf16.mxu0 %v4194
    %4746 = vmatmul.mubr.bf16.gmra.mxu0 %v4193
    %v4747 = vpop.f32.mrf.mxu0
    %v4748 = vadd.f32 0.0, %v4747
    %v4749 = vpop.f32.mrf.mxu0
    %v4750 = vadd.f32 0.0, %v4749
    %v4751 = vpop.f32.mrf.mxu0
    %v4752 = vadd.f32 0.0, %v4751
    %v4753 = vpop.f32.mrf.mxu0
    %v4754 = vadd.f32 0.0, %v4753
    %4755 = vdwg.mxu0
    %4756 = vmatprep.subr.bf16.mxu0 %v2589
    %4757 = vmatpush1.bf16.msra.mxu0 %v2588
    %4758 = vmatprep.subr.bf16.mxu0 %v2573
    %4759 = vmatpush1.bf16.msra.mxu0 %v2572
    %4760 = vmatprep.subr.bf16.mxu0 %v2557
    %4761 = vmatpush1.bf16.msra.mxu0 %v2556
    %4762 = vmatprep.subr.bf16.mxu0 %v2541
    %4763 = vmatpush1.bf16.msra.mxu0 %v2540
    %4764 = vmatprep.subr.bf16.mxu0 %v2525
    %4765 = vmatpush1.bf16.msra.mxu0 %v2524
    %4766 = vmatprep.subr.bf16.mxu0 %v2509
    %4767 = vmatpush1.bf16.msra.mxu0 %v2508
    %4768 = vmatprep.subr.bf16.mxu0 %v2493
    %4769 = vmatpush1.bf16.msra.mxu0 %v2492
    %4770 = vmatprep.subr.bf16.mxu0 %v2477
    %4771 = vmatpush1.bf16.msra.mxu0 %v2476
    %4772 = vmatprep.subr.bf16.mxu0 %v2717
    %4773 = vmatpush2.bf16.msra.mxu0 %v2716
    %4774 = vmatprep.subr.bf16.mxu0 %v2701
    %4775 = vmatpush2.bf16.msra.mxu0 %v2700
    %4776 = vmatprep.subr.bf16.mxu0 %v2685
    %4777 = vmatpush2.bf16.msra.mxu0 %v2684
    %4778 = vmatprep.subr.bf16.mxu0 %v2669
    %4779 = vmatpush2.bf16.msra.mxu0 %v2668
    %4780 = vmatprep.subr.bf16.mxu0 %v2653
    %4781 = vmatpush2.bf16.msra.mxu0 %v2652
    %4782 = vmatprep.subr.bf16.mxu0 %v2637
    %4783 = vmatpush2.bf16.msra.mxu0 %v2636
    %4784 = vmatprep.subr.bf16.mxu0 %v2621
    %4785 = vmatpush2.bf16.msra.mxu0 %v2620
    %4786 = vmatprep.subr.bf16.mxu0 %v2605
    %4787 = vmatpush2.bf16.msra.mxu0 %v2604
    %4788 = vmatprep.mubr.bf16.mxu0 %v4196
    %4789 = vmatmul.mubr.bf16.gmra.mxu0 %v4195
    %v4790 = vpop.f32.mrf.mxu0
    %v4791 = vadd.f32 %v4748, %v4790
    %v4792 = vpop.f32.mrf.mxu0
    %v4793 = vadd.f32 %v4750, %v4792
    %v4794 = vpop.f32.mrf.mxu0
    %v4795 = vadd.f32 %v4752, %v4794
    %v4796 = vpop.f32.mrf.mxu0
    %v4797 = vadd.f32 %v4754, %v4796
    %4798 = vdwg.mxu0
    %4799 = vmatprep.subr.bf16.mxu0 %v2335
    %4800 = vmatpush1.bf16.msra.mxu0 %v2334
    %4801 = vmatprep.subr.bf16.mxu0 %v2319
    %4802 = vmatpush1.bf16.msra.mxu0 %v2318
    %4803 = vmatprep.subr.bf16.mxu0 %v2303
    %4804 = vmatpush1.bf16.msra.mxu0 %v2302
    %4805 = vmatprep.subr.bf16.mxu0 %v2287
    %4806 = vmatpush1.bf16.msra.mxu0 %v2286
    %4807 = vmatprep.subr.bf16.mxu0 %v2271
    %4808 = vmatpush1.bf16.msra.mxu0 %v2270
    %4809 = vmatprep.subr.bf16.mxu0 %v2255
    %4810 = vmatpush1.bf16.msra.mxu0 %v2254
    %4811 = vmatprep.subr.bf16.mxu0 %v2239
    %4812 = vmatpush1.bf16.msra.mxu0 %v2238
    %4813 = vmatprep.subr.bf16.mxu0 %v2223
    %4814 = vmatpush1.bf16.msra.mxu0 %v2222
    %4815 = vmatprep.subr.bf16.mxu0 %v2463
    %4816 = vmatpush2.bf16.msra.mxu0 %v2462
    %4817 = vmatprep.subr.bf16.mxu0 %v2447
    %4818 = vmatpush2.bf16.msra.mxu0 %v2446
    %4819 = vmatprep.subr.bf16.mxu0 %v2431
    %4820 = vmatpush2.bf16.msra.mxu0 %v2430
    %4821 = vmatprep.subr.bf16.mxu0 %v2415
    %4822 = vmatpush2.bf16.msra.mxu0 %v2414
    %4823 = vmatprep.subr.bf16.mxu0 %v2399
    %4824 = vmatpush2.bf16.msra.mxu0 %v2398
    %4825 = vmatprep.subr.bf16.mxu0 %v2383
    %4826 = vmatpush2.bf16.msra.mxu0 %v2382
    %4827 = vmatprep.subr.bf16.mxu0 %v2367
    %4828 = vmatpush2.bf16.msra.mxu0 %v2366
    %4829 = vmatprep.subr.bf16.mxu0 %v2351
    %4830 = vmatpush2.bf16.msra.mxu0 %v2350
    %4831 = vmatprep.mubr.bf16.mxu0 %v4194
    %4832 = vmatmul.mubr.bf16.gmra.mxu0 %v4193
    %v4833 = vpop.f32.mrf.mxu0
    %v4834 = vadd.f32 0.0, %v4833
    %v4835 = vpop.f32.mrf.mxu0
    %v4836 = vadd.f32 0.0, %v4835
    %v4837 = vpop.f32.mrf.mxu0
    %v4838 = vadd.f32 0.0, %v4837
    %v4839 = vpop.f32.mrf.mxu0
    %v4840 = vadd.f32 0.0, %v4839
    %4841 = vdwg.mxu0
    %4842 = vmatprep.subr.bf16.mxu0 %v2591
    %4843 = vmatpush1.bf16.msra.mxu0 %v2590
    %4844 = vmatprep.subr.bf16.mxu0 %v2575
    %4845 = vmatpush1.bf16.msra.mxu0 %v2574
    %4846 = vmatprep.subr.bf16.mxu0 %v2559
    %4847 = vmatpush1.bf16.msra.mxu0 %v2558
    %4848 = vmatprep.subr.bf16.mxu0 %v2543
    %4849 = vmatpush1.bf16.msra.mxu0 %v2542
    %4850 = vmatprep.subr.bf16.mxu0 %v2527
    %4851 = vmatpush1.bf16.msra.mxu0 %v2526
    %4852 = vmatprep.subr.bf16.mxu0 %v2511
    %4853 = vmatpush1.bf16.msra.mxu0 %v2510
    %4854 = vmatprep.subr.bf16.mxu0 %v2495
    %4855 = vmatpush1.bf16.msra.mxu0 %v2494
    %4856 = vmatprep.subr.bf16.mxu0 %v2479
    %4857 = vmatpush1.bf16.msra.mxu0 %v2478
    %4858 = vmatprep.subr.bf16.mxu0 %v2719
    %4859 = vmatpush2.bf16.msra.mxu0 %v2718
    %4860 = vmatprep.subr.bf16.mxu0 %v2703
    %4861 = vmatpush2.bf16.msra.mxu0 %v2702
    %4862 = vmatprep.subr.bf16.mxu0 %v2687
    %4863 = vmatpush2.bf16.msra.mxu0 %v2686
    %4864 = vmatprep.subr.bf16.mxu0 %v2671
    %4865 = vmatpush2.bf16.msra.mxu0 %v2670
    %4866 = vmatprep.subr.bf16.mxu0 %v2655
    %4867 = vmatpush2.bf16.msra.mxu0 %v2654
    %4868 = vmatprep.subr.bf16.mxu0 %v2639
    %4869 = vmatpush2.bf16.msra.mxu0 %v2638
    %4870 = vmatprep.subr.bf16.mxu0 %v2623
    %4871 = vmatpush2.bf16.msra.mxu0 %v2622
    %4872 = vmatprep.subr.bf16.mxu0 %v2607
    %4873 = vmatpush2.bf16.msra.mxu0 %v2606
    %4874 = vmatprep.mubr.bf16.mxu0 %v4196
    %4875 = vmatmul.mubr.bf16.gmra.mxu0 %v4195
    %v4876 = vpop.f32.mrf.mxu0
    %v4877 = vadd.f32 %v4834, %v4876
    %v4878 = vpop.f32.mrf.mxu0
    %v4879 = vadd.f32 %v4836, %v4878
    %v4880 = vpop.f32.mrf.mxu0
    %v4881 = vadd.f32 %v4838, %v4880
    %v4882 = vpop.f32.mrf.mxu0
    %v4883 = vadd.f32 %v4840, %v4882
    %4884 = vdwg.mxu0
    %v4885 = vadd.f32 %v4161, %v4275
    %v4886 = vadd.f32 %v4162, %v4277
    %v4887 = vadd.f32 %v4163, %v4361
    %v4888 = vadd.f32 %v4164, %v4363
    %v4889 = vadd.f32 %v4165, %v4447
    %v4890 = vadd.f32 %v4166, %v4449
    %v4891 = vadd.f32 %v4167, %v4533
    %v4892 = vadd.f32 %v4168, %v4535
    %v4893 = vadd.f32 %v4169, %v4619
    %v4894 = vadd.f32 %v4170, %v4621
    %v4895 = vadd.f32 %v4171, %v4705
    %v4896 = vadd.f32 %v4172, %v4707
    %v4897 = vadd.f32 %v4173, %v4791
    %v4898 = vadd.f32 %v4174, %v4793
    %v4899 = vadd.f32 %v4175, %v4877
    %v4900 = vadd.f32 %v4176, %v4879
    %v4901 = vadd.f32 %v4177, %v4279
    %v4902 = vadd.f32 %v4178, %v4281
    %v4903 = vadd.f32 %v4179, %v4365
    %v4904 = vadd.f32 %v4180, %v4367
    %v4905 = vadd.f32 %v4181, %v4451
    %v4906 = vadd.f32 %v4182, %v4453
    %v4907 = vadd.f32 %v4183, %v4537
    %v4908 = vadd.f32 %v4184, %v4539
    %v4909 = vadd.f32 %v4185, %v4623
    %v4910 = vadd.f32 %v4186, %v4625
    %v4911 = vadd.f32 %v4187, %v4709
    %v4912 = vadd.f32 %v4188, %v4711
    %v4913 = vadd.f32 %v4189, %v4795
    %v4914 = vadd.f32 %v4190, %v4797
    %v4915 = vadd.f32 %v4191, %v4881
    %v4916 = vadd.f32 %v4192, %v4883
    %v4917 = vxor.u32 %v4885, 2147483648
    %v4918 = vxor.u32 %v4886, 2147483648
    %v4919 = vxor.u32 %v4887, 2147483648
    %v4920 = vxor.u32 %v4888, 2147483648
    %v4921 = vxor.u32 %v4901, 2147483648
    %v4922 = vxor.u32 %v4902, 2147483648
    %v4923 = vxor.u32 %v4903, 2147483648
    %v4924 = vxor.u32 %v4904, 2147483648
    %v4925 = vmul.f32 %v4917, 1.442695
    %v4926 = vpow.pop %v4925
    %v4927 = vmul.f32 %v4918, 1.442695
    %v4928 = vpow.pop %v4927
    %v4929 = vmul.f32 %v4919, 1.442695
    %v4930 = vpow.pop %v4929
    %v4931 = vmul.f32 %v4920, 1.442695
    %v4932 = vpow.pop %v4931
    %v4933 = vmul.f32 %v4921, 1.442695
    %v4934 = vpow.pop %v4933
    %v4935 = vmul.f32 %v4922, 1.442695
    %v4936 = vpow.pop %v4935
    %v4937 = vmul.f32 %v4923, 1.442695
    %v4938 = vpow.pop %v4937
    %v4939 = vmul.f32 %v4924, 1.442695
    %v4940 = vpow.pop %v4939
    %v4941 = vadd.f32 %v4926, 1.0
    %v4942 = vadd.f32 %v4928, 1.0
    %v4943 = vadd.f32 %v4930, 1.0
    %v4944 = vadd.f32 %v4932, 1.0
    %v4945 = vadd.f32 %v4934, 1.0
    %v4946 = vadd.f32 %v4936, 1.0
    %v4947 = vadd.f32 %v4938, 1.0
    %v4948 = vadd.f32 %v4940, 1.0
    %v4949 = vrcp.pop %v4941
    %v4950 = vmul.f32 1.0, %v4949
    %v4951 = vrcp.pop %v4942
    %v4952 = vmul.f32 1.0, %v4951
    %v4953 = vrcp.pop %v4943
    %v4954 = vmul.f32 1.0, %v4953
    %v4955 = vrcp.pop %v4944
    %v4956 = vmul.f32 1.0, %v4955
    %v4957 = vrcp.pop %v4945
    %v4958 = vmul.f32 1.0, %v4957
    %v4959 = vrcp.pop %v4946
    %v4960 = vmul.f32 1.0, %v4959
    %v4961 = vrcp.pop %v4947
    %v4962 = vmul.f32 1.0, %v4961
    %v4963 = vrcp.pop %v4948
    %v4964 = vmul.f32 1.0, %v4963
    %v4965 = vxor.u32 %v4889, 2147483648
    %v4966 = vxor.u32 %v4890, 2147483648
    %v4967 = vxor.u32 %v4891, 2147483648
    %v4968 = vxor.u32 %v4892, 2147483648
    %v4969 = vxor.u32 %v4905, 2147483648
    %v4970 = vxor.u32 %v4906, 2147483648
    %v4971 = vxor.u32 %v4907, 2147483648
    %v4972 = vxor.u32 %v4908, 2147483648
    %v4973 = vmul.f32 %v4965, 1.442695
    %v4974 = vpow.pop %v4973
    %v4975 = vmul.f32 %v4966, 1.442695
    %v4976 = vpow.pop %v4975
    %v4977 = vmul.f32 %v4967, 1.442695
    %v4978 = vpow.pop %v4977
    %v4979 = vmul.f32 %v4968, 1.442695
    %v4980 = vpow.pop %v4979
    %v4981 = vmul.f32 %v4969, 1.442695
    %v4982 = vpow.pop %v4981
    %v4983 = vmul.f32 %v4970, 1.442695
    %v4984 = vpow.pop %v4983
    %v4985 = vmul.f32 %v4971, 1.442695
    %v4986 = vpow.pop %v4985
    %v4987 = vmul.f32 %v4972, 1.442695
    %v4988 = vpow.pop %v4987
    %v4989 = vadd.f32 %v4974, 1.0
    %v4990 = vadd.f32 %v4976, 1.0
    %v4991 = vadd.f32 %v4978, 1.0
    %v4992 = vadd.f32 %v4980, 1.0
    %v4993 = vadd.f32 %v4982, 1.0
    %v4994 = vadd.f32 %v4984, 1.0
    %v4995 = vadd.f32 %v4986, 1.0
    %v4996 = vadd.f32 %v4988, 1.0
    %v4997 = vrcp.pop %v4989
    %v4998 = vmul.f32 1.0, %v4997
    %v4999 = vrcp.pop %v4990
    %v5000 = vmul.f32 1.0, %v4999
    %v5001 = vrcp.pop %v4991
    %v5002 = vmul.f32 1.0, %v5001
    %v5003 = vrcp.pop %v4992
    %v5004 = vmul.f32 1.0, %v5003
    %v5005 = vrcp.pop %v4993
    %v5006 = vmul.f32 1.0, %v5005
    %v5007 = vrcp.pop %v4994
    %v5008 = vmul.f32 1.0, %v5007
    %v5009 = vrcp.pop %v4995
    %v5010 = vmul.f32 1.0, %v5009
    %v5011 = vrcp.pop %v4996
    %v5012 = vmul.f32 1.0, %v5011
    %v5013 = vtanh.pop %v4893
    %v5014 = vtanh.pop %v4894
    %v5015 = vtanh.pop %v4895
    %v5016 = vtanh.pop %v4896
    %v5017 = vtanh.pop %v4909
    %v5018 = vtanh.pop %v4910
    %v5019 = vtanh.pop %v4911
    %v5020 = vtanh.pop %v4912
    %v5021 = vxor.u32 %v4897, 2147483648
    %v5022 = vxor.u32 %v4898, 2147483648
    %v5023 = vxor.u32 %v4899, 2147483648
    %v5024 = vxor.u32 %v4900, 2147483648
    %v5025 = vxor.u32 %v4913, 2147483648
    %v5026 = vxor.u32 %v4914, 2147483648
    %v5027 = vxor.u32 %v4915, 2147483648
    %v5028 = vxor.u32 %v4916, 2147483648
    %v5029 = vmul.f32 %v5021, 1.442695
    %v5030 = vpow.pop %v5029
    %v5031 = vmul.f32 %v5022, 1.442695
    %v5032 = vpow.pop %v5031
    %v5033 = vmul.f32 %v5023, 1.442695
    %v5034 = vpow.pop %v5033
    %v5035 = vmul.f32 %v5024, 1.442695
    %v5036 = vpow.pop %v5035
    %v5037 = vmul.f32 %v5025, 1.442695
    %v5038 = vpow.pop %v5037
    %v5039 = vmul.f32 %v5026, 1.442695
    %v5040 = vpow.pop %v5039
    %v5041 = vmul.f32 %v5027, 1.442695
    %v5042 = vpow.pop %v5041
    %v5043 = vmul.f32 %v5028, 1.442695
    %v5044 = vpow.pop %v5043
    %v5045 = vadd.f32 %v5030, 1.0
    %v5046 = vadd.f32 %v5032, 1.0
    %v5047 = vadd.f32 %v5034, 1.0
    %v5048 = vadd.f32 %v5036, 1.0
    %v5049 = vadd.f32 %v5038, 1.0
    %v5050 = vadd.f32 %v5040, 1.0
    %v5051 = vadd.f32 %v5042, 1.0
    %v5052 = vadd.f32 %v5044, 1.0
    %v5053 = vrcp.pop %v5045
    %v5054 = vmul.f32 1.0, %v5053
    %v5055 = vrcp.pop %v5046
    %v5056 = vmul.f32 1.0, %v5055
    %v5057 = vrcp.pop %v5047
    %v5058 = vmul.f32 1.0, %v5057
    %v5059 = vrcp.pop %v5048
    %v5060 = vmul.f32 1.0, %v5059
    %v5061 = vrcp.pop %v5049
    %v5062 = vmul.f32 1.0, %v5061
    %v5063 = vrcp.pop %v5050
    %v5064 = vmul.f32 1.0, %v5063
    %v5065 = vrcp.pop %v5051
    %v5066 = vmul.f32 1.0, %v5065
    %v5067 = vrcp.pop %v5052
    %v5068 = vmul.f32 1.0, %v5067
    %v5069 = vmul.f32 %v4998, %v4120
    %v5070 = vmul.f32 %v5000, %v4121
    %v5071 = vmul.f32 %v5002, %v4122
    %v5072 = vmul.f32 %v5004, %v4123
    %v5073 = vmul.f32 %v5006, %v4124
    %v5074 = vmul.f32 %v5008, %v4125
    %v5075 = vmul.f32 %v5010, %v4126
    %v5076 = vmul.f32 %v5012, %v4127
    %v5077 = vmul.f32 %v4950, %v5013
    %v5078 = vmul.f32 %v4952, %v5014
    %v5079 = vmul.f32 %v4954, %v5015
    %v5080 = vmul.f32 %v4956, %v5016
    %v5081 = vmul.f32 %v4958, %v5017
    %v5082 = vmul.f32 %v4960, %v5018
    %v5083 = vmul.f32 %v4962, %v5019
    %v5084 = vmul.f32 %v4964, %v5020
    %v5085 = vadd.f32 %v5069, %v5077
    %v5086 = vadd.f32 %v5070, %v5078
    %v5087 = vadd.f32 %v5071, %v5079
    %v5088 = vadd.f32 %v5072, %v5080
    %v5089 = vadd.f32 %v5073, %v5081
    %v5090 = vadd.f32 %v5074, %v5082
    %v5091 = vadd.f32 %v5075, %v5083
    %v5092 = vadd.f32 %v5076, %v5084
    %v5093 = vtanh.pop %v5085
    %v5094 = vtanh.pop %v5086
    %v5095 = vtanh.pop %v5087
    %v5096 = vtanh.pop %v5088
    %v5097 = vtanh.pop %v5089
    %v5098 = vtanh.pop %v5090
    %v5099 = vtanh.pop %v5091
    %v5100 = vtanh.pop %v5092
    %v5101 = vmul.f32 %v5054, %v5093
    %v5102 = vmul.f32 %v5056, %v5094
    %v5103 = vmul.f32 %v5058, %v5095
    %v5104 = vmul.f32 %v5060, %v5096
    %v5105 = vmul.f32 %v5062, %v5097
    %v5106 = vmul.f32 %v5064, %v5098
    %v5107 = vmul.f32 %v5066, %v5099
    %v5108 = vmul.f32 %v5068, %v5100
    %s5109 = scalar_lea.vmem [#allocation4], 256
    %v5110 = vld [vmem:[%s5109] sm:$0xff]
    %v5111 = vld [vmem:[%s5109 + $0x8] sm:$0xff]
    %v5112 = vld [vmem:[%s5109 + $0x10] sm:$0xff]
    %v5113 = vld [vmem:[%s5109 + $0x18] sm:$0xff]
    %v5114 = vld [vmem:[%s5109 + $0x20] sm:$0xff]
    %v5115 = vld [vmem:[%s5109 + $0x28] sm:$0xff]
    %v5116 = vld [vmem:[%s5109 + $0x30] sm:$0xff]
    %v5117 = vld [vmem:[%s5109 + $0x38] sm:$0xff]
    %v5118 = vld [vmem:[%s5109 + $0x40] sm:$0xff]
    %v5119 = vld [vmem:[%s5109 + $0x48] sm:$0xff]
    %v5120 = vld [vmem:[%s5109 + $0x50] sm:$0xff]
    %v5121 = vld [vmem:[%s5109 + $0x58] sm:$0xff]
    %v5122 = vld [vmem:[%s5109 + $0x60] sm:$0xff]
    %v5123 = vld [vmem:[%s5109 + $0x68] sm:$0xff]
    %v5124 = vld [vmem:[%s5109 + $0x70] sm:$0xff]
    %v5125 = vld [vmem:[%s5109 + $0x78] sm:$0xff]
    %v5126 = vunpack.c.l.bf16 %v5110
    %v5127 = vunpack.c.h.bf16 %v5110
    %v5128 = vunpack.c.l.bf16 %v5111
    %v5129 = vunpack.c.h.bf16 %v5111
    %v5130 = vunpack.c.l.bf16 %v5112
    %v5131 = vunpack.c.h.bf16 %v5112
    %v5132 = vunpack.c.l.bf16 %v5113
    %v5133 = vunpack.c.h.bf16 %v5113
    %v5134 = vunpack.c.l.bf16 %v5114
    %v5135 = vunpack.c.h.bf16 %v5114
    %v5136 = vunpack.c.l.bf16 %v5115
    %v5137 = vunpack.c.h.bf16 %v5115
    %v5138 = vunpack.c.l.bf16 %v5116
    %v5139 = vunpack.c.h.bf16 %v5116
    %v5140 = vunpack.c.l.bf16 %v5117
    %v5141 = vunpack.c.h.bf16 %v5117
    %v5142 = vunpack.c.l.bf16 %v5118
    %v5143 = vunpack.c.h.bf16 %v5118
    %v5144 = vunpack.c.l.bf16 %v5119
    %v5145 = vunpack.c.h.bf16 %v5119
    %v5146 = vunpack.c.l.bf16 %v5120
    %v5147 = vunpack.c.h.bf16 %v5120
    %v5148 = vunpack.c.l.bf16 %v5121
    %v5149 = vunpack.c.h.bf16 %v5121
    %v5150 = vunpack.c.l.bf16 %v5122
    %v5151 = vunpack.c.h.bf16 %v5122
    %v5152 = vunpack.c.l.bf16 %v5123
    %v5153 = vunpack.c.h.bf16 %v5123
    %v5154 = vunpack.c.l.bf16 %v5124
    %v5155 = vunpack.c.h.bf16 %v5124
    %v5156 = vunpack.c.l.bf16 %v5125
    %v5157 = vunpack.c.h.bf16 %v5125
    %v5158 = vpack.c.bf16 %v5105, %v5101
    %v5159 = vpack.c.bf16 %v5106, %v5102
    %v5160 = vpack.c.bf16 %v5107, %v5103
    %v5161 = vpack.c.bf16 %v5108, %v5104
    %5162 = vmatprep.subr.bf16.mxu0 %v2321
    %5163 = vmatpush1.bf16.msra.mxu0 %v2320
    %5164 = vmatprep.subr.bf16.mxu0 %v2305
    %5165 = vmatpush1.bf16.msra.mxu0 %v2304
    %5166 = vmatprep.subr.bf16.mxu0 %v2289
    %5167 = vmatpush1.bf16.msra.mxu0 %v2288
    %5168 = vmatprep.subr.bf16.mxu0 %v2273
    %5169 = vmatpush1.bf16.msra.mxu0 %v2272
    %5170 = vmatprep.subr.bf16.mxu0 %v2257
    %5171 = vmatpush1.bf16.msra.mxu0 %v2256
    %5172 = vmatprep.subr.bf16.mxu0 %v2241
    %5173 = vmatpush1.bf16.msra.mxu0 %v2240
    %5174 = vmatprep.subr.bf16.mxu0 %v2225
    %5175 = vmatpush1.bf16.msra.mxu0 %v2224
    %5176 = vmatprep.subr.bf16.mxu0 %v2209
    %5177 = vmatpush1.bf16.msra.mxu0 %v2208
    %5178 = vmatprep.subr.bf16.mxu0 %v2449
    %5179 = vmatpush2.bf16.msra.mxu0 %v2448
    %5180 = vmatprep.subr.bf16.mxu0 %v2433
    %5181 = vmatpush2.bf16.msra.mxu0 %v2432
    %5182 = vmatprep.subr.bf16.mxu0 %v2417
    %5183 = vmatpush2.bf16.msra.mxu0 %v2416
    %5184 = vmatprep.subr.bf16.mxu0 %v2401
    %5185 = vmatpush2.bf16.msra.mxu0 %v2400
    %5186 = vmatprep.subr.bf16.mxu0 %v2385
    %5187 = vmatpush2.bf16.msra.mxu0 %v2384
    %5188 = vmatprep.subr.bf16.mxu0 %v2369
    %5189 = vmatpush2.bf16.msra.mxu0 %v2368
    %5190 = vmatprep.subr.bf16.mxu0 %v2353
    %5191 = vmatpush2.bf16.msra.mxu0 %v2352
    %5192 = vmatprep.subr.bf16.mxu0 %v2337
    %5193 = vmatpush2.bf16.msra.mxu0 %v2336
    %5194 = vmatprep.mubr.bf16.mxu0 %v5159
    %5195 = vmatmul.mubr.bf16.gmra.mxu0 %v5158
    %v5196 = vpop.f32.mrf.mxu0
    %v5197 = vadd.f32 0.0, %v5196
    %v5198 = vpop.f32.mrf.mxu0
    %v5199 = vadd.f32 0.0, %v5198
    %v5200 = vpop.f32.mrf.mxu0
    %v5201 = vadd.f32 0.0, %v5200
    %v5202 = vpop.f32.mrf.mxu0
    %v5203 = vadd.f32 0.0, %v5202
    %5204 = vdwg.mxu0
    %5205 = vmatprep.subr.bf16.mxu0 %v2577
    %5206 = vmatpush1.bf16.msra.mxu0 %v2576
    %5207 = vmatprep.subr.bf16.mxu0 %v2561
    %5208 = vmatpush1.bf16.msra.mxu0 %v2560
    %5209 = vmatprep.subr.bf16.mxu0 %v2545
    %5210 = vmatpush1.bf16.msra.mxu0 %v2544
    %5211 = vmatprep.subr.bf16.mxu0 %v2529
    %5212 = vmatpush1.bf16.msra.mxu0 %v2528
    %5213 = vmatprep.subr.bf16.mxu0 %v2513
    %5214 = vmatpush1.bf16.msra.mxu0 %v2512
    %5215 = vmatprep.subr.bf16.mxu0 %v2497
    %5216 = vmatpush1.bf16.msra.mxu0 %v2496
    %5217 = vmatprep.subr.bf16.mxu0 %v2481
    %5218 = vmatpush1.bf16.msra.mxu0 %v2480
    %5219 = vmatprep.subr.bf16.mxu0 %v2465
    %5220 = vmatpush1.bf16.msra.mxu0 %v2464
    %5221 = vmatprep.subr.bf16.mxu0 %v2705
    %5222 = vmatpush2.bf16.msra.mxu0 %v2704
    %5223 = vmatprep.subr.bf16.mxu0 %v2689
    %5224 = vmatpush2.bf16.msra.mxu0 %v2688
    %5225 = vmatprep.subr.bf16.mxu0 %v2673
    %5226 = vmatpush2.bf16.msra.mxu0 %v2672
    %5227 = vmatprep.subr.bf16.mxu0 %v2657
    %5228 = vmatpush2.bf16.msra.mxu0 %v2656
    %5229 = vmatprep.subr.bf16.mxu0 %v2641
    %5230 = vmatpush2.bf16.msra.mxu0 %v2640
    %5231 = vmatprep.subr.bf16.mxu0 %v2625
    %5232 = vmatpush2.bf16.msra.mxu0 %v2624
    %5233 = vmatprep.subr.bf16.mxu0 %v2609
    %5234 = vmatpush2.bf16.msra.mxu0 %v2608
    %5235 = vmatprep.subr.bf16.mxu0 %v2593
    %5236 = vmatpush2.bf16.msra.mxu0 %v2592
    %5237 = vmatprep.mubr.bf16.mxu0 %v5161
    %5238 = vmatmul.mubr.bf16.gmra.mxu0 %v5160
    %v5239 = vpop.f32.mrf.mxu0
    %v5240 = vadd.f32 %v5197, %v5239
    %v5241 = vpop.f32.mrf.mxu0
    %v5242 = vadd.f32 %v5199, %v5241
    %v5243 = vpop.f32.mrf.mxu0
    %v5244 = vadd.f32 %v5201, %v5243
    %v5245 = vpop.f32.mrf.mxu0
    %v5246 = vadd.f32 %v5203, %v5245
    %5247 = vdwg.mxu0
    %5248 = vmatprep.subr.bf16.mxu0 %v2323
    %5249 = vmatpush1.bf16.msra.mxu0 %v2322
    %5250 = vmatprep.subr.bf16.mxu0 %v2307
    %5251 = vmatpush1.bf16.msra.mxu0 %v2306
    %5252 = vmatprep.subr.bf16.mxu0 %v2291
    %5253 = vmatpush1.bf16.msra.mxu0 %v2290
    %5254 = vmatprep.subr.bf16.mxu0 %v2275
    %5255 = vmatpush1.bf16.msra.mxu0 %v2274
    %5256 = vmatprep.subr.bf16.mxu0 %v2259
    %5257 = vmatpush1.bf16.msra.mxu0 %v2258
    %5258 = vmatprep.subr.bf16.mxu0 %v2243
    %5259 = vmatpush1.bf16.msra.mxu0 %v2242
    %5260 = vmatprep.subr.bf16.mxu0 %v2227
    %5261 = vmatpush1.bf16.msra.mxu0 %v2226
    %5262 = vmatprep.subr.bf16.mxu0 %v2211
    %5263 = vmatpush1.bf16.msra.mxu0 %v2210
    %5264 = vmatprep.subr.bf16.mxu0 %v2451
    %5265 = vmatpush2.bf16.msra.mxu0 %v2450
    %5266 = vmatprep.subr.bf16.mxu0 %v2435
    %5267 = vmatpush2.bf16.msra.mxu0 %v2434
    %5268 = vmatprep.subr.bf16.mxu0 %v2419
    %5269 = vmatpush2.bf16.msra.mxu0 %v2418
    %5270 = vmatprep.subr.bf16.mxu0 %v2403
    %5271 = vmatpush2.bf16.msra.mxu0 %v2402
    %5272 = vmatprep.subr.bf16.mxu0 %v2387
    %5273 = vmatpush2.bf16.msra.mxu0 %v2386
    %5274 = vmatprep.subr.bf16.mxu0 %v2371
    %5275 = vmatpush2.bf16.msra.mxu0 %v2370
    %5276 = vmatprep.subr.bf16.mxu0 %v2355
    %5277 = vmatpush2.bf16.msra.mxu0 %v2354
    %5278 = vmatprep.subr.bf16.mxu0 %v2339
    %5279 = vmatpush2.bf16.msra.mxu0 %v2338
    %5280 = vmatprep.mubr.bf16.mxu0 %v5159
    %5281 = vmatmul.mubr.bf16.gmra.mxu0 %v5158
    %v5282 = vpop.f32.mrf.mxu0
    %v5283 = vadd.f32 0.0, %v5282
    %v5284 = vpop.f32.mrf.mxu0
    %v5285 = vadd.f32 0.0, %v5284
    %v5286 = vpop.f32.mrf.mxu0
    %v5287 = vadd.f32 0.0, %v5286
    %v5288 = vpop.f32.mrf.mxu0
    %v5289 = vadd.f32 0.0, %v5288
    %5290 = vdwg.mxu0
    %5291 = vmatprep.subr.bf16.mxu0 %v2579
    %5292 = vmatpush1.bf16.msra.mxu0 %v2578
    %5293 = vmatprep.subr.bf16.mxu0 %v2563
    %5294 = vmatpush1.bf16.msra.mxu0 %v2562
    %5295 = vmatprep.subr.bf16.mxu0 %v2547
    %5296 = vmatpush1.bf16.msra.mxu0 %v2546
    %5297 = vmatprep.subr.bf16.mxu0 %v2531
    %5298 = vmatpush1.bf16.msra.mxu0 %v2530
    %5299 = vmatprep.subr.bf16.mxu0 %v2515
    %5300 = vmatpush1.bf16.msra.mxu0 %v2514
    %5301 = vmatprep.subr.bf16.mxu0 %v2499
    %5302 = vmatpush1.bf16.msra.mxu0 %v2498
    %5303 = vmatprep.subr.bf16.mxu0 %v2483
    %5304 = vmatpush1.bf16.msra.mxu0 %v2482
    %5305 = vmatprep.subr.bf16.mxu0 %v2467
    %5306 = vmatpush1.bf16.msra.mxu0 %v2466
    %5307 = vmatprep.subr.bf16.mxu0 %v2707
    %5308 = vmatpush2.bf16.msra.mxu0 %v2706
    %5309 = vmatprep.subr.bf16.mxu0 %v2691
    %5310 = vmatpush2.bf16.msra.mxu0 %v2690
    %5311 = vmatprep.subr.bf16.mxu0 %v2675
    %5312 = vmatpush2.bf16.msra.mxu0 %v2674
    %5313 = vmatprep.subr.bf16.mxu0 %v2659
    %5314 = vmatpush2.bf16.msra.mxu0 %v2658
    %5315 = vmatprep.subr.bf16.mxu0 %v2643
    %5316 = vmatpush2.bf16.msra.mxu0 %v2642
    %5317 = vmatprep.subr.bf16.mxu0 %v2627
    %5318 = vmatpush2.bf16.msra.mxu0 %v2626
    %5319 = vmatprep.subr.bf16.mxu0 %v2611
    %5320 = vmatpush2.bf16.msra.mxu0 %v2610
    %5321 = vmatprep.subr.bf16.mxu0 %v2595
    %5322 = vmatpush2.bf16.msra.mxu0 %v2594
    %5323 = vmatprep.mubr.bf16.mxu0 %v5161
    %5324 = vmatmul.mubr.bf16.gmra.mxu0 %v5160
    %v5325 = vpop.f32.mrf.mxu0
    %v5326 = vadd.f32 %v5283, %v5325
    %v5327 = vpop.f32.mrf.mxu0
    %v5328 = vadd.f32 %v5285, %v5327
    %v5329 = vpop.f32.mrf.mxu0
    %v5330 = vadd.f32 %v5287, %v5329
    %v5331 = vpop.f32.mrf.mxu0
    %v5332 = vadd.f32 %v5289, %v5331
    %5333 = vdwg.mxu0
    %5334 = vmatprep.subr.bf16.mxu0 %v2325
    %5335 = vmatpush1.bf16.msra.mxu0 %v2324
    %5336 = vmatprep.subr.bf16.mxu0 %v2309
    %5337 = vmatpush1.bf16.msra.mxu0 %v2308
    %5338 = vmatprep.subr.bf16.mxu0 %v2293
    %5339 = vmatpush1.bf16.msra.mxu0 %v2292
    %5340 = vmatprep.subr.bf16.mxu0 %v2277
    %5341 = vmatpush1.bf16.msra.mxu0 %v2276
    %5342 = vmatprep.subr.bf16.mxu0 %v2261
    %5343 = vmatpush1.bf16.msra.mxu0 %v2260
    %5344 = vmatprep.subr.bf16.mxu0 %v2245
    %5345 = vmatpush1.bf16.msra.mxu0 %v2244
    %5346 = vmatprep.subr.bf16.mxu0 %v2229
    %5347 = vmatpush1.bf16.msra.mxu0 %v2228
    %5348 = vmatprep.subr.bf16.mxu0 %v2213
    %5349 = vmatpush1.bf16.msra.mxu0 %v2212
    %5350 = vmatprep.subr.bf16.mxu0 %v2453
    %5351 = vmatpush2.bf16.msra.mxu0 %v2452
    %5352 = vmatprep.subr.bf16.mxu0 %v2437
    %5353 = vmatpush2.bf16.msra.mxu0 %v2436
    %5354 = vmatprep.subr.bf16.mxu0 %v2421
    %5355 = vmatpush2.bf16.msra.mxu0 %v2420
    %5356 = vmatprep.subr.bf16.mxu0 %v2405
    %5357 = vmatpush2.bf16.msra.mxu0 %v2404
    %5358 = vmatprep.subr.bf16.mxu0 %v2389
    %5359 = vmatpush2.bf16.msra.mxu0 %v2388
    %5360 = vmatprep.subr.bf16.mxu0 %v2373
    %5361 = vmatpush2.bf16.msra.mxu0 %v2372
    %5362 = vmatprep.subr.bf16.mxu0 %v2357
    %5363 = vmatpush2.bf16.msra.mxu0 %v2356
    %5364 = vmatprep.subr.bf16.mxu0 %v2341
    %5365 = vmatpush2.bf16.msra.mxu0 %v2340
    %5366 = vmatprep.mubr.bf16.mxu0 %v5159
    %5367 = vmatmul.mubr.bf16.gmra.mxu0 %v5158
    %v5368 = vpop.f32.mrf.mxu0
    %v5369 = vadd.f32 0.0, %v5368
    %v5370 = vpop.f32.mrf.mxu0
    %v5371 = vadd.f32 0.0, %v5370
    %v5372 = vpop.f32.mrf.mxu0
    %v5373 = vadd.f32 0.0, %v5372
    %v5374 = vpop.f32.mrf.mxu0
    %v5375 = vadd.f32 0.0, %v5374
    %5376 = vdwg.mxu0
    %5377 = vmatprep.subr.bf16.mxu0 %v2581
    %5378 = vmatpush1.bf16.msra.mxu0 %v2580
    %5379 = vmatprep.subr.bf16.mxu0 %v2565
    %5380 = vmatpush1.bf16.msra.mxu0 %v2564
    %5381 = vmatprep.subr.bf16.mxu0 %v2549
    %5382 = vmatpush1.bf16.msra.mxu0 %v2548
    %5383 = vmatprep.subr.bf16.mxu0 %v2533
    %5384 = vmatpush1.bf16.msra.mxu0 %v2532
    %5385 = vmatprep.subr.bf16.mxu0 %v2517
    %5386 = vmatpush1.bf16.msra.mxu0 %v2516
    %5387 = vmatprep.subr.bf16.mxu0 %v2501
    %5388 = vmatpush1.bf16.msra.mxu0 %v2500
    %5389 = vmatprep.subr.bf16.mxu0 %v2485
    %5390 = vmatpush1.bf16.msra.mxu0 %v2484
    %5391 = vmatprep.subr.bf16.mxu0 %v2469
    %5392 = vmatpush1.bf16.msra.mxu0 %v2468
    %5393 = vmatprep.subr.bf16.mxu0 %v2709
    %5394 = vmatpush2.bf16.msra.mxu0 %v2708
    %5395 = vmatprep.subr.bf16.mxu0 %v2693
    %5396 = vmatpush2.bf16.msra.mxu0 %v2692
    %5397 = vmatprep.subr.bf16.mxu0 %v2677
    %5398 = vmatpush2.bf16.msra.mxu0 %v2676
    %5399 = vmatprep.subr.bf16.mxu0 %v2661
    %5400 = vmatpush2.bf16.msra.mxu0 %v2660
    %5401 = vmatprep.subr.bf16.mxu0 %v2645
    %5402 = vmatpush2.bf16.msra.mxu0 %v2644
    %5403 = vmatprep.subr.bf16.mxu0 %v2629
    %5404 = vmatpush2.bf16.msra.mxu0 %v2628
    %5405 = vmatprep.subr.bf16.mxu0 %v2613
    %5406 = vmatpush2.bf16.msra.mxu0 %v2612
    %5407 = vmatprep.subr.bf16.mxu0 %v2597
    %5408 = vmatpush2.bf16.msra.mxu0 %v2596
    %5409 = vmatprep.mubr.bf16.mxu0 %v5161
    %5410 = vmatmul.mubr.bf16.gmra.mxu0 %v5160
    %v5411 = vpop.f32.mrf.mxu0
    %v5412 = vadd.f32 %v5369, %v5411
    %v5413 = vpop.f32.mrf.mxu0
    %v5414 = vadd.f32 %v5371, %v5413
    %v5415 = vpop.f32.mrf.mxu0
    %v5416 = vadd.f32 %v5373, %v5415
    %v5417 = vpop.f32.mrf.mxu0
    %v5418 = vadd.f32 %v5375, %v5417
    %5419 = vdwg.mxu0
    %5420 = vmatprep.subr.bf16.mxu0 %v2327
    %5421 = vmatpush1.bf16.msra.mxu0 %v2326
    %5422 = vmatprep.subr.bf16.mxu0 %v2311
    %5423 = vmatpush1.bf16.msra.mxu0 %v2310
    %5424 = vmatprep.subr.bf16.mxu0 %v2295
    %5425 = vmatpush1.bf16.msra.mxu0 %v2294
    %5426 = vmatprep.subr.bf16.mxu0 %v2279
    %5427 = vmatpush1.bf16.msra.mxu0 %v2278
    %5428 = vmatprep.subr.bf16.mxu0 %v2263
    %5429 = vmatpush1.bf16.msra.mxu0 %v2262
    %5430 = vmatprep.subr.bf16.mxu0 %v2247
    %5431 = vmatpush1.bf16.msra.mxu0 %v2246
    %5432 = vmatprep.subr.bf16.mxu0 %v2231
    %5433 = vmatpush1.bf16.msra.mxu0 %v2230
    %5434 = vmatprep.subr.bf16.mxu0 %v2215
    %5435 = vmatpush1.bf16.msra.mxu0 %v2214
    %5436 = vmatprep.subr.bf16.mxu0 %v2455
    %5437 = vmatpush2.bf16.msra.mxu0 %v2454
    %5438 = vmatprep.subr.bf16.mxu0 %v2439
    %5439 = vmatpush2.bf16.msra.mxu0 %v2438
    %5440 = vmatprep.subr.bf16.mxu0 %v2423
    %5441 = vmatpush2.bf16.msra.mxu0 %v2422
    %5442 = vmatprep.subr.bf16.mxu0 %v2407
    %5443 = vmatpush2.bf16.msra.mxu0 %v2406
    %5444 = vmatprep.subr.bf16.mxu0 %v2391
    %5445 = vmatpush2.bf16.msra.mxu0 %v2390
    %5446 = vmatprep.subr.bf16.mxu0 %v2375
    %5447 = vmatpush2.bf16.msra.mxu0 %v2374
    %5448 = vmatprep.subr.bf16.mxu0 %v2359
    %5449 = vmatpush2.bf16.msra.mxu0 %v2358
    %5450 = vmatprep.subr.bf16.mxu0 %v2343
    %5451 = vmatpush2.bf16.msra.mxu0 %v2342
    %5452 = vmatprep.mubr.bf16.mxu0 %v5159
    %5453 = vmatmul.mubr.bf16.gmra.mxu0 %v5158
    %v5454 = vpop.f32.mrf.mxu0
    %v5455 = vadd.f32 0.0, %v5454
    %v5456 = vpop.f32.mrf.mxu0
    %v5457 = vadd.f32 0.0, %v5456
    %v5458 = vpop.f32.mrf.mxu0
    %v5459 = vadd.f32 0.0, %v5458
    %v5460 = vpop.f32.mrf.mxu0
    %v5461 = vadd.f32 0.0, %v5460
    %5462 = vdwg.mxu0
    %5463 = vmatprep.subr.bf16.mxu0 %v2583
    %5464 = vmatpush1.bf16.msra.mxu0 %v2582
    %5465 = vmatprep.subr.bf16.mxu0 %v2567
    %5466 = vmatpush1.bf16.msra.mxu0 %v2566
    %5467 = vmatprep.subr.bf16.mxu0 %v2551
    %5468 = vmatpush1.bf16.msra.mxu0 %v2550
    %5469 = vmatprep.subr.bf16.mxu0 %v2535
    %5470 = vmatpush1.bf16.msra.mxu0 %v2534
    %5471 = vmatprep.subr.bf16.mxu0 %v2519
    %5472 = vmatpush1.bf16.msra.mxu0 %v2518
    %5473 = vmatprep.subr.bf16.mxu0 %v2503
    %5474 = vmatpush1.bf16.msra.mxu0 %v2502
    %5475 = vmatprep.subr.bf16.mxu0 %v2487
    %5476 = vmatpush1.bf16.msra.mxu0 %v2486
    %5477 = vmatprep.subr.bf16.mxu0 %v2471
    %5478 = vmatpush1.bf16.msra.mxu0 %v2470
    %5479 = vmatprep.subr.bf16.mxu0 %v2711
    %5480 = vmatpush2.bf16.msra.mxu0 %v2710
    %5481 = vmatprep.subr.bf16.mxu0 %v2695
    %5482 = vmatpush2.bf16.msra.mxu0 %v2694
    %5483 = vmatprep.subr.bf16.mxu0 %v2679
    %5484 = vmatpush2.bf16.msra.mxu0 %v2678
    %5485 = vmatprep.subr.bf16.mxu0 %v2663
    %5486 = vmatpush2.bf16.msra.mxu0 %v2662
    %5487 = vmatprep.subr.bf16.mxu0 %v2647
    %5488 = vmatpush2.bf16.msra.mxu0 %v2646
    %5489 = vmatprep.subr.bf16.mxu0 %v2631
    %5490 = vmatpush2.bf16.msra.mxu0 %v2630
    %5491 = vmatprep.subr.bf16.mxu0 %v2615
    %5492 = vmatpush2.bf16.msra.mxu0 %v2614
    %5493 = vmatprep.subr.bf16.mxu0 %v2599
    %5494 = vmatpush2.bf16.msra.mxu0 %v2598
    %5495 = vmatprep.mubr.bf16.mxu0 %v5161
    %5496 = vmatmul.mubr.bf16.gmra.mxu0 %v5160
    %v5497 = vpop.f32.mrf.mxu0
    %v5498 = vadd.f32 %v5455, %v5497
    %v5499 = vpop.f32.mrf.mxu0
    %v5500 = vadd.f32 %v5457, %v5499
    %v5501 = vpop.f32.mrf.mxu0
    %v5502 = vadd.f32 %v5459, %v5501
    %v5503 = vpop.f32.mrf.mxu0
    %v5504 = vadd.f32 %v5461, %v5503
    %5505 = vdwg.mxu0
    %5506 = vmatprep.subr.bf16.mxu0 %v2329
    %5507 = vmatpush1.bf16.msra.mxu0 %v2328
    %5508 = vmatprep.subr.bf16.mxu0 %v2313
    %5509 = vmatpush1.bf16.msra.mxu0 %v2312
    %5510 = vmatprep.subr.bf16.mxu0 %v2297
    %5511 = vmatpush1.bf16.msra.mxu0 %v2296
    %5512 = vmatprep.subr.bf16.mxu0 %v2281
    %5513 = vmatpush1.bf16.msra.mxu0 %v2280
    %5514 = vmatprep.subr.bf16.mxu0 %v2265
    %5515 = vmatpush1.bf16.msra.mxu0 %v2264
    %5516 = vmatprep.subr.bf16.mxu0 %v2249
    %5517 = vmatpush1.bf16.msra.mxu0 %v2248
    %5518 = vmatprep.subr.bf16.mxu0 %v2233
    %5519 = vmatpush1.bf16.msra.mxu0 %v2232
    %5520 = vmatprep.subr.bf16.mxu0 %v2217
    %5521 = vmatpush1.bf16.msra.mxu0 %v2216
    %5522 = vmatprep.subr.bf16.mxu0 %v2457
    %5523 = vmatpush2.bf16.msra.mxu0 %v2456
    %5524 = vmatprep.subr.bf16.mxu0 %v2441
    %5525 = vmatpush2.bf16.msra.mxu0 %v2440
    %5526 = vmatprep.subr.bf16.mxu0 %v2425
    %5527 = vmatpush2.bf16.msra.mxu0 %v2424
    %5528 = vmatprep.subr.bf16.mxu0 %v2409
    %5529 = vmatpush2.bf16.msra.mxu0 %v2408
    %5530 = vmatprep.subr.bf16.mxu0 %v2393
    %5531 = vmatpush2.bf16.msra.mxu0 %v2392
    %5532 = vmatprep.subr.bf16.mxu0 %v2377
    %5533 = vmatpush2.bf16.msra.mxu0 %v2376
    %5534 = vmatprep.subr.bf16.mxu0 %v2361
    %5535 = vmatpush2.bf16.msra.mxu0 %v2360
    %5536 = vmatprep.subr.bf16.mxu0 %v2345
    %5537 = vmatpush2.bf16.msra.mxu0 %v2344
    %5538 = vmatprep.mubr.bf16.mxu0 %v5159
    %5539 = vmatmul.mubr.bf16.gmra.mxu0 %v5158
    %v5540 = vpop.f32.mrf.mxu0
    %v5541 = vadd.f32 0.0, %v5540
    %v5542 = vpop.f32.mrf.mxu0
    %v5543 = vadd.f32 0.0, %v5542
    %v5544 = vpop.f32.mrf.mxu0
    %v5545 = vadd.f32 0.0, %v5544
    %v5546 = vpop.f32.mrf.mxu0
    %v5547 = vadd.f32 0.0, %v5546
    %5548 = vdwg.mxu0
    %5549 = vmatprep.subr.bf16.mxu0 %v2585
    %5550 = vmatpush1.bf16.msra.mxu0 %v2584
    %5551 = vmatprep.subr.bf16.mxu0 %v2569
    %5552 = vmatpush1.bf16.msra.mxu0 %v2568
    %5553 = vmatprep.subr.bf16.mxu0 %v2553
    %5554 = vmatpush1.bf16.msra.mxu0 %v2552
    %5555 = vmatprep.subr.bf16.mxu0 %v2537
    %5556 = vmatpush1.bf16.msra.mxu0 %v2536
    %5557 = vmatprep.subr.bf16.mxu0 %v2521
    %5558 = vmatpush1.bf16.msra.mxu0 %v2520
    %5559 = vmatprep.subr.bf16.mxu0 %v2505
    %5560 = vmatpush1.bf16.msra.mxu0 %v2504
    %5561 = vmatprep.subr.bf16.mxu0 %v2489
    %5562 = vmatpush1.bf16.msra.mxu0 %v2488
    %5563 = vmatprep.subr.bf16.mxu0 %v2473
    %5564 = vmatpush1.bf16.msra.mxu0 %v2472
    %5565 = vmatprep.subr.bf16.mxu0 %v2713
    %5566 = vmatpush2.bf16.msra.mxu0 %v2712
    %5567 = vmatprep.subr.bf16.mxu0 %v2697
    %5568 = vmatpush2.bf16.msra.mxu0 %v2696
    %5569 = vmatprep.subr.bf16.mxu0 %v2681
    %5570 = vmatpush2.bf16.msra.mxu0 %v2680
    %5571 = vmatprep.subr.bf16.mxu0 %v2665
    %5572 = vmatpush2.bf16.msra.mxu0 %v2664
    %5573 = vmatprep.subr.bf16.mxu0 %v2649
    %5574 = vmatpush2.bf16.msra.mxu0 %v2648
    %5575 = vmatprep.subr.bf16.mxu0 %v2633
    %5576 = vmatpush2.bf16.msra.mxu0 %v2632
    %5577 = vmatprep.subr.bf16.mxu0 %v2617
    %5578 = vmatpush2.bf16.msra.mxu0 %v2616
    %5579 = vmatprep.subr.bf16.mxu0 %v2601
    %5580 = vmatpush2.bf16.msra.mxu0 %v2600
    %5581 = vmatprep.mubr.bf16.mxu0 %v5161
    %5582 = vmatmul.mubr.bf16.gmra.mxu0 %v5160
    %v5583 = vpop.f32.mrf.mxu0
    %v5584 = vadd.f32 %v5541, %v5583
    %v5585 = vpop.f32.mrf.mxu0
    %v5586 = vadd.f32 %v5543, %v5585
    %v5587 = vpop.f32.mrf.mxu0
    %v5588 = vadd.f32 %v5545, %v5587
    %v5589 = vpop.f32.mrf.mxu0
    %v5590 = vadd.f32 %v5547, %v5589
    %5591 = vdwg.mxu0
    %5592 = vmatprep.subr.bf16.mxu0 %v2331
    %5593 = vmatpush1.bf16.msra.mxu0 %v2330
    %5594 = vmatprep.subr.bf16.mxu0 %v2315
    %5595 = vmatpush1.bf16.msra.mxu0 %v2314
    %5596 = vmatprep.subr.bf16.mxu0 %v2299
    %5597 = vmatpush1.bf16.msra.mxu0 %v2298
    %5598 = vmatprep.subr.bf16.mxu0 %v2283
    %5599 = vmatpush1.bf16.msra.mxu0 %v2282
    %5600 = vmatprep.subr.bf16.mxu0 %v2267
    %5601 = vmatpush1.bf16.msra.mxu0 %v2266
    %5602 = vmatprep.subr.bf16.mxu0 %v2251
    %5603 = vmatpush1.bf16.msra.mxu0 %v2250
    %5604 = vmatprep.subr.bf16.mxu0 %v2235
    %5605 = vmatpush1.bf16.msra.mxu0 %v2234
    %5606 = vmatprep.subr.bf16.mxu0 %v2219
    %5607 = vmatpush1.bf16.msra.mxu0 %v2218
    %5608 = vmatprep.subr.bf16.mxu0 %v2459
    %5609 = vmatpush2.bf16.msra.mxu0 %v2458
    %5610 = vmatprep.subr.bf16.mxu0 %v2443
    %5611 = vmatpush2.bf16.msra.mxu0 %v2442
    %5612 = vmatprep.subr.bf16.mxu0 %v2427
    %5613 = vmatpush2.bf16.msra.mxu0 %v2426
    %5614 = vmatprep.subr.bf16.mxu0 %v2411
    %5615 = vmatpush2.bf16.msra.mxu0 %v2410
    %5616 = vmatprep.subr.bf16.mxu0 %v2395
    %5617 = vmatpush2.bf16.msra.mxu0 %v2394
    %5618 = vmatprep.subr.bf16.mxu0 %v2379
    %5619 = vmatpush2.bf16.msra.mxu0 %v2378
    %5620 = vmatprep.subr.bf16.mxu0 %v2363
    %5621 = vmatpush2.bf16.msra.mxu0 %v2362
    %5622 = vmatprep.subr.bf16.mxu0 %v2347
    %5623 = vmatpush2.bf16.msra.mxu0 %v2346
    %5624 = vmatprep.mubr.bf16.mxu0 %v5159
    %5625 = vmatmul.mubr.bf16.gmra.mxu0 %v5158
    %v5626 = vpop.f32.mrf.mxu0
    %v5627 = vadd.f32 0.0, %v5626
    %v5628 = vpop.f32.mrf.mxu0
    %v5629 = vadd.f32 0.0, %v5628
    %v5630 = vpop.f32.mrf.mxu0
    %v5631 = vadd.f32 0.0, %v5630
    %v5632 = vpop.f32.mrf.mxu0
    %v5633 = vadd.f32 0.0, %v5632
    %5634 = vdwg.mxu0
    %5635 = vmatprep.subr.bf16.mxu0 %v2587
    %5636 = vmatpush1.bf16.msra.mxu0 %v2586
    %5637 = vmatprep.subr.bf16.mxu0 %v2571
    %5638 = vmatpush1.bf16.msra.mxu0 %v2570
    %5639 = vmatprep.subr.bf16.mxu0 %v2555
    %5640 = vmatpush1.bf16.msra.mxu0 %v2554
    %5641 = vmatprep.subr.bf16.mxu0 %v2539
    %5642 = vmatpush1.bf16.msra.mxu0 %v2538
    %5643 = vmatprep.subr.bf16.mxu0 %v2523
    %5644 = vmatpush1.bf16.msra.mxu0 %v2522
    %5645 = vmatprep.subr.bf16.mxu0 %v2507
    %5646 = vmatpush1.bf16.msra.mxu0 %v2506
    %5647 = vmatprep.subr.bf16.mxu0 %v2491
    %5648 = vmatpush1.bf16.msra.mxu0 %v2490
    %5649 = vmatprep.subr.bf16.mxu0 %v2475
    %5650 = vmatpush1.bf16.msra.mxu0 %v2474
    %5651 = vmatprep.subr.bf16.mxu0 %v2715
    %5652 = vmatpush2.bf16.msra.mxu0 %v2714
    %5653 = vmatprep.subr.bf16.mxu0 %v2699
    %5654 = vmatpush2.bf16.msra.mxu0 %v2698
    %5655 = vmatprep.subr.bf16.mxu0 %v2683
    %5656 = vmatpush2.bf16.msra.mxu0 %v2682
    %5657 = vmatprep.subr.bf16.mxu0 %v2667
    %5658 = vmatpush2.bf16.msra.mxu0 %v2666
    %5659 = vmatprep.subr.bf16.mxu0 %v2651
    %5660 = vmatpush2.bf16.msra.mxu0 %v2650
    %5661 = vmatprep.subr.bf16.mxu0 %v2635
    %5662 = vmatpush2.bf16.msra.mxu0 %v2634
    %5663 = vmatprep.subr.bf16.mxu0 %v2619
    %5664 = vmatpush2.bf16.msra.mxu0 %v2618
    %5665 = vmatprep.subr.bf16.mxu0 %v2603
    %5666 = vmatpush2.bf16.msra.mxu0 %v2602
    %5667 = vmatprep.mubr.bf16.mxu0 %v5161
    %5668 = vmatmul.mubr.bf16.gmra.mxu0 %v5160
    %v5669 = vpop.f32.mrf.mxu0
    %v5670 = vadd.f32 %v5627, %v5669
    %v5671 = vpop.f32.mrf.mxu0
    %v5672 = vadd.f32 %v5629, %v5671
    %v5673 = vpop.f32.mrf.mxu0
    %v5674 = vadd.f32 %v5631, %v5673
    %v5675 = vpop.f32.mrf.mxu0
    %v5676 = vadd.f32 %v5633, %v5675
    %5677 = vdwg.mxu0
    %5678 = vmatprep.subr.bf16.mxu0 %v2333
    %5679 = vmatpush1.bf16.msra.mxu0 %v2332
    %5680 = vmatprep.subr.bf16.mxu0 %v2317
    %5681 = vmatpush1.bf16.msra.mxu0 %v2316
    %5682 = vmatprep.subr.bf16.mxu0 %v2301
    %5683 = vmatpush1.bf16.msra.mxu0 %v2300
    %5684 = vmatprep.subr.bf16.mxu0 %v2285
    %5685 = vmatpush1.bf16.msra.mxu0 %v2284
    %5686 = vmatprep.subr.bf16.mxu0 %v2269
    %5687 = vmatpush1.bf16.msra.mxu0 %v2268
    %5688 = vmatprep.subr.bf16.mxu0 %v2253
    %5689 = vmatpush1.bf16.msra.mxu0 %v2252
    %5690 = vmatprep.subr.bf16.mxu0 %v2237
    %5691 = vmatpush1.bf16.msra.mxu0 %v2236
    %5692 = vmatprep.subr.bf16.mxu0 %v2221
    %5693 = vmatpush1.bf16.msra.mxu0 %v2220
    %5694 = vmatprep.subr.bf16.mxu0 %v2461
    %5695 = vmatpush2.bf16.msra.mxu0 %v2460
    %5696 = vmatprep.subr.bf16.mxu0 %v2445
    %5697 = vmatpush2.bf16.msra.mxu0 %v2444
    %5698 = vmatprep.subr.bf16.mxu0 %v2429
    %5699 = vmatpush2.bf16.msra.mxu0 %v2428
    %5700 = vmatprep.subr.bf16.mxu0 %v2413
    %5701 = vmatpush2.bf16.msra.mxu0 %v2412
    %5702 = vmatprep.subr.bf16.mxu0 %v2397
    %5703 = vmatpush2.bf16.msra.mxu0 %v2396
    %5704 = vmatprep.subr.bf16.mxu0 %v2381
    %5705 = vmatpush2.bf16.msra.mxu0 %v2380
    %5706 = vmatprep.subr.bf16.mxu0 %v2365
    %5707 = vmatpush2.bf16.msra.mxu0 %v2364
    %5708 = vmatprep.subr.bf16.mxu0 %v2349
    %5709 = vmatpush2.bf16.msra.mxu0 %v2348
    %5710 = vmatprep.mubr.bf16.mxu0 %v5159
    %5711 = vmatmul.mubr.bf16.gmra.mxu0 %v5158
    %v5712 = vpop.f32.mrf.mxu0
    %v5713 = vadd.f32 0.0, %v5712
    %v5714 = vpop.f32.mrf.mxu0
    %v5715 = vadd.f32 0.0, %v5714
    %v5716 = vpop.f32.mrf.mxu0
    %v5717 = vadd.f32 0.0, %v5716
    %v5718 = vpop.f32.mrf.mxu0
    %v5719 = vadd.f32 0.0, %v5718
    %5720 = vdwg.mxu0
    %5721 = vmatprep.subr.bf16.mxu0 %v2589
    %5722 = vmatpush1.bf16.msra.mxu0 %v2588
    %5723 = vmatprep.subr.bf16.mxu0 %v2573
    %5724 = vmatpush1.bf16.msra.mxu0 %v2572
    %5725 = vmatprep.subr.bf16.mxu0 %v2557
    %5726 = vmatpush1.bf16.msra.mxu0 %v2556
    %5727 = vmatprep.subr.bf16.mxu0 %v2541
    %5728 = vmatpush1.bf16.msra.mxu0 %v2540
    %5729 = vmatprep.subr.bf16.mxu0 %v2525
    %5730 = vmatpush1.bf16.msra.mxu0 %v2524
    %5731 = vmatprep.subr.bf16.mxu0 %v2509
    %5732 = vmatpush1.bf16.msra.mxu0 %v2508
    %5733 = vmatprep.subr.bf16.mxu0 %v2493
    %5734 = vmatpush1.bf16.msra.mxu0 %v2492
    %5735 = vmatprep.subr.bf16.mxu0 %v2477
    %5736 = vmatpush1.bf16.msra.mxu0 %v2476
    %5737 = vmatprep.subr.bf16.mxu0 %v2717
    %5738 = vmatpush2.bf16.msra.mxu0 %v2716
    %5739 = vmatprep.subr.bf16.mxu0 %v2701
    %5740 = vmatpush2.bf16.msra.mxu0 %v2700
    %5741 = vmatprep.subr.bf16.mxu0 %v2685
    %5742 = vmatpush2.bf16.msra.mxu0 %v2684
    %5743 = vmatprep.subr.bf16.mxu0 %v2669
    %5744 = vmatpush2.bf16.msra.mxu0 %v2668
    %5745 = vmatprep.subr.bf16.mxu0 %v2653
    %5746 = vmatpush2.bf16.msra.mxu0 %v2652
    %5747 = vmatprep.subr.bf16.mxu0 %v2637
    %5748 = vmatpush2.bf16.msra.mxu0 %v2636
    %5749 = vmatprep.subr.bf16.mxu0 %v2621
    %5750 = vmatpush2.bf16.msra.mxu0 %v2620
    %5751 = vmatprep.subr.bf16.mxu0 %v2605
    %5752 = vmatpush2.bf16.msra.mxu0 %v2604
    %5753 = vmatprep.mubr.bf16.mxu0 %v5161
    %5754 = vmatmul.mubr.bf16.gmra.mxu0 %v5160
    %v5755 = vpop.f32.mrf.mxu0
    %v5756 = vadd.f32 %v5713, %v5755
    %v5757 = vpop.f32.mrf.mxu0
    %v5758 = vadd.f32 %v5715, %v5757
    %v5759 = vpop.f32.mrf.mxu0
    %v5760 = vadd.f32 %v5717, %v5759
    %v5761 = vpop.f32.mrf.mxu0
    %v5762 = vadd.f32 %v5719, %v5761
    %5763 = vdwg.mxu0
    %5764 = vmatprep.subr.bf16.mxu0 %v2335
    %5765 = vmatpush1.bf16.msra.mxu0 %v2334
    %5766 = vmatprep.subr.bf16.mxu0 %v2319
    %5767 = vmatpush1.bf16.msra.mxu0 %v2318
    %5768 = vmatprep.subr.bf16.mxu0 %v2303
    %5769 = vmatpush1.bf16.msra.mxu0 %v2302
    %5770 = vmatprep.subr.bf16.mxu0 %v2287
    %5771 = vmatpush1.bf16.msra.mxu0 %v2286
    %5772 = vmatprep.subr.bf16.mxu0 %v2271
    %5773 = vmatpush1.bf16.msra.mxu0 %v2270
    %5774 = vmatprep.subr.bf16.mxu0 %v2255
    %5775 = vmatpush1.bf16.msra.mxu0 %v2254
    %5776 = vmatprep.subr.bf16.mxu0 %v2239
    %5777 = vmatpush1.bf16.msra.mxu0 %v2238
    %5778 = vmatprep.subr.bf16.mxu0 %v2223
    %5779 = vmatpush1.bf16.msra.mxu0 %v2222
    %5780 = vmatprep.subr.bf16.mxu0 %v2463
    %5781 = vmatpush2.bf16.msra.mxu0 %v2462
    %5782 = vmatprep.subr.bf16.mxu0 %v2447
    %5783 = vmatpush2.bf16.msra.mxu0 %v2446
    %5784 = vmatprep.subr.bf16.mxu0 %v2431
    %5785 = vmatpush2.bf16.msra.mxu0 %v2430
    %5786 = vmatprep.subr.bf16.mxu0 %v2415
    %5787 = vmatpush2.bf16.msra.mxu0 %v2414
    %5788 = vmatprep.subr.bf16.mxu0 %v2399
    %5789 = vmatpush2.bf16.msra.mxu0 %v2398
    %5790 = vmatprep.subr.bf16.mxu0 %v2383
    %5791 = vmatpush2.bf16.msra.mxu0 %v2382
    %5792 = vmatprep.subr.bf16.mxu0 %v2367
    %5793 = vmatpush2.bf16.msra.mxu0 %v2366
    %5794 = vmatprep.subr.bf16.mxu0 %v2351
    %5795 = vmatpush2.bf16.msra.mxu0 %v2350
    %5796 = vmatprep.mubr.bf16.mxu0 %v5159
    %5797 = vmatmul.mubr.bf16.gmra.mxu0 %v5158
    %v5798 = vpop.f32.mrf.mxu0
    %v5799 = vadd.f32 0.0, %v5798
    %v5800 = vpop.f32.mrf.mxu0
    %v5801 = vadd.f32 0.0, %v5800
    %v5802 = vpop.f32.mrf.mxu0
    %v5803 = vadd.f32 0.0, %v5802
    %v5804 = vpop.f32.mrf.mxu0
    %v5805 = vadd.f32 0.0, %v5804
    %5806 = vdwg.mxu0
    %5807 = vmatprep.subr.bf16.mxu0 %v2591
    %5808 = vmatpush1.bf16.msra.mxu0 %v2590
    %5809 = vmatprep.subr.bf16.mxu0 %v2575
    %5810 = vmatpush1.bf16.msra.mxu0 %v2574
    %5811 = vmatprep.subr.bf16.mxu0 %v2559
    %5812 = vmatpush1.bf16.msra.mxu0 %v2558
    %5813 = vmatprep.subr.bf16.mxu0 %v2543
    %5814 = vmatpush1.bf16.msra.mxu0 %v2542
    %5815 = vmatprep.subr.bf16.mxu0 %v2527
    %5816 = vmatpush1.bf16.msra.mxu0 %v2526
    %5817 = vmatprep.subr.bf16.mxu0 %v2511
    %5818 = vmatpush1.bf16.msra.mxu0 %v2510
    %5819 = vmatprep.subr.bf16.mxu0 %v2495
    %5820 = vmatpush1.bf16.msra.mxu0 %v2494
    %5821 = vmatprep.subr.bf16.mxu0 %v2479
    %5822 = vmatpush1.bf16.msra.mxu0 %v2478
    %5823 = vmatprep.subr.bf16.mxu0 %v2719
    %5824 = vmatpush2.bf16.msra.mxu0 %v2718
    %5825 = vmatprep.subr.bf16.mxu0 %v2703
    %5826 = vmatpush2.bf16.msra.mxu0 %v2702
    %5827 = vmatprep.subr.bf16.mxu0 %v2687
    %5828 = vmatpush2.bf16.msra.mxu0 %v2686
    %5829 = vmatprep.subr.bf16.mxu0 %v2671
    %5830 = vmatpush2.bf16.msra.mxu0 %v2670
    %5831 = vmatprep.subr.bf16.mxu0 %v2655
    %5832 = vmatpush2.bf16.msra.mxu0 %v2654
    %5833 = vmatprep.subr.bf16.mxu0 %v2639
    %5834 = vmatpush2.bf16.msra.mxu0 %v2638
    %5835 = vmatprep.subr.bf16.mxu0 %v2623
    %5836 = vmatpush2.bf16.msra.mxu0 %v2622
    %5837 = vmatprep.subr.bf16.mxu0 %v2607
    %5838 = vmatpush2.bf16.msra.mxu0 %v2606
    %5839 = vmatprep.mubr.bf16.mxu0 %v5161
    %5840 = vmatmul.mubr.bf16.gmra.mxu0 %v5160
    %v5841 = vpop.f32.mrf.mxu0
    %v5842 = vadd.f32 %v5799, %v5841
    %v5843 = vpop.f32.mrf.mxu0
    %v5844 = vadd.f32 %v5801, %v5843
    %v5845 = vpop.f32.mrf.mxu0
    %v5846 = vadd.f32 %v5803, %v5845
    %v5847 = vpop.f32.mrf.mxu0
    %v5848 = vadd.f32 %v5805, %v5847
    %5849 = vdwg.mxu0
    %v5850 = vadd.f32 %v5126, %v5240
    %v5851 = vadd.f32 %v5127, %v5242
    %v5852 = vadd.f32 %v5128, %v5326
    %v5853 = vadd.f32 %v5129, %v5328
    %v5854 = vadd.f32 %v5130, %v5412
    %v5855 = vadd.f32 %v5131, %v5414
    %v5856 = vadd.f32 %v5132, %v5498
    %v5857 = vadd.f32 %v5133, %v5500
    %v5858 = vadd.f32 %v5134, %v5584
    %v5859 = vadd.f32 %v5135, %v5586
    %v5860 = vadd.f32 %v5136, %v5670
    %v5861 = vadd.f32 %v5137, %v5672
    %v5862 = vadd.f32 %v5138, %v5756
    %v5863 = vadd.f32 %v5139, %v5758
    %v5864 = vadd.f32 %v5140, %v5842
    %v5865 = vadd.f32 %v5141, %v5844
    %v5866 = vadd.f32 %v5142, %v5244
    %v5867 = vadd.f32 %v5143, %v5246
    %v5868 = vadd.f32 %v5144, %v5330
    %v5869 = vadd.f32 %v5145, %v5332
    %v5870 = vadd.f32 %v5146, %v5416
    %v5871 = vadd.f32 %v5147, %v5418
    %v5872 = vadd.f32 %v5148, %v5502
    %v5873 = vadd.f32 %v5149, %v5504
    %v5874 = vadd.f32 %v5150, %v5588
    %v5875 = vadd.f32 %v5151, %v5590
    %v5876 = vadd.f32 %v5152, %v5674
    %v5877 = vadd.f32 %v5153, %v5676
    %v5878 = vadd.f32 %v5154, %v5760
    %v5879 = vadd.f32 %v5155, %v5762
    %v5880 = vadd.f32 %v5156, %v5846
    %v5881 = vadd.f32 %v5157, %v5848
    %v5882 = vxor.u32 %v5850, 2147483648
    %v5883 = vxor.u32 %v5851, 2147483648
    %v5884 = vxor.u32 %v5852, 2147483648
    %v5885 = vxor.u32 %v5853, 2147483648
    %v5886 = vxor.u32 %v5866, 2147483648
    %v5887 = vxor.u32 %v5867, 2147483648
    %v5888 = vxor.u32 %v5868, 2147483648
    %v5889 = vxor.u32 %v5869, 2147483648
    %v5890 = vmul.f32 %v5882, 1.442695
    %v5891 = vpow.pop %v5890
    %v5892 = vmul.f32 %v5883, 1.442695
    %v5893 = vpow.pop %v5892
    %v5894 = vmul.f32 %v5884, 1.442695
    %v5895 = vpow.pop %v5894
    %v5896 = vmul.f32 %v5885, 1.442695
    %v5897 = vpow.pop %v5896
    %v5898 = vmul.f32 %v5886, 1.442695
    %v5899 = vpow.pop %v5898
    %v5900 = vmul.f32 %v5887, 1.442695
    %v5901 = vpow.pop %v5900
    %v5902 = vmul.f32 %v5888, 1.442695
    %v5903 = vpow.pop %v5902
    %v5904 = vmul.f32 %v5889, 1.442695
    %v5905 = vpow.pop %v5904
    %v5906 = vadd.f32 %v5891, 1.0
    %v5907 = vadd.f32 %v5893, 1.0
    %v5908 = vadd.f32 %v5895, 1.0
    %v5909 = vadd.f32 %v5897, 1.0
    %v5910 = vadd.f32 %v5899, 1.0
    %v5911 = vadd.f32 %v5901, 1.0
    %v5912 = vadd.f32 %v5903, 1.0
    %v5913 = vadd.f32 %v5905, 1.0
    %v5914 = vrcp.pop %v5906
    %v5915 = vmul.f32 1.0, %v5914
    %v5916 = vrcp.pop %v5907
    %v5917 = vmul.f32 1.0, %v5916
    %v5918 = vrcp.pop %v5908
    %v5919 = vmul.f32 1.0, %v5918
    %v5920 = vrcp.pop %v5909
    %v5921 = vmul.f32 1.0, %v5920
    %v5922 = vrcp.pop %v5910
    %v5923 = vmul.f32 1.0, %v5922
    %v5924 = vrcp.pop %v5911
    %v5925 = vmul.f32 1.0, %v5924
    %v5926 = vrcp.pop %v5912
    %v5927 = vmul.f32 1.0, %v5926
    %v5928 = vrcp.pop %v5913
    %v5929 = vmul.f32 1.0, %v5928
    %v5930 = vxor.u32 %v5854, 2147483648
    %v5931 = vxor.u32 %v5855, 2147483648
    %v5932 = vxor.u32 %v5856, 2147483648
    %v5933 = vxor.u32 %v5857, 2147483648
    %v5934 = vxor.u32 %v5870, 2147483648
    %v5935 = vxor.u32 %v5871, 2147483648
    %v5936 = vxor.u32 %v5872, 2147483648
    %v5937 = vxor.u32 %v5873, 2147483648
    %v5938 = vmul.f32 %v5930, 1.442695
    %v5939 = vpow.pop %v5938
    %v5940 = vmul.f32 %v5931, 1.442695
    %v5941 = vpow.pop %v5940
    %v5942 = vmul.f32 %v5932, 1.442695
    %v5943 = vpow.pop %v5942
    %v5944 = vmul.f32 %v5933, 1.442695
    %v5945 = vpow.pop %v5944
    %v5946 = vmul.f32 %v5934, 1.442695
    %v5947 = vpow.pop %v5946
    %v5948 = vmul.f32 %v5935, 1.442695
    %v5949 = vpow.pop %v5948
    %v5950 = vmul.f32 %v5936, 1.442695
    %v5951 = vpow.pop %v5950
    %v5952 = vmul.f32 %v5937, 1.442695
    %v5953 = vpow.pop %v5952
    %v5954 = vadd.f32 %v5939, 1.0
    %v5955 = vadd.f32 %v5941, 1.0
    %v5956 = vadd.f32 %v5943, 1.0
    %v5957 = vadd.f32 %v5945, 1.0
    %v5958 = vadd.f32 %v5947, 1.0
    %v5959 = vadd.f32 %v5949, 1.0
    %v5960 = vadd.f32 %v5951, 1.0
    %v5961 = vadd.f32 %v5953, 1.0
    %v5962 = vrcp.pop %v5954
    %v5963 = vmul.f32 1.0, %v5962
    %v5964 = vrcp.pop %v5955
    %v5965 = vmul.f32 1.0, %v5964
    %v5966 = vrcp.pop %v5956
    %v5967 = vmul.f32 1.0, %v5966
    %v5968 = vrcp.pop %v5957
    %v5969 = vmul.f32 1.0, %v5968
    %v5970 = vrcp.pop %v5958
    %v5971 = vmul.f32 1.0, %v5970
    %v5972 = vrcp.pop %v5959
    %v5973 = vmul.f32 1.0, %v5972
    %v5974 = vrcp.pop %v5960
    %v5975 = vmul.f32 1.0, %v5974
    %v5976 = vrcp.pop %v5961
    %v5977 = vmul.f32 1.0, %v5976
    %v5978 = vtanh.pop %v5858
    %v5979 = vtanh.pop %v5859
    %v5980 = vtanh.pop %v5860
    %v5981 = vtanh.pop %v5861
    %v5982 = vtanh.pop %v5874
    %v5983 = vtanh.pop %v5875
    %v5984 = vtanh.pop %v5876
    %v5985 = vtanh.pop %v5877
    %v5986 = vxor.u32 %v5862, 2147483648
    %v5987 = vxor.u32 %v5863, 2147483648
    %v5988 = vxor.u32 %v5864, 2147483648
    %v5989 = vxor.u32 %v5865, 2147483648
    %v5990 = vxor.u32 %v5878, 2147483648
    %v5991 = vxor.u32 %v5879, 2147483648
    %v5992 = vxor.u32 %v5880, 2147483648
    %v5993 = vxor.u32 %v5881, 2147483648
    %v5994 = vmul.f32 %v5986, 1.442695
    %v5995 = vpow.pop %v5994
    %v5996 = vmul.f32 %v5987, 1.442695
    %v5997 = vpow.pop %v5996
    %v5998 = vmul.f32 %v5988, 1.442695
    %v5999 = vpow.pop %v5998
    %v6000 = vmul.f32 %v5989, 1.442695
    %v6001 = vpow.pop %v6000
    %v6002 = vmul.f32 %v5990, 1.442695
    %v6003 = vpow.pop %v6002
    %v6004 = vmul.f32 %v5991, 1.442695
    %v6005 = vpow.pop %v6004
    %v6006 = vmul.f32 %v5992, 1.442695
    %v6007 = vpow.pop %v6006
    %v6008 = vmul.f32 %v5993, 1.442695
    %v6009 = vpow.pop %v6008
    %v6010 = vadd.f32 %v5995, 1.0
    %v6011 = vadd.f32 %v5997, 1.0
    %v6012 = vadd.f32 %v5999, 1.0
    %v6013 = vadd.f32 %v6001, 1.0
    %v6014 = vadd.f32 %v6003, 1.0
    %v6015 = vadd.f32 %v6005, 1.0
    %v6016 = vadd.f32 %v6007, 1.0
    %v6017 = vadd.f32 %v6009, 1.0
    %v6018 = vrcp.pop %v6010
    %v6019 = vmul.f32 1.0, %v6018
    %v6020 = vrcp.pop %v6011
    %v6021 = vmul.f32 1.0, %v6020
    %v6022 = vrcp.pop %v6012
    %v6023 = vmul.f32 1.0, %v6022
    %v6024 = vrcp.pop %v6013
    %v6025 = vmul.f32 1.0, %v6024
    %v6026 = vrcp.pop %v6014
    %v6027 = vmul.f32 1.0, %v6026
    %v6028 = vrcp.pop %v6015
    %v6029 = vmul.f32 1.0, %v6028
    %v6030 = vrcp.pop %v6016
    %v6031 = vmul.f32 1.0, %v6030
    %v6032 = vrcp.pop %v6017
    %v6033 = vmul.f32 1.0, %v6032
    %v6034 = vmul.f32 %v5963, %v5085
    %v6035 = vmul.f32 %v5965, %v5086
    %v6036 = vmul.f32 %v5967, %v5087
    %v6037 = vmul.f32 %v5969, %v5088
    %v6038 = vmul.f32 %v5971, %v5089
    %v6039 = vmul.f32 %v5973, %v5090
    %v6040 = vmul.f32 %v5975, %v5091
    %v6041 = vmul.f32 %v5977, %v5092
    %v6042 = vmul.f32 %v5915, %v5978
    %v6043 = vmul.f32 %v5917, %v5979
    %v6044 = vmul.f32 %v5919, %v5980
    %v6045 = vmul.f32 %v5921, %v5981
    %v6046 = vmul.f32 %v5923, %v5982
    %v6047 = vmul.f32 %v5925, %v5983
    %v6048 = vmul.f32 %v5927, %v5984
    %v6049 = vmul.f32 %v5929, %v5985
    %v6050 = vadd.f32 %v6034, %v6042
    %v6051 = vadd.f32 %v6035, %v6043
    %v6052 = vadd.f32 %v6036, %v6044
    %v6053 = vadd.f32 %v6037, %v6045
    %v6054 = vadd.f32 %v6038, %v6046
    %v6055 = vadd.f32 %v6039, %v6047
    %v6056 = vadd.f32 %v6040, %v6048
    %v6057 = vadd.f32 %v6041, %v6049
    %v6058 = vtanh.pop %v6050
    %v6059 = vtanh.pop %v6051
    %v6060 = vtanh.pop %v6052
    %v6061 = vtanh.pop %v6053
    %v6062 = vtanh.pop %v6054
    %v6063 = vtanh.pop %v6055
    %v6064 = vtanh.pop %v6056
    %v6065 = vtanh.pop %v6057
    %v6066 = vmul.f32 %v6019, %v6058
    %v6067 = vmul.f32 %v6021, %v6059
    %v6068 = vmul.f32 %v6023, %v6060
    %v6069 = vmul.f32 %v6025, %v6061
    %v6070 = vmul.f32 %v6027, %v6062
    %v6071 = vmul.f32 %v6029, %v6063
    %v6072 = vmul.f32 %v6031, %v6064
    %v6073 = vmul.f32 %v6033, %v6065
    %s6074 = scalar_lea.vmem [#allocation4], 384
    %v6075 = vld [vmem:[%s6074] sm:$0xff]
    %v6076 = vld [vmem:[%s6074 + $0x8] sm:$0xff]
    %v6077 = vld [vmem:[%s6074 + $0x10] sm:$0xff]
    %v6078 = vld [vmem:[%s6074 + $0x18] sm:$0xff]
    %v6079 = vld [vmem:[%s6074 + $0x20] sm:$0xff]
    %v6080 = vld [vmem:[%s6074 + $0x28] sm:$0xff]
    %v6081 = vld [vmem:[%s6074 + $0x30] sm:$0xff]
    %v6082 = vld [vmem:[%s6074 + $0x38] sm:$0xff]
    %v6083 = vld [vmem:[%s6074 + $0x40] sm:$0xff]
    %v6084 = vld [vmem:[%s6074 + $0x48] sm:$0xff]
    %v6085 = vld [vmem:[%s6074 + $0x50] sm:$0xff]
    %v6086 = vld [vmem:[%s6074 + $0x58] sm:$0xff]
    %v6087 = vld [vmem:[%s6074 + $0x60] sm:$0xff]
    %v6088 = vld [vmem:[%s6074 + $0x68] sm:$0xff]
    %v6089 = vld [vmem:[%s6074 + $0x70] sm:$0xff]
    %v6090 = vld [vmem:[%s6074 + $0x78] sm:$0xff]
    %v6091 = vunpack.c.l.bf16 %v6075
    %v6092 = vunpack.c.h.bf16 %v6075
    %v6093 = vunpack.c.l.bf16 %v6076
    %v6094 = vunpack.c.h.bf16 %v6076
    %v6095 = vunpack.c.l.bf16 %v6077
    %v6096 = vunpack.c.h.bf16 %v6077
    %v6097 = vunpack.c.l.bf16 %v6078
    %v6098 = vunpack.c.h.bf16 %v6078
    %v6099 = vunpack.c.l.bf16 %v6079
    %v6100 = vunpack.c.h.bf16 %v6079
    %v6101 = vunpack.c.l.bf16 %v6080
    %v6102 = vunpack.c.h.bf16 %v6080
    %v6103 = vunpack.c.l.bf16 %v6081
    %v6104 = vunpack.c.h.bf16 %v6081
    %v6105 = vunpack.c.l.bf16 %v6082
    %v6106 = vunpack.c.h.bf16 %v6082
    %v6107 = vunpack.c.l.bf16 %v6083
    %v6108 = vunpack.c.h.bf16 %v6083
    %v6109 = vunpack.c.l.bf16 %v6084
    %v6110 = vunpack.c.h.bf16 %v6084
    %v6111 = vunpack.c.l.bf16 %v6085
    %v6112 = vunpack.c.h.bf16 %v6085
    %v6113 = vunpack.c.l.bf16 %v6086
    %v6114 = vunpack.c.h.bf16 %v6086
    %v6115 = vunpack.c.l.bf16 %v6087
    %v6116 = vunpack.c.h.bf16 %v6087
    %v6117 = vunpack.c.l.bf16 %v6088
    %v6118 = vunpack.c.h.bf16 %v6088
    %v6119 = vunpack.c.l.bf16 %v6089
    %v6120 = vunpack.c.h.bf16 %v6089
    %v6121 = vunpack.c.l.bf16 %v6090
    %v6122 = vunpack.c.h.bf16 %v6090
    %v6123 = vpack.c.bf16 %v6070, %v6066
    %v6124 = vpack.c.bf16 %v6071, %v6067
    %v6125 = vpack.c.bf16 %v6072, %v6068
    %v6126 = vpack.c.bf16 %v6073, %v6069
    %6127 = vmatprep.subr.bf16.mxu0 %v2321
    %6128 = vmatpush1.bf16.msra.mxu0 %v2320
    %6129 = vmatprep.subr.bf16.mxu0 %v2305
    %6130 = vmatpush1.bf16.msra.mxu0 %v2304
    %6131 = vmatprep.subr.bf16.mxu0 %v2289
    %6132 = vmatpush1.bf16.msra.mxu0 %v2288
    %6133 = vmatprep.subr.bf16.mxu0 %v2273
    %6134 = vmatpush1.bf16.msra.mxu0 %v2272
    %6135 = vmatprep.subr.bf16.mxu0 %v2257
    %6136 = vmatpush1.bf16.msra.mxu0 %v2256
    %6137 = vmatprep.subr.bf16.mxu0 %v2241
    %6138 = vmatpush1.bf16.msra.mxu0 %v2240
    %6139 = vmatprep.subr.bf16.mxu0 %v2225
    %6140 = vmatpush1.bf16.msra.mxu0 %v2224
    %6141 = vmatprep.subr.bf16.mxu0 %v2209
    %6142 = vmatpush1.bf16.msra.mxu0 %v2208
    %6143 = vmatprep.subr.bf16.mxu0 %v2449
    %6144 = vmatpush2.bf16.msra.mxu0 %v2448
    %6145 = vmatprep.subr.bf16.mxu0 %v2433
    %6146 = vmatpush2.bf16.msra.mxu0 %v2432
    %6147 = vmatprep.subr.bf16.mxu0 %v2417
    %6148 = vmatpush2.bf16.msra.mxu0 %v2416
    %6149 = vmatprep.subr.bf16.mxu0 %v2401
    %6150 = vmatpush2.bf16.msra.mxu0 %v2400
    %6151 = vmatprep.subr.bf16.mxu0 %v2385
    %6152 = vmatpush2.bf16.msra.mxu0 %v2384
    %6153 = vmatprep.subr.bf16.mxu0 %v2369
    %6154 = vmatpush2.bf16.msra.mxu0 %v2368
    %6155 = vmatprep.subr.bf16.mxu0 %v2353
    %6156 = vmatpush2.bf16.msra.mxu0 %v2352
    %6157 = vmatprep.subr.bf16.mxu0 %v2337
    %6158 = vmatpush2.bf16.msra.mxu0 %v2336
    %6159 = vmatprep.mubr.bf16.mxu0 %v6124
    %6160 = vmatmul.mubr.bf16.gmra.mxu0 %v6123
    %v6161 = vpop.f32.mrf.mxu0
    %v6162 = vadd.f32 0.0, %v6161
    %v6163 = vpop.f32.mrf.mxu0
    %v6164 = vadd.f32 0.0, %v6163
    %v6165 = vpop.f32.mrf.mxu0
    %v6166 = vadd.f32 0.0, %v6165
    %v6167 = vpop.f32.mrf.mxu0
    %v6168 = vadd.f32 0.0, %v6167
    %6169 = vdwg.mxu0
    %6170 = vmatprep.subr.bf16.mxu0 %v2577
    %6171 = vmatpush1.bf16.msra.mxu0 %v2576
    %6172 = vmatprep.subr.bf16.mxu0 %v2561
    %6173 = vmatpush1.bf16.msra.mxu0 %v2560
    %6174 = vmatprep.subr.bf16.mxu0 %v2545
    %6175 = vmatpush1.bf16.msra.mxu0 %v2544
    %6176 = vmatprep.subr.bf16.mxu0 %v2529
    %6177 = vmatpush1.bf16.msra.mxu0 %v2528
    %6178 = vmatprep.subr.bf16.mxu0 %v2513
    %6179 = vmatpush1.bf16.msra.mxu0 %v2512
    %6180 = vmatprep.subr.bf16.mxu0 %v2497
    %6181 = vmatpush1.bf16.msra.mxu0 %v2496
    %6182 = vmatprep.subr.bf16.mxu0 %v2481
    %6183 = vmatpush1.bf16.msra.mxu0 %v2480
    %6184 = vmatprep.subr.bf16.mxu0 %v2465
    %6185 = vmatpush1.bf16.msra.mxu0 %v2464
    %6186 = vmatprep.subr.bf16.mxu0 %v2705
    %6187 = vmatpush2.bf16.msra.mxu0 %v2704
    %6188 = vmatprep.subr.bf16.mxu0 %v2689
    %6189 = vmatpush2.bf16.msra.mxu0 %v2688
    %6190 = vmatprep.subr.bf16.mxu0 %v2673
    %6191 = vmatpush2.bf16.msra.mxu0 %v2672
    %6192 = vmatprep.subr.bf16.mxu0 %v2657
    %6193 = vmatpush2.bf16.msra.mxu0 %v2656
    %6194 = vmatprep.subr.bf16.mxu0 %v2641
    %6195 = vmatpush2.bf16.msra.mxu0 %v2640
    %6196 = vmatprep.subr.bf16.mxu0 %v2625
    %6197 = vmatpush2.bf16.msra.mxu0 %v2624
    %6198 = vmatprep.subr.bf16.mxu0 %v2609
    %6199 = vmatpush2.bf16.msra.mxu0 %v2608
    %6200 = vmatprep.subr.bf16.mxu0 %v2593
    %6201 = vmatpush2.bf16.msra.mxu0 %v2592
    %6202 = vmatprep.mubr.bf16.mxu0 %v6126
    %6203 = vmatmul.mubr.bf16.gmra.mxu0 %v6125
    %v6204 = vpop.f32.mrf.mxu0
    %v6205 = vadd.f32 %v6162, %v6204
    %v6206 = vpop.f32.mrf.mxu0
    %v6207 = vadd.f32 %v6164, %v6206
    %v6208 = vpop.f32.mrf.mxu0
    %v6209 = vadd.f32 %v6166, %v6208
    %v6210 = vpop.f32.mrf.mxu0
    %v6211 = vadd.f32 %v6168, %v6210
    %6212 = vdwg.mxu0
    %6213 = vmatprep.subr.bf16.mxu0 %v2323
    %6214 = vmatpush1.bf16.msra.mxu0 %v2322
    %6215 = vmatprep.subr.bf16.mxu0 %v2307
    %6216 = vmatpush1.bf16.msra.mxu0 %v2306
    %6217 = vmatprep.subr.bf16.mxu0 %v2291
    %6218 = vmatpush1.bf16.msra.mxu0 %v2290
    %6219 = vmatprep.subr.bf16.mxu0 %v2275
    %6220 = vmatpush1.bf16.msra.mxu0 %v2274
    %6221 = vmatprep.subr.bf16.mxu0 %v2259
    %6222 = vmatpush1.bf16.msra.mxu0 %v2258
    %6223 = vmatprep.subr.bf16.mxu0 %v2243
    %6224 = vmatpush1.bf16.msra.mxu0 %v2242
    %6225 = vmatprep.subr.bf16.mxu0 %v2227
    %6226 = vmatpush1.bf16.msra.mxu0 %v2226
    %6227 = vmatprep.subr.bf16.mxu0 %v2211
    %6228 = vmatpush1.bf16.msra.mxu0 %v2210
    %6229 = vmatprep.subr.bf16.mxu0 %v2451
    %6230 = vmatpush2.bf16.msra.mxu0 %v2450
    %6231 = vmatprep.subr.bf16.mxu0 %v2435
    %6232 = vmatpush2.bf16.msra.mxu0 %v2434
    %6233 = vmatprep.subr.bf16.mxu0 %v2419
    %6234 = vmatpush2.bf16.msra.mxu0 %v2418
    %6235 = vmatprep.subr.bf16.mxu0 %v2403
    %6236 = vmatpush2.bf16.msra.mxu0 %v2402
    %6237 = vmatprep.subr.bf16.mxu0 %v2387
    %6238 = vmatpush2.bf16.msra.mxu0 %v2386
    %6239 = vmatprep.subr.bf16.mxu0 %v2371
    %6240 = vmatpush2.bf16.msra.mxu0 %v2370
    %6241 = vmatprep.subr.bf16.mxu0 %v2355
    %6242 = vmatpush2.bf16.msra.mxu0 %v2354
    %6243 = vmatprep.subr.bf16.mxu0 %v2339
    %6244 = vmatpush2.bf16.msra.mxu0 %v2338
    %6245 = vmatprep.mubr.bf16.mxu0 %v6124
    %6246 = vmatmul.mubr.bf16.gmra.mxu0 %v6123
    %v6247 = vpop.f32.mrf.mxu0
    %v6248 = vadd.f32 0.0, %v6247
    %v6249 = vpop.f32.mrf.mxu0
    %v6250 = vadd.f32 0.0, %v6249
    %v6251 = vpop.f32.mrf.mxu0
    %v6252 = vadd.f32 0.0, %v6251
    %v6253 = vpop.f32.mrf.mxu0
    %v6254 = vadd.f32 0.0, %v6253
    %6255 = vdwg.mxu0
    %6256 = vmatprep.subr.bf16.mxu0 %v2579
    %6257 = vmatpush1.bf16.msra.mxu0 %v2578
    %6258 = vmatprep.subr.bf16.mxu0 %v2563
    %6259 = vmatpush1.bf16.msra.mxu0 %v2562
    %6260 = vmatprep.subr.bf16.mxu0 %v2547
    %6261 = vmatpush1.bf16.msra.mxu0 %v2546
    %6262 = vmatprep.subr.bf16.mxu0 %v2531
    %6263 = vmatpush1.bf16.msra.mxu0 %v2530
    %6264 = vmatprep.subr.bf16.mxu0 %v2515
    %6265 = vmatpush1.bf16.msra.mxu0 %v2514
    %6266 = vmatprep.subr.bf16.mxu0 %v2499
    %6267 = vmatpush1.bf16.msra.mxu0 %v2498
    %6268 = vmatprep.subr.bf16.mxu0 %v2483
    %6269 = vmatpush1.bf16.msra.mxu0 %v2482
    %6270 = vmatprep.subr.bf16.mxu0 %v2467
    %6271 = vmatpush1.bf16.msra.mxu0 %v2466
    %6272 = vmatprep.subr.bf16.mxu0 %v2707
    %6273 = vmatpush2.bf16.msra.mxu0 %v2706
    %6274 = vmatprep.subr.bf16.mxu0 %v2691
    %6275 = vmatpush2.bf16.msra.mxu0 %v2690
    %6276 = vmatprep.subr.bf16.mxu0 %v2675
    %6277 = vmatpush2.bf16.msra.mxu0 %v2674
    %6278 = vmatprep.subr.bf16.mxu0 %v2659
    %6279 = vmatpush2.bf16.msra.mxu0 %v2658
    %6280 = vmatprep.subr.bf16.mxu0 %v2643
    %6281 = vmatpush2.bf16.msra.mxu0 %v2642
    %6282 = vmatprep.subr.bf16.mxu0 %v2627
    %6283 = vmatpush2.bf16.msra.mxu0 %v2626
    %6284 = vmatprep.subr.bf16.mxu0 %v2611
    %6285 = vmatpush2.bf16.msra.mxu0 %v2610
    %6286 = vmatprep.subr.bf16.mxu0 %v2595
    %6287 = vmatpush2.bf16.msra.mxu0 %v2594
    %6288 = vmatprep.mubr.bf16.mxu0 %v6126
    %6289 = vmatmul.mubr.bf16.gmra.mxu0 %v6125
    %v6290 = vpop.f32.mrf.mxu0
    %v6291 = vadd.f32 %v6248, %v6290
    %v6292 = vpop.f32.mrf.mxu0
    %v6293 = vadd.f32 %v6250, %v6292
    %v6294 = vpop.f32.mrf.mxu0
    %v6295 = vadd.f32 %v6252, %v6294
    %v6296 = vpop.f32.mrf.mxu0
    %v6297 = vadd.f32 %v6254, %v6296
    %6298 = vdwg.mxu0
    %6299 = vmatprep.subr.bf16.mxu0 %v2325
    %6300 = vmatpush1.bf16.msra.mxu0 %v2324
    %6301 = vmatprep.subr.bf16.mxu0 %v2309
    %6302 = vmatpush1.bf16.msra.mxu0 %v2308
    %6303 = vmatprep.subr.bf16.mxu0 %v2293
    %6304 = vmatpush1.bf16.msra.mxu0 %v2292
    %6305 = vmatprep.subr.bf16.mxu0 %v2277
    %6306 = vmatpush1.bf16.msra.mxu0 %v2276
    %6307 = vmatprep.subr.bf16.mxu0 %v2261
    %6308 = vmatpush1.bf16.msra.mxu0 %v2260
    %6309 = vmatprep.subr.bf16.mxu0 %v2245
    %6310 = vmatpush1.bf16.msra.mxu0 %v2244
    %6311 = vmatprep.subr.bf16.mxu0 %v2229
    %6312 = vmatpush1.bf16.msra.mxu0 %v2228
    %6313 = vmatprep.subr.bf16.mxu0 %v2213
    %6314 = vmatpush1.bf16.msra.mxu0 %v2212
    %6315 = vmatprep.subr.bf16.mxu0 %v2453
    %6316 = vmatpush2.bf16.msra.mxu0 %v2452
    %6317 = vmatprep.subr.bf16.mxu0 %v2437
    %6318 = vmatpush2.bf16.msra.mxu0 %v2436
    %6319 = vmatprep.subr.bf16.mxu0 %v2421
    %6320 = vmatpush2.bf16.msra.mxu0 %v2420
    %6321 = vmatprep.subr.bf16.mxu0 %v2405
    %6322 = vmatpush2.bf16.msra.mxu0 %v2404
    %6323 = vmatprep.subr.bf16.mxu0 %v2389
    %6324 = vmatpush2.bf16.msra.mxu0 %v2388
    %6325 = vmatprep.subr.bf16.mxu0 %v2373
    %6326 = vmatpush2.bf16.msra.mxu0 %v2372
    %6327 = vmatprep.subr.bf16.mxu0 %v2357
    %6328 = vmatpush2.bf16.msra.mxu0 %v2356
    %6329 = vmatprep.subr.bf16.mxu0 %v2341
    %6330 = vmatpush2.bf16.msra.mxu0 %v2340
    %6331 = vmatprep.mubr.bf16.mxu0 %v6124
    %6332 = vmatmul.mubr.bf16.gmra.mxu0 %v6123
    %v6333 = vpop.f32.mrf.mxu0
    %v6334 = vadd.f32 0.0, %v6333
    %v6335 = vpop.f32.mrf.mxu0
    %v6336 = vadd.f32 0.0, %v6335
    %v6337 = vpop.f32.mrf.mxu0
    %v6338 = vadd.f32 0.0, %v6337
    %v6339 = vpop.f32.mrf.mxu0
    %v6340 = vadd.f32 0.0, %v6339
    %6341 = vdwg.mxu0
    %6342 = vmatprep.subr.bf16.mxu0 %v2581
    %6343 = vmatpush1.bf16.msra.mxu0 %v2580
    %6344 = vmatprep.subr.bf16.mxu0 %v2565
    %6345 = vmatpush1.bf16.msra.mxu0 %v2564
    %6346 = vmatprep.subr.bf16.mxu0 %v2549
    %6347 = vmatpush1.bf16.msra.mxu0 %v2548
    %6348 = vmatprep.subr.bf16.mxu0 %v2533
    %6349 = vmatpush1.bf16.msra.mxu0 %v2532
    %6350 = vmatprep.subr.bf16.mxu0 %v2517
    %6351 = vmatpush1.bf16.msra.mxu0 %v2516
    %6352 = vmatprep.subr.bf16.mxu0 %v2501
    %6353 = vmatpush1.bf16.msra.mxu0 %v2500
    %6354 = vmatprep.subr.bf16.mxu0 %v2485
    %6355 = vmatpush1.bf16.msra.mxu0 %v2484
    %6356 = vmatprep.subr.bf16.mxu0 %v2469
    %6357 = vmatpush1.bf16.msra.mxu0 %v2468
    %6358 = vmatprep.subr.bf16.mxu0 %v2709
    %6359 = vmatpush2.bf16.msra.mxu0 %v2708
    %6360 = vmatprep.subr.bf16.mxu0 %v2693
    %6361 = vmatpush2.bf16.msra.mxu0 %v2692
    %6362 = vmatprep.subr.bf16.mxu0 %v2677
    %6363 = vmatpush2.bf16.msra.mxu0 %v2676
    %6364 = vmatprep.subr.bf16.mxu0 %v2661
    %6365 = vmatpush2.bf16.msra.mxu0 %v2660
    %6366 = vmatprep.subr.bf16.mxu0 %v2645
    %6367 = vmatpush2.bf16.msra.mxu0 %v2644
    %6368 = vmatprep.subr.bf16.mxu0 %v2629
    %6369 = vmatpush2.bf16.msra.mxu0 %v2628
    %6370 = vmatprep.subr.bf16.mxu0 %v2613
    %6371 = vmatpush2.bf16.msra.mxu0 %v2612
    %6372 = vmatprep.subr.bf16.mxu0 %v2597
    %6373 = vmatpush2.bf16.msra.mxu0 %v2596
    %6374 = vmatprep.mubr.bf16.mxu0 %v6126
    %6375 = vmatmul.mubr.bf16.gmra.mxu0 %v6125
    %v6376 = vpop.f32.mrf.mxu0
    %v6377 = vadd.f32 %v6334, %v6376
    %v6378 = vpop.f32.mrf.mxu0
    %v6379 = vadd.f32 %v6336, %v6378
    %v6380 = vpop.f32.mrf.mxu0
    %v6381 = vadd.f32 %v6338, %v6380
    %v6382 = vpop.f32.mrf.mxu0
    %v6383 = vadd.f32 %v6340, %v6382
    %6384 = vdwg.mxu0
    %6385 = vmatprep.subr.bf16.mxu0 %v2327
    %6386 = vmatpush1.bf16.msra.mxu0 %v2326
    %6387 = vmatprep.subr.bf16.mxu0 %v2311
    %6388 = vmatpush1.bf16.msra.mxu0 %v2310
    %6389 = vmatprep.subr.bf16.mxu0 %v2295
    %6390 = vmatpush1.bf16.msra.mxu0 %v2294
    %6391 = vmatprep.subr.bf16.mxu0 %v2279
    %6392 = vmatpush1.bf16.msra.mxu0 %v2278
    %6393 = vmatprep.subr.bf16.mxu0 %v2263
    %6394 = vmatpush1.bf16.msra.mxu0 %v2262
    %6395 = vmatprep.subr.bf16.mxu0 %v2247
    %6396 = vmatpush1.bf16.msra.mxu0 %v2246
    %6397 = vmatprep.subr.bf16.mxu0 %v2231
    %6398 = vmatpush1.bf16.msra.mxu0 %v2230
    %6399 = vmatprep.subr.bf16.mxu0 %v2215
    %6400 = vmatpush1.bf16.msra.mxu0 %v2214
    %6401 = vmatprep.subr.bf16.mxu0 %v2455
    %6402 = vmatpush2.bf16.msra.mxu0 %v2454
    %6403 = vmatprep.subr.bf16.mxu0 %v2439
    %6404 = vmatpush2.bf16.msra.mxu0 %v2438
    %6405 = vmatprep.subr.bf16.mxu0 %v2423
    %6406 = vmatpush2.bf16.msra.mxu0 %v2422
    %6407 = vmatprep.subr.bf16.mxu0 %v2407
    %6408 = vmatpush2.bf16.msra.mxu0 %v2406
    %6409 = vmatprep.subr.bf16.mxu0 %v2391
    %6410 = vmatpush2.bf16.msra.mxu0 %v2390
    %6411 = vmatprep.subr.bf16.mxu0 %v2375
    %6412 = vmatpush2.bf16.msra.mxu0 %v2374
    %6413 = vmatprep.subr.bf16.mxu0 %v2359
    %6414 = vmatpush2.bf16.msra.mxu0 %v2358
    %6415 = vmatprep.subr.bf16.mxu0 %v2343
    %6416 = vmatpush2.bf16.msra.mxu0 %v2342
    %6417 = vmatprep.mubr.bf16.mxu0 %v6124
    %6418 = vmatmul.mubr.bf16.gmra.mxu0 %v6123
    %v6419 = vpop.f32.mrf.mxu0
    %v6420 = vadd.f32 0.0, %v6419
    %v6421 = vpop.f32.mrf.mxu0
    %v6422 = vadd.f32 0.0, %v6421
    %v6423 = vpop.f32.mrf.mxu0
    %v6424 = vadd.f32 0.0, %v6423
    %v6425 = vpop.f32.mrf.mxu0
    %v6426 = vadd.f32 0.0, %v6425
    %6427 = vdwg.mxu0
    %6428 = vmatprep.subr.bf16.mxu0 %v2583
    %6429 = vmatpush1.bf16.msra.mxu0 %v2582
    %6430 = vmatprep.subr.bf16.mxu0 %v2567
    %6431 = vmatpush1.bf16.msra.mxu0 %v2566
    %6432 = vmatprep.subr.bf16.mxu0 %v2551
    %6433 = vmatpush1.bf16.msra.mxu0 %v2550
    %6434 = vmatprep.subr.bf16.mxu0 %v2535
    %6435 = vmatpush1.bf16.msra.mxu0 %v2534
    %6436 = vmatprep.subr.bf16.mxu0 %v2519
    %6437 = vmatpush1.bf16.msra.mxu0 %v2518
    %6438 = vmatprep.subr.bf16.mxu0 %v2503
    %6439 = vmatpush1.bf16.msra.mxu0 %v2502
    %6440 = vmatprep.subr.bf16.mxu0 %v2487
    %6441 = vmatpush1.bf16.msra.mxu0 %v2486
    %6442 = vmatprep.subr.bf16.mxu0 %v2471
    %6443 = vmatpush1.bf16.msra.mxu0 %v2470
    %6444 = vmatprep.subr.bf16.mxu0 %v2711
    %6445 = vmatpush2.bf16.msra.mxu0 %v2710
    %6446 = vmatprep.subr.bf16.mxu0 %v2695
    %6447 = vmatpush2.bf16.msra.mxu0 %v2694
    %6448 = vmatprep.subr.bf16.mxu0 %v2679
    %6449 = vmatpush2.bf16.msra.mxu0 %v2678
    %6450 = vmatprep.subr.bf16.mxu0 %v2663
    %6451 = vmatpush2.bf16.msra.mxu0 %v2662
    %6452 = vmatprep.subr.bf16.mxu0 %v2647
    %6453 = vmatpush2.bf16.msra.mxu0 %v2646
    %6454 = vmatprep.subr.bf16.mxu0 %v2631
    %6455 = vmatpush2.bf16.msra.mxu0 %v2630
    %6456 = vmatprep.subr.bf16.mxu0 %v2615
    %6457 = vmatpush2.bf16.msra.mxu0 %v2614
    %6458 = vmatprep.subr.bf16.mxu0 %v2599
    %6459 = vmatpush2.bf16.msra.mxu0 %v2598
    %6460 = vmatprep.mubr.bf16.mxu0 %v6126
    %6461 = vmatmul.mubr.bf16.gmra.mxu0 %v6125
    %v6462 = vpop.f32.mrf.mxu0
    %v6463 = vadd.f32 %v6420, %v6462
    %v6464 = vpop.f32.mrf.mxu0
    %v6465 = vadd.f32 %v6422, %v6464
    %v6466 = vpop.f32.mrf.mxu0
    %v6467 = vadd.f32 %v6424, %v6466
    %v6468 = vpop.f32.mrf.mxu0
    %v6469 = vadd.f32 %v6426, %v6468
    %6470 = vdwg.mxu0
    %6471 = vmatprep.subr.bf16.mxu0 %v2329
    %6472 = vmatpush1.bf16.msra.mxu0 %v2328
    %6473 = vmatprep.subr.bf16.mxu0 %v2313
    %6474 = vmatpush1.bf16.msra.mxu0 %v2312
    %6475 = vmatprep.subr.bf16.mxu0 %v2297
    %6476 = vmatpush1.bf16.msra.mxu0 %v2296
    %6477 = vmatprep.subr.bf16.mxu0 %v2281
    %6478 = vmatpush1.bf16.msra.mxu0 %v2280
    %6479 = vmatprep.subr.bf16.mxu0 %v2265
    %6480 = vmatpush1.bf16.msra.mxu0 %v2264
    %6481 = vmatprep.subr.bf16.mxu0 %v2249
    %6482 = vmatpush1.bf16.msra.mxu0 %v2248
    %6483 = vmatprep.subr.bf16.mxu0 %v2233
    %6484 = vmatpush1.bf16.msra.mxu0 %v2232
    %6485 = vmatprep.subr.bf16.mxu0 %v2217
    %6486 = vmatpush1.bf16.msra.mxu0 %v2216
    %6487 = vmatprep.subr.bf16.mxu0 %v2457
    %6488 = vmatpush2.bf16.msra.mxu0 %v2456
    %6489 = vmatprep.subr.bf16.mxu0 %v2441
    %6490 = vmatpush2.bf16.msra.mxu0 %v2440
    %6491 = vmatprep.subr.bf16.mxu0 %v2425
    %6492 = vmatpush2.bf16.msra.mxu0 %v2424
    %6493 = vmatprep.subr.bf16.mxu0 %v2409
    %6494 = vmatpush2.bf16.msra.mxu0 %v2408
    %6495 = vmatprep.subr.bf16.mxu0 %v2393
    %6496 = vmatpush2.bf16.msra.mxu0 %v2392
    %6497 = vmatprep.subr.bf16.mxu0 %v2377
    %6498 = vmatpush2.bf16.msra.mxu0 %v2376
    %6499 = vmatprep.subr.bf16.mxu0 %v2361
    %6500 = vmatpush2.bf16.msra.mxu0 %v2360
    %6501 = vmatprep.subr.bf16.mxu0 %v2345
    %6502 = vmatpush2.bf16.msra.mxu0 %v2344
    %6503 = vmatprep.mubr.bf16.mxu0 %v6124
    %6504 = vmatmul.mubr.bf16.gmra.mxu0 %v6123
    %v6505 = vpop.f32.mrf.mxu0
    %v6506 = vadd.f32 0.0, %v6505
    %v6507 = vpop.f32.mrf.mxu0
    %v6508 = vadd.f32 0.0, %v6507
    %v6509 = vpop.f32.mrf.mxu0
    %v6510 = vadd.f32 0.0, %v6509
    %v6511 = vpop.f32.mrf.mxu0
    %v6512 = vadd.f32 0.0, %v6511
    %6513 = vdwg.mxu0
    %6514 = vmatprep.subr.bf16.mxu0 %v2585
    %6515 = vmatpush1.bf16.msra.mxu0 %v2584
    %6516 = vmatprep.subr.bf16.mxu0 %v2569
    %6517 = vmatpush1.bf16.msra.mxu0 %v2568
    %6518 = vmatprep.subr.bf16.mxu0 %v2553
    %6519 = vmatpush1.bf16.msra.mxu0 %v2552
    %6520 = vmatprep.subr.bf16.mxu0 %v2537
    %6521 = vmatpush1.bf16.msra.mxu0 %v2536
    %6522 = vmatprep.subr.bf16.mxu0 %v2521
    %6523 = vmatpush1.bf16.msra.mxu0 %v2520
    %6524 = vmatprep.subr.bf16.mxu0 %v2505
    %6525 = vmatpush1.bf16.msra.mxu0 %v2504
    %6526 = vmatprep.subr.bf16.mxu0 %v2489
    %6527 = vmatpush1.bf16.msra.mxu0 %v2488
    %6528 = vmatprep.subr.bf16.mxu0 %v2473
    %6529 = vmatpush1.bf16.msra.mxu0 %v2472
    %6530 = vmatprep.subr.bf16.mxu0 %v2713
    %6531 = vmatpush2.bf16.msra.mxu0 %v2712
    %6532 = vmatprep.subr.bf16.mxu0 %v2697
    %6533 = vmatpush2.bf16.msra.mxu0 %v2696
    %6534 = vmatprep.subr.bf16.mxu0 %v2681
    %6535 = vmatpush2.bf16.msra.mxu0 %v2680
    %6536 = vmatprep.subr.bf16.mxu0 %v2665
    %6537 = vmatpush2.bf16.msra.mxu0 %v2664
    %6538 = vmatprep.subr.bf16.mxu0 %v2649
    %6539 = vmatpush2.bf16.msra.mxu0 %v2648
    %6540 = vmatprep.subr.bf16.mxu0 %v2633
    %6541 = vmatpush2.bf16.msra.mxu0 %v2632
    %6542 = vmatprep.subr.bf16.mxu0 %v2617
    %6543 = vmatpush2.bf16.msra.mxu0 %v2616
    %6544 = vmatprep.subr.bf16.mxu0 %v2601
    %6545 = vmatpush2.bf16.msra.mxu0 %v2600
    %6546 = vmatprep.mubr.bf16.mxu0 %v6126
    %6547 = vmatmul.mubr.bf16.gmra.mxu0 %v6125
    %v6548 = vpop.f32.mrf.mxu0
    %v6549 = vadd.f32 %v6506, %v6548
    %v6550 = vpop.f32.mrf.mxu0
    %v6551 = vadd.f32 %v6508, %v6550
    %v6552 = vpop.f32.mrf.mxu0
    %v6553 = vadd.f32 %v6510, %v6552
    %v6554 = vpop.f32.mrf.mxu0
    %v6555 = vadd.f32 %v6512, %v6554
    %6556 = vdwg.mxu0
    %6557 = vmatprep.subr.bf16.mxu0 %v2331
    %6558 = vmatpush1.bf16.msra.mxu0 %v2330
    %6559 = vmatprep.subr.bf16.mxu0 %v2315
    %6560 = vmatpush1.bf16.msra.mxu0 %v2314
    %6561 = vmatprep.subr.bf16.mxu0 %v2299
    %6562 = vmatpush1.bf16.msra.mxu0 %v2298
    %6563 = vmatprep.subr.bf16.mxu0 %v2283
    %6564 = vmatpush1.bf16.msra.mxu0 %v2282
    %6565 = vmatprep.subr.bf16.mxu0 %v2267
    %6566 = vmatpush1.bf16.msra.mxu0 %v2266
    %6567 = vmatprep.subr.bf16.mxu0 %v2251
    %6568 = vmatpush1.bf16.msra.mxu0 %v2250
    %6569 = vmatprep.subr.bf16.mxu0 %v2235
    %6570 = vmatpush1.bf16.msra.mxu0 %v2234
    %6571 = vmatprep.subr.bf16.mxu0 %v2219
    %6572 = vmatpush1.bf16.msra.mxu0 %v2218
    %6573 = vmatprep.subr.bf16.mxu0 %v2459
    %6574 = vmatpush2.bf16.msra.mxu0 %v2458
    %6575 = vmatprep.subr.bf16.mxu0 %v2443
    %6576 = vmatpush2.bf16.msra.mxu0 %v2442
    %6577 = vmatprep.subr.bf16.mxu0 %v2427
    %6578 = vmatpush2.bf16.msra.mxu0 %v2426
    %6579 = vmatprep.subr.bf16.mxu0 %v2411
    %6580 = vmatpush2.bf16.msra.mxu0 %v2410
    %6581 = vmatprep.subr.bf16.mxu0 %v2395
    %6582 = vmatpush2.bf16.msra.mxu0 %v2394
    %6583 = vmatprep.subr.bf16.mxu0 %v2379
    %6584 = vmatpush2.bf16.msra.mxu0 %v2378
    %6585 = vmatprep.subr.bf16.mxu0 %v2363
    %6586 = vmatpush2.bf16.msra.mxu0 %v2362
    %6587 = vmatprep.subr.bf16.mxu0 %v2347
    %6588 = vmatpush2.bf16.msra.mxu0 %v2346
    %6589 = vmatprep.mubr.bf16.mxu0 %v6124
    %6590 = vmatmul.mubr.bf16.gmra.mxu0 %v6123
    %v6591 = vpop.f32.mrf.mxu0
    %v6592 = vadd.f32 0.0, %v6591
    %v6593 = vpop.f32.mrf.mxu0
    %v6594 = vadd.f32 0.0, %v6593
    %v6595 = vpop.f32.mrf.mxu0
    %v6596 = vadd.f32 0.0, %v6595
    %v6597 = vpop.f32.mrf.mxu0
    %v6598 = vadd.f32 0.0, %v6597
    %6599 = vdwg.mxu0
    %6600 = vmatprep.subr.bf16.mxu0 %v2587
    %6601 = vmatpush1.bf16.msra.mxu0 %v2586
    %6602 = vmatprep.subr.bf16.mxu0 %v2571
    %6603 = vmatpush1.bf16.msra.mxu0 %v2570
    %6604 = vmatprep.subr.bf16.mxu0 %v2555
    %6605 = vmatpush1.bf16.msra.mxu0 %v2554
    %6606 = vmatprep.subr.bf16.mxu0 %v2539
    %6607 = vmatpush1.bf16.msra.mxu0 %v2538
    %6608 = vmatprep.subr.bf16.mxu0 %v2523
    %6609 = vmatpush1.bf16.msra.mxu0 %v2522
    %6610 = vmatprep.subr.bf16.mxu0 %v2507
    %6611 = vmatpush1.bf16.msra.mxu0 %v2506
    %6612 = vmatprep.subr.bf16.mxu0 %v2491
    %6613 = vmatpush1.bf16.msra.mxu0 %v2490
    %6614 = vmatprep.subr.bf16.mxu0 %v2475
    %6615 = vmatpush1.bf16.msra.mxu0 %v2474
    %6616 = vmatprep.subr.bf16.mxu0 %v2715
    %6617 = vmatpush2.bf16.msra.mxu0 %v2714
    %6618 = vmatprep.subr.bf16.mxu0 %v2699
    %6619 = vmatpush2.bf16.msra.mxu0 %v2698
    %6620 = vmatprep.subr.bf16.mxu0 %v2683
    %6621 = vmatpush2.bf16.msra.mxu0 %v2682
    %6622 = vmatprep.subr.bf16.mxu0 %v2667
    %6623 = vmatpush2.bf16.msra.mxu0 %v2666
    %6624 = vmatprep.subr.bf16.mxu0 %v2651
    %6625 = vmatpush2.bf16.msra.mxu0 %v2650
    %6626 = vmatprep.subr.bf16.mxu0 %v2635
    %6627 = vmatpush2.bf16.msra.mxu0 %v2634
    %6628 = vmatprep.subr.bf16.mxu0 %v2619
    %6629 = vmatpush2.bf16.msra.mxu0 %v2618
    %6630 = vmatprep.subr.bf16.mxu0 %v2603
    %6631 = vmatpush2.bf16.msra.mxu0 %v2602
    %6632 = vmatprep.mubr.bf16.mxu0 %v6126
    %6633 = vmatmul.mubr.bf16.gmra.mxu0 %v6125
    %v6634 = vpop.f32.mrf.mxu0
    %v6635 = vadd.f32 %v6592, %v6634
    %v6636 = vpop.f32.mrf.mxu0
    %v6637 = vadd.f32 %v6594, %v6636
    %v6638 = vpop.f32.mrf.mxu0
    %v6639 = vadd.f32 %v6596, %v6638
    %v6640 = vpop.f32.mrf.mxu0
    %v6641 = vadd.f32 %v6598, %v6640
    %6642 = vdwg.mxu0
    %6643 = vmatprep.subr.bf16.mxu0 %v2333
    %6644 = vmatpush1.bf16.msra.mxu0 %v2332
    %6645 = vmatprep.subr.bf16.mxu0 %v2317
    %6646 = vmatpush1.bf16.msra.mxu0 %v2316
    %6647 = vmatprep.subr.bf16.mxu0 %v2301
    %6648 = vmatpush1.bf16.msra.mxu0 %v2300
    %6649 = vmatprep.subr.bf16.mxu0 %v2285
    %6650 = vmatpush1.bf16.msra.mxu0 %v2284
    %6651 = vmatprep.subr.bf16.mxu0 %v2269
    %6652 = vmatpush1.bf16.msra.mxu0 %v2268
    %6653 = vmatprep.subr.bf16.mxu0 %v2253
    %6654 = vmatpush1.bf16.msra.mxu0 %v2252
    %6655 = vmatprep.subr.bf16.mxu0 %v2237
    %6656 = vmatpush1.bf16.msra.mxu0 %v2236
    %6657 = vmatprep.subr.bf16.mxu0 %v2221
    %6658 = vmatpush1.bf16.msra.mxu0 %v2220
    %6659 = vmatprep.subr.bf16.mxu0 %v2461
    %6660 = vmatpush2.bf16.msra.mxu0 %v2460
    %6661 = vmatprep.subr.bf16.mxu0 %v2445
    %6662 = vmatpush2.bf16.msra.mxu0 %v2444
    %6663 = vmatprep.subr.bf16.mxu0 %v2429
    %6664 = vmatpush2.bf16.msra.mxu0 %v2428
    %6665 = vmatprep.subr.bf16.mxu0 %v2413
    %6666 = vmatpush2.bf16.msra.mxu0 %v2412
    %6667 = vmatprep.subr.bf16.mxu0 %v2397
    %6668 = vmatpush2.bf16.msra.mxu0 %v2396
    %6669 = vmatprep.subr.bf16.mxu0 %v2381
    %6670 = vmatpush2.bf16.msra.mxu0 %v2380
    %6671 = vmatprep.subr.bf16.mxu0 %v2365
    %6672 = vmatpush2.bf16.msra.mxu0 %v2364
    %6673 = vmatprep.subr.bf16.mxu0 %v2349
    %6674 = vmatpush2.bf16.msra.mxu0 %v2348
    %6675 = vmatprep.mubr.bf16.mxu0 %v6124
    %6676 = vmatmul.mubr.bf16.gmra.mxu0 %v6123
    %v6677 = vpop.f32.mrf.mxu0
    %v6678 = vadd.f32 0.0, %v6677
    %v6679 = vpop.f32.mrf.mxu0
    %v6680 = vadd.f32 0.0, %v6679
    %v6681 = vpop.f32.mrf.mxu0
    %v6682 = vadd.f32 0.0, %v6681
    %v6683 = vpop.f32.mrf.mxu0
    %v6684 = vadd.f32 0.0, %v6683
    %6685 = vdwg.mxu0
    %6686 = vmatprep.subr.bf16.mxu0 %v2589
    %6687 = vmatpush1.bf16.msra.mxu0 %v2588
    %6688 = vmatprep.subr.bf16.mxu0 %v2573
    %6689 = vmatpush1.bf16.msra.mxu0 %v2572
    %6690 = vmatprep.subr.bf16.mxu0 %v2557
    %6691 = vmatpush1.bf16.msra.mxu0 %v2556
    %6692 = vmatprep.subr.bf16.mxu0 %v2541
    %6693 = vmatpush1.bf16.msra.mxu0 %v2540
    %6694 = vmatprep.subr.bf16.mxu0 %v2525
    %6695 = vmatpush1.bf16.msra.mxu0 %v2524
    %6696 = vmatprep.subr.bf16.mxu0 %v2509
    %6697 = vmatpush1.bf16.msra.mxu0 %v2508
    %6698 = vmatprep.subr.bf16.mxu0 %v2493
    %6699 = vmatpush1.bf16.msra.mxu0 %v2492
    %6700 = vmatprep.subr.bf16.mxu0 %v2477
    %6701 = vmatpush1.bf16.msra.mxu0 %v2476
    %6702 = vmatprep.subr.bf16.mxu0 %v2717
    %6703 = vmatpush2.bf16.msra.mxu0 %v2716
    %6704 = vmatprep.subr.bf16.mxu0 %v2701
    %6705 = vmatpush2.bf16.msra.mxu0 %v2700
    %6706 = vmatprep.subr.bf16.mxu0 %v2685
    %6707 = vmatpush2.bf16.msra.mxu0 %v2684
    %6708 = vmatprep.subr.bf16.mxu0 %v2669
    %6709 = vmatpush2.bf16.msra.mxu0 %v2668
    %6710 = vmatprep.subr.bf16.mxu0 %v2653
    %6711 = vmatpush2.bf16.msra.mxu0 %v2652
    %6712 = vmatprep.subr.bf16.mxu0 %v2637
    %6713 = vmatpush2.bf16.msra.mxu0 %v2636
    %6714 = vmatprep.subr.bf16.mxu0 %v2621
    %6715 = vmatpush2.bf16.msra.mxu0 %v2620
    %6716 = vmatprep.subr.bf16.mxu0 %v2605
    %6717 = vmatpush2.bf16.msra.mxu0 %v2604
    %6718 = vmatprep.mubr.bf16.mxu0 %v6126
    %6719 = vmatmul.mubr.bf16.gmra.mxu0 %v6125
    %v6720 = vpop.f32.mrf.mxu0
    %v6721 = vadd.f32 %v6678, %v6720
    %v6722 = vpop.f32.mrf.mxu0
    %v6723 = vadd.f32 %v6680, %v6722
    %v6724 = vpop.f32.mrf.mxu0
    %v6725 = vadd.f32 %v6682, %v6724
    %v6726 = vpop.f32.mrf.mxu0
    %v6727 = vadd.f32 %v6684, %v6726
    %6728 = vdwg.mxu0
    %6729 = vmatprep.subr.bf16.mxu0 %v2335
    %6730 = vmatpush1.bf16.msra.mxu0 %v2334
    %6731 = vmatprep.subr.bf16.mxu0 %v2319
    %6732 = vmatpush1.bf16.msra.mxu0 %v2318
    %6733 = vmatprep.subr.bf16.mxu0 %v2303
    %6734 = vmatpush1.bf16.msra.mxu0 %v2302
    %6735 = vmatprep.subr.bf16.mxu0 %v2287
    %6736 = vmatpush1.bf16.msra.mxu0 %v2286
    %6737 = vmatprep.subr.bf16.mxu0 %v2271
    %6738 = vmatpush1.bf16.msra.mxu0 %v2270
    %6739 = vmatprep.subr.bf16.mxu0 %v2255
    %6740 = vmatpush1.bf16.msra.mxu0 %v2254
    %6741 = vmatprep.subr.bf16.mxu0 %v2239
    %6742 = vmatpush1.bf16.msra.mxu0 %v2238
    %6743 = vmatprep.subr.bf16.mxu0 %v2223
    %6744 = vmatpush1.bf16.msra.mxu0 %v2222
    %6745 = vmatprep.subr.bf16.mxu0 %v2463
    %6746 = vmatpush2.bf16.msra.mxu0 %v2462
    %6747 = vmatprep.subr.bf16.mxu0 %v2447
    %6748 = vmatpush2.bf16.msra.mxu0 %v2446
    %6749 = vmatprep.subr.bf16.mxu0 %v2431
    %6750 = vmatpush2.bf16.msra.mxu0 %v2430
    %6751 = vmatprep.subr.bf16.mxu0 %v2415
    %6752 = vmatpush2.bf16.msra.mxu0 %v2414
    %6753 = vmatprep.subr.bf16.mxu0 %v2399
    %6754 = vmatpush2.bf16.msra.mxu0 %v2398
    %6755 = vmatprep.subr.bf16.mxu0 %v2383
    %6756 = vmatpush2.bf16.msra.mxu0 %v2382
    %6757 = vmatprep.subr.bf16.mxu0 %v2367
    %6758 = vmatpush2.bf16.msra.mxu0 %v2366
    %6759 = vmatprep.subr.bf16.mxu0 %v2351
    %6760 = vmatpush2.bf16.msra.mxu0 %v2350
    %6761 = vmatprep.mubr.bf16.mxu0 %v6124
    %6762 = vmatmul.mubr.bf16.gmra.mxu0 %v6123
    %v6763 = vpop.f32.mrf.mxu0
    %v6764 = vadd.f32 0.0, %v6763
    %v6765 = vpop.f32.mrf.mxu0
    %v6766 = vadd.f32 0.0, %v6765
    %v6767 = vpop.f32.mrf.mxu0
    %v6768 = vadd.f32 0.0, %v6767
    %v6769 = vpop.f32.mrf.mxu0
    %v6770 = vadd.f32 0.0, %v6769
    %6771 = vdwg.mxu0
    %6772 = vmatprep.subr.bf16.mxu0 %v2591
    %6773 = vmatpush1.bf16.msra.mxu0 %v2590
    %6774 = vmatprep.subr.bf16.mxu0 %v2575
    %6775 = vmatpush1.bf16.msra.mxu0 %v2574
    %6776 = vmatprep.subr.bf16.mxu0 %v2559
    %6777 = vmatpush1.bf16.msra.mxu0 %v2558
    %6778 = vmatprep.subr.bf16.mxu0 %v2543
    %6779 = vmatpush1.bf16.msra.mxu0 %v2542
    %6780 = vmatprep.subr.bf16.mxu0 %v2527
    %6781 = vmatpush1.bf16.msra.mxu0 %v2526
    %6782 = vmatprep.subr.bf16.mxu0 %v2511
    %6783 = vmatpush1.bf16.msra.mxu0 %v2510
    %6784 = vmatprep.subr.bf16.mxu0 %v2495
    %6785 = vmatpush1.bf16.msra.mxu0 %v2494
    %6786 = vmatprep.subr.bf16.mxu0 %v2479
    %6787 = vmatpush1.bf16.msra.mxu0 %v2478
    %6788 = vmatprep.subr.bf16.mxu0 %v2719
    %6789 = vmatpush2.bf16.msra.mxu0 %v2718
    %6790 = vmatprep.subr.bf16.mxu0 %v2703
    %6791 = vmatpush2.bf16.msra.mxu0 %v2702
    %6792 = vmatprep.subr.bf16.mxu0 %v2687
    %6793 = vmatpush2.bf16.msra.mxu0 %v2686
    %6794 = vmatprep.subr.bf16.mxu0 %v2671
    %6795 = vmatpush2.bf16.msra.mxu0 %v2670
    %6796 = vmatprep.subr.bf16.mxu0 %v2655
    %6797 = vmatpush2.bf16.msra.mxu0 %v2654
    %6798 = vmatprep.subr.bf16.mxu0 %v2639
    %6799 = vmatpush2.bf16.msra.mxu0 %v2638
    %6800 = vmatprep.subr.bf16.mxu0 %v2623
    %6801 = vmatpush2.bf16.msra.mxu0 %v2622
    %6802 = vmatprep.subr.bf16.mxu0 %v2607
    %6803 = vmatpush2.bf16.msra.mxu0 %v2606
    %6804 = vmatprep.mubr.bf16.mxu0 %v6126
    %6805 = vmatmul.mubr.bf16.gmra.mxu0 %v6125
    %v6806 = vpop.f32.mrf.mxu0
    %v6807 = vadd.f32 %v6764, %v6806
    %v6808 = vpop.f32.mrf.mxu0
    %v6809 = vadd.f32 %v6766, %v6808
    %v6810 = vpop.f32.mrf.mxu0
    %v6811 = vadd.f32 %v6768, %v6810
    %v6812 = vpop.f32.mrf.mxu0
    %v6813 = vadd.f32 %v6770, %v6812
    %6814 = vdwg.mxu0
    %v6815 = vadd.f32 %v6091, %v6205
    %v6816 = vadd.f32 %v6092, %v6207
    %v6817 = vadd.f32 %v6093, %v6291
    %v6818 = vadd.f32 %v6094, %v6293
    %v6819 = vadd.f32 %v6095, %v6377
    %v6820 = vadd.f32 %v6096, %v6379
    %v6821 = vadd.f32 %v6097, %v6463
    %v6822 = vadd.f32 %v6098, %v6465
    %v6823 = vadd.f32 %v6099, %v6549
    %v6824 = vadd.f32 %v6100, %v6551
    %v6825 = vadd.f32 %v6101, %v6635
    %v6826 = vadd.f32 %v6102, %v6637
    %v6827 = vadd.f32 %v6103, %v6721
    %v6828 = vadd.f32 %v6104, %v6723
    %v6829 = vadd.f32 %v6105, %v6807
    %v6830 = vadd.f32 %v6106, %v6809
    %v6831 = vadd.f32 %v6107, %v6209
    %v6832 = vadd.f32 %v6108, %v6211
    %v6833 = vadd.f32 %v6109, %v6295
    %v6834 = vadd.f32 %v6110, %v6297
    %v6835 = vadd.f32 %v6111, %v6381
    %v6836 = vadd.f32 %v6112, %v6383
    %v6837 = vadd.f32 %v6113, %v6467
    %v6838 = vadd.f32 %v6114, %v6469
    %v6839 = vadd.f32 %v6115, %v6553
    %v6840 = vadd.f32 %v6116, %v6555
    %v6841 = vadd.f32 %v6117, %v6639
    %v6842 = vadd.f32 %v6118, %v6641
    %v6843 = vadd.f32 %v6119, %v6725
    %v6844 = vadd.f32 %v6120, %v6727
    %v6845 = vadd.f32 %v6121, %v6811
    %v6846 = vadd.f32 %v6122, %v6813
    %v6847 = vxor.u32 %v6815, 2147483648
    %v6848 = vxor.u32 %v6816, 2147483648
    %v6849 = vxor.u32 %v6817, 2147483648
    %v6850 = vxor.u32 %v6818, 2147483648
    %v6851 = vxor.u32 %v6831, 2147483648
    %v6852 = vxor.u32 %v6832, 2147483648
    %v6853 = vxor.u32 %v6833, 2147483648
    %v6854 = vxor.u32 %v6834, 2147483648
    %v6855 = vmul.f32 %v6847, 1.442695
    %v6856 = vpow.pop %v6855
    %v6857 = vmul.f32 %v6848, 1.442695
    %v6858 = vpow.pop %v6857
    %v6859 = vmul.f32 %v6849, 1.442695
    %v6860 = vpow.pop %v6859
    %v6861 = vmul.f32 %v6850, 1.442695
    %v6862 = vpow.pop %v6861
    %v6863 = vmul.f32 %v6851, 1.442695
    %v6864 = vpow.pop %v6863
    %v6865 = vmul.f32 %v6852, 1.442695
    %v6866 = vpow.pop %v6865
    %v6867 = vmul.f32 %v6853, 1.442695
    %v6868 = vpow.pop %v6867
    %v6869 = vmul.f32 %v6854, 1.442695
    %v6870 = vpow.pop %v6869
    %v6871 = vadd.f32 %v6856, 1.0
    %v6872 = vadd.f32 %v6858, 1.0
    %v6873 = vadd.f32 %v6860, 1.0
    %v6874 = vadd.f32 %v6862, 1.0
    %v6875 = vadd.f32 %v6864, 1.0
    %v6876 = vadd.f32 %v6866, 1.0
    %v6877 = vadd.f32 %v6868, 1.0
    %v6878 = vadd.f32 %v6870, 1.0
    %v6879 = vrcp.pop %v6871
    %v6880 = vmul.f32 1.0, %v6879
    %v6881 = vrcp.pop %v6872
    %v6882 = vmul.f32 1.0, %v6881
    %v6883 = vrcp.pop %v6873
    %v6884 = vmul.f32 1.0, %v6883
    %v6885 = vrcp.pop %v6874
    %v6886 = vmul.f32 1.0, %v6885
    %v6887 = vrcp.pop %v6875
    %v6888 = vmul.f32 1.0, %v6887
    %v6889 = vrcp.pop %v6876
    %v6890 = vmul.f32 1.0, %v6889
    %v6891 = vrcp.pop %v6877
    %v6892 = vmul.f32 1.0, %v6891
    %v6893 = vrcp.pop %v6878
    %v6894 = vmul.f32 1.0, %v6893
    %v6895 = vxor.u32 %v6819, 2147483648
    %v6896 = vxor.u32 %v6820, 2147483648
    %v6897 = vxor.u32 %v6821, 2147483648
    %v6898 = vxor.u32 %v6822, 2147483648
    %v6899 = vxor.u32 %v6835, 2147483648
    %v6900 = vxor.u32 %v6836, 2147483648
    %v6901 = vxor.u32 %v6837, 2147483648
    %v6902 = vxor.u32 %v6838, 2147483648
    %v6903 = vmul.f32 %v6895, 1.442695
    %v6904 = vpow.pop %v6903
    %v6905 = vmul.f32 %v6896, 1.442695
    %v6906 = vpow.pop %v6905
    %v6907 = vmul.f32 %v6897, 1.442695
    %v6908 = vpow.pop %v6907
    %v6909 = vmul.f32 %v6898, 1.442695
    %v6910 = vpow.pop %v6909
    %v6911 = vmul.f32 %v6899, 1.442695
    %v6912 = vpow.pop %v6911
    %v6913 = vmul.f32 %v6900, 1.442695
    %v6914 = vpow.pop %v6913
    %v6915 = vmul.f32 %v6901, 1.442695
    %v6916 = vpow.pop %v6915
    %v6917 = vmul.f32 %v6902, 1.442695
    %v6918 = vpow.pop %v6917
    %v6919 = vadd.f32 %v6904, 1.0
    %v6920 = vadd.f32 %v6906, 1.0
    %v6921 = vadd.f32 %v6908, 1.0
    %v6922 = vadd.f32 %v6910, 1.0
    %v6923 = vadd.f32 %v6912, 1.0
    %v6924 = vadd.f32 %v6914, 1.0
    %v6925 = vadd.f32 %v6916, 1.0
    %v6926 = vadd.f32 %v6918, 1.0
    %v6927 = vrcp.pop %v6919
    %v6928 = vmul.f32 1.0, %v6927
    %v6929 = vrcp.pop %v6920
    %v6930 = vmul.f32 1.0, %v6929
    %v6931 = vrcp.pop %v6921
    %v6932 = vmul.f32 1.0, %v6931
    %v6933 = vrcp.pop %v6922
    %v6934 = vmul.f32 1.0, %v6933
    %v6935 = vrcp.pop %v6923
    %v6936 = vmul.f32 1.0, %v6935
    %v6937 = vrcp.pop %v6924
    %v6938 = vmul.f32 1.0, %v6937
    %v6939 = vrcp.pop %v6925
    %v6940 = vmul.f32 1.0, %v6939
    %v6941 = vrcp.pop %v6926
    %v6942 = vmul.f32 1.0, %v6941
    %v6943 = vtanh.pop %v6823
    %v6944 = vtanh.pop %v6824
    %v6945 = vtanh.pop %v6825
    %v6946 = vtanh.pop %v6826
    %v6947 = vtanh.pop %v6839
    %v6948 = vtanh.pop %v6840
    %v6949 = vtanh.pop %v6841
    %v6950 = vtanh.pop %v6842
    %v6951 = vxor.u32 %v6827, 2147483648
    %v6952 = vxor.u32 %v6828, 2147483648
    %v6953 = vxor.u32 %v6829, 2147483648
    %v6954 = vxor.u32 %v6830, 2147483648
    %v6955 = vxor.u32 %v6843, 2147483648
    %v6956 = vxor.u32 %v6844, 2147483648
    %v6957 = vxor.u32 %v6845, 2147483648
    %v6958 = vxor.u32 %v6846, 2147483648
    %v6959 = vmul.f32 %v6951, 1.442695
    %v6960 = vpow.pop %v6959
    %v6961 = vmul.f32 %v6952, 1.442695
    %v6962 = vpow.pop %v6961
    %v6963 = vmul.f32 %v6953, 1.442695
    %v6964 = vpow.pop %v6963
    %v6965 = vmul.f32 %v6954, 1.442695
    %v6966 = vpow.pop %v6965
    %v6967 = vmul.f32 %v6955, 1.442695
    %v6968 = vpow.pop %v6967
    %v6969 = vmul.f32 %v6956, 1.442695
    %v6970 = vpow.pop %v6969
    %v6971 = vmul.f32 %v6957, 1.442695
    %v6972 = vpow.pop %v6971
    %v6973 = vmul.f32 %v6958, 1.442695
    %v6974 = vpow.pop %v6973
    %v6975 = vadd.f32 %v6960, 1.0
    %v6976 = vadd.f32 %v6962, 1.0
    %v6977 = vadd.f32 %v6964, 1.0
    %v6978 = vadd.f32 %v6966, 1.0
    %v6979 = vadd.f32 %v6968, 1.0
    %v6980 = vadd.f32 %v6970, 1.0
    %v6981 = vadd.f32 %v6972, 1.0
    %v6982 = vadd.f32 %v6974, 1.0
    %v6983 = vrcp.pop %v6975
    %v6984 = vmul.f32 1.0, %v6983
    %v6985 = vrcp.pop %v6976
    %v6986 = vmul.f32 1.0, %v6985
    %v6987 = vrcp.pop %v6977
    %v6988 = vmul.f32 1.0, %v6987
    %v6989 = vrcp.pop %v6978
    %v6990 = vmul.f32 1.0, %v6989
    %v6991 = vrcp.pop %v6979
    %v6992 = vmul.f32 1.0, %v6991
    %v6993 = vrcp.pop %v6980
    %v6994 = vmul.f32 1.0, %v6993
    %v6995 = vrcp.pop %v6981
    %v6996 = vmul.f32 1.0, %v6995
    %v6997 = vrcp.pop %v6982
    %v6998 = vmul.f32 1.0, %v6997
    %v6999 = vmul.f32 %v6928, %v6050
    %v7000 = vmul.f32 %v6930, %v6051
    %v7001 = vmul.f32 %v6932, %v6052
    %v7002 = vmul.f32 %v6934, %v6053
    %v7003 = vmul.f32 %v6936, %v6054
    %v7004 = vmul.f32 %v6938, %v6055
    %v7005 = vmul.f32 %v6940, %v6056
    %v7006 = vmul.f32 %v6942, %v6057
    %v7007 = vmul.f32 %v6880, %v6943
    %v7008 = vmul.f32 %v6882, %v6944
    %v7009 = vmul.f32 %v6884, %v6945
    %v7010 = vmul.f32 %v6886, %v6946
    %v7011 = vmul.f32 %v6888, %v6947
    %v7012 = vmul.f32 %v6890, %v6948
    %v7013 = vmul.f32 %v6892, %v6949
    %v7014 = vmul.f32 %v6894, %v6950
    %v7015 = vadd.f32 %v6999, %v7007
    %v7016 = vadd.f32 %v7000, %v7008
    %v7017 = vadd.f32 %v7001, %v7009
    %v7018 = vadd.f32 %v7002, %v7010
    %v7019 = vadd.f32 %v7003, %v7011
    %v7020 = vadd.f32 %v7004, %v7012
    %v7021 = vadd.f32 %v7005, %v7013
    %v7022 = vadd.f32 %v7006, %v7014
    %v7023 = vtanh.pop %v7015
    %v7024 = vtanh.pop %v7016
    %v7025 = vtanh.pop %v7017
    %v7026 = vtanh.pop %v7018
    %v7027 = vtanh.pop %v7019
    %v7028 = vtanh.pop %v7020
    %v7029 = vtanh.pop %v7021
    %v7030 = vtanh.pop %v7022
    %v7031 = vmul.f32 %v6984, %v7023
    %v7032 = vmul.f32 %v6986, %v7024
    %v7033 = vmul.f32 %v6988, %v7025
    %v7034 = vmul.f32 %v6990, %v7026
    %v7035 = vmul.f32 %v6992, %v7027
    %v7036 = vmul.f32 %v6994, %v7028
    %v7037 = vmul.f32 %v6996, %v7029
    %v7038 = vmul.f32 %v6998, %v7030
    %s7039 = scalar_lea.vmem [#allocation4], 512
    %v7040 = vld [vmem:[%s7039] sm:$0xff]
    %v7041 = vld [vmem:[%s7039 + $0x8] sm:$0xff]
    %v7042 = vld [vmem:[%s7039 + $0x10] sm:$0xff]
    %v7043 = vld [vmem:[%s7039 + $0x18] sm:$0xff]
    %v7044 = vld [vmem:[%s7039 + $0x20] sm:$0xff]
    %v7045 = vld [vmem:[%s7039 + $0x28] sm:$0xff]
    %v7046 = vld [vmem:[%s7039 + $0x30] sm:$0xff]
    %v7047 = vld [vmem:[%s7039 + $0x38] sm:$0xff]
    %v7048 = vld [vmem:[%s7039 + $0x40] sm:$0xff]
    %v7049 = vld [vmem:[%s7039 + $0x48] sm:$0xff]
    %v7050 = vld [vmem:[%s7039 + $0x50] sm:$0xff]
    %v7051 = vld [vmem:[%s7039 + $0x58] sm:$0xff]
    %v7052 = vld [vmem:[%s7039 + $0x60] sm:$0xff]
    %v7053 = vld [vmem:[%s7039 + $0x68] sm:$0xff]
    %v7054 = vld [vmem:[%s7039 + $0x70] sm:$0xff]
    %v7055 = vld [vmem:[%s7039 + $0x78] sm:$0xff]
    %v7056 = vunpack.c.l.bf16 %v7040
    %v7057 = vunpack.c.h.bf16 %v7040
    %v7058 = vunpack.c.l.bf16 %v7041
    %v7059 = vunpack.c.h.bf16 %v7041
    %v7060 = vunpack.c.l.bf16 %v7042
    %v7061 = vunpack.c.h.bf16 %v7042
    %v7062 = vunpack.c.l.bf16 %v7043
    %v7063 = vunpack.c.h.bf16 %v7043
    %v7064 = vunpack.c.l.bf16 %v7044
    %v7065 = vunpack.c.h.bf16 %v7044
    %v7066 = vunpack.c.l.bf16 %v7045
    %v7067 = vunpack.c.h.bf16 %v7045
    %v7068 = vunpack.c.l.bf16 %v7046
    %v7069 = vunpack.c.h.bf16 %v7046
    %v7070 = vunpack.c.l.bf16 %v7047
    %v7071 = vunpack.c.h.bf16 %v7047
    %v7072 = vunpack.c.l.bf16 %v7048
    %v7073 = vunpack.c.h.bf16 %v7048
    %v7074 = vunpack.c.l.bf16 %v7049
    %v7075 = vunpack.c.h.bf16 %v7049
    %v7076 = vunpack.c.l.bf16 %v7050
    %v7077 = vunpack.c.h.bf16 %v7050
    %v7078 = vunpack.c.l.bf16 %v7051
    %v7079 = vunpack.c.h.bf16 %v7051
    %v7080 = vunpack.c.l.bf16 %v7052
    %v7081 = vunpack.c.h.bf16 %v7052
    %v7082 = vunpack.c.l.bf16 %v7053
    %v7083 = vunpack.c.h.bf16 %v7053
    %v7084 = vunpack.c.l.bf16 %v7054
    %v7085 = vunpack.c.h.bf16 %v7054
    %v7086 = vunpack.c.l.bf16 %v7055
    %v7087 = vunpack.c.h.bf16 %v7055
    %v7088 = vpack.c.bf16 %v7035, %v7031
    %v7089 = vpack.c.bf16 %v7036, %v7032
    %v7090 = vpack.c.bf16 %v7037, %v7033
    %v7091 = vpack.c.bf16 %v7038, %v7034
    %7092 = vmatprep.subr.bf16.mxu0 %v2321
    %7093 = vmatpush1.bf16.msra.mxu0 %v2320
    %7094 = vmatprep.subr.bf16.mxu0 %v2305
    %7095 = vmatpush1.bf16.msra.mxu0 %v2304
    %7096 = vmatprep.subr.bf16.mxu0 %v2289
    %7097 = vmatpush1.bf16.msra.mxu0 %v2288
    %7098 = vmatprep.subr.bf16.mxu0 %v2273
    %7099 = vmatpush1.bf16.msra.mxu0 %v2272
    %7100 = vmatprep.subr.bf16.mxu0 %v2257
    %7101 = vmatpush1.bf16.msra.mxu0 %v2256
    %7102 = vmatprep.subr.bf16.mxu0 %v2241
    %7103 = vmatpush1.bf16.msra.mxu0 %v2240
    %7104 = vmatprep.subr.bf16.mxu0 %v2225
    %7105 = vmatpush1.bf16.msra.mxu0 %v2224
    %7106 = vmatprep.subr.bf16.mxu0 %v2209
    %7107 = vmatpush1.bf16.msra.mxu0 %v2208
    %7108 = vmatprep.subr.bf16.mxu0 %v2449
    %7109 = vmatpush2.bf16.msra.mxu0 %v2448
    %7110 = vmatprep.subr.bf16.mxu0 %v2433
    %7111 = vmatpush2.bf16.msra.mxu0 %v2432
    %7112 = vmatprep.subr.bf16.mxu0 %v2417
    %7113 = vmatpush2.bf16.msra.mxu0 %v2416
    %7114 = vmatprep.subr.bf16.mxu0 %v2401
    %7115 = vmatpush2.bf16.msra.mxu0 %v2400
    %7116 = vmatprep.subr.bf16.mxu0 %v2385
    %7117 = vmatpush2.bf16.msra.mxu0 %v2384
    %7118 = vmatprep.subr.bf16.mxu0 %v2369
    %7119 = vmatpush2.bf16.msra.mxu0 %v2368
    %7120 = vmatprep.subr.bf16.mxu0 %v2353
    %7121 = vmatpush2.bf16.msra.mxu0 %v2352
    %7122 = vmatprep.subr.bf16.mxu0 %v2337
    %7123 = vmatpush2.bf16.msra.mxu0 %v2336
    %7124 = vmatprep.mubr.bf16.mxu0 %v7089
    %7125 = vmatmul.mubr.bf16.gmra.mxu0 %v7088
    %v7126 = vpop.f32.mrf.mxu0
    %v7127 = vadd.f32 0.0, %v7126
    %v7128 = vpop.f32.mrf.mxu0
    %v7129 = vadd.f32 0.0, %v7128
    %v7130 = vpop.f32.mrf.mxu0
    %v7131 = vadd.f32 0.0, %v7130
    %v7132 = vpop.f32.mrf.mxu0
    %v7133 = vadd.f32 0.0, %v7132
    %7134 = vdwg.mxu0
    %7135 = vmatprep.subr.bf16.mxu0 %v2577
    %7136 = vmatpush1.bf16.msra.mxu0 %v2576
    %7137 = vmatprep.subr.bf16.mxu0 %v2561
    %7138 = vmatpush1.bf16.msra.mxu0 %v2560
    %7139 = vmatprep.subr.bf16.mxu0 %v2545
    %7140 = vmatpush1.bf16.msra.mxu0 %v2544
    %7141 = vmatprep.subr.bf16.mxu0 %v2529
    %7142 = vmatpush1.bf16.msra.mxu0 %v2528
    %7143 = vmatprep.subr.bf16.mxu0 %v2513
    %7144 = vmatpush1.bf16.msra.mxu0 %v2512
    %7145 = vmatprep.subr.bf16.mxu0 %v2497
    %7146 = vmatpush1.bf16.msra.mxu0 %v2496
    %7147 = vmatprep.subr.bf16.mxu0 %v2481
    %7148 = vmatpush1.bf16.msra.mxu0 %v2480
    %7149 = vmatprep.subr.bf16.mxu0 %v2465
    %7150 = vmatpush1.bf16.msra.mxu0 %v2464
    %7151 = vmatprep.subr.bf16.mxu0 %v2705
    %7152 = vmatpush2.bf16.msra.mxu0 %v2704
    %7153 = vmatprep.subr.bf16.mxu0 %v2689
    %7154 = vmatpush2.bf16.msra.mxu0 %v2688
    %7155 = vmatprep.subr.bf16.mxu0 %v2673
    %7156 = vmatpush2.bf16.msra.mxu0 %v2672
    %7157 = vmatprep.subr.bf16.mxu0 %v2657
    %7158 = vmatpush2.bf16.msra.mxu0 %v2656
    %7159 = vmatprep.subr.bf16.mxu0 %v2641
    %7160 = vmatpush2.bf16.msra.mxu0 %v2640
    %7161 = vmatprep.subr.bf16.mxu0 %v2625
    %7162 = vmatpush2.bf16.msra.mxu0 %v2624
    %7163 = vmatprep.subr.bf16.mxu0 %v2609
    %7164 = vmatpush2.bf16.msra.mxu0 %v2608
    %7165 = vmatprep.subr.bf16.mxu0 %v2593
    %7166 = vmatpush2.bf16.msra.mxu0 %v2592
    %7167 = vmatprep.mubr.bf16.mxu0 %v7091
    %7168 = vmatmul.mubr.bf16.gmra.mxu0 %v7090
    %v7169 = vpop.f32.mrf.mxu0
    %v7170 = vadd.f32 %v7127, %v7169
    %v7171 = vpop.f32.mrf.mxu0
    %v7172 = vadd.f32 %v7129, %v7171
    %v7173 = vpop.f32.mrf.mxu0
    %v7174 = vadd.f32 %v7131, %v7173
    %v7175 = vpop.f32.mrf.mxu0
    %v7176 = vadd.f32 %v7133, %v7175
    %7177 = vdwg.mxu0
    %7178 = vmatprep.subr.bf16.mxu0 %v2323
    %7179 = vmatpush1.bf16.msra.mxu0 %v2322
    %7180 = vmatprep.subr.bf16.mxu0 %v2307
    %7181 = vmatpush1.bf16.msra.mxu0 %v2306
    %7182 = vmatprep.subr.bf16.mxu0 %v2291
    %7183 = vmatpush1.bf16.msra.mxu0 %v2290
    %7184 = vmatprep.subr.bf16.mxu0 %v2275
    %7185 = vmatpush1.bf16.msra.mxu0 %v2274
    %7186 = vmatprep.subr.bf16.mxu0 %v2259
    %7187 = vmatpush1.bf16.msra.mxu0 %v2258
    %7188 = vmatprep.subr.bf16.mxu0 %v2243
    %7189 = vmatpush1.bf16.msra.mxu0 %v2242
    %7190 = vmatprep.subr.bf16.mxu0 %v2227
    %7191 = vmatpush1.bf16.msra.mxu0 %v2226
    %7192 = vmatprep.subr.bf16.mxu0 %v2211
    %7193 = vmatpush1.bf16.msra.mxu0 %v2210
    %7194 = vmatprep.subr.bf16.mxu0 %v2451
    %7195 = vmatpush2.bf16.msra.mxu0 %v2450
    %7196 = vmatprep.subr.bf16.mxu0 %v2435
    %7197 = vmatpush2.bf16.msra.mxu0 %v2434
    %7198 = vmatprep.subr.bf16.mxu0 %v2419
    %7199 = vmatpush2.bf16.msra.mxu0 %v2418
    %7200 = vmatprep.subr.bf16.mxu0 %v2403
    %7201 = vmatpush2.bf16.msra.mxu0 %v2402
    %7202 = vmatprep.subr.bf16.mxu0 %v2387
    %7203 = vmatpush2.bf16.msra.mxu0 %v2386
    %7204 = vmatprep.subr.bf16.mxu0 %v2371
    %7205 = vmatpush2.bf16.msra.mxu0 %v2370
    %7206 = vmatprep.subr.bf16.mxu0 %v2355
    %7207 = vmatpush2.bf16.msra.mxu0 %v2354
    %7208 = vmatprep.subr.bf16.mxu0 %v2339
    %7209 = vmatpush2.bf16.msra.mxu0 %v2338
    %7210 = vmatprep.mubr.bf16.mxu0 %v7089
    %7211 = vmatmul.mubr.bf16.gmra.mxu0 %v7088
    %v7212 = vpop.f32.mrf.mxu0
    %v7213 = vadd.f32 0.0, %v7212
    %v7214 = vpop.f32.mrf.mxu0
    %v7215 = vadd.f32 0.0, %v7214
    %v7216 = vpop.f32.mrf.mxu0
    %v7217 = vadd.f32 0.0, %v7216
    %v7218 = vpop.f32.mrf.mxu0
    %v7219 = vadd.f32 0.0, %v7218
    %7220 = vdwg.mxu0
    %7221 = vmatprep.subr.bf16.mxu0 %v2579
    %7222 = vmatpush1.bf16.msra.mxu0 %v2578
    %7223 = vmatprep.subr.bf16.mxu0 %v2563
    %7224 = vmatpush1.bf16.msra.mxu0 %v2562
    %7225 = vmatprep.subr.bf16.mxu0 %v2547
    %7226 = vmatpush1.bf16.msra.mxu0 %v2546
    %7227 = vmatprep.subr.bf16.mxu0 %v2531
    %7228 = vmatpush1.bf16.msra.mxu0 %v2530
    %7229 = vmatprep.subr.bf16.mxu0 %v2515
    %7230 = vmatpush1.bf16.msra.mxu0 %v2514
    %7231 = vmatprep.subr.bf16.mxu0 %v2499
    %7232 = vmatpush1.bf16.msra.mxu0 %v2498
    %7233 = vmatprep.subr.bf16.mxu0 %v2483
    %7234 = vmatpush1.bf16.msra.mxu0 %v2482
    %7235 = vmatprep.subr.bf16.mxu0 %v2467
    %7236 = vmatpush1.bf16.msra.mxu0 %v2466
    %7237 = vmatprep.subr.bf16.mxu0 %v2707
    %7238 = vmatpush2.bf16.msra.mxu0 %v2706
    %7239 = vmatprep.subr.bf16.mxu0 %v2691
    %7240 = vmatpush2.bf16.msra.mxu0 %v2690
    %7241 = vmatprep.subr.bf16.mxu0 %v2675
    %7242 = vmatpush2.bf16.msra.mxu0 %v2674
    %7243 = vmatprep.subr.bf16.mxu0 %v2659
    %7244 = vmatpush2.bf16.msra.mxu0 %v2658
    %7245 = vmatprep.subr.bf16.mxu0 %v2643
    %7246 = vmatpush2.bf16.msra.mxu0 %v2642
    %7247 = vmatprep.subr.bf16.mxu0 %v2627
    %7248 = vmatpush2.bf16.msra.mxu0 %v2626
    %7249 = vmatprep.subr.bf16.mxu0 %v2611
    %7250 = vmatpush2.bf16.msra.mxu0 %v2610
    %7251 = vmatprep.subr.bf16.mxu0 %v2595
    %7252 = vmatpush2.bf16.msra.mxu0 %v2594
    %7253 = vmatprep.mubr.bf16.mxu0 %v7091
    %7254 = vmatmul.mubr.bf16.gmra.mxu0 %v7090
    %v7255 = vpop.f32.mrf.mxu0
    %v7256 = vadd.f32 %v7213, %v7255
    %v7257 = vpop.f32.mrf.mxu0
    %v7258 = vadd.f32 %v7215, %v7257
    %v7259 = vpop.f32.mrf.mxu0
    %v7260 = vadd.f32 %v7217, %v7259
    %v7261 = vpop.f32.mrf.mxu0
    %v7262 = vadd.f32 %v7219, %v7261
    %7263 = vdwg.mxu0
    %7264 = vmatprep.subr.bf16.mxu0 %v2325
    %7265 = vmatpush1.bf16.msra.mxu0 %v2324
    %7266 = vmatprep.subr.bf16.mxu0 %v2309
    %7267 = vmatpush1.bf16.msra.mxu0 %v2308
    %7268 = vmatprep.subr.bf16.mxu0 %v2293
    %7269 = vmatpush1.bf16.msra.mxu0 %v2292
    %7270 = vmatprep.subr.bf16.mxu0 %v2277
    %7271 = vmatpush1.bf16.msra.mxu0 %v2276
    %7272 = vmatprep.subr.bf16.mxu0 %v2261
    %7273 = vmatpush1.bf16.msra.mxu0 %v2260
    %7274 = vmatprep.subr.bf16.mxu0 %v2245
    %7275 = vmatpush1.bf16.msra.mxu0 %v2244
    %7276 = vmatprep.subr.bf16.mxu0 %v2229
    %7277 = vmatpush1.bf16.msra.mxu0 %v2228
    %7278 = vmatprep.subr.bf16.mxu0 %v2213
    %7279 = vmatpush1.bf16.msra.mxu0 %v2212
    %7280 = vmatprep.subr.bf16.mxu0 %v2453
    %7281 = vmatpush2.bf16.msra.mxu0 %v2452
    %7282 = vmatprep.subr.bf16.mxu0 %v2437
    %7283 = vmatpush2.bf16.msra.mxu0 %v2436
    %7284 = vmatprep.subr.bf16.mxu0 %v2421
    %7285 = vmatpush2.bf16.msra.mxu0 %v2420
    %7286 = vmatprep.subr.bf16.mxu0 %v2405
    %7287 = vmatpush2.bf16.msra.mxu0 %v2404
    %7288 = vmatprep.subr.bf16.mxu0 %v2389
    %7289 = vmatpush2.bf16.msra.mxu0 %v2388
    %7290 = vmatprep.subr.bf16.mxu0 %v2373
    %7291 = vmatpush2.bf16.msra.mxu0 %v2372
    %7292 = vmatprep.subr.bf16.mxu0 %v2357
    %7293 = vmatpush2.bf16.msra.mxu0 %v2356
    %7294 = vmatprep.subr.bf16.mxu0 %v2341
    %7295 = vmatpush2.bf16.msra.mxu0 %v2340
    %7296 = vmatprep.mubr.bf16.mxu0 %v7089
    %7297 = vmatmul.mubr.bf16.gmra.mxu0 %v7088
    %v7298 = vpop.f32.mrf.mxu0
    %v7299 = vadd.f32 0.0, %v7298
    %v7300 = vpop.f32.mrf.mxu0
    %v7301 = vadd.f32 0.0, %v7300
    %v7302 = vpop.f32.mrf.mxu0
    %v7303 = vadd.f32 0.0, %v7302
    %v7304 = vpop.f32.mrf.mxu0
    %v7305 = vadd.f32 0.0, %v7304
    %7306 = vdwg.mxu0
    %7307 = vmatprep.subr.bf16.mxu0 %v2581
    %7308 = vmatpush1.bf16.msra.mxu0 %v2580
    %7309 = vmatprep.subr.bf16.mxu0 %v2565
    %7310 = vmatpush1.bf16.msra.mxu0 %v2564
    %7311 = vmatprep.subr.bf16.mxu0 %v2549
    %7312 = vmatpush1.bf16.msra.mxu0 %v2548
    %7313 = vmatprep.subr.bf16.mxu0 %v2533
    %7314 = vmatpush1.bf16.msra.mxu0 %v2532
    %7315 = vmatprep.subr.bf16.mxu0 %v2517
    %7316 = vmatpush1.bf16.msra.mxu0 %v2516
    %7317 = vmatprep.subr.bf16.mxu0 %v2501
    %7318 = vmatpush1.bf16.msra.mxu0 %v2500
    %7319 = vmatprep.subr.bf16.mxu0 %v2485
    %7320 = vmatpush1.bf16.msra.mxu0 %v2484
    %7321 = vmatprep.subr.bf16.mxu0 %v2469
    %7322 = vmatpush1.bf16.msra.mxu0 %v2468
    %7323 = vmatprep.subr.bf16.mxu0 %v2709
    %7324 = vmatpush2.bf16.msra.mxu0 %v2708
    %7325 = vmatprep.subr.bf16.mxu0 %v2693
    %7326 = vmatpush2.bf16.msra.mxu0 %v2692
    %7327 = vmatprep.subr.bf16.mxu0 %v2677
    %7328 = vmatpush2.bf16.msra.mxu0 %v2676
    %7329 = vmatprep.subr.bf16.mxu0 %v2661
    %7330 = vmatpush2.bf16.msra.mxu0 %v2660
    %7331 = vmatprep.subr.bf16.mxu0 %v2645
    %7332 = vmatpush2.bf16.msra.mxu0 %v2644
    %7333 = vmatprep.subr.bf16.mxu0 %v2629
    %7334 = vmatpush2.bf16.msra.mxu0 %v2628
    %7335 = vmatprep.subr.bf16.mxu0 %v2613
    %7336 = vmatpush2.bf16.msra.mxu0 %v2612
    %7337 = vmatprep.subr.bf16.mxu0 %v2597
    %7338 = vmatpush2.bf16.msra.mxu0 %v2596
    %7339 = vmatprep.mubr.bf16.mxu0 %v7091
    %7340 = vmatmul.mubr.bf16.gmra.mxu0 %v7090
    %v7341 = vpop.f32.mrf.mxu0
    %v7342 = vadd.f32 %v7299, %v7341
    %v7343 = vpop.f32.mrf.mxu0
    %v7344 = vadd.f32 %v7301, %v7343
    %v7345 = vpop.f32.mrf.mxu0
    %v7346 = vadd.f32 %v7303, %v7345
    %v7347 = vpop.f32.mrf.mxu0
    %v7348 = vadd.f32 %v7305, %v7347
    %7349 = vdwg.mxu0
    %7350 = vmatprep.subr.bf16.mxu0 %v2327
    %7351 = vmatpush1.bf16.msra.mxu0 %v2326
    %7352 = vmatprep.subr.bf16.mxu0 %v2311
    %7353 = vmatpush1.bf16.msra.mxu0 %v2310
    %7354 = vmatprep.subr.bf16.mxu0 %v2295
    %7355 = vmatpush1.bf16.msra.mxu0 %v2294
    %7356 = vmatprep.subr.bf16.mxu0 %v2279
    %7357 = vmatpush1.bf16.msra.mxu0 %v2278
    %7358 = vmatprep.subr.bf16.mxu0 %v2263
    %7359 = vmatpush1.bf16.msra.mxu0 %v2262
    %7360 = vmatprep.subr.bf16.mxu0 %v2247
    %7361 = vmatpush1.bf16.msra.mxu0 %v2246
    %7362 = vmatprep.subr.bf16.mxu0 %v2231
    %7363 = vmatpush1.bf16.msra.mxu0 %v2230
    %7364 = vmatprep.subr.bf16.mxu0 %v2215
    %7365 = vmatpush1.bf16.msra.mxu0 %v2214
    %7366 = vmatprep.subr.bf16.mxu0 %v2455
    %7367 = vmatpush2.bf16.msra.mxu0 %v2454
    %7368 = vmatprep.subr.bf16.mxu0 %v2439
    %7369 = vmatpush2.bf16.msra.mxu0 %v2438
    %7370 = vmatprep.subr.bf16.mxu0 %v2423
    %7371 = vmatpush2.bf16.msra.mxu0 %v2422
    %7372 = vmatprep.subr.bf16.mxu0 %v2407
    %7373 = vmatpush2.bf16.msra.mxu0 %v2406
    %7374 = vmatprep.subr.bf16.mxu0 %v2391
    %7375 = vmatpush2.bf16.msra.mxu0 %v2390
    %7376 = vmatprep.subr.bf16.mxu0 %v2375
    %7377 = vmatpush2.bf16.msra.mxu0 %v2374
    %7378 = vmatprep.subr.bf16.mxu0 %v2359
    %7379 = vmatpush2.bf16.msra.mxu0 %v2358
    %7380 = vmatprep.subr.bf16.mxu0 %v2343
    %7381 = vmatpush2.bf16.msra.mxu0 %v2342
    %7382 = vmatprep.mubr.bf16.mxu0 %v7089
    %7383 = vmatmul.mubr.bf16.gmra.mxu0 %v7088
    %v7384 = vpop.f32.mrf.mxu0
    %v7385 = vadd.f32 0.0, %v7384
    %v7386 = vpop.f32.mrf.mxu0
    %v7387 = vadd.f32 0.0, %v7386
    %v7388 = vpop.f32.mrf.mxu0
    %v7389 = vadd.f32 0.0, %v7388
    %v7390 = vpop.f32.mrf.mxu0
    %v7391 = vadd.f32 0.0, %v7390
    %7392 = vdwg.mxu0
    %7393 = vmatprep.subr.bf16.mxu0 %v2583
    %7394 = vmatpush1.bf16.msra.mxu0 %v2582
    %7395 = vmatprep.subr.bf16.mxu0 %v2567
    %7396 = vmatpush1.bf16.msra.mxu0 %v2566
    %7397 = vmatprep.subr.bf16.mxu0 %v2551
    %7398 = vmatpush1.bf16.msra.mxu0 %v2550
    %7399 = vmatprep.subr.bf16.mxu0 %v2535
    %7400 = vmatpush1.bf16.msra.mxu0 %v2534
    %7401 = vmatprep.subr.bf16.mxu0 %v2519
    %7402 = vmatpush1.bf16.msra.mxu0 %v2518
    %7403 = vmatprep.subr.bf16.mxu0 %v2503
    %7404 = vmatpush1.bf16.msra.mxu0 %v2502
    %7405 = vmatprep.subr.bf16.mxu0 %v2487
    %7406 = vmatpush1.bf16.msra.mxu0 %v2486
    %7407 = vmatprep.subr.bf16.mxu0 %v2471
    %7408 = vmatpush1.bf16.msra.mxu0 %v2470
    %7409 = vmatprep.subr.bf16.mxu0 %v2711
    %7410 = vmatpush2.bf16.msra.mxu0 %v2710
    %7411 = vmatprep.subr.bf16.mxu0 %v2695
    %7412 = vmatpush2.bf16.msra.mxu0 %v2694
    %7413 = vmatprep.subr.bf16.mxu0 %v2679
    %7414 = vmatpush2.bf16.msra.mxu0 %v2678
    %7415 = vmatprep.subr.bf16.mxu0 %v2663
    %7416 = vmatpush2.bf16.msra.mxu0 %v2662
    %7417 = vmatprep.subr.bf16.mxu0 %v2647
    %7418 = vmatpush2.bf16.msra.mxu0 %v2646
    %7419 = vmatprep.subr.bf16.mxu0 %v2631
    %7420 = vmatpush2.bf16.msra.mxu0 %v2630
    %7421 = vmatprep.subr.bf16.mxu0 %v2615
    %7422 = vmatpush2.bf16.msra.mxu0 %v2614
    %7423 = vmatprep.subr.bf16.mxu0 %v2599
    %7424 = vmatpush2.bf16.msra.mxu0 %v2598
    %7425 = vmatprep.mubr.bf16.mxu0 %v7091
    %7426 = vmatmul.mubr.bf16.gmra.mxu0 %v7090
    %v7427 = vpop.f32.mrf.mxu0
    %v7428 = vadd.f32 %v7385, %v7427
    %v7429 = vpop.f32.mrf.mxu0
    %v7430 = vadd.f32 %v7387, %v7429
    %v7431 = vpop.f32.mrf.mxu0
    %v7432 = vadd.f32 %v7389, %v7431
    %v7433 = vpop.f32.mrf.mxu0
    %v7434 = vadd.f32 %v7391, %v7433
    %7435 = vdwg.mxu0
    %7436 = vmatprep.subr.bf16.mxu0 %v2329
    %7437 = vmatpush1.bf16.msra.mxu0 %v2328
    %7438 = vmatprep.subr.bf16.mxu0 %v2313
    %7439 = vmatpush1.bf16.msra.mxu0 %v2312
    %7440 = vmatprep.subr.bf16.mxu0 %v2297
    %7441 = vmatpush1.bf16.msra.mxu0 %v2296
    %7442 = vmatprep.subr.bf16.mxu0 %v2281
    %7443 = vmatpush1.bf16.msra.mxu0 %v2280
    %7444 = vmatprep.subr.bf16.mxu0 %v2265
    %7445 = vmatpush1.bf16.msra.mxu0 %v2264
    %7446 = vmatprep.subr.bf16.mxu0 %v2249
    %7447 = vmatpush1.bf16.msra.mxu0 %v2248
    %7448 = vmatprep.subr.bf16.mxu0 %v2233
    %7449 = vmatpush1.bf16.msra.mxu0 %v2232
    %7450 = vmatprep.subr.bf16.mxu0 %v2217
    %7451 = vmatpush1.bf16.msra.mxu0 %v2216
    %7452 = vmatprep.subr.bf16.mxu0 %v2457
    %7453 = vmatpush2.bf16.msra.mxu0 %v2456
    %7454 = vmatprep.subr.bf16.mxu0 %v2441
    %7455 = vmatpush2.bf16.msra.mxu0 %v2440
    %7456 = vmatprep.subr.bf16.mxu0 %v2425
    %7457 = vmatpush2.bf16.msra.mxu0 %v2424
    %7458 = vmatprep.subr.bf16.mxu0 %v2409
    %7459 = vmatpush2.bf16.msra.mxu0 %v2408
    %7460 = vmatprep.subr.bf16.mxu0 %v2393
    %7461 = vmatpush2.bf16.msra.mxu0 %v2392
    %7462 = vmatprep.subr.bf16.mxu0 %v2377
    %7463 = vmatpush2.bf16.msra.mxu0 %v2376
    %7464 = vmatprep.subr.bf16.mxu0 %v2361
    %7465 = vmatpush2.bf16.msra.mxu0 %v2360
    %7466 = vmatprep.subr.bf16.mxu0 %v2345
    %7467 = vmatpush2.bf16.msra.mxu0 %v2344
    %7468 = vmatprep.mubr.bf16.mxu0 %v7089
    %7469 = vmatmul.mubr.bf16.gmra.mxu0 %v7088
    %v7470 = vpop.f32.mrf.mxu0
    %v7471 = vadd.f32 0.0, %v7470
    %v7472 = vpop.f32.mrf.mxu0
    %v7473 = vadd.f32 0.0, %v7472
    %v7474 = vpop.f32.mrf.mxu0
    %v7475 = vadd.f32 0.0, %v7474
    %v7476 = vpop.f32.mrf.mxu0
    %v7477 = vadd.f32 0.0, %v7476
    %7478 = vdwg.mxu0
    %7479 = vmatprep.subr.bf16.mxu0 %v2585
    %7480 = vmatpush1.bf16.msra.mxu0 %v2584
    %7481 = vmatprep.subr.bf16.mxu0 %v2569
    %7482 = vmatpush1.bf16.msra.mxu0 %v2568
    %7483 = vmatprep.subr.bf16.mxu0 %v2553
    %7484 = vmatpush1.bf16.msra.mxu0 %v2552
    %7485 = vmatprep.subr.bf16.mxu0 %v2537
    %7486 = vmatpush1.bf16.msra.mxu0 %v2536
    %7487 = vmatprep.subr.bf16.mxu0 %v2521
    %7488 = vmatpush1.bf16.msra.mxu0 %v2520
    %7489 = vmatprep.subr.bf16.mxu0 %v2505
    %7490 = vmatpush1.bf16.msra.mxu0 %v2504
    %7491 = vmatprep.subr.bf16.mxu0 %v2489
    %7492 = vmatpush1.bf16.msra.mxu0 %v2488
    %7493 = vmatprep.subr.bf16.mxu0 %v2473
    %7494 = vmatpush1.bf16.msra.mxu0 %v2472
    %7495 = vmatprep.subr.bf16.mxu0 %v2713
    %7496 = vmatpush2.bf16.msra.mxu0 %v2712
    %7497 = vmatprep.subr.bf16.mxu0 %v2697
    %7498 = vmatpush2.bf16.msra.mxu0 %v2696
    %7499 = vmatprep.subr.bf16.mxu0 %v2681
    %7500 = vmatpush2.bf16.msra.mxu0 %v2680
    %7501 = vmatprep.subr.bf16.mxu0 %v2665
    %7502 = vmatpush2.bf16.msra.mxu0 %v2664
    %7503 = vmatprep.subr.bf16.mxu0 %v2649
    %7504 = vmatpush2.bf16.msra.mxu0 %v2648
    %7505 = vmatprep.subr.bf16.mxu0 %v2633
    %7506 = vmatpush2.bf16.msra.mxu0 %v2632
    %7507 = vmatprep.subr.bf16.mxu0 %v2617
    %7508 = vmatpush2.bf16.msra.mxu0 %v2616
    %7509 = vmatprep.subr.bf16.mxu0 %v2601
    %7510 = vmatpush2.bf16.msra.mxu0 %v2600
    %7511 = vmatprep.mubr.bf16.mxu0 %v7091
    %7512 = vmatmul.mubr.bf16.gmra.mxu0 %v7090
    %v7513 = vpop.f32.mrf.mxu0
    %v7514 = vadd.f32 %v7471, %v7513
    %v7515 = vpop.f32.mrf.mxu0
    %v7516 = vadd.f32 %v7473, %v7515
    %v7517 = vpop.f32.mrf.mxu0
    %v7518 = vadd.f32 %v7475, %v7517
    %v7519 = vpop.f32.mrf.mxu0
    %v7520 = vadd.f32 %v7477, %v7519
    %7521 = vdwg.mxu0
    %7522 = vmatprep.subr.bf16.mxu0 %v2331
    %7523 = vmatpush1.bf16.msra.mxu0 %v2330
    %7524 = vmatprep.subr.bf16.mxu0 %v2315
    %7525 = vmatpush1.bf16.msra.mxu0 %v2314
    %7526 = vmatprep.subr.bf16.mxu0 %v2299
    %7527 = vmatpush1.bf16.msra.mxu0 %v2298
    %7528 = vmatprep.subr.bf16.mxu0 %v2283
    %7529 = vmatpush1.bf16.msra.mxu0 %v2282
    %7530 = vmatprep.subr.bf16.mxu0 %v2267
    %7531 = vmatpush1.bf16.msra.mxu0 %v2266
    %7532 = vmatprep.subr.bf16.mxu0 %v2251
    %7533 = vmatpush1.bf16.msra.mxu0 %v2250
    %7534 = vmatprep.subr.bf16.mxu0 %v2235
    %7535 = vmatpush1.bf16.msra.mxu0 %v2234
    %7536 = vmatprep.subr.bf16.mxu0 %v2219
    %7537 = vmatpush1.bf16.msra.mxu0 %v2218
    %7538 = vmatprep.subr.bf16.mxu0 %v2459
    %7539 = vmatpush2.bf16.msra.mxu0 %v2458
    %7540 = vmatprep.subr.bf16.mxu0 %v2443
    %7541 = vmatpush2.bf16.msra.mxu0 %v2442
    %7542 = vmatprep.subr.bf16.mxu0 %v2427
    %7543 = vmatpush2.bf16.msra.mxu0 %v2426
    %7544 = vmatprep.subr.bf16.mxu0 %v2411
    %7545 = vmatpush2.bf16.msra.mxu0 %v2410
    %7546 = vmatprep.subr.bf16.mxu0 %v2395
    %7547 = vmatpush2.bf16.msra.mxu0 %v2394
    %7548 = vmatprep.subr.bf16.mxu0 %v2379
    %7549 = vmatpush2.bf16.msra.mxu0 %v2378
    %7550 = vmatprep.subr.bf16.mxu0 %v2363
    %7551 = vmatpush2.bf16.msra.mxu0 %v2362
    %7552 = vmatprep.subr.bf16.mxu0 %v2347
    %7553 = vmatpush2.bf16.msra.mxu0 %v2346
    %7554 = vmatprep.mubr.bf16.mxu0 %v7089
    %7555 = vmatmul.mubr.bf16.gmra.mxu0 %v7088
    %v7556 = vpop.f32.mrf.mxu0
    %v7557 = vadd.f32 0.0, %v7556
    %v7558 = vpop.f32.mrf.mxu0
    %v7559 = vadd.f32 0.0, %v7558
    %v7560 = vpop.f32.mrf.mxu0
    %v7561 = vadd.f32 0.0, %v7560
    %v7562 = vpop.f32.mrf.mxu0
    %v7563 = vadd.f32 0.0, %v7562
    %7564 = vdwg.mxu0
    %7565 = vmatprep.subr.bf16.mxu0 %v2587
    %7566 = vmatpush1.bf16.msra.mxu0 %v2586
    %7567 = vmatprep.subr.bf16.mxu0 %v2571
    %7568 = vmatpush1.bf16.msra.mxu0 %v2570
    %7569 = vmatprep.subr.bf16.mxu0 %v2555
    %7570 = vmatpush1.bf16.msra.mxu0 %v2554
    %7571 = vmatprep.subr.bf16.mxu0 %v2539
    %7572 = vmatpush1.bf16.msra.mxu0 %v2538
    %7573 = vmatprep.subr.bf16.mxu0 %v2523
    %7574 = vmatpush1.bf16.msra.mxu0 %v2522
    %7575 = vmatprep.subr.bf16.mxu0 %v2507
    %7576 = vmatpush1.bf16.msra.mxu0 %v2506
    %7577 = vmatprep.subr.bf16.mxu0 %v2491
    %7578 = vmatpush1.bf16.msra.mxu0 %v2490
    %7579 = vmatprep.subr.bf16.mxu0 %v2475
    %7580 = vmatpush1.bf16.msra.mxu0 %v2474
    %7581 = vmatprep.subr.bf16.mxu0 %v2715
    %7582 = vmatpush2.bf16.msra.mxu0 %v2714
    %7583 = vmatprep.subr.bf16.mxu0 %v2699
    %7584 = vmatpush2.bf16.msra.mxu0 %v2698
    %7585 = vmatprep.subr.bf16.mxu0 %v2683
    %7586 = vmatpush2.bf16.msra.mxu0 %v2682
    %7587 = vmatprep.subr.bf16.mxu0 %v2667
    %7588 = vmatpush2.bf16.msra.mxu0 %v2666
    %7589 = vmatprep.subr.bf16.mxu0 %v2651
    %7590 = vmatpush2.bf16.msra.mxu0 %v2650
    %7591 = vmatprep.subr.bf16.mxu0 %v2635
    %7592 = vmatpush2.bf16.msra.mxu0 %v2634
    %7593 = vmatprep.subr.bf16.mxu0 %v2619
    %7594 = vmatpush2.bf16.msra.mxu0 %v2618
    %7595 = vmatprep.subr.bf16.mxu0 %v2603
    %7596 = vmatpush2.bf16.msra.mxu0 %v2602
    %7597 = vmatprep.mubr.bf16.mxu0 %v7091
    %7598 = vmatmul.mubr.bf16.gmra.mxu0 %v7090
    %v7599 = vpop.f32.mrf.mxu0
    %v7600 = vadd.f32 %v7557, %v7599
    %v7601 = vpop.f32.mrf.mxu0
    %v7602 = vadd.f32 %v7559, %v7601
    %v7603 = vpop.f32.mrf.mxu0
    %v7604 = vadd.f32 %v7561, %v7603
    %v7605 = vpop.f32.mrf.mxu0
    %v7606 = vadd.f32 %v7563, %v7605
    %7607 = vdwg.mxu0
    %7608 = vmatprep.subr.bf16.mxu0 %v2333
    %7609 = vmatpush1.bf16.msra.mxu0 %v2332
    %7610 = vmatprep.subr.bf16.mxu0 %v2317
    %7611 = vmatpush1.bf16.msra.mxu0 %v2316
    %7612 = vmatprep.subr.bf16.mxu0 %v2301
    %7613 = vmatpush1.bf16.msra.mxu0 %v2300
    %7614 = vmatprep.subr.bf16.mxu0 %v2285
    %7615 = vmatpush1.bf16.msra.mxu0 %v2284
    %7616 = vmatprep.subr.bf16.mxu0 %v2269
    %7617 = vmatpush1.bf16.msra.mxu0 %v2268
    %7618 = vmatprep.subr.bf16.mxu0 %v2253
    %7619 = vmatpush1.bf16.msra.mxu0 %v2252
    %7620 = vmatprep.subr.bf16.mxu0 %v2237
    %7621 = vmatpush1.bf16.msra.mxu0 %v2236
    %7622 = vmatprep.subr.bf16.mxu0 %v2221
    %7623 = vmatpush1.bf16.msra.mxu0 %v2220
    %7624 = vmatprep.subr.bf16.mxu0 %v2461
    %7625 = vmatpush2.bf16.msra.mxu0 %v2460
    %7626 = vmatprep.subr.bf16.mxu0 %v2445
    %7627 = vmatpush2.bf16.msra.mxu0 %v2444
    %7628 = vmatprep.subr.bf16.mxu0 %v2429
    %7629 = vmatpush2.bf16.msra.mxu0 %v2428
    %7630 = vmatprep.subr.bf16.mxu0 %v2413
    %7631 = vmatpush2.bf16.msra.mxu0 %v2412
    %7632 = vmatprep.subr.bf16.mxu0 %v2397
    %7633 = vmatpush2.bf16.msra.mxu0 %v2396
    %7634 = vmatprep.subr.bf16.mxu0 %v2381
    %7635 = vmatpush2.bf16.msra.mxu0 %v2380
    %7636 = vmatprep.subr.bf16.mxu0 %v2365
    %7637 = vmatpush2.bf16.msra.mxu0 %v2364
    %7638 = vmatprep.subr.bf16.mxu0 %v2349
    %7639 = vmatpush2.bf16.msra.mxu0 %v2348
    %7640 = vmatprep.mubr.bf16.mxu0 %v7089
    %7641 = vmatmul.mubr.bf16.gmra.mxu0 %v7088
    %v7642 = vpop.f32.mrf.mxu0
    %v7643 = vadd.f32 0.0, %v7642
    %v7644 = vpop.f32.mrf.mxu0
    %v7645 = vadd.f32 0.0, %v7644
    %v7646 = vpop.f32.mrf.mxu0
    %v7647 = vadd.f32 0.0, %v7646
    %v7648 = vpop.f32.mrf.mxu0
    %v7649 = vadd.f32 0.0, %v7648
    %7650 = vdwg.mxu0
    %7651 = vmatprep.subr.bf16.mxu0 %v2589
    %7652 = vmatpush1.bf16.msra.mxu0 %v2588
    %7653 = vmatprep.subr.bf16.mxu0 %v2573
    %7654 = vmatpush1.bf16.msra.mxu0 %v2572
    %7655 = vmatprep.subr.bf16.mxu0 %v2557
    %7656 = vmatpush1.bf16.msra.mxu0 %v2556
    %7657 = vmatprep.subr.bf16.mxu0 %v2541
    %7658 = vmatpush1.bf16.msra.mxu0 %v2540
    %7659 = vmatprep.subr.bf16.mxu0 %v2525
    %7660 = vmatpush1.bf16.msra.mxu0 %v2524
    %7661 = vmatprep.subr.bf16.mxu0 %v2509
    %7662 = vmatpush1.bf16.msra.mxu0 %v2508
    %7663 = vmatprep.subr.bf16.mxu0 %v2493
    %7664 = vmatpush1.bf16.msra.mxu0 %v2492
    %7665 = vmatprep.subr.bf16.mxu0 %v2477
    %7666 = vmatpush1.bf16.msra.mxu0 %v2476
    %7667 = vmatprep.subr.bf16.mxu0 %v2717
    %7668 = vmatpush2.bf16.msra.mxu0 %v2716
    %7669 = vmatprep.subr.bf16.mxu0 %v2701
    %7670 = vmatpush2.bf16.msra.mxu0 %v2700
    %7671 = vmatprep.subr.bf16.mxu0 %v2685
    %7672 = vmatpush2.bf16.msra.mxu0 %v2684
    %7673 = vmatprep.subr.bf16.mxu0 %v2669
    %7674 = vmatpush2.bf16.msra.mxu0 %v2668
    %7675 = vmatprep.subr.bf16.mxu0 %v2653
    %7676 = vmatpush2.bf16.msra.mxu0 %v2652
    %7677 = vmatprep.subr.bf16.mxu0 %v2637
    %7678 = vmatpush2.bf16.msra.mxu0 %v2636
    %7679 = vmatprep.subr.bf16.mxu0 %v2621
    %7680 = vmatpush2.bf16.msra.mxu0 %v2620
    %7681 = vmatprep.subr.bf16.mxu0 %v2605
    %7682 = vmatpush2.bf16.msra.mxu0 %v2604
    %7683 = vmatprep.mubr.bf16.mxu0 %v7091
    %7684 = vmatmul.mubr.bf16.gmra.mxu0 %v7090
    %v7685 = vpop.f32.mrf.mxu0
    %v7686 = vadd.f32 %v7643, %v7685
    %v7687 = vpop.f32.mrf.mxu0
    %v7688 = vadd.f32 %v7645, %v7687
    %v7689 = vpop.f32.mrf.mxu0
    %v7690 = vadd.f32 %v7647, %v7689
    %v7691 = vpop.f32.mrf.mxu0
    %v7692 = vadd.f32 %v7649, %v7691
    %7693 = vdwg.mxu0
    %7694 = vmatprep.subr.bf16.mxu0 %v2335
    %7695 = vmatpush1.bf16.msra.mxu0 %v2334
    %7696 = vmatprep.subr.bf16.mxu0 %v2319
    %7697 = vmatpush1.bf16.msra.mxu0 %v2318
    %7698 = vmatprep.subr.bf16.mxu0 %v2303
    %7699 = vmatpush1.bf16.msra.mxu0 %v2302
    %7700 = vmatprep.subr.bf16.mxu0 %v2287
    %7701 = vmatpush1.bf16.msra.mxu0 %v2286
    %7702 = vmatprep.subr.bf16.mxu0 %v2271
    %7703 = vmatpush1.bf16.msra.mxu0 %v2270
    %7704 = vmatprep.subr.bf16.mxu0 %v2255
    %7705 = vmatpush1.bf16.msra.mxu0 %v2254
    %7706 = vmatprep.subr.bf16.mxu0 %v2239
    %7707 = vmatpush1.bf16.msra.mxu0 %v2238
    %7708 = vmatprep.subr.bf16.mxu0 %v2223
    %7709 = vmatpush1.bf16.msra.mxu0 %v2222
    %7710 = vmatprep.subr.bf16.mxu0 %v2463
    %7711 = vmatpush2.bf16.msra.mxu0 %v2462
    %7712 = vmatprep.subr.bf16.mxu0 %v2447
    %7713 = vmatpush2.bf16.msra.mxu0 %v2446
    %7714 = vmatprep.subr.bf16.mxu0 %v2431
    %7715 = vmatpush2.bf16.msra.mxu0 %v2430
    %7716 = vmatprep.subr.bf16.mxu0 %v2415
    %7717 = vmatpush2.bf16.msra.mxu0 %v2414
    %7718 = vmatprep.subr.bf16.mxu0 %v2399
    %7719 = vmatpush2.bf16.msra.mxu0 %v2398
    %7720 = vmatprep.subr.bf16.mxu0 %v2383
    %7721 = vmatpush2.bf16.msra.mxu0 %v2382
    %7722 = vmatprep.subr.bf16.mxu0 %v2367
    %7723 = vmatpush2.bf16.msra.mxu0 %v2366
    %7724 = vmatprep.subr.bf16.mxu0 %v2351
    %7725 = vmatpush2.bf16.msra.mxu0 %v2350
    %7726 = vmatprep.mubr.bf16.mxu0 %v7089
    %7727 = vmatmul.mubr.bf16.gmra.mxu0 %v7088
    %v7728 = vpop.f32.mrf.mxu0
    %v7729 = vadd.f32 0.0, %v7728
    %v7730 = vpop.f32.mrf.mxu0
    %v7731 = vadd.f32 0.0, %v7730
    %v7732 = vpop.f32.mrf.mxu0
    %v7733 = vadd.f32 0.0, %v7732
    %v7734 = vpop.f32.mrf.mxu0
    %v7735 = vadd.f32 0.0, %v7734
    %7736 = vdwg.mxu0
    %7737 = vmatprep.subr.bf16.mxu0 %v2591
    %7738 = vmatpush1.bf16.msra.mxu0 %v2590
    %7739 = vmatprep.subr.bf16.mxu0 %v2575
    %7740 = vmatpush1.bf16.msra.mxu0 %v2574
    %7741 = vmatprep.subr.bf16.mxu0 %v2559
    %7742 = vmatpush1.bf16.msra.mxu0 %v2558
    %7743 = vmatprep.subr.bf16.mxu0 %v2543
    %7744 = vmatpush1.bf16.msra.mxu0 %v2542
    %7745 = vmatprep.subr.bf16.mxu0 %v2527
    %7746 = vmatpush1.bf16.msra.mxu0 %v2526
    %7747 = vmatprep.subr.bf16.mxu0 %v2511
    %7748 = vmatpush1.bf16.msra.mxu0 %v2510
    %7749 = vmatprep.subr.bf16.mxu0 %v2495
    %7750 = vmatpush1.bf16.msra.mxu0 %v2494
    %7751 = vmatprep.subr.bf16.mxu0 %v2479
    %7752 = vmatpush1.bf16.msra.mxu0 %v2478
    %7753 = vmatprep.subr.bf16.mxu0 %v2719
    %7754 = vmatpush2.bf16.msra.mxu0 %v2718
    %7755 = vmatprep.subr.bf16.mxu0 %v2703
    %7756 = vmatpush2.bf16.msra.mxu0 %v2702
    %7757 = vmatprep.subr.bf16.mxu0 %v2687
    %7758 = vmatpush2.bf16.msra.mxu0 %v2686
    %7759 = vmatprep.subr.bf16.mxu0 %v2671
    %7760 = vmatpush2.bf16.msra.mxu0 %v2670
    %7761 = vmatprep.subr.bf16.mxu0 %v2655
    %7762 = vmatpush2.bf16.msra.mxu0 %v2654
    %7763 = vmatprep.subr.bf16.mxu0 %v2639
    %7764 = vmatpush2.bf16.msra.mxu0 %v2638
    %7765 = vmatprep.subr.bf16.mxu0 %v2623
    %7766 = vmatpush2.bf16.msra.mxu0 %v2622
    %7767 = vmatprep.subr.bf16.mxu0 %v2607
    %7768 = vmatpush2.bf16.msra.mxu0 %v2606
    %7769 = vmatprep.mubr.bf16.mxu0 %v7091
    %7770 = vmatmul.mubr.bf16.gmra.mxu0 %v7090
    %v7771 = vpop.f32.mrf.mxu0
    %v7772 = vadd.f32 %v7729, %v7771
    %v7773 = vpop.f32.mrf.mxu0
    %v7774 = vadd.f32 %v7731, %v7773
    %v7775 = vpop.f32.mrf.mxu0
    %v7776 = vadd.f32 %v7733, %v7775
    %v7777 = vpop.f32.mrf.mxu0
    %v7778 = vadd.f32 %v7735, %v7777
    %7779 = vdwg.mxu0
    %v7780 = vadd.f32 %v7056, %v7170
    %v7781 = vadd.f32 %v7057, %v7172
    %v7782 = vadd.f32 %v7058, %v7256
    %v7783 = vadd.f32 %v7059, %v7258
    %v7784 = vadd.f32 %v7060, %v7342
    %v7785 = vadd.f32 %v7061, %v7344
    %v7786 = vadd.f32 %v7062, %v7428
    %v7787 = vadd.f32 %v7063, %v7430
    %v7788 = vadd.f32 %v7064, %v7514
    %v7789 = vadd.f32 %v7065, %v7516
    %v7790 = vadd.f32 %v7066, %v7600
    %v7791 = vadd.f32 %v7067, %v7602
    %v7792 = vadd.f32 %v7068, %v7686
    %v7793 = vadd.f32 %v7069, %v7688
    %v7794 = vadd.f32 %v7070, %v7772
    %v7795 = vadd.f32 %v7071, %v7774
    %v7796 = vadd.f32 %v7072, %v7174
    %v7797 = vadd.f32 %v7073, %v7176
    %v7798 = vadd.f32 %v7074, %v7260
    %v7799 = vadd.f32 %v7075, %v7262
    %v7800 = vadd.f32 %v7076, %v7346
    %v7801 = vadd.f32 %v7077, %v7348
    %v7802 = vadd.f32 %v7078, %v7432
    %v7803 = vadd.f32 %v7079, %v7434
    %v7804 = vadd.f32 %v7080, %v7518
    %v7805 = vadd.f32 %v7081, %v7520
    %v7806 = vadd.f32 %v7082, %v7604
    %v7807 = vadd.f32 %v7083, %v7606
    %v7808 = vadd.f32 %v7084, %v7690
    %v7809 = vadd.f32 %v7085, %v7692
    %v7810 = vadd.f32 %v7086, %v7776
    %v7811 = vadd.f32 %v7087, %v7778
    %v7812 = vxor.u32 %v7780, 2147483648
    %v7813 = vxor.u32 %v7781, 2147483648
    %v7814 = vxor.u32 %v7782, 2147483648
    %v7815 = vxor.u32 %v7783, 2147483648
    %v7816 = vxor.u32 %v7796, 2147483648
    %v7817 = vxor.u32 %v7797, 2147483648
    %v7818 = vxor.u32 %v7798, 2147483648
    %v7819 = vxor.u32 %v7799, 2147483648
    %v7820 = vmul.f32 %v7812, 1.442695
    %v7821 = vpow.pop %v7820
    %v7822 = vmul.f32 %v7813, 1.442695
    %v7823 = vpow.pop %v7822
    %v7824 = vmul.f32 %v7814, 1.442695
    %v7825 = vpow.pop %v7824
    %v7826 = vmul.f32 %v7815, 1.442695
    %v7827 = vpow.pop %v7826
    %v7828 = vmul.f32 %v7816, 1.442695
    %v7829 = vpow.pop %v7828
    %v7830 = vmul.f32 %v7817, 1.442695
    %v7831 = vpow.pop %v7830
    %v7832 = vmul.f32 %v7818, 1.442695
    %v7833 = vpow.pop %v7832
    %v7834 = vmul.f32 %v7819, 1.442695
    %v7835 = vpow.pop %v7834
    %v7836 = vadd.f32 %v7821, 1.0
    %v7837 = vadd.f32 %v7823, 1.0
    %v7838 = vadd.f32 %v7825, 1.0
    %v7839 = vadd.f32 %v7827, 1.0
    %v7840 = vadd.f32 %v7829, 1.0
    %v7841 = vadd.f32 %v7831, 1.0
    %v7842 = vadd.f32 %v7833, 1.0
    %v7843 = vadd.f32 %v7835, 1.0
    %v7844 = vrcp.pop %v7836
    %v7845 = vmul.f32 1.0, %v7844
    %v7846 = vrcp.pop %v7837
    %v7847 = vmul.f32 1.0, %v7846
    %v7848 = vrcp.pop %v7838
    %v7849 = vmul.f32 1.0, %v7848
    %v7850 = vrcp.pop %v7839
    %v7851 = vmul.f32 1.0, %v7850
    %v7852 = vrcp.pop %v7840
    %v7853 = vmul.f32 1.0, %v7852
    %v7854 = vrcp.pop %v7841
    %v7855 = vmul.f32 1.0, %v7854
    %v7856 = vrcp.pop %v7842
    %v7857 = vmul.f32 1.0, %v7856
    %v7858 = vrcp.pop %v7843
    %v7859 = vmul.f32 1.0, %v7858
    %v7860 = vxor.u32 %v7784, 2147483648
    %v7861 = vxor.u32 %v7785, 2147483648
    %v7862 = vxor.u32 %v7786, 2147483648
    %v7863 = vxor.u32 %v7787, 2147483648
    %v7864 = vxor.u32 %v7800, 2147483648
    %v7865 = vxor.u32 %v7801, 2147483648
    %v7866 = vxor.u32 %v7802, 2147483648
    %v7867 = vxor.u32 %v7803, 2147483648
    %v7868 = vmul.f32 %v7860, 1.442695
    %v7869 = vpow.pop %v7868
    %v7870 = vmul.f32 %v7861, 1.442695
    %v7871 = vpow.pop %v7870
    %v7872 = vmul.f32 %v7862, 1.442695
    %v7873 = vpow.pop %v7872
    %v7874 = vmul.f32 %v7863, 1.442695
    %v7875 = vpow.pop %v7874
    %v7876 = vmul.f32 %v7864, 1.442695
    %v7877 = vpow.pop %v7876
    %v7878 = vmul.f32 %v7865, 1.442695
    %v7879 = vpow.pop %v7878
    %v7880 = vmul.f32 %v7866, 1.442695
    %v7881 = vpow.pop %v7880
    %v7882 = vmul.f32 %v7867, 1.442695
    %v7883 = vpow.pop %v7882
    %v7884 = vadd.f32 %v7869, 1.0
    %v7885 = vadd.f32 %v7871, 1.0
    %v7886 = vadd.f32 %v7873, 1.0
    %v7887 = vadd.f32 %v7875, 1.0
    %v7888 = vadd.f32 %v7877, 1.0
    %v7889 = vadd.f32 %v7879, 1.0
    %v7890 = vadd.f32 %v7881, 1.0
    %v7891 = vadd.f32 %v7883, 1.0
    %v7892 = vrcp.pop %v7884
    %v7893 = vmul.f32 1.0, %v7892
    %v7894 = vrcp.pop %v7885
    %v7895 = vmul.f32 1.0, %v7894
    %v7896 = vrcp.pop %v7886
    %v7897 = vmul.f32 1.0, %v7896
    %v7898 = vrcp.pop %v7887
    %v7899 = vmul.f32 1.0, %v7898
    %v7900 = vrcp.pop %v7888
    %v7901 = vmul.f32 1.0, %v7900
    %v7902 = vrcp.pop %v7889
    %v7903 = vmul.f32 1.0, %v7902
    %v7904 = vrcp.pop %v7890
    %v7905 = vmul.f32 1.0, %v7904
    %v7906 = vrcp.pop %v7891
    %v7907 = vmul.f32 1.0, %v7906
    %v7908 = vtanh.pop %v7788
    %v7909 = vtanh.pop %v7789
    %v7910 = vtanh.pop %v7790
    %v7911 = vtanh.pop %v7791
    %v7912 = vtanh.pop %v7804
    %v7913 = vtanh.pop %v7805
    %v7914 = vtanh.pop %v7806
    %v7915 = vtanh.pop %v7807
    %v7916 = vxor.u32 %v7792, 2147483648
    %v7917 = vxor.u32 %v7793, 2147483648
    %v7918 = vxor.u32 %v7794, 2147483648
    %v7919 = vxor.u32 %v7795, 2147483648
    %v7920 = vxor.u32 %v7808, 2147483648
    %v7921 = vxor.u32 %v7809, 2147483648
    %v7922 = vxor.u32 %v7810, 2147483648
    %v7923 = vxor.u32 %v7811, 2147483648
    %v7924 = vmul.f32 %v7916, 1.442695
    %v7925 = vpow.pop %v7924
    %v7926 = vmul.f32 %v7917, 1.442695
    %v7927 = vpow.pop %v7926
    %v7928 = vmul.f32 %v7918, 1.442695
    %v7929 = vpow.pop %v7928
    %v7930 = vmul.f32 %v7919, 1.442695
    %v7931 = vpow.pop %v7930
    %v7932 = vmul.f32 %v7920, 1.442695
    %v7933 = vpow.pop %v7932
    %v7934 = vmul.f32 %v7921, 1.442695
    %v7935 = vpow.pop %v7934
    %v7936 = vmul.f32 %v7922, 1.442695
    %v7937 = vpow.pop %v7936
    %v7938 = vmul.f32 %v7923, 1.442695
    %v7939 = vpow.pop %v7938
    %v7940 = vadd.f32 %v7925, 1.0
    %v7941 = vadd.f32 %v7927, 1.0
    %v7942 = vadd.f32 %v7929, 1.0
    %v7943 = vadd.f32 %v7931, 1.0
    %v7944 = vadd.f32 %v7933, 1.0
    %v7945 = vadd.f32 %v7935, 1.0
    %v7946 = vadd.f32 %v7937, 1.0
    %v7947 = vadd.f32 %v7939, 1.0
    %v7948 = vrcp.pop %v7940
    %v7949 = vmul.f32 1.0, %v7948
    %v7950 = vrcp.pop %v7941
    %v7951 = vmul.f32 1.0, %v7950
    %v7952 = vrcp.pop %v7942
    %v7953 = vmul.f32 1.0, %v7952
    %v7954 = vrcp.pop %v7943
    %v7955 = vmul.f32 1.0, %v7954
    %v7956 = vrcp.pop %v7944
    %v7957 = vmul.f32 1.0, %v7956
    %v7958 = vrcp.pop %v7945
    %v7959 = vmul.f32 1.0, %v7958
    %v7960 = vrcp.pop %v7946
    %v7961 = vmul.f32 1.0, %v7960
    %v7962 = vrcp.pop %v7947
    %v7963 = vmul.f32 1.0, %v7962
    %v7964 = vmul.f32 %v7893, %v7015
    %v7965 = vmul.f32 %v7895, %v7016
    %v7966 = vmul.f32 %v7897, %v7017
    %v7967 = vmul.f32 %v7899, %v7018
    %v7968 = vmul.f32 %v7901, %v7019
    %v7969 = vmul.f32 %v7903, %v7020
    %v7970 = vmul.f32 %v7905, %v7021
    %v7971 = vmul.f32 %v7907, %v7022
    %v7972 = vmul.f32 %v7845, %v7908
    %v7973 = vmul.f32 %v7847, %v7909
    %v7974 = vmul.f32 %v7849, %v7910
    %v7975 = vmul.f32 %v7851, %v7911
    %v7976 = vmul.f32 %v7853, %v7912
    %v7977 = vmul.f32 %v7855, %v7913
    %v7978 = vmul.f32 %v7857, %v7914
    %v7979 = vmul.f32 %v7859, %v7915
    %v7980 = vadd.f32 %v7964, %v7972
    %v7981 = vadd.f32 %v7965, %v7973
    %v7982 = vadd.f32 %v7966, %v7974
    %v7983 = vadd.f32 %v7967, %v7975
    %v7984 = vadd.f32 %v7968, %v7976
    %v7985 = vadd.f32 %v7969, %v7977
    %v7986 = vadd.f32 %v7970, %v7978
    %v7987 = vadd.f32 %v7971, %v7979
    %v7988 = vtanh.pop %v7980
    %v7989 = vtanh.pop %v7981
    %v7990 = vtanh.pop %v7982
    %v7991 = vtanh.pop %v7983
    %v7992 = vtanh.pop %v7984
    %v7993 = vtanh.pop %v7985
    %v7994 = vtanh.pop %v7986
    %v7995 = vtanh.pop %v7987
    %v7996 = vmul.f32 %v7949, %v7988
    %v7997 = vmul.f32 %v7951, %v7989
    %v7998 = vmul.f32 %v7953, %v7990
    %v7999 = vmul.f32 %v7955, %v7991
    %v8000 = vmul.f32 %v7957, %v7992
    %v8001 = vmul.f32 %v7959, %v7993
    %v8002 = vmul.f32 %v7961, %v7994
    %v8003 = vmul.f32 %v7963, %v7995
    %s8004 = scalar_lea.vmem [#allocation4], 640
    %v8005 = vld [vmem:[%s8004] sm:$0xff]
    %v8006 = vld [vmem:[%s8004 + $0x8] sm:$0xff]
    %v8007 = vld [vmem:[%s8004 + $0x10] sm:$0xff]
    %v8008 = vld [vmem:[%s8004 + $0x18] sm:$0xff]
    %v8009 = vld [vmem:[%s8004 + $0x20] sm:$0xff]
    %v8010 = vld [vmem:[%s8004 + $0x28] sm:$0xff]
    %v8011 = vld [vmem:[%s8004 + $0x30] sm:$0xff]
    %v8012 = vld [vmem:[%s8004 + $0x38] sm:$0xff]
    %v8013 = vld [vmem:[%s8004 + $0x40] sm:$0xff]
    %v8014 = vld [vmem:[%s8004 + $0x48] sm:$0xff]
    %v8015 = vld [vmem:[%s8004 + $0x50] sm:$0xff]
    %v8016 = vld [vmem:[%s8004 + $0x58] sm:$0xff]
    %v8017 = vld [vmem:[%s8004 + $0x60] sm:$0xff]
    %v8018 = vld [vmem:[%s8004 + $0x68] sm:$0xff]
    %v8019 = vld [vmem:[%s8004 + $0x70] sm:$0xff]
    %v8020 = vld [vmem:[%s8004 + $0x78] sm:$0xff]
    %v8021 = vunpack.c.l.bf16 %v8005
    %v8022 = vunpack.c.h.bf16 %v8005
    %v8023 = vunpack.c.l.bf16 %v8006
    %v8024 = vunpack.c.h.bf16 %v8006
    %v8025 = vunpack.c.l.bf16 %v8007
    %v8026 = vunpack.c.h.bf16 %v8007
    %v8027 = vunpack.c.l.bf16 %v8008
    %v8028 = vunpack.c.h.bf16 %v8008
    %v8029 = vunpack.c.l.bf16 %v8009
    %v8030 = vunpack.c.h.bf16 %v8009
    %v8031 = vunpack.c.l.bf16 %v8010
    %v8032 = vunpack.c.h.bf16 %v8010
    %v8033 = vunpack.c.l.bf16 %v8011
    %v8034 = vunpack.c.h.bf16 %v8011
    %v8035 = vunpack.c.l.bf16 %v8012
    %v8036 = vunpack.c.h.bf16 %v8012
    %v8037 = vunpack.c.l.bf16 %v8013
    %v8038 = vunpack.c.h.bf16 %v8013
    %v8039 = vunpack.c.l.bf16 %v8014
    %v8040 = vunpack.c.h.bf16 %v8014
    %v8041 = vunpack.c.l.bf16 %v8015
    %v8042 = vunpack.c.h.bf16 %v8015
    %v8043 = vunpack.c.l.bf16 %v8016
    %v8044 = vunpack.c.h.bf16 %v8016
    %v8045 = vunpack.c.l.bf16 %v8017
    %v8046 = vunpack.c.h.bf16 %v8017
    %v8047 = vunpack.c.l.bf16 %v8018
    %v8048 = vunpack.c.h.bf16 %v8018
    %v8049 = vunpack.c.l.bf16 %v8019
    %v8050 = vunpack.c.h.bf16 %v8019
    %v8051 = vunpack.c.l.bf16 %v8020
    %v8052 = vunpack.c.h.bf16 %v8020
    %v8053 = vpack.c.bf16 %v8000, %v7996
    %v8054 = vpack.c.bf16 %v8001, %v7997
    %v8055 = vpack.c.bf16 %v8002, %v7998
    %v8056 = vpack.c.bf16 %v8003, %v7999
    %8057 = vmatprep.subr.bf16.mxu0 %v2321
    %8058 = vmatpush1.bf16.msra.mxu0 %v2320
    %8059 = vmatprep.subr.bf16.mxu0 %v2305
    %8060 = vmatpush1.bf16.msra.mxu0 %v2304
    %8061 = vmatprep.subr.bf16.mxu0 %v2289
    %8062 = vmatpush1.bf16.msra.mxu0 %v2288
    %8063 = vmatprep.subr.bf16.mxu0 %v2273
    %8064 = vmatpush1.bf16.msra.mxu0 %v2272
    %8065 = vmatprep.subr.bf16.mxu0 %v2257
    %8066 = vmatpush1.bf16.msra.mxu0 %v2256
    %8067 = vmatprep.subr.bf16.mxu0 %v2241
    %8068 = vmatpush1.bf16.msra.mxu0 %v2240
    %8069 = vmatprep.subr.bf16.mxu0 %v2225
    %8070 = vmatpush1.bf16.msra.mxu0 %v2224
    %8071 = vmatprep.subr.bf16.mxu0 %v2209
    %8072 = vmatpush1.bf16.msra.mxu0 %v2208
    %8073 = vmatprep.subr.bf16.mxu0 %v2449
    %8074 = vmatpush2.bf16.msra.mxu0 %v2448
    %8075 = vmatprep.subr.bf16.mxu0 %v2433
    %8076 = vmatpush2.bf16.msra.mxu0 %v2432
    %8077 = vmatprep.subr.bf16.mxu0 %v2417
    %8078 = vmatpush2.bf16.msra.mxu0 %v2416
    %8079 = vmatprep.subr.bf16.mxu0 %v2401
    %8080 = vmatpush2.bf16.msra.mxu0 %v2400
    %8081 = vmatprep.subr.bf16.mxu0 %v2385
    %8082 = vmatpush2.bf16.msra.mxu0 %v2384
    %8083 = vmatprep.subr.bf16.mxu0 %v2369
    %8084 = vmatpush2.bf16.msra.mxu0 %v2368
    %8085 = vmatprep.subr.bf16.mxu0 %v2353
    %8086 = vmatpush2.bf16.msra.mxu0 %v2352
    %8087 = vmatprep.subr.bf16.mxu0 %v2337
    %8088 = vmatpush2.bf16.msra.mxu0 %v2336
    %8089 = vmatprep.mubr.bf16.mxu0 %v8054
    %8090 = vmatmul.mubr.bf16.gmra.mxu0 %v8053
    %v8091 = vpop.f32.mrf.mxu0
    %v8092 = vadd.f32 0.0, %v8091
    %v8093 = vpop.f32.mrf.mxu0
    %v8094 = vadd.f32 0.0, %v8093
    %v8095 = vpop.f32.mrf.mxu0
    %v8096 = vadd.f32 0.0, %v8095
    %v8097 = vpop.f32.mrf.mxu0
    %v8098 = vadd.f32 0.0, %v8097
    %8099 = vdwg.mxu0
    %8100 = vmatprep.subr.bf16.mxu0 %v2577
    %8101 = vmatpush1.bf16.msra.mxu0 %v2576
    %8102 = vmatprep.subr.bf16.mxu0 %v2561
    %8103 = vmatpush1.bf16.msra.mxu0 %v2560
    %8104 = vmatprep.subr.bf16.mxu0 %v2545
    %8105 = vmatpush1.bf16.msra.mxu0 %v2544
    %8106 = vmatprep.subr.bf16.mxu0 %v2529
    %8107 = vmatpush1.bf16.msra.mxu0 %v2528
    %8108 = vmatprep.subr.bf16.mxu0 %v2513
    %8109 = vmatpush1.bf16.msra.mxu0 %v2512
    %8110 = vmatprep.subr.bf16.mxu0 %v2497
    %8111 = vmatpush1.bf16.msra.mxu0 %v2496
    %8112 = vmatprep.subr.bf16.mxu0 %v2481
    %8113 = vmatpush1.bf16.msra.mxu0 %v2480
    %8114 = vmatprep.subr.bf16.mxu0 %v2465
    %8115 = vmatpush1.bf16.msra.mxu0 %v2464
    %8116 = vmatprep.subr.bf16.mxu0 %v2705
    %8117 = vmatpush2.bf16.msra.mxu0 %v2704
    %8118 = vmatprep.subr.bf16.mxu0 %v2689
    %8119 = vmatpush2.bf16.msra.mxu0 %v2688
    %8120 = vmatprep.subr.bf16.mxu0 %v2673
    %8121 = vmatpush2.bf16.msra.mxu0 %v2672
    %8122 = vmatprep.subr.bf16.mxu0 %v2657
    %8123 = vmatpush2.bf16.msra.mxu0 %v2656
    %8124 = vmatprep.subr.bf16.mxu0 %v2641
    %8125 = vmatpush2.bf16.msra.mxu0 %v2640
    %8126 = vmatprep.subr.bf16.mxu0 %v2625
    %8127 = vmatpush2.bf16.msra.mxu0 %v2624
    %8128 = vmatprep.subr.bf16.mxu0 %v2609
    %8129 = vmatpush2.bf16.msra.mxu0 %v2608
    %8130 = vmatprep.subr.bf16.mxu0 %v2593
    %8131 = vmatpush2.bf16.msra.mxu0 %v2592
    %8132 = vmatprep.mubr.bf16.mxu0 %v8056
    %8133 = vmatmul.mubr.bf16.gmra.mxu0 %v8055
    %v8134 = vpop.f32.mrf.mxu0
    %v8135 = vadd.f32 %v8092, %v8134
    %v8136 = vpop.f32.mrf.mxu0
    %v8137 = vadd.f32 %v8094, %v8136
    %v8138 = vpop.f32.mrf.mxu0
    %v8139 = vadd.f32 %v8096, %v8138
    %v8140 = vpop.f32.mrf.mxu0
    %v8141 = vadd.f32 %v8098, %v8140
    %8142 = vdwg.mxu0
    %8143 = vmatprep.subr.bf16.mxu0 %v2323
    %8144 = vmatpush1.bf16.msra.mxu0 %v2322
    %8145 = vmatprep.subr.bf16.mxu0 %v2307
    %8146 = vmatpush1.bf16.msra.mxu0 %v2306
    %8147 = vmatprep.subr.bf16.mxu0 %v2291
    %8148 = vmatpush1.bf16.msra.mxu0 %v2290
    %8149 = vmatprep.subr.bf16.mxu0 %v2275
    %8150 = vmatpush1.bf16.msra.mxu0 %v2274
    %8151 = vmatprep.subr.bf16.mxu0 %v2259
    %8152 = vmatpush1.bf16.msra.mxu0 %v2258
    %8153 = vmatprep.subr.bf16.mxu0 %v2243
    %8154 = vmatpush1.bf16.msra.mxu0 %v2242
    %8155 = vmatprep.subr.bf16.mxu0 %v2227
    %8156 = vmatpush1.bf16.msra.mxu0 %v2226
    %8157 = vmatprep.subr.bf16.mxu0 %v2211
    %8158 = vmatpush1.bf16.msra.mxu0 %v2210
    %8159 = vmatprep.subr.bf16.mxu0 %v2451
    %8160 = vmatpush2.bf16.msra.mxu0 %v2450
    %8161 = vmatprep.subr.bf16.mxu0 %v2435
    %8162 = vmatpush2.bf16.msra.mxu0 %v2434
    %8163 = vmatprep.subr.bf16.mxu0 %v2419
    %8164 = vmatpush2.bf16.msra.mxu0 %v2418
    %8165 = vmatprep.subr.bf16.mxu0 %v2403
    %8166 = vmatpush2.bf16.msra.mxu0 %v2402
    %8167 = vmatprep.subr.bf16.mxu0 %v2387
    %8168 = vmatpush2.bf16.msra.mxu0 %v2386
    %8169 = vmatprep.subr.bf16.mxu0 %v2371
    %8170 = vmatpush2.bf16.msra.mxu0 %v2370
    %8171 = vmatprep.subr.bf16.mxu0 %v2355
    %8172 = vmatpush2.bf16.msra.mxu0 %v2354
    %8173 = vmatprep.subr.bf16.mxu0 %v2339
    %8174 = vmatpush2.bf16.msra.mxu0 %v2338
    %8175 = vmatprep.mubr.bf16.mxu0 %v8054
    %8176 = vmatmul.mubr.bf16.gmra.mxu0 %v8053
    %v8177 = vpop.f32.mrf.mxu0
    %v8178 = vadd.f32 0.0, %v8177
    %v8179 = vpop.f32.mrf.mxu0
    %v8180 = vadd.f32 0.0, %v8179
    %v8181 = vpop.f32.mrf.mxu0
    %v8182 = vadd.f32 0.0, %v8181
    %v8183 = vpop.f32.mrf.mxu0
    %v8184 = vadd.f32 0.0, %v8183
    %8185 = vdwg.mxu0
    %8186 = vmatprep.subr.bf16.mxu0 %v2579
    %8187 = vmatpush1.bf16.msra.mxu0 %v2578
    %8188 = vmatprep.subr.bf16.mxu0 %v2563
    %8189 = vmatpush1.bf16.msra.mxu0 %v2562
    %8190 = vmatprep.subr.bf16.mxu0 %v2547
    %8191 = vmatpush1.bf16.msra.mxu0 %v2546
    %8192 = vmatprep.subr.bf16.mxu0 %v2531
    %8193 = vmatpush1.bf16.msra.mxu0 %v2530
    %8194 = vmatprep.subr.bf16.mxu0 %v2515
    %8195 = vmatpush1.bf16.msra.mxu0 %v2514
    %8196 = vmatprep.subr.bf16.mxu0 %v2499
    %8197 = vmatpush1.bf16.msra.mxu0 %v2498
    %8198 = vmatprep.subr.bf16.mxu0 %v2483
    %8199 = vmatpush1.bf16.msra.mxu0 %v2482
    %8200 = vmatprep.subr.bf16.mxu0 %v2467
    %8201 = vmatpush1.bf16.msra.mxu0 %v2466
    %8202 = vmatprep.subr.bf16.mxu0 %v2707
    %8203 = vmatpush2.bf16.msra.mxu0 %v2706
    %8204 = vmatprep.subr.bf16.mxu0 %v2691
    %8205 = vmatpush2.bf16.msra.mxu0 %v2690
    %8206 = vmatprep.subr.bf16.mxu0 %v2675
    %8207 = vmatpush2.bf16.msra.mxu0 %v2674
    %8208 = vmatprep.subr.bf16.mxu0 %v2659
    %8209 = vmatpush2.bf16.msra.mxu0 %v2658
    %8210 = vmatprep.subr.bf16.mxu0 %v2643
    %8211 = vmatpush2.bf16.msra.mxu0 %v2642
    %8212 = vmatprep.subr.bf16.mxu0 %v2627
    %8213 = vmatpush2.bf16.msra.mxu0 %v2626
    %8214 = vmatprep.subr.bf16.mxu0 %v2611
    %8215 = vmatpush2.bf16.msra.mxu0 %v2610
    %8216 = vmatprep.subr.bf16.mxu0 %v2595
    %8217 = vmatpush2.bf16.msra.mxu0 %v2594
    %8218 = vmatprep.mubr.bf16.mxu0 %v8056
    %8219 = vmatmul.mubr.bf16.gmra.mxu0 %v8055
    %v8220 = vpop.f32.mrf.mxu0
    %v8221 = vadd.f32 %v8178, %v8220
    %v8222 = vpop.f32.mrf.mxu0
    %v8223 = vadd.f32 %v8180, %v8222
    %v8224 = vpop.f32.mrf.mxu0
    %v8225 = vadd.f32 %v8182, %v8224
    %v8226 = vpop.f32.mrf.mxu0
    %v8227 = vadd.f32 %v8184, %v8226
    %8228 = vdwg.mxu0
    %8229 = vmatprep.subr.bf16.mxu0 %v2325
    %8230 = vmatpush1.bf16.msra.mxu0 %v2324
    %8231 = vmatprep.subr.bf16.mxu0 %v2309
    %8232 = vmatpush1.bf16.msra.mxu0 %v2308
    %8233 = vmatprep.subr.bf16.mxu0 %v2293
    %8234 = vmatpush1.bf16.msra.mxu0 %v2292
    %8235 = vmatprep.subr.bf16.mxu0 %v2277
    %8236 = vmatpush1.bf16.msra.mxu0 %v2276
    %8237 = vmatprep.subr.bf16.mxu0 %v2261
    %8238 = vmatpush1.bf16.msra.mxu0 %v2260
    %8239 = vmatprep.subr.bf16.mxu0 %v2245
    %8240 = vmatpush1.bf16.msra.mxu0 %v2244
    %8241 = vmatprep.subr.bf16.mxu0 %v2229
    %8242 = vmatpush1.bf16.msra.mxu0 %v2228
    %8243 = vmatprep.subr.bf16.mxu0 %v2213
    %8244 = vmatpush1.bf16.msra.mxu0 %v2212
    %8245 = vmatprep.subr.bf16.mxu0 %v2453
    %8246 = vmatpush2.bf16.msra.mxu0 %v2452
    %8247 = vmatprep.subr.bf16.mxu0 %v2437
    %8248 = vmatpush2.bf16.msra.mxu0 %v2436
    %8249 = vmatprep.subr.bf16.mxu0 %v2421
    %8250 = vmatpush2.bf16.msra.mxu0 %v2420
    %8251 = vmatprep.subr.bf16.mxu0 %v2405
    %8252 = vmatpush2.bf16.msra.mxu0 %v2404
    %8253 = vmatprep.subr.bf16.mxu0 %v2389
    %8254 = vmatpush2.bf16.msra.mxu0 %v2388
    %8255 = vmatprep.subr.bf16.mxu0 %v2373
    %8256 = vmatpush2.bf16.msra.mxu0 %v2372
    %8257 = vmatprep.subr.bf16.mxu0 %v2357
    %8258 = vmatpush2.bf16.msra.mxu0 %v2356
    %8259 = vmatprep.subr.bf16.mxu0 %v2341
    %8260 = vmatpush2.bf16.msra.mxu0 %v2340
    %8261 = vmatprep.mubr.bf16.mxu0 %v8054
    %8262 = vmatmul.mubr.bf16.gmra.mxu0 %v8053
    %v8263 = vpop.f32.mrf.mxu0
    %v8264 = vadd.f32 0.0, %v8263
    %v8265 = vpop.f32.mrf.mxu0
    %v8266 = vadd.f32 0.0, %v8265
    %v8267 = vpop.f32.mrf.mxu0
    %v8268 = vadd.f32 0.0, %v8267
    %v8269 = vpop.f32.mrf.mxu0
    %v8270 = vadd.f32 0.0, %v8269
    %8271 = vdwg.mxu0
    %8272 = vmatprep.subr.bf16.mxu0 %v2581
    %8273 = vmatpush1.bf16.msra.mxu0 %v2580
    %8274 = vmatprep.subr.bf16.mxu0 %v2565
    %8275 = vmatpush1.bf16.msra.mxu0 %v2564
    %8276 = vmatprep.subr.bf16.mxu0 %v2549
    %8277 = vmatpush1.bf16.msra.mxu0 %v2548
    %8278 = vmatprep.subr.bf16.mxu0 %v2533
    %8279 = vmatpush1.bf16.msra.mxu0 %v2532
    %8280 = vmatprep.subr.bf16.mxu0 %v2517
    %8281 = vmatpush1.bf16.msra.mxu0 %v2516
    %8282 = vmatprep.subr.bf16.mxu0 %v2501
    %8283 = vmatpush1.bf16.msra.mxu0 %v2500
    %8284 = vmatprep.subr.bf16.mxu0 %v2485
    %8285 = vmatpush1.bf16.msra.mxu0 %v2484
    %8286 = vmatprep.subr.bf16.mxu0 %v2469
    %8287 = vmatpush1.bf16.msra.mxu0 %v2468
    %8288 = vmatprep.subr.bf16.mxu0 %v2709
    %8289 = vmatpush2.bf16.msra.mxu0 %v2708
    %8290 = vmatprep.subr.bf16.mxu0 %v2693
    %8291 = vmatpush2.bf16.msra.mxu0 %v2692
    %8292 = vmatprep.subr.bf16.mxu0 %v2677
    %8293 = vmatpush2.bf16.msra.mxu0 %v2676
    %8294 = vmatprep.subr.bf16.mxu0 %v2661
    %8295 = vmatpush2.bf16.msra.mxu0 %v2660
    %8296 = vmatprep.subr.bf16.mxu0 %v2645
    %8297 = vmatpush2.bf16.msra.mxu0 %v2644
    %8298 = vmatprep.subr.bf16.mxu0 %v2629
    %8299 = vmatpush2.bf16.msra.mxu0 %v2628
    %8300 = vmatprep.subr.bf16.mxu0 %v2613
    %8301 = vmatpush2.bf16.msra.mxu0 %v2612
    %8302 = vmatprep.subr.bf16.mxu0 %v2597
    %8303 = vmatpush2.bf16.msra.mxu0 %v2596
    %8304 = vmatprep.mubr.bf16.mxu0 %v8056
    %8305 = vmatmul.mubr.bf16.gmra.mxu0 %v8055
    %v8306 = vpop.f32.mrf.mxu0
    %v8307 = vadd.f32 %v8264, %v8306
    %v8308 = vpop.f32.mrf.mxu0
    %v8309 = vadd.f32 %v8266, %v8308
    %v8310 = vpop.f32.mrf.mxu0
    %v8311 = vadd.f32 %v8268, %v8310
    %v8312 = vpop.f32.mrf.mxu0
    %v8313 = vadd.f32 %v8270, %v8312
    %8314 = vdwg.mxu0
    %8315 = vmatprep.subr.bf16.mxu0 %v2327
    %8316 = vmatpush1.bf16.msra.mxu0 %v2326
    %8317 = vmatprep.subr.bf16.mxu0 %v2311
    %8318 = vmatpush1.bf16.msra.mxu0 %v2310
    %8319 = vmatprep.subr.bf16.mxu0 %v2295
    %8320 = vmatpush1.bf16.msra.mxu0 %v2294
    %8321 = vmatprep.subr.bf16.mxu0 %v2279
    %8322 = vmatpush1.bf16.msra.mxu0 %v2278
    %8323 = vmatprep.subr.bf16.mxu0 %v2263
    %8324 = vmatpush1.bf16.msra.mxu0 %v2262
    %8325 = vmatprep.subr.bf16.mxu0 %v2247
    %8326 = vmatpush1.bf16.msra.mxu0 %v2246
    %8327 = vmatprep.subr.bf16.mxu0 %v2231
    %8328 = vmatpush1.bf16.msra.mxu0 %v2230
    %8329 = vmatprep.subr.bf16.mxu0 %v2215
    %8330 = vmatpush1.bf16.msra.mxu0 %v2214
    %8331 = vmatprep.subr.bf16.mxu0 %v2455
    %8332 = vmatpush2.bf16.msra.mxu0 %v2454
    %8333 = vmatprep.subr.bf16.mxu0 %v2439
    %8334 = vmatpush2.bf16.msra.mxu0 %v2438
    %8335 = vmatprep.subr.bf16.mxu0 %v2423
    %8336 = vmatpush2.bf16.msra.mxu0 %v2422
    %8337 = vmatprep.subr.bf16.mxu0 %v2407
    %8338 = vmatpush2.bf16.msra.mxu0 %v2406
    %8339 = vmatprep.subr.bf16.mxu0 %v2391
    %8340 = vmatpush2.bf16.msra.mxu0 %v2390
    %8341 = vmatprep.subr.bf16.mxu0 %v2375
    %8342 = vmatpush2.bf16.msra.mxu0 %v2374
    %8343 = vmatprep.subr.bf16.mxu0 %v2359
    %8344 = vmatpush2.bf16.msra.mxu0 %v2358
    %8345 = vmatprep.subr.bf16.mxu0 %v2343
    %8346 = vmatpush2.bf16.msra.mxu0 %v2342
    %8347 = vmatprep.mubr.bf16.mxu0 %v8054
    %8348 = vmatmul.mubr.bf16.gmra.mxu0 %v8053
    %v8349 = vpop.f32.mrf.mxu0
    %v8350 = vadd.f32 0.0, %v8349
    %v8351 = vpop.f32.mrf.mxu0
    %v8352 = vadd.f32 0.0, %v8351
    %v8353 = vpop.f32.mrf.mxu0
    %v8354 = vadd.f32 0.0, %v8353
    %v8355 = vpop.f32.mrf.mxu0
    %v8356 = vadd.f32 0.0, %v8355
    %8357 = vdwg.mxu0
    %8358 = vmatprep.subr.bf16.mxu0 %v2583
    %8359 = vmatpush1.bf16.msra.mxu0 %v2582
    %8360 = vmatprep.subr.bf16.mxu0 %v2567
    %8361 = vmatpush1.bf16.msra.mxu0 %v2566
    %8362 = vmatprep.subr.bf16.mxu0 %v2551
    %8363 = vmatpush1.bf16.msra.mxu0 %v2550
    %8364 = vmatprep.subr.bf16.mxu0 %v2535
    %8365 = vmatpush1.bf16.msra.mxu0 %v2534
    %8366 = vmatprep.subr.bf16.mxu0 %v2519
    %8367 = vmatpush1.bf16.msra.mxu0 %v2518
    %8368 = vmatprep.subr.bf16.mxu0 %v2503
    %8369 = vmatpush1.bf16.msra.mxu0 %v2502
    %8370 = vmatprep.subr.bf16.mxu0 %v2487
    %8371 = vmatpush1.bf16.msra.mxu0 %v2486
    %8372 = vmatprep.subr.bf16.mxu0 %v2471
    %8373 = vmatpush1.bf16.msra.mxu0 %v2470
    %8374 = vmatprep.subr.bf16.mxu0 %v2711
    %8375 = vmatpush2.bf16.msra.mxu0 %v2710
    %8376 = vmatprep.subr.bf16.mxu0 %v2695
    %8377 = vmatpush2.bf16.msra.mxu0 %v2694
    %8378 = vmatprep.subr.bf16.mxu0 %v2679
    %8379 = vmatpush2.bf16.msra.mxu0 %v2678
    %8380 = vmatprep.subr.bf16.mxu0 %v2663
    %8381 = vmatpush2.bf16.msra.mxu0 %v2662
    %8382 = vmatprep.subr.bf16.mxu0 %v2647
    %8383 = vmatpush2.bf16.msra.mxu0 %v2646
    %8384 = vmatprep.subr.bf16.mxu0 %v2631
    %8385 = vmatpush2.bf16.msra.mxu0 %v2630
    %8386 = vmatprep.subr.bf16.mxu0 %v2615
    %8387 = vmatpush2.bf16.msra.mxu0 %v2614
    %8388 = vmatprep.subr.bf16.mxu0 %v2599
    %8389 = vmatpush2.bf16.msra.mxu0 %v2598
    %8390 = vmatprep.mubr.bf16.mxu0 %v8056
    %8391 = vmatmul.mubr.bf16.gmra.mxu0 %v8055
    %v8392 = vpop.f32.mrf.mxu0
    %v8393 = vadd.f32 %v8350, %v8392
    %v8394 = vpop.f32.mrf.mxu0
    %v8395 = vadd.f32 %v8352, %v8394
    %v8396 = vpop.f32.mrf.mxu0
    %v8397 = vadd.f32 %v8354, %v8396
    %v8398 = vpop.f32.mrf.mxu0
    %v8399 = vadd.f32 %v8356, %v8398
    %8400 = vdwg.mxu0
    %8401 = vmatprep.subr.bf16.mxu0 %v2329
    %8402 = vmatpush1.bf16.msra.mxu0 %v2328
    %8403 = vmatprep.subr.bf16.mxu0 %v2313
    %8404 = vmatpush1.bf16.msra.mxu0 %v2312
    %8405 = vmatprep.subr.bf16.mxu0 %v2297
    %8406 = vmatpush1.bf16.msra.mxu0 %v2296
    %8407 = vmatprep.subr.bf16.mxu0 %v2281
    %8408 = vmatpush1.bf16.msra.mxu0 %v2280
    %8409 = vmatprep.subr.bf16.mxu0 %v2265
    %8410 = vmatpush1.bf16.msra.mxu0 %v2264
    %8411 = vmatprep.subr.bf16.mxu0 %v2249
    %8412 = vmatpush1.bf16.msra.mxu0 %v2248
    %8413 = vmatprep.subr.bf16.mxu0 %v2233
    %8414 = vmatpush1.bf16.msra.mxu0 %v2232
    %8415 = vmatprep.subr.bf16.mxu0 %v2217
    %8416 = vmatpush1.bf16.msra.mxu0 %v2216
    %8417 = vmatprep.subr.bf16.mxu0 %v2457
    %8418 = vmatpush2.bf16.msra.mxu0 %v2456
    %8419 = vmatprep.subr.bf16.mxu0 %v2441
    %8420 = vmatpush2.bf16.msra.mxu0 %v2440
    %8421 = vmatprep.subr.bf16.mxu0 %v2425
    %8422 = vmatpush2.bf16.msra.mxu0 %v2424
    %8423 = vmatprep.subr.bf16.mxu0 %v2409
    %8424 = vmatpush2.bf16.msra.mxu0 %v2408
    %8425 = vmatprep.subr.bf16.mxu0 %v2393
    %8426 = vmatpush2.bf16.msra.mxu0 %v2392
    %8427 = vmatprep.subr.bf16.mxu0 %v2377
    %8428 = vmatpush2.bf16.msra.mxu0 %v2376
    %8429 = vmatprep.subr.bf16.mxu0 %v2361
    %8430 = vmatpush2.bf16.msra.mxu0 %v2360
    %8431 = vmatprep.subr.bf16.mxu0 %v2345
    %8432 = vmatpush2.bf16.msra.mxu0 %v2344
    %8433 = vmatprep.mubr.bf16.mxu0 %v8054
    %8434 = vmatmul.mubr.bf16.gmra.mxu0 %v8053
    %v8435 = vpop.f32.mrf.mxu0
    %v8436 = vadd.f32 0.0, %v8435
    %v8437 = vpop.f32.mrf.mxu0
    %v8438 = vadd.f32 0.0, %v8437
    %v8439 = vpop.f32.mrf.mxu0
    %v8440 = vadd.f32 0.0, %v8439
    %v8441 = vpop.f32.mrf.mxu0
    %v8442 = vadd.f32 0.0, %v8441
    %8443 = vdwg.mxu0
    %8444 = vmatprep.subr.bf16.mxu0 %v2585
    %8445 = vmatpush1.bf16.msra.mxu0 %v2584
    %8446 = vmatprep.subr.bf16.mxu0 %v2569
    %8447 = vmatpush1.bf16.msra.mxu0 %v2568
    %8448 = vmatprep.subr.bf16.mxu0 %v2553
    %8449 = vmatpush1.bf16.msra.mxu0 %v2552
    %8450 = vmatprep.subr.bf16.mxu0 %v2537
    %8451 = vmatpush1.bf16.msra.mxu0 %v2536
    %8452 = vmatprep.subr.bf16.mxu0 %v2521
    %8453 = vmatpush1.bf16.msra.mxu0 %v2520
    %8454 = vmatprep.subr.bf16.mxu0 %v2505
    %8455 = vmatpush1.bf16.msra.mxu0 %v2504
    %8456 = vmatprep.subr.bf16.mxu0 %v2489
    %8457 = vmatpush1.bf16.msra.mxu0 %v2488
    %8458 = vmatprep.subr.bf16.mxu0 %v2473
    %8459 = vmatpush1.bf16.msra.mxu0 %v2472
    %8460 = vmatprep.subr.bf16.mxu0 %v2713
    %8461 = vmatpush2.bf16.msra.mxu0 %v2712
    %8462 = vmatprep.subr.bf16.mxu0 %v2697
    %8463 = vmatpush2.bf16.msra.mxu0 %v2696
    %8464 = vmatprep.subr.bf16.mxu0 %v2681
    %8465 = vmatpush2.bf16.msra.mxu0 %v2680
    %8466 = vmatprep.subr.bf16.mxu0 %v2665
    %8467 = vmatpush2.bf16.msra.mxu0 %v2664
    %8468 = vmatprep.subr.bf16.mxu0 %v2649
    %8469 = vmatpush2.bf16.msra.mxu0 %v2648
    %8470 = vmatprep.subr.bf16.mxu0 %v2633
    %8471 = vmatpush2.bf16.msra.mxu0 %v2632
    %8472 = vmatprep.subr.bf16.mxu0 %v2617
    %8473 = vmatpush2.bf16.msra.mxu0 %v2616
    %8474 = vmatprep.subr.bf16.mxu0 %v2601
    %8475 = vmatpush2.bf16.msra.mxu0 %v2600
    %8476 = vmatprep.mubr.bf16.mxu0 %v8056
    %8477 = vmatmul.mubr.bf16.gmra.mxu0 %v8055
    %v8478 = vpop.f32.mrf.mxu0
    %v8479 = vadd.f32 %v8436, %v8478
    %v8480 = vpop.f32.mrf.mxu0
    %v8481 = vadd.f32 %v8438, %v8480
    %v8482 = vpop.f32.mrf.mxu0
    %v8483 = vadd.f32 %v8440, %v8482
    %v8484 = vpop.f32.mrf.mxu0
    %v8485 = vadd.f32 %v8442, %v8484
    %8486 = vdwg.mxu0
    %8487 = vmatprep.subr.bf16.mxu0 %v2331
    %8488 = vmatpush1.bf16.msra.mxu0 %v2330
    %8489 = vmatprep.subr.bf16.mxu0 %v2315
    %8490 = vmatpush1.bf16.msra.mxu0 %v2314
    %8491 = vmatprep.subr.bf16.mxu0 %v2299
    %8492 = vmatpush1.bf16.msra.mxu0 %v2298
    %8493 = vmatprep.subr.bf16.mxu0 %v2283
    %8494 = vmatpush1.bf16.msra.mxu0 %v2282
    %8495 = vmatprep.subr.bf16.mxu0 %v2267
    %8496 = vmatpush1.bf16.msra.mxu0 %v2266
    %8497 = vmatprep.subr.bf16.mxu0 %v2251
    %8498 = vmatpush1.bf16.msra.mxu0 %v2250
    %8499 = vmatprep.subr.bf16.mxu0 %v2235
    %8500 = vmatpush1.bf16.msra.mxu0 %v2234
    %8501 = vmatprep.subr.bf16.mxu0 %v2219
    %8502 = vmatpush1.bf16.msra.mxu0 %v2218
    %8503 = vmatprep.subr.bf16.mxu0 %v2459
    %8504 = vmatpush2.bf16.msra.mxu0 %v2458
    %8505 = vmatprep.subr.bf16.mxu0 %v2443
    %8506 = vmatpush2.bf16.msra.mxu0 %v2442
    %8507 = vmatprep.subr.bf16.mxu0 %v2427
    %8508 = vmatpush2.bf16.msra.mxu0 %v2426
    %8509 = vmatprep.subr.bf16.mxu0 %v2411
    %8510 = vmatpush2.bf16.msra.mxu0 %v2410
    %8511 = vmatprep.subr.bf16.mxu0 %v2395
    %8512 = vmatpush2.bf16.msra.mxu0 %v2394
    %8513 = vmatprep.subr.bf16.mxu0 %v2379
    %8514 = vmatpush2.bf16.msra.mxu0 %v2378
    %8515 = vmatprep.subr.bf16.mxu0 %v2363
    %8516 = vmatpush2.bf16.msra.mxu0 %v2362
    %8517 = vmatprep.subr.bf16.mxu0 %v2347
    %8518 = vmatpush2.bf16.msra.mxu0 %v2346
    %8519 = vmatprep.mubr.bf16.mxu0 %v8054
    %8520 = vmatmul.mubr.bf16.gmra.mxu0 %v8053
    %v8521 = vpop.f32.mrf.mxu0
    %v8522 = vadd.f32 0.0, %v8521
    %v8523 = vpop.f32.mrf.mxu0
    %v8524 = vadd.f32 0.0, %v8523
    %v8525 = vpop.f32.mrf.mxu0
    %v8526 = vadd.f32 0.0, %v8525
    %v8527 = vpop.f32.mrf.mxu0
    %v8528 = vadd.f32 0.0, %v8527
    %8529 = vdwg.mxu0
    %8530 = vmatprep.subr.bf16.mxu0 %v2587
    %8531 = vmatpush1.bf16.msra.mxu0 %v2586
    %8532 = vmatprep.subr.bf16.mxu0 %v2571
    %8533 = vmatpush1.bf16.msra.mxu0 %v2570
    %8534 = vmatprep.subr.bf16.mxu0 %v2555
    %8535 = vmatpush1.bf16.msra.mxu0 %v2554
    %8536 = vmatprep.subr.bf16.mxu0 %v2539
    %8537 = vmatpush1.bf16.msra.mxu0 %v2538
    %8538 = vmatprep.subr.bf16.mxu0 %v2523
    %8539 = vmatpush1.bf16.msra.mxu0 %v2522
    %8540 = vmatprep.subr.bf16.mxu0 %v2507
    %8541 = vmatpush1.bf16.msra.mxu0 %v2506
    %8542 = vmatprep.subr.bf16.mxu0 %v2491
    %8543 = vmatpush1.bf16.msra.mxu0 %v2490
    %8544 = vmatprep.subr.bf16.mxu0 %v2475
    %8545 = vmatpush1.bf16.msra.mxu0 %v2474
    %8546 = vmatprep.subr.bf16.mxu0 %v2715
    %8547 = vmatpush2.bf16.msra.mxu0 %v2714
    %8548 = vmatprep.subr.bf16.mxu0 %v2699
    %8549 = vmatpush2.bf16.msra.mxu0 %v2698
    %8550 = vmatprep.subr.bf16.mxu0 %v2683
    %8551 = vmatpush2.bf16.msra.mxu0 %v2682
    %8552 = vmatprep.subr.bf16.mxu0 %v2667
    %8553 = vmatpush2.bf16.msra.mxu0 %v2666
    %8554 = vmatprep.subr.bf16.mxu0 %v2651
    %8555 = vmatpush2.bf16.msra.mxu0 %v2650
    %8556 = vmatprep.subr.bf16.mxu0 %v2635
    %8557 = vmatpush2.bf16.msra.mxu0 %v2634
    %8558 = vmatprep.subr.bf16.mxu0 %v2619
    %8559 = vmatpush2.bf16.msra.mxu0 %v2618
    %8560 = vmatprep.subr.bf16.mxu0 %v2603
    %8561 = vmatpush2.bf16.msra.mxu0 %v2602
    %8562 = vmatprep.mubr.bf16.mxu0 %v8056
    %8563 = vmatmul.mubr.bf16.gmra.mxu0 %v8055
    %v8564 = vpop.f32.mrf.mxu0
    %v8565 = vadd.f32 %v8522, %v8564
    %v8566 = vpop.f32.mrf.mxu0
    %v8567 = vadd.f32 %v8524, %v8566
    %v8568 = vpop.f32.mrf.mxu0
    %v8569 = vadd.f32 %v8526, %v8568
    %v8570 = vpop.f32.mrf.mxu0
    %v8571 = vadd.f32 %v8528, %v8570
    %8572 = vdwg.mxu0
    %8573 = vmatprep.subr.bf16.mxu0 %v2333
    %8574 = vmatpush1.bf16.msra.mxu0 %v2332
    %8575 = vmatprep.subr.bf16.mxu0 %v2317
    %8576 = vmatpush1.bf16.msra.mxu0 %v2316
    %8577 = vmatprep.subr.bf16.mxu0 %v2301
    %8578 = vmatpush1.bf16.msra.mxu0 %v2300
    %8579 = vmatprep.subr.bf16.mxu0 %v2285
    %8580 = vmatpush1.bf16.msra.mxu0 %v2284
    %8581 = vmatprep.subr.bf16.mxu0 %v2269
    %8582 = vmatpush1.bf16.msra.mxu0 %v2268
    %8583 = vmatprep.subr.bf16.mxu0 %v2253
    %8584 = vmatpush1.bf16.msra.mxu0 %v2252
    %8585 = vmatprep.subr.bf16.mxu0 %v2237
    %8586 = vmatpush1.bf16.msra.mxu0 %v2236
    %8587 = vmatprep.subr.bf16.mxu0 %v2221
    %8588 = vmatpush1.bf16.msra.mxu0 %v2220
    %8589 = vmatprep.subr.bf16.mxu0 %v2461
    %8590 = vmatpush2.bf16.msra.mxu0 %v2460
    %8591 = vmatprep.subr.bf16.mxu0 %v2445
    %8592 = vmatpush2.bf16.msra.mxu0 %v2444
    %8593 = vmatprep.subr.bf16.mxu0 %v2429
    %8594 = vmatpush2.bf16.msra.mxu0 %v2428
    %8595 = vmatprep.subr.bf16.mxu0 %v2413
    %8596 = vmatpush2.bf16.msra.mxu0 %v2412
    %8597 = vmatprep.subr.bf16.mxu0 %v2397
    %8598 = vmatpush2.bf16.msra.mxu0 %v2396
    %8599 = vmatprep.subr.bf16.mxu0 %v2381
    %8600 = vmatpush2.bf16.msra.mxu0 %v2380
    %8601 = vmatprep.subr.bf16.mxu0 %v2365
    %8602 = vmatpush2.bf16.msra.mxu0 %v2364
    %8603 = vmatprep.subr.bf16.mxu0 %v2349
    %8604 = vmatpush2.bf16.msra.mxu0 %v2348
    %8605 = vmatprep.mubr.bf16.mxu0 %v8054
    %8606 = vmatmul.mubr.bf16.gmra.mxu0 %v8053
    %v8607 = vpop.f32.mrf.mxu0
    %v8608 = vadd.f32 0.0, %v8607
    %v8609 = vpop.f32.mrf.mxu0
    %v8610 = vadd.f32 0.0, %v8609
    %v8611 = vpop.f32.mrf.mxu0
    %v8612 = vadd.f32 0.0, %v8611
    %v8613 = vpop.f32.mrf.mxu0
    %v8614 = vadd.f32 0.0, %v8613
    %8615 = vdwg.mxu0
    %8616 = vmatprep.subr.bf16.mxu0 %v2589
    %8617 = vmatpush1.bf16.msra.mxu0 %v2588
    %8618 = vmatprep.subr.bf16.mxu0 %v2573
    %8619 = vmatpush1.bf16.msra.mxu0 %v2572
    %8620 = vmatprep.subr.bf16.mxu0 %v2557
    %8621 = vmatpush1.bf16.msra.mxu0 %v2556
    %8622 = vmatprep.subr.bf16.mxu0 %v2541
    %8623 = vmatpush1.bf16.msra.mxu0 %v2540
    %8624 = vmatprep.subr.bf16.mxu0 %v2525
    %8625 = vmatpush1.bf16.msra.mxu0 %v2524
    %8626 = vmatprep.subr.bf16.mxu0 %v2509
    %8627 = vmatpush1.bf16.msra.mxu0 %v2508
    %8628 = vmatprep.subr.bf16.mxu0 %v2493
    %8629 = vmatpush1.bf16.msra.mxu0 %v2492
    %8630 = vmatprep.subr.bf16.mxu0 %v2477
    %8631 = vmatpush1.bf16.msra.mxu0 %v2476
    %8632 = vmatprep.subr.bf16.mxu0 %v2717
    %8633 = vmatpush2.bf16.msra.mxu0 %v2716
    %8634 = vmatprep.subr.bf16.mxu0 %v2701
    %8635 = vmatpush2.bf16.msra.mxu0 %v2700
    %8636 = vmatprep.subr.bf16.mxu0 %v2685
    %8637 = vmatpush2.bf16.msra.mxu0 %v2684
    %8638 = vmatprep.subr.bf16.mxu0 %v2669
    %8639 = vmatpush2.bf16.msra.mxu0 %v2668
    %8640 = vmatprep.subr.bf16.mxu0 %v2653
    %8641 = vmatpush2.bf16.msra.mxu0 %v2652
    %8642 = vmatprep.subr.bf16.mxu0 %v2637
    %8643 = vmatpush2.bf16.msra.mxu0 %v2636
    %8644 = vmatprep.subr.bf16.mxu0 %v2621
    %8645 = vmatpush2.bf16.msra.mxu0 %v2620
    %8646 = vmatprep.subr.bf16.mxu0 %v2605
    %8647 = vmatpush2.bf16.msra.mxu0 %v2604
    %8648 = vmatprep.mubr.bf16.mxu0 %v8056
    %8649 = vmatmul.mubr.bf16.gmra.mxu0 %v8055
    %v8650 = vpop.f32.mrf.mxu0
    %v8651 = vadd.f32 %v8608, %v8650
    %v8652 = vpop.f32.mrf.mxu0
    %v8653 = vadd.f32 %v8610, %v8652
    %v8654 = vpop.f32.mrf.mxu0
    %v8655 = vadd.f32 %v8612, %v8654
    %v8656 = vpop.f32.mrf.mxu0
    %v8657 = vadd.f32 %v8614, %v8656
    %8658 = vdwg.mxu0
    %8659 = vmatprep.subr.bf16.mxu0 %v2335
    %8660 = vmatpush1.bf16.msra.mxu0 %v2334
    %8661 = vmatprep.subr.bf16.mxu0 %v2319
    %8662 = vmatpush1.bf16.msra.mxu0 %v2318
    %8663 = vmatprep.subr.bf16.mxu0 %v2303
    %8664 = vmatpush1.bf16.msra.mxu0 %v2302
    %8665 = vmatprep.subr.bf16.mxu0 %v2287
    %8666 = vmatpush1.bf16.msra.mxu0 %v2286
    %8667 = vmatprep.subr.bf16.mxu0 %v2271
    %8668 = vmatpush1.bf16.msra.mxu0 %v2270
    %8669 = vmatprep.subr.bf16.mxu0 %v2255
    %8670 = vmatpush1.bf16.msra.mxu0 %v2254
    %8671 = vmatprep.subr.bf16.mxu0 %v2239
    %8672 = vmatpush1.bf16.msra.mxu0 %v2238
    %8673 = vmatprep.subr.bf16.mxu0 %v2223
    %8674 = vmatpush1.bf16.msra.mxu0 %v2222
    %8675 = vmatprep.subr.bf16.mxu0 %v2463
    %8676 = vmatpush2.bf16.msra.mxu0 %v2462
    %8677 = vmatprep.subr.bf16.mxu0 %v2447
    %8678 = vmatpush2.bf16.msra.mxu0 %v2446
    %8679 = vmatprep.subr.bf16.mxu0 %v2431
    %8680 = vmatpush2.bf16.msra.mxu0 %v2430
    %8681 = vmatprep.subr.bf16.mxu0 %v2415
    %8682 = vmatpush2.bf16.msra.mxu0 %v2414
    %8683 = vmatprep.subr.bf16.mxu0 %v2399
    %8684 = vmatpush2.bf16.msra.mxu0 %v2398
    %8685 = vmatprep.subr.bf16.mxu0 %v2383
    %8686 = vmatpush2.bf16.msra.mxu0 %v2382
    %8687 = vmatprep.subr.bf16.mxu0 %v2367
    %8688 = vmatpush2.bf16.msra.mxu0 %v2366
    %8689 = vmatprep.subr.bf16.mxu0 %v2351
    %8690 = vmatpush2.bf16.msra.mxu0 %v2350
    %8691 = vmatprep.mubr.bf16.mxu0 %v8054
    %8692 = vmatmul.mubr.bf16.gmra.mxu0 %v8053
    %v8693 = vpop.f32.mrf.mxu0
    %v8694 = vadd.f32 0.0, %v8693
    %v8695 = vpop.f32.mrf.mxu0
    %v8696 = vadd.f32 0.0, %v8695
    %v8697 = vpop.f32.mrf.mxu0
    %v8698 = vadd.f32 0.0, %v8697
    %v8699 = vpop.f32.mrf.mxu0
    %v8700 = vadd.f32 0.0, %v8699
    %8701 = vdwg.mxu0
    %8702 = vmatprep.subr.bf16.mxu0 %v2591
    %8703 = vmatpush1.bf16.msra.mxu0 %v2590
    %8704 = vmatprep.subr.bf16.mxu0 %v2575
    %8705 = vmatpush1.bf16.msra.mxu0 %v2574
    %8706 = vmatprep.subr.bf16.mxu0 %v2559
    %8707 = vmatpush1.bf16.msra.mxu0 %v2558
    %8708 = vmatprep.subr.bf16.mxu0 %v2543
    %8709 = vmatpush1.bf16.msra.mxu0 %v2542
    %8710 = vmatprep.subr.bf16.mxu0 %v2527
    %8711 = vmatpush1.bf16.msra.mxu0 %v2526
    %8712 = vmatprep.subr.bf16.mxu0 %v2511
    %8713 = vmatpush1.bf16.msra.mxu0 %v2510
    %8714 = vmatprep.subr.bf16.mxu0 %v2495
    %8715 = vmatpush1.bf16.msra.mxu0 %v2494
    %8716 = vmatprep.subr.bf16.mxu0 %v2479
    %8717 = vmatpush1.bf16.msra.mxu0 %v2478
    %8718 = vmatprep.subr.bf16.mxu0 %v2719
    %8719 = vmatpush2.bf16.msra.mxu0 %v2718
    %8720 = vmatprep.subr.bf16.mxu0 %v2703
    %8721 = vmatpush2.bf16.msra.mxu0 %v2702
    %8722 = vmatprep.subr.bf16.mxu0 %v2687
    %8723 = vmatpush2.bf16.msra.mxu0 %v2686
    %8724 = vmatprep.subr.bf16.mxu0 %v2671
    %8725 = vmatpush2.bf16.msra.mxu0 %v2670
    %8726 = vmatprep.subr.bf16.mxu0 %v2655
    %8727 = vmatpush2.bf16.msra.mxu0 %v2654
    %8728 = vmatprep.subr.bf16.mxu0 %v2639
    %8729 = vmatpush2.bf16.msra.mxu0 %v2638
    %8730 = vmatprep.subr.bf16.mxu0 %v2623
    %8731 = vmatpush2.bf16.msra.mxu0 %v2622
    %8732 = vmatprep.subr.bf16.mxu0 %v2607
    %8733 = vmatpush2.bf16.msra.mxu0 %v2606
    %8734 = vmatprep.mubr.bf16.mxu0 %v8056
    %8735 = vmatmul.mubr.bf16.gmra.mxu0 %v8055
    %v8736 = vpop.f32.mrf.mxu0
    %v8737 = vadd.f32 %v8694, %v8736
    %v8738 = vpop.f32.mrf.mxu0
    %v8739 = vadd.f32 %v8696, %v8738
    %v8740 = vpop.f32.mrf.mxu0
    %v8741 = vadd.f32 %v8698, %v8740
    %v8742 = vpop.f32.mrf.mxu0
    %v8743 = vadd.f32 %v8700, %v8742
    %8744 = vdwg.mxu0
    %v8745 = vadd.f32 %v8021, %v8135
    %v8746 = vadd.f32 %v8022, %v8137
    %v8747 = vadd.f32 %v8023, %v8221
    %v8748 = vadd.f32 %v8024, %v8223
    %v8749 = vadd.f32 %v8025, %v8307
    %v8750 = vadd.f32 %v8026, %v8309
    %v8751 = vadd.f32 %v8027, %v8393
    %v8752 = vadd.f32 %v8028, %v8395
    %v8753 = vadd.f32 %v8029, %v8479
    %v8754 = vadd.f32 %v8030, %v8481
    %v8755 = vadd.f32 %v8031, %v8565
    %v8756 = vadd.f32 %v8032, %v8567
    %v8757 = vadd.f32 %v8033, %v8651
    %v8758 = vadd.f32 %v8034, %v8653
    %v8759 = vadd.f32 %v8035, %v8737
    %v8760 = vadd.f32 %v8036, %v8739
    %v8761 = vadd.f32 %v8037, %v8139
    %v8762 = vadd.f32 %v8038, %v8141
    %v8763 = vadd.f32 %v8039, %v8225
    %v8764 = vadd.f32 %v8040, %v8227
    %v8765 = vadd.f32 %v8041, %v8311
    %v8766 = vadd.f32 %v8042, %v8313
    %v8767 = vadd.f32 %v8043, %v8397
    %v8768 = vadd.f32 %v8044, %v8399
    %v8769 = vadd.f32 %v8045, %v8483
    %v8770 = vadd.f32 %v8046, %v8485
    %v8771 = vadd.f32 %v8047, %v8569
    %v8772 = vadd.f32 %v8048, %v8571
    %v8773 = vadd.f32 %v8049, %v8655
    %v8774 = vadd.f32 %v8050, %v8657
    %v8775 = vadd.f32 %v8051, %v8741
    %v8776 = vadd.f32 %v8052, %v8743
    %v8777 = vxor.u32 %v8745, 2147483648
    %v8778 = vxor.u32 %v8746, 2147483648
    %v8779 = vxor.u32 %v8747, 2147483648
    %v8780 = vxor.u32 %v8748, 2147483648
    %v8781 = vxor.u32 %v8761, 2147483648
    %v8782 = vxor.u32 %v8762, 2147483648
    %v8783 = vxor.u32 %v8763, 2147483648
    %v8784 = vxor.u32 %v8764, 2147483648
    %v8785 = vmul.f32 %v8777, 1.442695
    %v8786 = vpow.pop %v8785
    %v8787 = vmul.f32 %v8778, 1.442695
    %v8788 = vpow.pop %v8787
    %v8789 = vmul.f32 %v8779, 1.442695
    %v8790 = vpow.pop %v8789
    %v8791 = vmul.f32 %v8780, 1.442695
    %v8792 = vpow.pop %v8791
    %v8793 = vmul.f32 %v8781, 1.442695
    %v8794 = vpow.pop %v8793
    %v8795 = vmul.f32 %v8782, 1.442695
    %v8796 = vpow.pop %v8795
    %v8797 = vmul.f32 %v8783, 1.442695
    %v8798 = vpow.pop %v8797
    %v8799 = vmul.f32 %v8784, 1.442695
    %v8800 = vpow.pop %v8799
    %v8801 = vadd.f32 %v8786, 1.0
    %v8802 = vadd.f32 %v8788, 1.0
    %v8803 = vadd.f32 %v8790, 1.0
    %v8804 = vadd.f32 %v8792, 1.0
    %v8805 = vadd.f32 %v8794, 1.0
    %v8806 = vadd.f32 %v8796, 1.0
    %v8807 = vadd.f32 %v8798, 1.0
    %v8808 = vadd.f32 %v8800, 1.0
    %v8809 = vrcp.pop %v8801
    %v8810 = vmul.f32 1.0, %v8809
    %v8811 = vrcp.pop %v8802
    %v8812 = vmul.f32 1.0, %v8811
    %v8813 = vrcp.pop %v8803
    %v8814 = vmul.f32 1.0, %v8813
    %v8815 = vrcp.pop %v8804
    %v8816 = vmul.f32 1.0, %v8815
    %v8817 = vrcp.pop %v8805
    %v8818 = vmul.f32 1.0, %v8817
    %v8819 = vrcp.pop %v8806
    %v8820 = vmul.f32 1.0, %v8819
    %v8821 = vrcp.pop %v8807
    %v8822 = vmul.f32 1.0, %v8821
    %v8823 = vrcp.pop %v8808
    %v8824 = vmul.f32 1.0, %v8823
    %v8825 = vxor.u32 %v8749, 2147483648
    %v8826 = vxor.u32 %v8750, 2147483648
    %v8827 = vxor.u32 %v8751, 2147483648
    %v8828 = vxor.u32 %v8752, 2147483648
    %v8829 = vxor.u32 %v8765, 2147483648
    %v8830 = vxor.u32 %v8766, 2147483648
    %v8831 = vxor.u32 %v8767, 2147483648
    %v8832 = vxor.u32 %v8768, 2147483648
    %v8833 = vmul.f32 %v8825, 1.442695
    %v8834 = vpow.pop %v8833
    %v8835 = vmul.f32 %v8826, 1.442695
    %v8836 = vpow.pop %v8835
    %v8837 = vmul.f32 %v8827, 1.442695
    %v8838 = vpow.pop %v8837
    %v8839 = vmul.f32 %v8828, 1.442695
    %v8840 = vpow.pop %v8839
    %v8841 = vmul.f32 %v8829, 1.442695
    %v8842 = vpow.pop %v8841
    %v8843 = vmul.f32 %v8830, 1.442695
    %v8844 = vpow.pop %v8843
    %v8845 = vmul.f32 %v8831, 1.442695
    %v8846 = vpow.pop %v8845
    %v8847 = vmul.f32 %v8832, 1.442695
    %v8848 = vpow.pop %v8847
    %v8849 = vadd.f32 %v8834, 1.0
    %v8850 = vadd.f32 %v8836, 1.0
    %v8851 = vadd.f32 %v8838, 1.0
    %v8852 = vadd.f32 %v8840, 1.0
    %v8853 = vadd.f32 %v8842, 1.0
    %v8854 = vadd.f32 %v8844, 1.0
    %v8855 = vadd.f32 %v8846, 1.0
    %v8856 = vadd.f32 %v8848, 1.0
    %v8857 = vrcp.pop %v8849
    %v8858 = vmul.f32 1.0, %v8857
    %v8859 = vrcp.pop %v8850
    %v8860 = vmul.f32 1.0, %v8859
    %v8861 = vrcp.pop %v8851
    %v8862 = vmul.f32 1.0, %v8861
    %v8863 = vrcp.pop %v8852
    %v8864 = vmul.f32 1.0, %v8863
    %v8865 = vrcp.pop %v8853
    %v8866 = vmul.f32 1.0, %v8865
    %v8867 = vrcp.pop %v8854
    %v8868 = vmul.f32 1.0, %v8867
    %v8869 = vrcp.pop %v8855
    %v8870 = vmul.f32 1.0, %v8869
    %v8871 = vrcp.pop %v8856
    %v8872 = vmul.f32 1.0, %v8871
    %v8873 = vtanh.pop %v8753
    %v8874 = vtanh.pop %v8754
    %v8875 = vtanh.pop %v8755
    %v8876 = vtanh.pop %v8756
    %v8877 = vtanh.pop %v8769
    %v8878 = vtanh.pop %v8770
    %v8879 = vtanh.pop %v8771
    %v8880 = vtanh.pop %v8772
    %v8881 = vxor.u32 %v8757, 2147483648
    %v8882 = vxor.u32 %v8758, 2147483648
    %v8883 = vxor.u32 %v8759, 2147483648
    %v8884 = vxor.u32 %v8760, 2147483648
    %v8885 = vxor.u32 %v8773, 2147483648
    %v8886 = vxor.u32 %v8774, 2147483648
    %v8887 = vxor.u32 %v8775, 2147483648
    %v8888 = vxor.u32 %v8776, 2147483648
    %v8889 = vmul.f32 %v8881, 1.442695
    %v8890 = vpow.pop %v8889
    %v8891 = vmul.f32 %v8882, 1.442695
    %v8892 = vpow.pop %v8891
    %v8893 = vmul.f32 %v8883, 1.442695
    %v8894 = vpow.pop %v8893
    %v8895 = vmul.f32 %v8884, 1.442695
    %v8896 = vpow.pop %v8895
    %v8897 = vmul.f32 %v8885, 1.442695
    %v8898 = vpow.pop %v8897
    %v8899 = vmul.f32 %v8886, 1.442695
    %v8900 = vpow.pop %v8899
    %v8901 = vmul.f32 %v8887, 1.442695
    %v8902 = vpow.pop %v8901
    %v8903 = vmul.f32 %v8888, 1.442695
    %v8904 = vpow.pop %v8903
    %v8905 = vadd.f32 %v8890, 1.0
    %v8906 = vadd.f32 %v8892, 1.0
    %v8907 = vadd.f32 %v8894, 1.0
    %v8908 = vadd.f32 %v8896, 1.0
    %v8909 = vadd.f32 %v8898, 1.0
    %v8910 = vadd.f32 %v8900, 1.0
    %v8911 = vadd.f32 %v8902, 1.0
    %v8912 = vadd.f32 %v8904, 1.0
    %v8913 = vrcp.pop %v8905
    %v8914 = vmul.f32 1.0, %v8913
    %v8915 = vrcp.pop %v8906
    %v8916 = vmul.f32 1.0, %v8915
    %v8917 = vrcp.pop %v8907
    %v8918 = vmul.f32 1.0, %v8917
    %v8919 = vrcp.pop %v8908
    %v8920 = vmul.f32 1.0, %v8919
    %v8921 = vrcp.pop %v8909
    %v8922 = vmul.f32 1.0, %v8921
    %v8923 = vrcp.pop %v8910
    %v8924 = vmul.f32 1.0, %v8923
    %v8925 = vrcp.pop %v8911
    %v8926 = vmul.f32 1.0, %v8925
    %v8927 = vrcp.pop %v8912
    %v8928 = vmul.f32 1.0, %v8927
    %v8929 = vmul.f32 %v8858, %v7980
    %v8930 = vmul.f32 %v8860, %v7981
    %v8931 = vmul.f32 %v8862, %v7982
    %v8932 = vmul.f32 %v8864, %v7983
    %v8933 = vmul.f32 %v8866, %v7984
    %v8934 = vmul.f32 %v8868, %v7985
    %v8935 = vmul.f32 %v8870, %v7986
    %v8936 = vmul.f32 %v8872, %v7987
    %v8937 = vmul.f32 %v8810, %v8873
    %v8938 = vmul.f32 %v8812, %v8874
    %v8939 = vmul.f32 %v8814, %v8875
    %v8940 = vmul.f32 %v8816, %v8876
    %v8941 = vmul.f32 %v8818, %v8877
    %v8942 = vmul.f32 %v8820, %v8878
    %v8943 = vmul.f32 %v8822, %v8879
    %v8944 = vmul.f32 %v8824, %v8880
    %v8945 = vadd.f32 %v8929, %v8937
    %v8946 = vadd.f32 %v8930, %v8938
    %v8947 = vadd.f32 %v8931, %v8939
    %v8948 = vadd.f32 %v8932, %v8940
    %v8949 = vadd.f32 %v8933, %v8941
    %v8950 = vadd.f32 %v8934, %v8942
    %v8951 = vadd.f32 %v8935, %v8943
    %v8952 = vadd.f32 %v8936, %v8944
    %v8953 = vtanh.pop %v8945
    %v8954 = vtanh.pop %v8946
    %v8955 = vtanh.pop %v8947
    %v8956 = vtanh.pop %v8948
    %v8957 = vtanh.pop %v8949
    %v8958 = vtanh.pop %v8950
    %v8959 = vtanh.pop %v8951
    %v8960 = vtanh.pop %v8952
    %v8961 = vmul.f32 %v8914, %v8953
    %v8962 = vmul.f32 %v8916, %v8954
    %v8963 = vmul.f32 %v8918, %v8955
    %v8964 = vmul.f32 %v8920, %v8956
    %v8965 = vmul.f32 %v8922, %v8957
    %v8966 = vmul.f32 %v8924, %v8958
    %v8967 = vmul.f32 %v8926, %v8959
    %v8968 = vmul.f32 %v8928, %v8960
    %s8969 = scalar_lea.vmem [#allocation4], 768
    %v8970 = vld [vmem:[%s8969] sm:$0xff]
    %v8971 = vld [vmem:[%s8969 + $0x8] sm:$0xff]
    %v8972 = vld [vmem:[%s8969 + $0x10] sm:$0xff]
    %v8973 = vld [vmem:[%s8969 + $0x18] sm:$0xff]
    %v8974 = vld [vmem:[%s8969 + $0x20] sm:$0xff]
    %v8975 = vld [vmem:[%s8969 + $0x28] sm:$0xff]
    %v8976 = vld [vmem:[%s8969 + $0x30] sm:$0xff]
    %v8977 = vld [vmem:[%s8969 + $0x38] sm:$0xff]
    %v8978 = vld [vmem:[%s8969 + $0x40] sm:$0xff]
    %v8979 = vld [vmem:[%s8969 + $0x48] sm:$0xff]
    %v8980 = vld [vmem:[%s8969 + $0x50] sm:$0xff]
    %v8981 = vld [vmem:[%s8969 + $0x58] sm:$0xff]
    %v8982 = vld [vmem:[%s8969 + $0x60] sm:$0xff]
    %v8983 = vld [vmem:[%s8969 + $0x68] sm:$0xff]
    %v8984 = vld [vmem:[%s8969 + $0x70] sm:$0xff]
    %v8985 = vld [vmem:[%s8969 + $0x78] sm:$0xff]
    %v8986 = vunpack.c.l.bf16 %v8970
    %v8987 = vunpack.c.h.bf16 %v8970
    %v8988 = vunpack.c.l.bf16 %v8971
    %v8989 = vunpack.c.h.bf16 %v8971
    %v8990 = vunpack.c.l.bf16 %v8972
    %v8991 = vunpack.c.h.bf16 %v8972
    %v8992 = vunpack.c.l.bf16 %v8973
    %v8993 = vunpack.c.h.bf16 %v8973
    %v8994 = vunpack.c.l.bf16 %v8974
    %v8995 = vunpack.c.h.bf16 %v8974
    %v8996 = vunpack.c.l.bf16 %v8975
    %v8997 = vunpack.c.h.bf16 %v8975
    %v8998 = vunpack.c.l.bf16 %v8976
    %v8999 = vunpack.c.h.bf16 %v8976
    %v9000 = vunpack.c.l.bf16 %v8977
    %v9001 = vunpack.c.h.bf16 %v8977
    %v9002 = vunpack.c.l.bf16 %v8978
    %v9003 = vunpack.c.h.bf16 %v8978
    %v9004 = vunpack.c.l.bf16 %v8979
    %v9005 = vunpack.c.h.bf16 %v8979
    %v9006 = vunpack.c.l.bf16 %v8980
    %v9007 = vunpack.c.h.bf16 %v8980
    %v9008 = vunpack.c.l.bf16 %v8981
    %v9009 = vunpack.c.h.bf16 %v8981
    %v9010 = vunpack.c.l.bf16 %v8982
    %v9011 = vunpack.c.h.bf16 %v8982
    %v9012 = vunpack.c.l.bf16 %v8983
    %v9013 = vunpack.c.h.bf16 %v8983
    %v9014 = vunpack.c.l.bf16 %v8984
    %v9015 = vunpack.c.h.bf16 %v8984
    %v9016 = vunpack.c.l.bf16 %v8985
    %v9017 = vunpack.c.h.bf16 %v8985
    %v9018 = vpack.c.bf16 %v8965, %v8961
    %v9019 = vpack.c.bf16 %v8966, %v8962
    %v9020 = vpack.c.bf16 %v8967, %v8963
    %v9021 = vpack.c.bf16 %v8968, %v8964
    %9022 = vmatprep.subr.bf16.mxu0 %v2321
    %9023 = vmatpush1.bf16.msra.mxu0 %v2320
    %9024 = vmatprep.subr.bf16.mxu0 %v2305
    %9025 = vmatpush1.bf16.msra.mxu0 %v2304
    %9026 = vmatprep.subr.bf16.mxu0 %v2289
    %9027 = vmatpush1.bf16.msra.mxu0 %v2288
    %9028 = vmatprep.subr.bf16.mxu0 %v2273
    %9029 = vmatpush1.bf16.msra.mxu0 %v2272
    %9030 = vmatprep.subr.bf16.mxu0 %v2257
    %9031 = vmatpush1.bf16.msra.mxu0 %v2256
    %9032 = vmatprep.subr.bf16.mxu0 %v2241
    %9033 = vmatpush1.bf16.msra.mxu0 %v2240
    %9034 = vmatprep.subr.bf16.mxu0 %v2225
    %9035 = vmatpush1.bf16.msra.mxu0 %v2224
    %9036 = vmatprep.subr.bf16.mxu0 %v2209
    %9037 = vmatpush1.bf16.msra.mxu0 %v2208
    %9038 = vmatprep.subr.bf16.mxu0 %v2449
    %9039 = vmatpush2.bf16.msra.mxu0 %v2448
    %9040 = vmatprep.subr.bf16.mxu0 %v2433
    %9041 = vmatpush2.bf16.msra.mxu0 %v2432
    %9042 = vmatprep.subr.bf16.mxu0 %v2417
    %9043 = vmatpush2.bf16.msra.mxu0 %v2416
    %9044 = vmatprep.subr.bf16.mxu0 %v2401
    %9045 = vmatpush2.bf16.msra.mxu0 %v2400
    %9046 = vmatprep.subr.bf16.mxu0 %v2385
    %9047 = vmatpush2.bf16.msra.mxu0 %v2384
    %9048 = vmatprep.subr.bf16.mxu0 %v2369
    %9049 = vmatpush2.bf16.msra.mxu0 %v2368
    %9050 = vmatprep.subr.bf16.mxu0 %v2353
    %9051 = vmatpush2.bf16.msra.mxu0 %v2352
    %9052 = vmatprep.subr.bf16.mxu0 %v2337
    %9053 = vmatpush2.bf16.msra.mxu0 %v2336
    %9054 = vmatprep.mubr.bf16.mxu0 %v9019
    %9055 = vmatmul.mubr.bf16.gmra.mxu0 %v9018
    %v9056 = vpop.f32.mrf.mxu0
    %v9057 = vadd.f32 0.0, %v9056
    %v9058 = vpop.f32.mrf.mxu0
    %v9059 = vadd.f32 0.0, %v9058
    %v9060 = vpop.f32.mrf.mxu0
    %v9061 = vadd.f32 0.0, %v9060
    %v9062 = vpop.f32.mrf.mxu0
    %v9063 = vadd.f32 0.0, %v9062
    %9064 = vdwg.mxu0
    %9065 = vmatprep.subr.bf16.mxu0 %v2577
    %9066 = vmatpush1.bf16.msra.mxu0 %v2576
    %9067 = vmatprep.subr.bf16.mxu0 %v2561
    %9068 = vmatpush1.bf16.msra.mxu0 %v2560
    %9069 = vmatprep.subr.bf16.mxu0 %v2545
    %9070 = vmatpush1.bf16.msra.mxu0 %v2544
    %9071 = vmatprep.subr.bf16.mxu0 %v2529
    %9072 = vmatpush1.bf16.msra.mxu0 %v2528
    %9073 = vmatprep.subr.bf16.mxu0 %v2513
    %9074 = vmatpush1.bf16.msra.mxu0 %v2512
    %9075 = vmatprep.subr.bf16.mxu0 %v2497
    %9076 = vmatpush1.bf16.msra.mxu0 %v2496
    %9077 = vmatprep.subr.bf16.mxu0 %v2481
    %9078 = vmatpush1.bf16.msra.mxu0 %v2480
    %9079 = vmatprep.subr.bf16.mxu0 %v2465
    %9080 = vmatpush1.bf16.msra.mxu0 %v2464
    %9081 = vmatprep.subr.bf16.mxu0 %v2705
    %9082 = vmatpush2.bf16.msra.mxu0 %v2704
    %9083 = vmatprep.subr.bf16.mxu0 %v2689
    %9084 = vmatpush2.bf16.msra.mxu0 %v2688
    %9085 = vmatprep.subr.bf16.mxu0 %v2673
    %9086 = vmatpush2.bf16.msra.mxu0 %v2672
    %9087 = vmatprep.subr.bf16.mxu0 %v2657
    %9088 = vmatpush2.bf16.msra.mxu0 %v2656
    %9089 = vmatprep.subr.bf16.mxu0 %v2641
    %9090 = vmatpush2.bf16.msra.mxu0 %v2640
    %9091 = vmatprep.subr.bf16.mxu0 %v2625
    %9092 = vmatpush2.bf16.msra.mxu0 %v2624
    %9093 = vmatprep.subr.bf16.mxu0 %v2609
    %9094 = vmatpush2.bf16.msra.mxu0 %v2608
    %9095 = vmatprep.subr.bf16.mxu0 %v2593
    %9096 = vmatpush2.bf16.msra.mxu0 %v2592
    %9097 = vmatprep.mubr.bf16.mxu0 %v9021
    %9098 = vmatmul.mubr.bf16.gmra.mxu0 %v9020
    %v9099 = vpop.f32.mrf.mxu0
    %v9100 = vadd.f32 %v9057, %v9099
    %v9101 = vpop.f32.mrf.mxu0
    %v9102 = vadd.f32 %v9059, %v9101
    %v9103 = vpop.f32.mrf.mxu0
    %v9104 = vadd.f32 %v9061, %v9103
    %v9105 = vpop.f32.mrf.mxu0
    %v9106 = vadd.f32 %v9063, %v9105
    %9107 = vdwg.mxu0
    %9108 = vmatprep.subr.bf16.mxu0 %v2323
    %9109 = vmatpush1.bf16.msra.mxu0 %v2322
    %9110 = vmatprep.subr.bf16.mxu0 %v2307
    %9111 = vmatpush1.bf16.msra.mxu0 %v2306
    %9112 = vmatprep.subr.bf16.mxu0 %v2291
    %9113 = vmatpush1.bf16.msra.mxu0 %v2290
    %9114 = vmatprep.subr.bf16.mxu0 %v2275
    %9115 = vmatpush1.bf16.msra.mxu0 %v2274
    %9116 = vmatprep.subr.bf16.mxu0 %v2259
    %9117 = vmatpush1.bf16.msra.mxu0 %v2258
    %9118 = vmatprep.subr.bf16.mxu0 %v2243
    %9119 = vmatpush1.bf16.msra.mxu0 %v2242
    %9120 = vmatprep.subr.bf16.mxu0 %v2227
    %9121 = vmatpush1.bf16.msra.mxu0 %v2226
    %9122 = vmatprep.subr.bf16.mxu0 %v2211
    %9123 = vmatpush1.bf16.msra.mxu0 %v2210
    %9124 = vmatprep.subr.bf16.mxu0 %v2451
    %9125 = vmatpush2.bf16.msra.mxu0 %v2450
    %9126 = vmatprep.subr.bf16.mxu0 %v2435
    %9127 = vmatpush2.bf16.msra.mxu0 %v2434
    %9128 = vmatprep.subr.bf16.mxu0 %v2419
    %9129 = vmatpush2.bf16.msra.mxu0 %v2418
    %9130 = vmatprep.subr.bf16.mxu0 %v2403
    %9131 = vmatpush2.bf16.msra.mxu0 %v2402
    %9132 = vmatprep.subr.bf16.mxu0 %v2387
    %9133 = vmatpush2.bf16.msra.mxu0 %v2386
    %9134 = vmatprep.subr.bf16.mxu0 %v2371
    %9135 = vmatpush2.bf16.msra.mxu0 %v2370
    %9136 = vmatprep.subr.bf16.mxu0 %v2355
    %9137 = vmatpush2.bf16.msra.mxu0 %v2354
    %9138 = vmatprep.subr.bf16.mxu0 %v2339
    %9139 = vmatpush2.bf16.msra.mxu0 %v2338
    %9140 = vmatprep.mubr.bf16.mxu0 %v9019
    %9141 = vmatmul.mubr.bf16.gmra.mxu0 %v9018
    %v9142 = vpop.f32.mrf.mxu0
    %v9143 = vadd.f32 0.0, %v9142
    %v9144 = vpop.f32.mrf.mxu0
    %v9145 = vadd.f32 0.0, %v9144
    %v9146 = vpop.f32.mrf.mxu0
    %v9147 = vadd.f32 0.0, %v9146
    %v9148 = vpop.f32.mrf.mxu0
    %v9149 = vadd.f32 0.0, %v9148
    %9150 = vdwg.mxu0
    %9151 = vmatprep.subr.bf16.mxu0 %v2579
    %9152 = vmatpush1.bf16.msra.mxu0 %v2578
    %9153 = vmatprep.subr.bf16.mxu0 %v2563
    %9154 = vmatpush1.bf16.msra.mxu0 %v2562
    %9155 = vmatprep.subr.bf16.mxu0 %v2547
    %9156 = vmatpush1.bf16.msra.mxu0 %v2546
    %9157 = vmatprep.subr.bf16.mxu0 %v2531
    %9158 = vmatpush1.bf16.msra.mxu0 %v2530
    %9159 = vmatprep.subr.bf16.mxu0 %v2515
    %9160 = vmatpush1.bf16.msra.mxu0 %v2514
    %9161 = vmatprep.subr.bf16.mxu0 %v2499
    %9162 = vmatpush1.bf16.msra.mxu0 %v2498
    %9163 = vmatprep.subr.bf16.mxu0 %v2483
    %9164 = vmatpush1.bf16.msra.mxu0 %v2482
    %9165 = vmatprep.subr.bf16.mxu0 %v2467
    %9166 = vmatpush1.bf16.msra.mxu0 %v2466
    %9167 = vmatprep.subr.bf16.mxu0 %v2707
    %9168 = vmatpush2.bf16.msra.mxu0 %v2706
    %9169 = vmatprep.subr.bf16.mxu0 %v2691
    %9170 = vmatpush2.bf16.msra.mxu0 %v2690
    %9171 = vmatprep.subr.bf16.mxu0 %v2675
    %9172 = vmatpush2.bf16.msra.mxu0 %v2674
    %9173 = vmatprep.subr.bf16.mxu0 %v2659
    %9174 = vmatpush2.bf16.msra.mxu0 %v2658
    %9175 = vmatprep.subr.bf16.mxu0 %v2643
    %9176 = vmatpush2.bf16.msra.mxu0 %v2642
    %9177 = vmatprep.subr.bf16.mxu0 %v2627
    %9178 = vmatpush2.bf16.msra.mxu0 %v2626
    %9179 = vmatprep.subr.bf16.mxu0 %v2611
    %9180 = vmatpush2.bf16.msra.mxu0 %v2610
    %9181 = vmatprep.subr.bf16.mxu0 %v2595
    %9182 = vmatpush2.bf16.msra.mxu0 %v2594
    %9183 = vmatprep.mubr.bf16.mxu0 %v9021
    %9184 = vmatmul.mubr.bf16.gmra.mxu0 %v9020
    %v9185 = vpop.f32.mrf.mxu0
    %v9186 = vadd.f32 %v9143, %v9185
    %v9187 = vpop.f32.mrf.mxu0
    %v9188 = vadd.f32 %v9145, %v9187
    %v9189 = vpop.f32.mrf.mxu0
    %v9190 = vadd.f32 %v9147, %v9189
    %v9191 = vpop.f32.mrf.mxu0
    %v9192 = vadd.f32 %v9149, %v9191
    %9193 = vdwg.mxu0
    %9194 = vmatprep.subr.bf16.mxu0 %v2325
    %9195 = vmatpush1.bf16.msra.mxu0 %v2324
    %9196 = vmatprep.subr.bf16.mxu0 %v2309
    %9197 = vmatpush1.bf16.msra.mxu0 %v2308
    %9198 = vmatprep.subr.bf16.mxu0 %v2293
    %9199 = vmatpush1.bf16.msra.mxu0 %v2292
    %9200 = vmatprep.subr.bf16.mxu0 %v2277
    %9201 = vmatpush1.bf16.msra.mxu0 %v2276
    %9202 = vmatprep.subr.bf16.mxu0 %v2261
    %9203 = vmatpush1.bf16.msra.mxu0 %v2260
    %9204 = vmatprep.subr.bf16.mxu0 %v2245
    %9205 = vmatpush1.bf16.msra.mxu0 %v2244
    %9206 = vmatprep.subr.bf16.mxu0 %v2229
    %9207 = vmatpush1.bf16.msra.mxu0 %v2228
    %9208 = vmatprep.subr.bf16.mxu0 %v2213
    %9209 = vmatpush1.bf16.msra.mxu0 %v2212
    %9210 = vmatprep.subr.bf16.mxu0 %v2453
    %9211 = vmatpush2.bf16.msra.mxu0 %v2452
    %9212 = vmatprep.subr.bf16.mxu0 %v2437
    %9213 = vmatpush2.bf16.msra.mxu0 %v2436
    %9214 = vmatprep.subr.bf16.mxu0 %v2421
    %9215 = vmatpush2.bf16.msra.mxu0 %v2420
    %9216 = vmatprep.subr.bf16.mxu0 %v2405
    %9217 = vmatpush2.bf16.msra.mxu0 %v2404
    %9218 = vmatprep.subr.bf16.mxu0 %v2389
    %9219 = vmatpush2.bf16.msra.mxu0 %v2388
    %9220 = vmatprep.subr.bf16.mxu0 %v2373
    %9221 = vmatpush2.bf16.msra.mxu0 %v2372
    %9222 = vmatprep.subr.bf16.mxu0 %v2357
    %9223 = vmatpush2.bf16.msra.mxu0 %v2356
    %9224 = vmatprep.subr.bf16.mxu0 %v2341
    %9225 = vmatpush2.bf16.msra.mxu0 %v2340
    %9226 = vmatprep.mubr.bf16.mxu0 %v9019
    %9227 = vmatmul.mubr.bf16.gmra.mxu0 %v9018
    %v9228 = vpop.f32.mrf.mxu0
    %v9229 = vadd.f32 0.0, %v9228
    %v9230 = vpop.f32.mrf.mxu0
    %v9231 = vadd.f32 0.0, %v9230
    %v9232 = vpop.f32.mrf.mxu0
    %v9233 = vadd.f32 0.0, %v9232
    %v9234 = vpop.f32.mrf.mxu0
    %v9235 = vadd.f32 0.0, %v9234
    %9236 = vdwg.mxu0
    %9237 = vmatprep.subr.bf16.mxu0 %v2581
    %9238 = vmatpush1.bf16.msra.mxu0 %v2580
    %9239 = vmatprep.subr.bf16.mxu0 %v2565
    %9240 = vmatpush1.bf16.msra.mxu0 %v2564
    %9241 = vmatprep.subr.bf16.mxu0 %v2549
    %9242 = vmatpush1.bf16.msra.mxu0 %v2548
    %9243 = vmatprep.subr.bf16.mxu0 %v2533
    %9244 = vmatpush1.bf16.msra.mxu0 %v2532
    %9245 = vmatprep.subr.bf16.mxu0 %v2517
    %9246 = vmatpush1.bf16.msra.mxu0 %v2516
    %9247 = vmatprep.subr.bf16.mxu0 %v2501
    %9248 = vmatpush1.bf16.msra.mxu0 %v2500
    %9249 = vmatprep.subr.bf16.mxu0 %v2485
    %9250 = vmatpush1.bf16.msra.mxu0 %v2484
    %9251 = vmatprep.subr.bf16.mxu0 %v2469
    %9252 = vmatpush1.bf16.msra.mxu0 %v2468
    %9253 = vmatprep.subr.bf16.mxu0 %v2709
    %9254 = vmatpush2.bf16.msra.mxu0 %v2708
    %9255 = vmatprep.subr.bf16.mxu0 %v2693
    %9256 = vmatpush2.bf16.msra.mxu0 %v2692
    %9257 = vmatprep.subr.bf16.mxu0 %v2677
    %9258 = vmatpush2.bf16.msra.mxu0 %v2676
    %9259 = vmatprep.subr.bf16.mxu0 %v2661
    %9260 = vmatpush2.bf16.msra.mxu0 %v2660
    %9261 = vmatprep.subr.bf16.mxu0 %v2645
    %9262 = vmatpush2.bf16.msra.mxu0 %v2644
    %9263 = vmatprep.subr.bf16.mxu0 %v2629
    %9264 = vmatpush2.bf16.msra.mxu0 %v2628
    %9265 = vmatprep.subr.bf16.mxu0 %v2613
    %9266 = vmatpush2.bf16.msra.mxu0 %v2612
    %9267 = vmatprep.subr.bf16.mxu0 %v2597
    %9268 = vmatpush2.bf16.msra.mxu0 %v2596
    %9269 = vmatprep.mubr.bf16.mxu0 %v9021
    %9270 = vmatmul.mubr.bf16.gmra.mxu0 %v9020
    %v9271 = vpop.f32.mrf.mxu0
    %v9272 = vadd.f32 %v9229, %v9271
    %v9273 = vpop.f32.mrf.mxu0
    %v9274 = vadd.f32 %v9231, %v9273
    %v9275 = vpop.f32.mrf.mxu0
    %v9276 = vadd.f32 %v9233, %v9275
    %v9277 = vpop.f32.mrf.mxu0
    %v9278 = vadd.f32 %v9235, %v9277
    %9279 = vdwg.mxu0
    %9280 = vmatprep.subr.bf16.mxu0 %v2327
    %9281 = vmatpush1.bf16.msra.mxu0 %v2326
    %9282 = vmatprep.subr.bf16.mxu0 %v2311
    %9283 = vmatpush1.bf16.msra.mxu0 %v2310
    %9284 = vmatprep.subr.bf16.mxu0 %v2295
    %9285 = vmatpush1.bf16.msra.mxu0 %v2294
    %9286 = vmatprep.subr.bf16.mxu0 %v2279
    %9287 = vmatpush1.bf16.msra.mxu0 %v2278
    %9288 = vmatprep.subr.bf16.mxu0 %v2263
    %9289 = vmatpush1.bf16.msra.mxu0 %v2262
    %9290 = vmatprep.subr.bf16.mxu0 %v2247
    %9291 = vmatpush1.bf16.msra.mxu0 %v2246
    %9292 = vmatprep.subr.bf16.mxu0 %v2231
    %9293 = vmatpush1.bf16.msra.mxu0 %v2230
    %9294 = vmatprep.subr.bf16.mxu0 %v2215
    %9295 = vmatpush1.bf16.msra.mxu0 %v2214
    %9296 = vmatprep.subr.bf16.mxu0 %v2455
    %9297 = vmatpush2.bf16.msra.mxu0 %v2454
    %9298 = vmatprep.subr.bf16.mxu0 %v2439
    %9299 = vmatpush2.bf16.msra.mxu0 %v2438
    %9300 = vmatprep.subr.bf16.mxu0 %v2423
    %9301 = vmatpush2.bf16.msra.mxu0 %v2422
    %9302 = vmatprep.subr.bf16.mxu0 %v2407
    %9303 = vmatpush2.bf16.msra.mxu0 %v2406
    %9304 = vmatprep.subr.bf16.mxu0 %v2391
    %9305 = vmatpush2.bf16.msra.mxu0 %v2390
    %9306 = vmatprep.subr.bf16.mxu0 %v2375
    %9307 = vmatpush2.bf16.msra.mxu0 %v2374
    %9308 = vmatprep.subr.bf16.mxu0 %v2359
    %9309 = vmatpush2.bf16.msra.mxu0 %v2358
    %9310 = vmatprep.subr.bf16.mxu0 %v2343
    %9311 = vmatpush2.bf16.msra.mxu0 %v2342
    %9312 = vmatprep.mubr.bf16.mxu0 %v9019
    %9313 = vmatmul.mubr.bf16.gmra.mxu0 %v9018
    %v9314 = vpop.f32.mrf.mxu0
    %v9315 = vadd.f32 0.0, %v9314
    %v9316 = vpop.f32.mrf.mxu0
    %v9317 = vadd.f32 0.0, %v9316
    %v9318 = vpop.f32.mrf.mxu0
    %v9319 = vadd.f32 0.0, %v9318
    %v9320 = vpop.f32.mrf.mxu0
    %v9321 = vadd.f32 0.0, %v9320
    %9322 = vdwg.mxu0
    %9323 = vmatprep.subr.bf16.mxu0 %v2583
    %9324 = vmatpush1.bf16.msra.mxu0 %v2582
    %9325 = vmatprep.subr.bf16.mxu0 %v2567
    %9326 = vmatpush1.bf16.msra.mxu0 %v2566
    %9327 = vmatprep.subr.bf16.mxu0 %v2551
    %9328 = vmatpush1.bf16.msra.mxu0 %v2550
    %9329 = vmatprep.subr.bf16.mxu0 %v2535
    %9330 = vmatpush1.bf16.msra.mxu0 %v2534
    %9331 = vmatprep.subr.bf16.mxu0 %v2519
    %9332 = vmatpush1.bf16.msra.mxu0 %v2518
    %9333 = vmatprep.subr.bf16.mxu0 %v2503
    %9334 = vmatpush1.bf16.msra.mxu0 %v2502
    %9335 = vmatprep.subr.bf16.mxu0 %v2487
    %9336 = vmatpush1.bf16.msra.mxu0 %v2486
    %9337 = vmatprep.subr.bf16.mxu0 %v2471
    %9338 = vmatpush1.bf16.msra.mxu0 %v2470
    %9339 = vmatprep.subr.bf16.mxu0 %v2711
    %9340 = vmatpush2.bf16.msra.mxu0 %v2710
    %9341 = vmatprep.subr.bf16.mxu0 %v2695
    %9342 = vmatpush2.bf16.msra.mxu0 %v2694
    %9343 = vmatprep.subr.bf16.mxu0 %v2679
    %9344 = vmatpush2.bf16.msra.mxu0 %v2678
    %9345 = vmatprep.subr.bf16.mxu0 %v2663
    %9346 = vmatpush2.bf16.msra.mxu0 %v2662
    %9347 = vmatprep.subr.bf16.mxu0 %v2647
    %9348 = vmatpush2.bf16.msra.mxu0 %v2646
    %9349 = vmatprep.subr.bf16.mxu0 %v2631
    %9350 = vmatpush2.bf16.msra.mxu0 %v2630
    %9351 = vmatprep.subr.bf16.mxu0 %v2615
    %9352 = vmatpush2.bf16.msra.mxu0 %v2614
    %9353 = vmatprep.subr.bf16.mxu0 %v2599
    %9354 = vmatpush2.bf16.msra.mxu0 %v2598
    %9355 = vmatprep.mubr.bf16.mxu0 %v9021
    %9356 = vmatmul.mubr.bf16.gmra.mxu0 %v9020
    %v9357 = vpop.f32.mrf.mxu0
    %v9358 = vadd.f32 %v9315, %v9357
    %v9359 = vpop.f32.mrf.mxu0
    %v9360 = vadd.f32 %v9317, %v9359
    %v9361 = vpop.f32.mrf.mxu0
    %v9362 = vadd.f32 %v9319, %v9361
    %v9363 = vpop.f32.mrf.mxu0
    %v9364 = vadd.f32 %v9321, %v9363
    %9365 = vdwg.mxu0
    %9366 = vmatprep.subr.bf16.mxu0 %v2329
    %9367 = vmatpush1.bf16.msra.mxu0 %v2328
    %9368 = vmatprep.subr.bf16.mxu0 %v2313
    %9369 = vmatpush1.bf16.msra.mxu0 %v2312
    %9370 = vmatprep.subr.bf16.mxu0 %v2297
    %9371 = vmatpush1.bf16.msra.mxu0 %v2296
    %9372 = vmatprep.subr.bf16.mxu0 %v2281
    %9373 = vmatpush1.bf16.msra.mxu0 %v2280
    %9374 = vmatprep.subr.bf16.mxu0 %v2265
    %9375 = vmatpush1.bf16.msra.mxu0 %v2264
    %9376 = vmatprep.subr.bf16.mxu0 %v2249
    %9377 = vmatpush1.bf16.msra.mxu0 %v2248
    %9378 = vmatprep.subr.bf16.mxu0 %v2233
    %9379 = vmatpush1.bf16.msra.mxu0 %v2232
    %9380 = vmatprep.subr.bf16.mxu0 %v2217
    %9381 = vmatpush1.bf16.msra.mxu0 %v2216
    %9382 = vmatprep.subr.bf16.mxu0 %v2457
    %9383 = vmatpush2.bf16.msra.mxu0 %v2456
    %9384 = vmatprep.subr.bf16.mxu0 %v2441
    %9385 = vmatpush2.bf16.msra.mxu0 %v2440
    %9386 = vmatprep.subr.bf16.mxu0 %v2425
    %9387 = vmatpush2.bf16.msra.mxu0 %v2424
    %9388 = vmatprep.subr.bf16.mxu0 %v2409
    %9389 = vmatpush2.bf16.msra.mxu0 %v2408
    %9390 = vmatprep.subr.bf16.mxu0 %v2393
    %9391 = vmatpush2.bf16.msra.mxu0 %v2392
    %9392 = vmatprep.subr.bf16.mxu0 %v2377
    %9393 = vmatpush2.bf16.msra.mxu0 %v2376
    %9394 = vmatprep.subr.bf16.mxu0 %v2361
    %9395 = vmatpush2.bf16.msra.mxu0 %v2360
    %9396 = vmatprep.subr.bf16.mxu0 %v2345
    %9397 = vmatpush2.bf16.msra.mxu0 %v2344
    %9398 = vmatprep.mubr.bf16.mxu0 %v9019
    %9399 = vmatmul.mubr.bf16.gmra.mxu0 %v9018
    %v9400 = vpop.f32.mrf.mxu0
    %v9401 = vadd.f32 0.0, %v9400
    %v9402 = vpop.f32.mrf.mxu0
    %v9403 = vadd.f32 0.0, %v9402
    %v9404 = vpop.f32.mrf.mxu0
    %v9405 = vadd.f32 0.0, %v9404
    %v9406 = vpop.f32.mrf.mxu0
    %v9407 = vadd.f32 0.0, %v9406
    %9408 = vdwg.mxu0
    %9409 = vmatprep.subr.bf16.mxu0 %v2585
    %9410 = vmatpush1.bf16.msra.mxu0 %v2584
    %9411 = vmatprep.subr.bf16.mxu0 %v2569
    %9412 = vmatpush1.bf16.msra.mxu0 %v2568
    %9413 = vmatprep.subr.bf16.mxu0 %v2553
    %9414 = vmatpush1.bf16.msra.mxu0 %v2552
    %9415 = vmatprep.subr.bf16.mxu0 %v2537
    %9416 = vmatpush1.bf16.msra.mxu0 %v2536
    %9417 = vmatprep.subr.bf16.mxu0 %v2521
    %9418 = vmatpush1.bf16.msra.mxu0 %v2520
    %9419 = vmatprep.subr.bf16.mxu0 %v2505
    %9420 = vmatpush1.bf16.msra.mxu0 %v2504
    %9421 = vmatprep.subr.bf16.mxu0 %v2489
    %9422 = vmatpush1.bf16.msra.mxu0 %v2488
    %9423 = vmatprep.subr.bf16.mxu0 %v2473
    %9424 = vmatpush1.bf16.msra.mxu0 %v2472
    %9425 = vmatprep.subr.bf16.mxu0 %v2713
    %9426 = vmatpush2.bf16.msra.mxu0 %v2712
    %9427 = vmatprep.subr.bf16.mxu0 %v2697
    %9428 = vmatpush2.bf16.msra.mxu0 %v2696
    %9429 = vmatprep.subr.bf16.mxu0 %v2681
    %9430 = vmatpush2.bf16.msra.mxu0 %v2680
    %9431 = vmatprep.subr.bf16.mxu0 %v2665
    %9432 = vmatpush2.bf16.msra.mxu0 %v2664
    %9433 = vmatprep.subr.bf16.mxu0 %v2649
    %9434 = vmatpush2.bf16.msra.mxu0 %v2648
    %9435 = vmatprep.subr.bf16.mxu0 %v2633
    %9436 = vmatpush2.bf16.msra.mxu0 %v2632
    %9437 = vmatprep.subr.bf16.mxu0 %v2617
    %9438 = vmatpush2.bf16.msra.mxu0 %v2616
    %9439 = vmatprep.subr.bf16.mxu0 %v2601
    %9440 = vmatpush2.bf16.msra.mxu0 %v2600
    %9441 = vmatprep.mubr.bf16.mxu0 %v9021
    %9442 = vmatmul.mubr.bf16.gmra.mxu0 %v9020
    %v9443 = vpop.f32.mrf.mxu0
    %v9444 = vadd.f32 %v9401, %v9443
    %v9445 = vpop.f32.mrf.mxu0
    %v9446 = vadd.f32 %v9403, %v9445
    %v9447 = vpop.f32.mrf.mxu0
    %v9448 = vadd.f32 %v9405, %v9447
    %v9449 = vpop.f32.mrf.mxu0
    %v9450 = vadd.f32 %v9407, %v9449
    %9451 = vdwg.mxu0
    %9452 = vmatprep.subr.bf16.mxu0 %v2331
    %9453 = vmatpush1.bf16.msra.mxu0 %v2330
    %9454 = vmatprep.subr.bf16.mxu0 %v2315
    %9455 = vmatpush1.bf16.msra.mxu0 %v2314
    %9456 = vmatprep.subr.bf16.mxu0 %v2299
    %9457 = vmatpush1.bf16.msra.mxu0 %v2298
    %9458 = vmatprep.subr.bf16.mxu0 %v2283
    %9459 = vmatpush1.bf16.msra.mxu0 %v2282
    %9460 = vmatprep.subr.bf16.mxu0 %v2267
    %9461 = vmatpush1.bf16.msra.mxu0 %v2266
    %9462 = vmatprep.subr.bf16.mxu0 %v2251
    %9463 = vmatpush1.bf16.msra.mxu0 %v2250
    %9464 = vmatprep.subr.bf16.mxu0 %v2235
    %9465 = vmatpush1.bf16.msra.mxu0 %v2234
    %9466 = vmatprep.subr.bf16.mxu0 %v2219
    %9467 = vmatpush1.bf16.msra.mxu0 %v2218
    %9468 = vmatprep.subr.bf16.mxu0 %v2459
    %9469 = vmatpush2.bf16.msra.mxu0 %v2458
    %9470 = vmatprep.subr.bf16.mxu0 %v2443
    %9471 = vmatpush2.bf16.msra.mxu0 %v2442
    %9472 = vmatprep.subr.bf16.mxu0 %v2427
    %9473 = vmatpush2.bf16.msra.mxu0 %v2426
    %9474 = vmatprep.subr.bf16.mxu0 %v2411
    %9475 = vmatpush2.bf16.msra.mxu0 %v2410
    %9476 = vmatprep.subr.bf16.mxu0 %v2395
    %9477 = vmatpush2.bf16.msra.mxu0 %v2394
    %9478 = vmatprep.subr.bf16.mxu0 %v2379
    %9479 = vmatpush2.bf16.msra.mxu0 %v2378
    %9480 = vmatprep.subr.bf16.mxu0 %v2363
    %9481 = vmatpush2.bf16.msra.mxu0 %v2362
    %9482 = vmatprep.subr.bf16.mxu0 %v2347
    %9483 = vmatpush2.bf16.msra.mxu0 %v2346
    %9484 = vmatprep.mubr.bf16.mxu0 %v9019
    %9485 = vmatmul.mubr.bf16.gmra.mxu0 %v9018
    %v9486 = vpop.f32.mrf.mxu0
    %v9487 = vadd.f32 0.0, %v9486
    %v9488 = vpop.f32.mrf.mxu0
    %v9489 = vadd.f32 0.0, %v9488
    %v9490 = vpop.f32.mrf.mxu0
    %v9491 = vadd.f32 0.0, %v9490
    %v9492 = vpop.f32.mrf.mxu0
    %v9493 = vadd.f32 0.0, %v9492
    %9494 = vdwg.mxu0
    %9495 = vmatprep.subr.bf16.mxu0 %v2587
    %9496 = vmatpush1.bf16.msra.mxu0 %v2586
    %9497 = vmatprep.subr.bf16.mxu0 %v2571
    %9498 = vmatpush1.bf16.msra.mxu0 %v2570
    %9499 = vmatprep.subr.bf16.mxu0 %v2555
    %9500 = vmatpush1.bf16.msra.mxu0 %v2554
    %9501 = vmatprep.subr.bf16.mxu0 %v2539
    %9502 = vmatpush1.bf16.msra.mxu0 %v2538
    %9503 = vmatprep.subr.bf16.mxu0 %v2523
    %9504 = vmatpush1.bf16.msra.mxu0 %v2522
    %9505 = vmatprep.subr.bf16.mxu0 %v2507
    %9506 = vmatpush1.bf16.msra.mxu0 %v2506
    %9507 = vmatprep.subr.bf16.mxu0 %v2491
    %9508 = vmatpush1.bf16.msra.mxu0 %v2490
    %9509 = vmatprep.subr.bf16.mxu0 %v2475
    %9510 = vmatpush1.bf16.msra.mxu0 %v2474
    %9511 = vmatprep.subr.bf16.mxu0 %v2715
    %9512 = vmatpush2.bf16.msra.mxu0 %v2714
    %9513 = vmatprep.subr.bf16.mxu0 %v2699
    %9514 = vmatpush2.bf16.msra.mxu0 %v2698
    %9515 = vmatprep.subr.bf16.mxu0 %v2683
    %9516 = vmatpush2.bf16.msra.mxu0 %v2682
    %9517 = vmatprep.subr.bf16.mxu0 %v2667
    %9518 = vmatpush2.bf16.msra.mxu0 %v2666
    %9519 = vmatprep.subr.bf16.mxu0 %v2651
    %9520 = vmatpush2.bf16.msra.mxu0 %v2650
    %9521 = vmatprep.subr.bf16.mxu0 %v2635
    %9522 = vmatpush2.bf16.msra.mxu0 %v2634
    %9523 = vmatprep.subr.bf16.mxu0 %v2619
    %9524 = vmatpush2.bf16.msra.mxu0 %v2618
    %9525 = vmatprep.subr.bf16.mxu0 %v2603
    %9526 = vmatpush2.bf16.msra.mxu0 %v2602
    %9527 = vmatprep.mubr.bf16.mxu0 %v9021
    %9528 = vmatmul.mubr.bf16.gmra.mxu0 %v9020
    %v9529 = vpop.f32.mrf.mxu0
    %v9530 = vadd.f32 %v9487, %v9529
    %v9531 = vpop.f32.mrf.mxu0
    %v9532 = vadd.f32 %v9489, %v9531
    %v9533 = vpop.f32.mrf.mxu0
    %v9534 = vadd.f32 %v9491, %v9533
    %v9535 = vpop.f32.mrf.mxu0
    %v9536 = vadd.f32 %v9493, %v9535
    %9537 = vdwg.mxu0
    %9538 = vmatprep.subr.bf16.mxu0 %v2333
    %9539 = vmatpush1.bf16.msra.mxu0 %v2332
    %9540 = vmatprep.subr.bf16.mxu0 %v2317
    %9541 = vmatpush1.bf16.msra.mxu0 %v2316
    %9542 = vmatprep.subr.bf16.mxu0 %v2301
    %9543 = vmatpush1.bf16.msra.mxu0 %v2300
    %9544 = vmatprep.subr.bf16.mxu0 %v2285
    %9545 = vmatpush1.bf16.msra.mxu0 %v2284
    %9546 = vmatprep.subr.bf16.mxu0 %v2269
    %9547 = vmatpush1.bf16.msra.mxu0 %v2268
    %9548 = vmatprep.subr.bf16.mxu0 %v2253
    %9549 = vmatpush1.bf16.msra.mxu0 %v2252
    %9550 = vmatprep.subr.bf16.mxu0 %v2237
    %9551 = vmatpush1.bf16.msra.mxu0 %v2236
    %9552 = vmatprep.subr.bf16.mxu0 %v2221
    %9553 = vmatpush1.bf16.msra.mxu0 %v2220
    %9554 = vmatprep.subr.bf16.mxu0 %v2461
    %9555 = vmatpush2.bf16.msra.mxu0 %v2460
    %9556 = vmatprep.subr.bf16.mxu0 %v2445
    %9557 = vmatpush2.bf16.msra.mxu0 %v2444
    %9558 = vmatprep.subr.bf16.mxu0 %v2429
    %9559 = vmatpush2.bf16.msra.mxu0 %v2428
    %9560 = vmatprep.subr.bf16.mxu0 %v2413
    %9561 = vmatpush2.bf16.msra.mxu0 %v2412
    %9562 = vmatprep.subr.bf16.mxu0 %v2397
    %9563 = vmatpush2.bf16.msra.mxu0 %v2396
    %9564 = vmatprep.subr.bf16.mxu0 %v2381
    %9565 = vmatpush2.bf16.msra.mxu0 %v2380
    %9566 = vmatprep.subr.bf16.mxu0 %v2365
    %9567 = vmatpush2.bf16.msra.mxu0 %v2364
    %9568 = vmatprep.subr.bf16.mxu0 %v2349
    %9569 = vmatpush2.bf16.msra.mxu0 %v2348
    %9570 = vmatprep.mubr.bf16.mxu0 %v9019
    %9571 = vmatmul.mubr.bf16.gmra.mxu0 %v9018
    %v9572 = vpop.f32.mrf.mxu0
    %v9573 = vadd.f32 0.0, %v9572
    %v9574 = vpop.f32.mrf.mxu0
    %v9575 = vadd.f32 0.0, %v9574
    %v9576 = vpop.f32.mrf.mxu0
    %v9577 = vadd.f32 0.0, %v9576
    %v9578 = vpop.f32.mrf.mxu0
    %v9579 = vadd.f32 0.0, %v9578
    %9580 = vdwg.mxu0
    %9581 = vmatprep.subr.bf16.mxu0 %v2589
    %9582 = vmatpush1.bf16.msra.mxu0 %v2588
    %9583 = vmatprep.subr.bf16.mxu0 %v2573
    %9584 = vmatpush1.bf16.msra.mxu0 %v2572
    %9585 = vmatprep.subr.bf16.mxu0 %v2557
    %9586 = vmatpush1.bf16.msra.mxu0 %v2556
    %9587 = vmatprep.subr.bf16.mxu0 %v2541
    %9588 = vmatpush1.bf16.msra.mxu0 %v2540
    %9589 = vmatprep.subr.bf16.mxu0 %v2525
    %9590 = vmatpush1.bf16.msra.mxu0 %v2524
    %9591 = vmatprep.subr.bf16.mxu0 %v2509
    %9592 = vmatpush1.bf16.msra.mxu0 %v2508
    %9593 = vmatprep.subr.bf16.mxu0 %v2493
    %9594 = vmatpush1.bf16.msra.mxu0 %v2492
    %9595 = vmatprep.subr.bf16.mxu0 %v2477
    %9596 = vmatpush1.bf16.msra.mxu0 %v2476
    %9597 = vmatprep.subr.bf16.mxu0 %v2717
    %9598 = vmatpush2.bf16.msra.mxu0 %v2716
    %9599 = vmatprep.subr.bf16.mxu0 %v2701
    %9600 = vmatpush2.bf16.msra.mxu0 %v2700
    %9601 = vmatprep.subr.bf16.mxu0 %v2685
    %9602 = vmatpush2.bf16.msra.mxu0 %v2684
    %9603 = vmatprep.subr.bf16.mxu0 %v2669
    %9604 = vmatpush2.bf16.msra.mxu0 %v2668
    %9605 = vmatprep.subr.bf16.mxu0 %v2653
    %9606 = vmatpush2.bf16.msra.mxu0 %v2652
    %9607 = vmatprep.subr.bf16.mxu0 %v2637
    %9608 = vmatpush2.bf16.msra.mxu0 %v2636
    %9609 = vmatprep.subr.bf16.mxu0 %v2621
    %9610 = vmatpush2.bf16.msra.mxu0 %v2620
    %9611 = vmatprep.subr.bf16.mxu0 %v2605
    %9612 = vmatpush2.bf16.msra.mxu0 %v2604
    %9613 = vmatprep.mubr.bf16.mxu0 %v9021
    %9614 = vmatmul.mubr.bf16.gmra.mxu0 %v9020
    %v9615 = vpop.f32.mrf.mxu0
    %v9616 = vadd.f32 %v9573, %v9615
    %v9617 = vpop.f32.mrf.mxu0
    %v9618 = vadd.f32 %v9575, %v9617
    %v9619 = vpop.f32.mrf.mxu0
    %v9620 = vadd.f32 %v9577, %v9619
    %v9621 = vpop.f32.mrf.mxu0
    %v9622 = vadd.f32 %v9579, %v9621
    %9623 = vdwg.mxu0
    %9624 = vmatprep.subr.bf16.mxu0 %v2335
    %9625 = vmatpush1.bf16.msra.mxu0 %v2334
    %9626 = vmatprep.subr.bf16.mxu0 %v2319
    %9627 = vmatpush1.bf16.msra.mxu0 %v2318
    %9628 = vmatprep.subr.bf16.mxu0 %v2303
    %9629 = vmatpush1.bf16.msra.mxu0 %v2302
    %9630 = vmatprep.subr.bf16.mxu0 %v2287
    %9631 = vmatpush1.bf16.msra.mxu0 %v2286
    %9632 = vmatprep.subr.bf16.mxu0 %v2271
    %9633 = vmatpush1.bf16.msra.mxu0 %v2270
    %9634 = vmatprep.subr.bf16.mxu0 %v2255
    %9635 = vmatpush1.bf16.msra.mxu0 %v2254
    %9636 = vmatprep.subr.bf16.mxu0 %v2239
    %9637 = vmatpush1.bf16.msra.mxu0 %v2238
    %9638 = vmatprep.subr.bf16.mxu0 %v2223
    %9639 = vmatpush1.bf16.msra.mxu0 %v2222
    %9640 = vmatprep.subr.bf16.mxu0 %v2463
    %9641 = vmatpush2.bf16.msra.mxu0 %v2462
    %9642 = vmatprep.subr.bf16.mxu0 %v2447
    %9643 = vmatpush2.bf16.msra.mxu0 %v2446
    %9644 = vmatprep.subr.bf16.mxu0 %v2431
    %9645 = vmatpush2.bf16.msra.mxu0 %v2430
    %9646 = vmatprep.subr.bf16.mxu0 %v2415
    %9647 = vmatpush2.bf16.msra.mxu0 %v2414
    %9648 = vmatprep.subr.bf16.mxu0 %v2399
    %9649 = vmatpush2.bf16.msra.mxu0 %v2398
    %9650 = vmatprep.subr.bf16.mxu0 %v2383
    %9651 = vmatpush2.bf16.msra.mxu0 %v2382
    %9652 = vmatprep.subr.bf16.mxu0 %v2367
    %9653 = vmatpush2.bf16.msra.mxu0 %v2366
    %9654 = vmatprep.subr.bf16.mxu0 %v2351
    %9655 = vmatpush2.bf16.msra.mxu0 %v2350
    %9656 = vmatprep.mubr.bf16.mxu0 %v9019
    %9657 = vmatmul.mubr.bf16.gmra.mxu0 %v9018
    %v9658 = vpop.f32.mrf.mxu0
    %v9659 = vadd.f32 0.0, %v9658
    %v9660 = vpop.f32.mrf.mxu0
    %v9661 = vadd.f32 0.0, %v9660
    %v9662 = vpop.f32.mrf.mxu0
    %v9663 = vadd.f32 0.0, %v9662
    %v9664 = vpop.f32.mrf.mxu0
    %v9665 = vadd.f32 0.0, %v9664
    %9666 = vdwg.mxu0
    %9667 = vmatprep.subr.bf16.mxu0 %v2591
    %9668 = vmatpush1.bf16.msra.mxu0 %v2590
    %9669 = vmatprep.subr.bf16.mxu0 %v2575
    %9670 = vmatpush1.bf16.msra.mxu0 %v2574
    %9671 = vmatprep.subr.bf16.mxu0 %v2559
    %9672 = vmatpush1.bf16.msra.mxu0 %v2558
    %9673 = vmatprep.subr.bf16.mxu0 %v2543
    %9674 = vmatpush1.bf16.msra.mxu0 %v2542
    %9675 = vmatprep.subr.bf16.mxu0 %v2527
    %9676 = vmatpush1.bf16.msra.mxu0 %v2526
    %9677 = vmatprep.subr.bf16.mxu0 %v2511
    %9678 = vmatpush1.bf16.msra.mxu0 %v2510
    %9679 = vmatprep.subr.bf16.mxu0 %v2495
    %9680 = vmatpush1.bf16.msra.mxu0 %v2494
    %9681 = vmatprep.subr.bf16.mxu0 %v2479
    %9682 = vmatpush1.bf16.msra.mxu0 %v2478
    %9683 = vmatprep.subr.bf16.mxu0 %v2719
    %9684 = vmatpush2.bf16.msra.mxu0 %v2718
    %9685 = vmatprep.subr.bf16.mxu0 %v2703
    %9686 = vmatpush2.bf16.msra.mxu0 %v2702
    %9687 = vmatprep.subr.bf16.mxu0 %v2687
    %9688 = vmatpush2.bf16.msra.mxu0 %v2686
    %9689 = vmatprep.subr.bf16.mxu0 %v2671
    %9690 = vmatpush2.bf16.msra.mxu0 %v2670
    %9691 = vmatprep.subr.bf16.mxu0 %v2655
    %9692 = vmatpush2.bf16.msra.mxu0 %v2654
    %9693 = vmatprep.subr.bf16.mxu0 %v2639
    %9694 = vmatpush2.bf16.msra.mxu0 %v2638
    %9695 = vmatprep.subr.bf16.mxu0 %v2623
    %9696 = vmatpush2.bf16.msra.mxu0 %v2622
    %9697 = vmatprep.subr.bf16.mxu0 %v2607
    %9698 = vmatpush2.bf16.msra.mxu0 %v2606
    %9699 = vmatprep.mubr.bf16.mxu0 %v9021
    %9700 = vmatmul.mubr.bf16.gmra.mxu0 %v9020
    %v9701 = vpop.f32.mrf.mxu0
    %v9702 = vadd.f32 %v9659, %v9701
    %v9703 = vpop.f32.mrf.mxu0
    %v9704 = vadd.f32 %v9661, %v9703
    %v9705 = vpop.f32.mrf.mxu0
    %v9706 = vadd.f32 %v9663, %v9705
    %v9707 = vpop.f32.mrf.mxu0
    %v9708 = vadd.f32 %v9665, %v9707
    %9709 = vdwg.mxu0
    %v9710 = vadd.f32 %v8986, %v9100
    %v9711 = vadd.f32 %v8987, %v9102
    %v9712 = vadd.f32 %v8988, %v9186
    %v9713 = vadd.f32 %v8989, %v9188
    %v9714 = vadd.f32 %v8990, %v9272
    %v9715 = vadd.f32 %v8991, %v9274
    %v9716 = vadd.f32 %v8992, %v9358
    %v9717 = vadd.f32 %v8993, %v9360
    %v9718 = vadd.f32 %v8994, %v9444
    %v9719 = vadd.f32 %v8995, %v9446
    %v9720 = vadd.f32 %v8996, %v9530
    %v9721 = vadd.f32 %v8997, %v9532
    %v9722 = vadd.f32 %v8998, %v9616
    %v9723 = vadd.f32 %v8999, %v9618
    %v9724 = vadd.f32 %v9000, %v9702
    %v9725 = vadd.f32 %v9001, %v9704
    %v9726 = vadd.f32 %v9002, %v9104
    %v9727 = vadd.f32 %v9003, %v9106
    %v9728 = vadd.f32 %v9004, %v9190
    %v9729 = vadd.f32 %v9005, %v9192
    %v9730 = vadd.f32 %v9006, %v9276
    %v9731 = vadd.f32 %v9007, %v9278
    %v9732 = vadd.f32 %v9008, %v9362
    %v9733 = vadd.f32 %v9009, %v9364
    %v9734 = vadd.f32 %v9010, %v9448
    %v9735 = vadd.f32 %v9011, %v9450
    %v9736 = vadd.f32 %v9012, %v9534
    %v9737 = vadd.f32 %v9013, %v9536
    %v9738 = vadd.f32 %v9014, %v9620
    %v9739 = vadd.f32 %v9015, %v9622
    %v9740 = vadd.f32 %v9016, %v9706
    %v9741 = vadd.f32 %v9017, %v9708
    %v9742 = vxor.u32 %v9710, 2147483648
    %v9743 = vxor.u32 %v9711, 2147483648
    %v9744 = vxor.u32 %v9712, 2147483648
    %v9745 = vxor.u32 %v9713, 2147483648
    %v9746 = vxor.u32 %v9726, 2147483648
    %v9747 = vxor.u32 %v9727, 2147483648
    %v9748 = vxor.u32 %v9728, 2147483648
    %v9749 = vxor.u32 %v9729, 2147483648
    %v9750 = vmul.f32 %v9742, 1.442695
    %v9751 = vpow.pop %v9750
    %v9752 = vmul.f32 %v9743, 1.442695
    %v9753 = vpow.pop %v9752
    %v9754 = vmul.f32 %v9744, 1.442695
    %v9755 = vpow.pop %v9754
    %v9756 = vmul.f32 %v9745, 1.442695
    %v9757 = vpow.pop %v9756
    %v9758 = vmul.f32 %v9746, 1.442695
    %v9759 = vpow.pop %v9758
    %v9760 = vmul.f32 %v9747, 1.442695
    %v9761 = vpow.pop %v9760
    %v9762 = vmul.f32 %v9748, 1.442695
    %v9763 = vpow.pop %v9762
    %v9764 = vmul.f32 %v9749, 1.442695
    %v9765 = vpow.pop %v9764
    %v9766 = vadd.f32 %v9751, 1.0
    %v9767 = vadd.f32 %v9753, 1.0
    %v9768 = vadd.f32 %v9755, 1.0
    %v9769 = vadd.f32 %v9757, 1.0
    %v9770 = vadd.f32 %v9759, 1.0
    %v9771 = vadd.f32 %v9761, 1.0
    %v9772 = vadd.f32 %v9763, 1.0
    %v9773 = vadd.f32 %v9765, 1.0
    %v9774 = vrcp.pop %v9766
    %v9775 = vmul.f32 1.0, %v9774
    %v9776 = vrcp.pop %v9767
    %v9777 = vmul.f32 1.0, %v9776
    %v9778 = vrcp.pop %v9768
    %v9779 = vmul.f32 1.0, %v9778
    %v9780 = vrcp.pop %v9769
    %v9781 = vmul.f32 1.0, %v9780
    %v9782 = vrcp.pop %v9770
    %v9783 = vmul.f32 1.0, %v9782
    %v9784 = vrcp.pop %v9771
    %v9785 = vmul.f32 1.0, %v9784
    %v9786 = vrcp.pop %v9772
    %v9787 = vmul.f32 1.0, %v9786
    %v9788 = vrcp.pop %v9773
    %v9789 = vmul.f32 1.0, %v9788
    %v9790 = vxor.u32 %v9714, 2147483648
    %v9791 = vxor.u32 %v9715, 2147483648
    %v9792 = vxor.u32 %v9716, 2147483648
    %v9793 = vxor.u32 %v9717, 2147483648
    %v9794 = vxor.u32 %v9730, 2147483648
    %v9795 = vxor.u32 %v9731, 2147483648
    %v9796 = vxor.u32 %v9732, 2147483648
    %v9797 = vxor.u32 %v9733, 2147483648
    %v9798 = vmul.f32 %v9790, 1.442695
    %v9799 = vpow.pop %v9798
    %v9800 = vmul.f32 %v9791, 1.442695
    %v9801 = vpow.pop %v9800
    %v9802 = vmul.f32 %v9792, 1.442695
    %v9803 = vpow.pop %v9802
    %v9804 = vmul.f32 %v9793, 1.442695
    %v9805 = vpow.pop %v9804
    %v9806 = vmul.f32 %v9794, 1.442695
    %v9807 = vpow.pop %v9806
    %v9808 = vmul.f32 %v9795, 1.442695
    %v9809 = vpow.pop %v9808
    %v9810 = vmul.f32 %v9796, 1.442695
    %v9811 = vpow.pop %v9810
    %v9812 = vmul.f32 %v9797, 1.442695
    %v9813 = vpow.pop %v9812
    %v9814 = vadd.f32 %v9799, 1.0
    %v9815 = vadd.f32 %v9801, 1.0
    %v9816 = vadd.f32 %v9803, 1.0
    %v9817 = vadd.f32 %v9805, 1.0
    %v9818 = vadd.f32 %v9807, 1.0
    %v9819 = vadd.f32 %v9809, 1.0
    %v9820 = vadd.f32 %v9811, 1.0
    %v9821 = vadd.f32 %v9813, 1.0
    %v9822 = vrcp.pop %v9814
    %v9823 = vmul.f32 1.0, %v9822
    %v9824 = vrcp.pop %v9815
    %v9825 = vmul.f32 1.0, %v9824
    %v9826 = vrcp.pop %v9816
    %v9827 = vmul.f32 1.0, %v9826
    %v9828 = vrcp.pop %v9817
    %v9829 = vmul.f32 1.0, %v9828
    %v9830 = vrcp.pop %v9818
    %v9831 = vmul.f32 1.0, %v9830
    %v9832 = vrcp.pop %v9819
    %v9833 = vmul.f32 1.0, %v9832
    %v9834 = vrcp.pop %v9820
    %v9835 = vmul.f32 1.0, %v9834
    %v9836 = vrcp.pop %v9821
    %v9837 = vmul.f32 1.0, %v9836
    %v9838 = vtanh.pop %v9718
    %v9839 = vtanh.pop %v9719
    %v9840 = vtanh.pop %v9720
    %v9841 = vtanh.pop %v9721
    %v9842 = vtanh.pop %v9734
    %v9843 = vtanh.pop %v9735
    %v9844 = vtanh.pop %v9736
    %v9845 = vtanh.pop %v9737
    %v9846 = vxor.u32 %v9722, 2147483648
    %v9847 = vxor.u32 %v9723, 2147483648
    %v9848 = vxor.u32 %v9724, 2147483648
    %v9849 = vxor.u32 %v9725, 2147483648
    %v9850 = vxor.u32 %v9738, 2147483648
    %v9851 = vxor.u32 %v9739, 2147483648
    %v9852 = vxor.u32 %v9740, 2147483648
    %v9853 = vxor.u32 %v9741, 2147483648
    %v9854 = vmul.f32 %v9846, 1.442695
    %v9855 = vpow.pop %v9854
    %v9856 = vmul.f32 %v9847, 1.442695
    %v9857 = vpow.pop %v9856
    %v9858 = vmul.f32 %v9848, 1.442695
    %v9859 = vpow.pop %v9858
    %v9860 = vmul.f32 %v9849, 1.442695
    %v9861 = vpow.pop %v9860
    %v9862 = vmul.f32 %v9850, 1.442695
    %v9863 = vpow.pop %v9862
    %v9864 = vmul.f32 %v9851, 1.442695
    %v9865 = vpow.pop %v9864
    %v9866 = vmul.f32 %v9852, 1.442695
    %v9867 = vpow.pop %v9866
    %v9868 = vmul.f32 %v9853, 1.442695
    %v9869 = vpow.pop %v9868
    %v9870 = vadd.f32 %v9855, 1.0
    %v9871 = vadd.f32 %v9857, 1.0
    %v9872 = vadd.f32 %v9859, 1.0
    %v9873 = vadd.f32 %v9861, 1.0
    %v9874 = vadd.f32 %v9863, 1.0
    %v9875 = vadd.f32 %v9865, 1.0
    %v9876 = vadd.f32 %v9867, 1.0
    %v9877 = vadd.f32 %v9869, 1.0
    %v9878 = vrcp.pop %v9870
    %v9879 = vmul.f32 1.0, %v9878
    %v9880 = vrcp.pop %v9871
    %v9881 = vmul.f32 1.0, %v9880
    %v9882 = vrcp.pop %v9872
    %v9883 = vmul.f32 1.0, %v9882
    %v9884 = vrcp.pop %v9873
    %v9885 = vmul.f32 1.0, %v9884
    %v9886 = vrcp.pop %v9874
    %v9887 = vmul.f32 1.0, %v9886
    %v9888 = vrcp.pop %v9875
    %v9889 = vmul.f32 1.0, %v9888
    %v9890 = vrcp.pop %v9876
    %v9891 = vmul.f32 1.0, %v9890
    %v9892 = vrcp.pop %v9877
    %v9893 = vmul.f32 1.0, %v9892
    %v9894 = vmul.f32 %v9823, %v8945
    %v9895 = vmul.f32 %v9825, %v8946
    %v9896 = vmul.f32 %v9827, %v8947
    %v9897 = vmul.f32 %v9829, %v8948
    %v9898 = vmul.f32 %v9831, %v8949
    %v9899 = vmul.f32 %v9833, %v8950
    %v9900 = vmul.f32 %v9835, %v8951
    %v9901 = vmul.f32 %v9837, %v8952
    %v9902 = vmul.f32 %v9775, %v9838
    %v9903 = vmul.f32 %v9777, %v9839
    %v9904 = vmul.f32 %v9779, %v9840
    %v9905 = vmul.f32 %v9781, %v9841
    %v9906 = vmul.f32 %v9783, %v9842
    %v9907 = vmul.f32 %v9785, %v9843
    %v9908 = vmul.f32 %v9787, %v9844
    %v9909 = vmul.f32 %v9789, %v9845
    %v9910 = vadd.f32 %v9894, %v9902
    %v9911 = vadd.f32 %v9895, %v9903
    %v9912 = vadd.f32 %v9896, %v9904
    %v9913 = vadd.f32 %v9897, %v9905
    %v9914 = vadd.f32 %v9898, %v9906
    %v9915 = vadd.f32 %v9899, %v9907
    %v9916 = vadd.f32 %v9900, %v9908
    %v9917 = vadd.f32 %v9901, %v9909
    %v9918 = vtanh.pop %v9910
    %v9919 = vtanh.pop %v9911
    %v9920 = vtanh.pop %v9912
    %v9921 = vtanh.pop %v9913
    %v9922 = vtanh.pop %v9914
    %v9923 = vtanh.pop %v9915
    %v9924 = vtanh.pop %v9916
    %v9925 = vtanh.pop %v9917
    %v9926 = vmul.f32 %v9879, %v9918
    %v9927 = vmul.f32 %v9881, %v9919
    %v9928 = vmul.f32 %v9883, %v9920
    %v9929 = vmul.f32 %v9885, %v9921
    %v9930 = vmul.f32 %v9887, %v9922
    %v9931 = vmul.f32 %v9889, %v9923
    %v9932 = vmul.f32 %v9891, %v9924
    %v9933 = vmul.f32 %v9893, %v9925
    %s9934 = scalar_lea.vmem [#allocation4], 896
    %v9935 = vld [vmem:[%s9934] sm:$0xff]
    %v9936 = vld [vmem:[%s9934 + $0x8] sm:$0xff]
    %v9937 = vld [vmem:[%s9934 + $0x10] sm:$0xff]
    %v9938 = vld [vmem:[%s9934 + $0x18] sm:$0xff]
    %v9939 = vld [vmem:[%s9934 + $0x20] sm:$0xff]
    %v9940 = vld [vmem:[%s9934 + $0x28] sm:$0xff]
    %v9941 = vld [vmem:[%s9934 + $0x30] sm:$0xff]
    %v9942 = vld [vmem:[%s9934 + $0x38] sm:$0xff]
    %v9943 = vld [vmem:[%s9934 + $0x40] sm:$0xff]
    %v9944 = vld [vmem:[%s9934 + $0x48] sm:$0xff]
    %v9945 = vld [vmem:[%s9934 + $0x50] sm:$0xff]
    %v9946 = vld [vmem:[%s9934 + $0x58] sm:$0xff]
    %v9947 = vld [vmem:[%s9934 + $0x60] sm:$0xff]
    %v9948 = vld [vmem:[%s9934 + $0x68] sm:$0xff]
    %v9949 = vld [vmem:[%s9934 + $0x70] sm:$0xff]
    %v9950 = vld [vmem:[%s9934 + $0x78] sm:$0xff]
    %v9951 = vunpack.c.l.bf16 %v9935
    %v9952 = vunpack.c.h.bf16 %v9935
    %v9953 = vunpack.c.l.bf16 %v9936
    %v9954 = vunpack.c.h.bf16 %v9936
    %v9955 = vunpack.c.l.bf16 %v9937
    %v9956 = vunpack.c.h.bf16 %v9937
    %v9957 = vunpack.c.l.bf16 %v9938
    %v9958 = vunpack.c.h.bf16 %v9938
    %v9959 = vunpack.c.l.bf16 %v9939
    %v9960 = vunpack.c.h.bf16 %v9939
    %v9961 = vunpack.c.l.bf16 %v9940
    %v9962 = vunpack.c.h.bf16 %v9940
    %v9963 = vunpack.c.l.bf16 %v9941
    %v9964 = vunpack.c.h.bf16 %v9941
    %v9965 = vunpack.c.l.bf16 %v9942
    %v9966 = vunpack.c.h.bf16 %v9942
    %v9967 = vunpack.c.l.bf16 %v9943
    %v9968 = vunpack.c.h.bf16 %v9943
    %v9969 = vunpack.c.l.bf16 %v9944
    %v9970 = vunpack.c.h.bf16 %v9944
    %v9971 = vunpack.c.l.bf16 %v9945
    %v9972 = vunpack.c.h.bf16 %v9945
    %v9973 = vunpack.c.l.bf16 %v9946
    %v9974 = vunpack.c.h.bf16 %v9946
    %v9975 = vunpack.c.l.bf16 %v9947
    %v9976 = vunpack.c.h.bf16 %v9947
    %v9977 = vunpack.c.l.bf16 %v9948
    %v9978 = vunpack.c.h.bf16 %v9948
    %v9979 = vunpack.c.l.bf16 %v9949
    %v9980 = vunpack.c.h.bf16 %v9949
    %v9981 = vunpack.c.l.bf16 %v9950
    %v9982 = vunpack.c.h.bf16 %v9950
    %v9983 = vpack.c.bf16 %v9930, %v9926
    %v9984 = vpack.c.bf16 %v9931, %v9927
    %v9985 = vpack.c.bf16 %v9932, %v9928
    %v9986 = vpack.c.bf16 %v9933, %v9929
    %9987 = vmatprep.subr.bf16.mxu0 %v2321
    %9988 = vmatpush1.bf16.msra.mxu0 %v2320
    %9989 = vmatprep.subr.bf16.mxu0 %v2305
    %9990 = vmatpush1.bf16.msra.mxu0 %v2304
    %9991 = vmatprep.subr.bf16.mxu0 %v2289
    %9992 = vmatpush1.bf16.msra.mxu0 %v2288
    %9993 = vmatprep.subr.bf16.mxu0 %v2273
    %9994 = vmatpush1.bf16.msra.mxu0 %v2272
    %9995 = vmatprep.subr.bf16.mxu0 %v2257
    %9996 = vmatpush1.bf16.msra.mxu0 %v2256
    %9997 = vmatprep.subr.bf16.mxu0 %v2241
    %9998 = vmatpush1.bf16.msra.mxu0 %v2240
    %9999 = vmatprep.subr.bf16.mxu0 %v2225
    %10000 = vmatpush1.bf16.msra.mxu0 %v2224
    %10001 = vmatprep.subr.bf16.mxu0 %v2209
    %10002 = vmatpush1.bf16.msra.mxu0 %v2208
    %10003 = vmatprep.subr.bf16.mxu0 %v2449
    %10004 = vmatpush2.bf16.msra.mxu0 %v2448
    %10005 = vmatprep.subr.bf16.mxu0 %v2433
    %10006 = vmatpush2.bf16.msra.mxu0 %v2432
    %10007 = vmatprep.subr.bf16.mxu0 %v2417
    %10008 = vmatpush2.bf16.msra.mxu0 %v2416
    %10009 = vmatprep.subr.bf16.mxu0 %v2401
    %10010 = vmatpush2.bf16.msra.mxu0 %v2400
    %10011 = vmatprep.subr.bf16.mxu0 %v2385
    %10012 = vmatpush2.bf16.msra.mxu0 %v2384
    %10013 = vmatprep.subr.bf16.mxu0 %v2369
    %10014 = vmatpush2.bf16.msra.mxu0 %v2368
    %10015 = vmatprep.subr.bf16.mxu0 %v2353
    %10016 = vmatpush2.bf16.msra.mxu0 %v2352
    %10017 = vmatprep.subr.bf16.mxu0 %v2337
    %10018 = vmatpush2.bf16.msra.mxu0 %v2336
    %10019 = vmatprep.mubr.bf16.mxu0 %v9984
    %10020 = vmatmul.mubr.bf16.gmra.mxu0 %v9983
    %v10021 = vpop.f32.mrf.mxu0
    %v10022 = vadd.f32 0.0, %v10021
    %v10023 = vpop.f32.mrf.mxu0
    %v10024 = vadd.f32 0.0, %v10023
    %v10025 = vpop.f32.mrf.mxu0
    %v10026 = vadd.f32 0.0, %v10025
    %v10027 = vpop.f32.mrf.mxu0
    %v10028 = vadd.f32 0.0, %v10027
    %10029 = vdwg.mxu0
    %10030 = vmatprep.subr.bf16.mxu0 %v2577
    %10031 = vmatpush1.bf16.msra.mxu0 %v2576
    %10032 = vmatprep.subr.bf16.mxu0 %v2561
    %10033 = vmatpush1.bf16.msra.mxu0 %v2560
    %10034 = vmatprep.subr.bf16.mxu0 %v2545
    %10035 = vmatpush1.bf16.msra.mxu0 %v2544
    %10036 = vmatprep.subr.bf16.mxu0 %v2529
    %10037 = vmatpush1.bf16.msra.mxu0 %v2528
    %10038 = vmatprep.subr.bf16.mxu0 %v2513
    %10039 = vmatpush1.bf16.msra.mxu0 %v2512
    %10040 = vmatprep.subr.bf16.mxu0 %v2497
    %10041 = vmatpush1.bf16.msra.mxu0 %v2496
    %10042 = vmatprep.subr.bf16.mxu0 %v2481
    %10043 = vmatpush1.bf16.msra.mxu0 %v2480
    %10044 = vmatprep.subr.bf16.mxu0 %v2465
    %10045 = vmatpush1.bf16.msra.mxu0 %v2464
    %10046 = vmatprep.subr.bf16.mxu0 %v2705
    %10047 = vmatpush2.bf16.msra.mxu0 %v2704
    %10048 = vmatprep.subr.bf16.mxu0 %v2689
    %10049 = vmatpush2.bf16.msra.mxu0 %v2688
    %10050 = vmatprep.subr.bf16.mxu0 %v2673
    %10051 = vmatpush2.bf16.msra.mxu0 %v2672
    %10052 = vmatprep.subr.bf16.mxu0 %v2657
    %10053 = vmatpush2.bf16.msra.mxu0 %v2656
    %10054 = vmatprep.subr.bf16.mxu0 %v2641
    %10055 = vmatpush2.bf16.msra.mxu0 %v2640
    %10056 = vmatprep.subr.bf16.mxu0 %v2625
    %10057 = vmatpush2.bf16.msra.mxu0 %v2624
    %10058 = vmatprep.subr.bf16.mxu0 %v2609
    %10059 = vmatpush2.bf16.msra.mxu0 %v2608
    %10060 = vmatprep.subr.bf16.mxu0 %v2593
    %10061 = vmatpush2.bf16.msra.mxu0 %v2592
    %10062 = vmatprep.mubr.bf16.mxu0 %v9986
    %10063 = vmatmul.mubr.bf16.gmra.mxu0 %v9985
    %v10064 = vpop.f32.mrf.mxu0
    %v10065 = vadd.f32 %v10022, %v10064
    %v10066 = vpop.f32.mrf.mxu0
    %v10067 = vadd.f32 %v10024, %v10066
    %v10068 = vpop.f32.mrf.mxu0
    %v10069 = vadd.f32 %v10026, %v10068
    %v10070 = vpop.f32.mrf.mxu0
    %v10071 = vadd.f32 %v10028, %v10070
    %10072 = vdwg.mxu0
    %10073 = vmatprep.subr.bf16.mxu0 %v2323
    %10074 = vmatpush1.bf16.msra.mxu0 %v2322
    %10075 = vmatprep.subr.bf16.mxu0 %v2307
    %10076 = vmatpush1.bf16.msra.mxu0 %v2306
    %10077 = vmatprep.subr.bf16.mxu0 %v2291
    %10078 = vmatpush1.bf16.msra.mxu0 %v2290
    %10079 = vmatprep.subr.bf16.mxu0 %v2275
    %10080 = vmatpush1.bf16.msra.mxu0 %v2274
    %10081 = vmatprep.subr.bf16.mxu0 %v2259
    %10082 = vmatpush1.bf16.msra.mxu0 %v2258
    %10083 = vmatprep.subr.bf16.mxu0 %v2243
    %10084 = vmatpush1.bf16.msra.mxu0 %v2242
    %10085 = vmatprep.subr.bf16.mxu0 %v2227
    %10086 = vmatpush1.bf16.msra.mxu0 %v2226
    %10087 = vmatprep.subr.bf16.mxu0 %v2211
    %10088 = vmatpush1.bf16.msra.mxu0 %v2210
    %10089 = vmatprep.subr.bf16.mxu0 %v2451
    %10090 = vmatpush2.bf16.msra.mxu0 %v2450
    %10091 = vmatprep.subr.bf16.mxu0 %v2435
    %10092 = vmatpush2.bf16.msra.mxu0 %v2434
    %10093 = vmatprep.subr.bf16.mxu0 %v2419
    %10094 = vmatpush2.bf16.msra.mxu0 %v2418
    %10095 = vmatprep.subr.bf16.mxu0 %v2403
    %10096 = vmatpush2.bf16.msra.mxu0 %v2402
    %10097 = vmatprep.subr.bf16.mxu0 %v2387
    %10098 = vmatpush2.bf16.msra.mxu0 %v2386
    %10099 = vmatprep.subr.bf16.mxu0 %v2371
    %10100 = vmatpush2.bf16.msra.mxu0 %v2370
    %10101 = vmatprep.subr.bf16.mxu0 %v2355
    %10102 = vmatpush2.bf16.msra.mxu0 %v2354
    %10103 = vmatprep.subr.bf16.mxu0 %v2339
    %10104 = vmatpush2.bf16.msra.mxu0 %v2338
    %10105 = vmatprep.mubr.bf16.mxu0 %v9984
    %10106 = vmatmul.mubr.bf16.gmra.mxu0 %v9983
    %v10107 = vpop.f32.mrf.mxu0
    %v10108 = vadd.f32 0.0, %v10107
    %v10109 = vpop.f32.mrf.mxu0
    %v10110 = vadd.f32 0.0, %v10109
    %v10111 = vpop.f32.mrf.mxu0
    %v10112 = vadd.f32 0.0, %v10111
    %v10113 = vpop.f32.mrf.mxu0
    %v10114 = vadd.f32 0.0, %v10113
    %10115 = vdwg.mxu0
    %10116 = vmatprep.subr.bf16.mxu0 %v2579
    %10117 = vmatpush1.bf16.msra.mxu0 %v2578
    %10118 = vmatprep.subr.bf16.mxu0 %v2563
    %10119 = vmatpush1.bf16.msra.mxu0 %v2562
    %10120 = vmatprep.subr.bf16.mxu0 %v2547
    %10121 = vmatpush1.bf16.msra.mxu0 %v2546
    %10122 = vmatprep.subr.bf16.mxu0 %v2531
    %10123 = vmatpush1.bf16.msra.mxu0 %v2530
    %10124 = vmatprep.subr.bf16.mxu0 %v2515
    %10125 = vmatpush1.bf16.msra.mxu0 %v2514
    %10126 = vmatprep.subr.bf16.mxu0 %v2499
    %10127 = vmatpush1.bf16.msra.mxu0 %v2498
    %10128 = vmatprep.subr.bf16.mxu0 %v2483
    %10129 = vmatpush1.bf16.msra.mxu0 %v2482
    %10130 = vmatprep.subr.bf16.mxu0 %v2467
    %10131 = vmatpush1.bf16.msra.mxu0 %v2466
    %10132 = vmatprep.subr.bf16.mxu0 %v2707
    %10133 = vmatpush2.bf16.msra.mxu0 %v2706
    %10134 = vmatprep.subr.bf16.mxu0 %v2691
    %10135 = vmatpush2.bf16.msra.mxu0 %v2690
    %10136 = vmatprep.subr.bf16.mxu0 %v2675
    %10137 = vmatpush2.bf16.msra.mxu0 %v2674
    %10138 = vmatprep.subr.bf16.mxu0 %v2659
    %10139 = vmatpush2.bf16.msra.mxu0 %v2658
    %10140 = vmatprep.subr.bf16.mxu0 %v2643
    %10141 = vmatpush2.bf16.msra.mxu0 %v2642
    %10142 = vmatprep.subr.bf16.mxu0 %v2627
    %10143 = vmatpush2.bf16.msra.mxu0 %v2626
    %10144 = vmatprep.subr.bf16.mxu0 %v2611
    %10145 = vmatpush2.bf16.msra.mxu0 %v2610
    %10146 = vmatprep.subr.bf16.mxu0 %v2595
    %10147 = vmatpush2.bf16.msra.mxu0 %v2594
    %10148 = vmatprep.mubr.bf16.mxu0 %v9986
    %10149 = vmatmul.mubr.bf16.gmra.mxu0 %v9985
    %v10150 = vpop.f32.mrf.mxu0
    %v10151 = vadd.f32 %v10108, %v10150
    %v10152 = vpop.f32.mrf.mxu0
    %v10153 = vadd.f32 %v10110, %v10152
    %v10154 = vpop.f32.mrf.mxu0
    %v10155 = vadd.f32 %v10112, %v10154
    %v10156 = vpop.f32.mrf.mxu0
    %v10157 = vadd.f32 %v10114, %v10156
    %10158 = vdwg.mxu0
    %10159 = vmatprep.subr.bf16.mxu0 %v2325
    %10160 = vmatpush1.bf16.msra.mxu0 %v2324
    %10161 = vmatprep.subr.bf16.mxu0 %v2309
    %10162 = vmatpush1.bf16.msra.mxu0 %v2308
    %10163 = vmatprep.subr.bf16.mxu0 %v2293
    %10164 = vmatpush1.bf16.msra.mxu0 %v2292
    %10165 = vmatprep.subr.bf16.mxu0 %v2277
    %10166 = vmatpush1.bf16.msra.mxu0 %v2276
    %10167 = vmatprep.subr.bf16.mxu0 %v2261
    %10168 = vmatpush1.bf16.msra.mxu0 %v2260
    %10169 = vmatprep.subr.bf16.mxu0 %v2245
    %10170 = vmatpush1.bf16.msra.mxu0 %v2244
    %10171 = vmatprep.subr.bf16.mxu0 %v2229
    %10172 = vmatpush1.bf16.msra.mxu0 %v2228
    %10173 = vmatprep.subr.bf16.mxu0 %v2213
    %10174 = vmatpush1.bf16.msra.mxu0 %v2212
    %10175 = vmatprep.subr.bf16.mxu0 %v2453
    %10176 = vmatpush2.bf16.msra.mxu0 %v2452
    %10177 = vmatprep.subr.bf16.mxu0 %v2437
    %10178 = vmatpush2.bf16.msra.mxu0 %v2436
    %10179 = vmatprep.subr.bf16.mxu0 %v2421
    %10180 = vmatpush2.bf16.msra.mxu0 %v2420
    %10181 = vmatprep.subr.bf16.mxu0 %v2405
    %10182 = vmatpush2.bf16.msra.mxu0 %v2404
    %10183 = vmatprep.subr.bf16.mxu0 %v2389
    %10184 = vmatpush2.bf16.msra.mxu0 %v2388
    %10185 = vmatprep.subr.bf16.mxu0 %v2373
    %10186 = vmatpush2.bf16.msra.mxu0 %v2372
    %10187 = vmatprep.subr.bf16.mxu0 %v2357
    %10188 = vmatpush2.bf16.msra.mxu0 %v2356
    %10189 = vmatprep.subr.bf16.mxu0 %v2341
    %10190 = vmatpush2.bf16.msra.mxu0 %v2340
    %10191 = vmatprep.mubr.bf16.mxu0 %v9984
    %10192 = vmatmul.mubr.bf16.gmra.mxu0 %v9983
    %v10193 = vpop.f32.mrf.mxu0
    %v10194 = vadd.f32 0.0, %v10193
    %v10195 = vpop.f32.mrf.mxu0
    %v10196 = vadd.f32 0.0, %v10195
    %v10197 = vpop.f32.mrf.mxu0
    %v10198 = vadd.f32 0.0, %v10197
    %v10199 = vpop.f32.mrf.mxu0
    %v10200 = vadd.f32 0.0, %v10199
    %10201 = vdwg.mxu0
    %10202 = vmatprep.subr.bf16.mxu0 %v2581
    %10203 = vmatpush1.bf16.msra.mxu0 %v2580
    %10204 = vmatprep.subr.bf16.mxu0 %v2565
    %10205 = vmatpush1.bf16.msra.mxu0 %v2564
    %10206 = vmatprep.subr.bf16.mxu0 %v2549
    %10207 = vmatpush1.bf16.msra.mxu0 %v2548
    %10208 = vmatprep.subr.bf16.mxu0 %v2533
    %10209 = vmatpush1.bf16.msra.mxu0 %v2532
    %10210 = vmatprep.subr.bf16.mxu0 %v2517
    %10211 = vmatpush1.bf16.msra.mxu0 %v2516
    %10212 = vmatprep.subr.bf16.mxu0 %v2501
    %10213 = vmatpush1.bf16.msra.mxu0 %v2500
    %10214 = vmatprep.subr.bf16.mxu0 %v2485
    %10215 = vmatpush1.bf16.msra.mxu0 %v2484
    %10216 = vmatprep.subr.bf16.mxu0 %v2469
    %10217 = vmatpush1.bf16.msra.mxu0 %v2468
    %10218 = vmatprep.subr.bf16.mxu0 %v2709
    %10219 = vmatpush2.bf16.msra.mxu0 %v2708
    %10220 = vmatprep.subr.bf16.mxu0 %v2693
    %10221 = vmatpush2.bf16.msra.mxu0 %v2692
    %10222 = vmatprep.subr.bf16.mxu0 %v2677
    %10223 = vmatpush2.bf16.msra.mxu0 %v2676
    %10224 = vmatprep.subr.bf16.mxu0 %v2661
    %10225 = vmatpush2.bf16.msra.mxu0 %v2660
    %10226 = vmatprep.subr.bf16.mxu0 %v2645
    %10227 = vmatpush2.bf16.msra.mxu0 %v2644
    %10228 = vmatprep.subr.bf16.mxu0 %v2629
    %10229 = vmatpush2.bf16.msra.mxu0 %v2628
    %10230 = vmatprep.subr.bf16.mxu0 %v2613
    %10231 = vmatpush2.bf16.msra.mxu0 %v2612
    %10232 = vmatprep.subr.bf16.mxu0 %v2597
    %10233 = vmatpush2.bf16.msra.mxu0 %v2596
    %10234 = vmatprep.mubr.bf16.mxu0 %v9986
    %10235 = vmatmul.mubr.bf16.gmra.mxu0 %v9985
    %v10236 = vpop.f32.mrf.mxu0
    %v10237 = vadd.f32 %v10194, %v10236
    %v10238 = vpop.f32.mrf.mxu0
    %v10239 = vadd.f32 %v10196, %v10238
    %v10240 = vpop.f32.mrf.mxu0
    %v10241 = vadd.f32 %v10198, %v10240
    %v10242 = vpop.f32.mrf.mxu0
    %v10243 = vadd.f32 %v10200, %v10242
    %10244 = vdwg.mxu0
    %10245 = vmatprep.subr.bf16.mxu0 %v2327
    %10246 = vmatpush1.bf16.msra.mxu0 %v2326
    %10247 = vmatprep.subr.bf16.mxu0 %v2311
    %10248 = vmatpush1.bf16.msra.mxu0 %v2310
    %10249 = vmatprep.subr.bf16.mxu0 %v2295
    %10250 = vmatpush1.bf16.msra.mxu0 %v2294
    %10251 = vmatprep.subr.bf16.mxu0 %v2279
    %10252 = vmatpush1.bf16.msra.mxu0 %v2278
    %10253 = vmatprep.subr.bf16.mxu0 %v2263
    %10254 = vmatpush1.bf16.msra.mxu0 %v2262
    %10255 = vmatprep.subr.bf16.mxu0 %v2247
    %10256 = vmatpush1.bf16.msra.mxu0 %v2246
    %10257 = vmatprep.subr.bf16.mxu0 %v2231
    %10258 = vmatpush1.bf16.msra.mxu0 %v2230
    %10259 = vmatprep.subr.bf16.mxu0 %v2215
    %10260 = vmatpush1.bf16.msra.mxu0 %v2214
    %10261 = vmatprep.subr.bf16.mxu0 %v2455
    %10262 = vmatpush2.bf16.msra.mxu0 %v2454
    %10263 = vmatprep.subr.bf16.mxu0 %v2439
    %10264 = vmatpush2.bf16.msra.mxu0 %v2438
    %10265 = vmatprep.subr.bf16.mxu0 %v2423
    %10266 = vmatpush2.bf16.msra.mxu0 %v2422
    %10267 = vmatprep.subr.bf16.mxu0 %v2407
    %10268 = vmatpush2.bf16.msra.mxu0 %v2406
    %10269 = vmatprep.subr.bf16.mxu0 %v2391
    %10270 = vmatpush2.bf16.msra.mxu0 %v2390
    %10271 = vmatprep.subr.bf16.mxu0 %v2375
    %10272 = vmatpush2.bf16.msra.mxu0 %v2374
    %10273 = vmatprep.subr.bf16.mxu0 %v2359
    %10274 = vmatpush2.bf16.msra.mxu0 %v2358
    %10275 = vmatprep.subr.bf16.mxu0 %v2343
    %10276 = vmatpush2.bf16.msra.mxu0 %v2342
    %10277 = vmatprep.mubr.bf16.mxu0 %v9984
    %10278 = vmatmul.mubr.bf16.gmra.mxu0 %v9983
    %v10279 = vpop.f32.mrf.mxu0
    %v10280 = vadd.f32 0.0, %v10279
    %v10281 = vpop.f32.mrf.mxu0
    %v10282 = vadd.f32 0.0, %v10281
    %v10283 = vpop.f32.mrf.mxu0
    %v10284 = vadd.f32 0.0, %v10283
    %v10285 = vpop.f32.mrf.mxu0
    %v10286 = vadd.f32 0.0, %v10285
    %10287 = vdwg.mxu0
    %10288 = vmatprep.subr.bf16.mxu0 %v2583
    %10289 = vmatpush1.bf16.msra.mxu0 %v2582
    %10290 = vmatprep.subr.bf16.mxu0 %v2567
    %10291 = vmatpush1.bf16.msra.mxu0 %v2566
    %10292 = vmatprep.subr.bf16.mxu0 %v2551
    %10293 = vmatpush1.bf16.msra.mxu0 %v2550
    %10294 = vmatprep.subr.bf16.mxu0 %v2535
    %10295 = vmatpush1.bf16.msra.mxu0 %v2534
    %10296 = vmatprep.subr.bf16.mxu0 %v2519
    %10297 = vmatpush1.bf16.msra.mxu0 %v2518
    %10298 = vmatprep.subr.bf16.mxu0 %v2503
    %10299 = vmatpush1.bf16.msra.mxu0 %v2502
    %10300 = vmatprep.subr.bf16.mxu0 %v2487
    %10301 = vmatpush1.bf16.msra.mxu0 %v2486
    %10302 = vmatprep.subr.bf16.mxu0 %v2471
    %10303 = vmatpush1.bf16.msra.mxu0 %v2470
    %10304 = vmatprep.subr.bf16.mxu0 %v2711
    %10305 = vmatpush2.bf16.msra.mxu0 %v2710
    %10306 = vmatprep.subr.bf16.mxu0 %v2695
    %10307 = vmatpush2.bf16.msra.mxu0 %v2694
    %10308 = vmatprep.subr.bf16.mxu0 %v2679
    %10309 = vmatpush2.bf16.msra.mxu0 %v2678
    %10310 = vmatprep.subr.bf16.mxu0 %v2663
    %10311 = vmatpush2.bf16.msra.mxu0 %v2662
    %10312 = vmatprep.subr.bf16.mxu0 %v2647
    %10313 = vmatpush2.bf16.msra.mxu0 %v2646
    %10314 = vmatprep.subr.bf16.mxu0 %v2631
    %10315 = vmatpush2.bf16.msra.mxu0 %v2630
    %10316 = vmatprep.subr.bf16.mxu0 %v2615
    %10317 = vmatpush2.bf16.msra.mxu0 %v2614
    %10318 = vmatprep.subr.bf16.mxu0 %v2599
    %10319 = vmatpush2.bf16.msra.mxu0 %v2598
    %10320 = vmatprep.mubr.bf16.mxu0 %v9986
    %10321 = vmatmul.mubr.bf16.gmra.mxu0 %v9985
    %v10322 = vpop.f32.mrf.mxu0
    %v10323 = vadd.f32 %v10280, %v10322
    %v10324 = vpop.f32.mrf.mxu0
    %v10325 = vadd.f32 %v10282, %v10324
    %v10326 = vpop.f32.mrf.mxu0
    %v10327 = vadd.f32 %v10284, %v10326
    %v10328 = vpop.f32.mrf.mxu0
    %v10329 = vadd.f32 %v10286, %v10328
    %10330 = vdwg.mxu0
    %10331 = vmatprep.subr.bf16.mxu0 %v2329
    %10332 = vmatpush1.bf16.msra.mxu0 %v2328
    %10333 = vmatprep.subr.bf16.mxu0 %v2313
    %10334 = vmatpush1.bf16.msra.mxu0 %v2312
    %10335 = vmatprep.subr.bf16.mxu0 %v2297
    %10336 = vmatpush1.bf16.msra.mxu0 %v2296
    %10337 = vmatprep.subr.bf16.mxu0 %v2281
    %10338 = vmatpush1.bf16.msra.mxu0 %v2280
    %10339 = vmatprep.subr.bf16.mxu0 %v2265
    %10340 = vmatpush1.bf16.msra.mxu0 %v2264
    %10341 = vmatprep.subr.bf16.mxu0 %v2249
    %10342 = vmatpush1.bf16.msra.mxu0 %v2248
    %10343 = vmatprep.subr.bf16.mxu0 %v2233
    %10344 = vmatpush1.bf16.msra.mxu0 %v2232
    %10345 = vmatprep.subr.bf16.mxu0 %v2217
    %10346 = vmatpush1.bf16.msra.mxu0 %v2216
    %10347 = vmatprep.subr.bf16.mxu0 %v2457
    %10348 = vmatpush2.bf16.msra.mxu0 %v2456
    %10349 = vmatprep.subr.bf16.mxu0 %v2441
    %10350 = vmatpush2.bf16.msra.mxu0 %v2440
    %10351 = vmatprep.subr.bf16.mxu0 %v2425
    %10352 = vmatpush2.bf16.msra.mxu0 %v2424
    %10353 = vmatprep.subr.bf16.mxu0 %v2409
    %10354 = vmatpush2.bf16.msra.mxu0 %v2408
    %10355 = vmatprep.subr.bf16.mxu0 %v2393
    %10356 = vmatpush2.bf16.msra.mxu0 %v2392
    %10357 = vmatprep.subr.bf16.mxu0 %v2377
    %10358 = vmatpush2.bf16.msra.mxu0 %v2376
    %10359 = vmatprep.subr.bf16.mxu0 %v2361
    %10360 = vmatpush2.bf16.msra.mxu0 %v2360
    %10361 = vmatprep.subr.bf16.mxu0 %v2345
    %10362 = vmatpush2.bf16.msra.mxu0 %v2344
    %10363 = vmatprep.mubr.bf16.mxu0 %v9984
    %10364 = vmatmul.mubr.bf16.gmra.mxu0 %v9983
    %v10365 = vpop.f32.mrf.mxu0
    %v10366 = vadd.f32 0.0, %v10365
    %v10367 = vpop.f32.mrf.mxu0
    %v10368 = vadd.f32 0.0, %v10367
    %v10369 = vpop.f32.mrf.mxu0
    %v10370 = vadd.f32 0.0, %v10369
    %v10371 = vpop.f32.mrf.mxu0
    %v10372 = vadd.f32 0.0, %v10371
    %10373 = vdwg.mxu0
    %10374 = vmatprep.subr.bf16.mxu0 %v2585
    %10375 = vmatpush1.bf16.msra.mxu0 %v2584
    %10376 = vmatprep.subr.bf16.mxu0 %v2569
    %10377 = vmatpush1.bf16.msra.mxu0 %v2568
    %10378 = vmatprep.subr.bf16.mxu0 %v2553
    %10379 = vmatpush1.bf16.msra.mxu0 %v2552
    %10380 = vmatprep.subr.bf16.mxu0 %v2537
    %10381 = vmatpush1.bf16.msra.mxu0 %v2536
    %10382 = vmatprep.subr.bf16.mxu0 %v2521
    %10383 = vmatpush1.bf16.msra.mxu0 %v2520
    %10384 = vmatprep.subr.bf16.mxu0 %v2505
    %10385 = vmatpush1.bf16.msra.mxu0 %v2504
    %10386 = vmatprep.subr.bf16.mxu0 %v2489
    %10387 = vmatpush1.bf16.msra.mxu0 %v2488
    %10388 = vmatprep.subr.bf16.mxu0 %v2473
    %10389 = vmatpush1.bf16.msra.mxu0 %v2472
    %10390 = vmatprep.subr.bf16.mxu0 %v2713
    %10391 = vmatpush2.bf16.msra.mxu0 %v2712
    %10392 = vmatprep.subr.bf16.mxu0 %v2697
    %10393 = vmatpush2.bf16.msra.mxu0 %v2696
    %10394 = vmatprep.subr.bf16.mxu0 %v2681
    %10395 = vmatpush2.bf16.msra.mxu0 %v2680
    %10396 = vmatprep.subr.bf16.mxu0 %v2665
    %10397 = vmatpush2.bf16.msra.mxu0 %v2664
    %10398 = vmatprep.subr.bf16.mxu0 %v2649
    %10399 = vmatpush2.bf16.msra.mxu0 %v2648
    %10400 = vmatprep.subr.bf16.mxu0 %v2633
    %10401 = vmatpush2.bf16.msra.mxu0 %v2632
    %10402 = vmatprep.subr.bf16.mxu0 %v2617
    %10403 = vmatpush2.bf16.msra.mxu0 %v2616
    %10404 = vmatprep.subr.bf16.mxu0 %v2601
    %10405 = vmatpush2.bf16.msra.mxu0 %v2600
    %10406 = vmatprep.mubr.bf16.mxu0 %v9986
    %10407 = vmatmul.mubr.bf16.gmra.mxu0 %v9985
    %v10408 = vpop.f32.mrf.mxu0
    %v10409 = vadd.f32 %v10366, %v10408
    %v10410 = vpop.f32.mrf.mxu0
    %v10411 = vadd.f32 %v10368, %v10410
    %v10412 = vpop.f32.mrf.mxu0
    %v10413 = vadd.f32 %v10370, %v10412
    %v10414 = vpop.f32.mrf.mxu0
    %v10415 = vadd.f32 %v10372, %v10414
    %10416 = vdwg.mxu0
    %10417 = vmatprep.subr.bf16.mxu0 %v2331
    %10418 = vmatpush1.bf16.msra.mxu0 %v2330
    %10419 = vmatprep.subr.bf16.mxu0 %v2315
    %10420 = vmatpush1.bf16.msra.mxu0 %v2314
    %10421 = vmatprep.subr.bf16.mxu0 %v2299
    %10422 = vmatpush1.bf16.msra.mxu0 %v2298
    %10423 = vmatprep.subr.bf16.mxu0 %v2283
    %10424 = vmatpush1.bf16.msra.mxu0 %v2282
    %10425 = vmatprep.subr.bf16.mxu0 %v2267
    %10426 = vmatpush1.bf16.msra.mxu0 %v2266
    %10427 = vmatprep.subr.bf16.mxu0 %v2251
    %10428 = vmatpush1.bf16.msra.mxu0 %v2250
    %10429 = vmatprep.subr.bf16.mxu0 %v2235
    %10430 = vmatpush1.bf16.msra.mxu0 %v2234
    %10431 = vmatprep.subr.bf16.mxu0 %v2219
    %10432 = vmatpush1.bf16.msra.mxu0 %v2218
    %10433 = vmatprep.subr.bf16.mxu0 %v2459
    %10434 = vmatpush2.bf16.msra.mxu0 %v2458
    %10435 = vmatprep.subr.bf16.mxu0 %v2443
    %10436 = vmatpush2.bf16.msra.mxu0 %v2442
    %10437 = vmatprep.subr.bf16.mxu0 %v2427
    %10438 = vmatpush2.bf16.msra.mxu0 %v2426
    %10439 = vmatprep.subr.bf16.mxu0 %v2411
    %10440 = vmatpush2.bf16.msra.mxu0 %v2410
    %10441 = vmatprep.subr.bf16.mxu0 %v2395
    %10442 = vmatpush2.bf16.msra.mxu0 %v2394
    %10443 = vmatprep.subr.bf16.mxu0 %v2379
    %10444 = vmatpush2.bf16.msra.mxu0 %v2378
    %10445 = vmatprep.subr.bf16.mxu0 %v2363
    %10446 = vmatpush2.bf16.msra.mxu0 %v2362
    %10447 = vmatprep.subr.bf16.mxu0 %v2347
    %10448 = vmatpush2.bf16.msra.mxu0 %v2346
    %10449 = vmatprep.mubr.bf16.mxu0 %v9984
    %10450 = vmatmul.mubr.bf16.gmra.mxu0 %v9983
    %v10451 = vpop.f32.mrf.mxu0
    %v10452 = vadd.f32 0.0, %v10451
    %v10453 = vpop.f32.mrf.mxu0
    %v10454 = vadd.f32 0.0, %v10453
    %v10455 = vpop.f32.mrf.mxu0
    %v10456 = vadd.f32 0.0, %v10455
    %v10457 = vpop.f32.mrf.mxu0
    %v10458 = vadd.f32 0.0, %v10457
    %10459 = vdwg.mxu0
    %10460 = vmatprep.subr.bf16.mxu0 %v2587
    %10461 = vmatpush1.bf16.msra.mxu0 %v2586
    %10462 = vmatprep.subr.bf16.mxu0 %v2571
    %10463 = vmatpush1.bf16.msra.mxu0 %v2570
    %10464 = vmatprep.subr.bf16.mxu0 %v2555
    %10465 = vmatpush1.bf16.msra.mxu0 %v2554
    %10466 = vmatprep.subr.bf16.mxu0 %v2539
    %10467 = vmatpush1.bf16.msra.mxu0 %v2538
    %10468 = vmatprep.subr.bf16.mxu0 %v2523
    %10469 = vmatpush1.bf16.msra.mxu0 %v2522
    %10470 = vmatprep.subr.bf16.mxu0 %v2507
    %10471 = vmatpush1.bf16.msra.mxu0 %v2506
    %10472 = vmatprep.subr.bf16.mxu0 %v2491
    %10473 = vmatpush1.bf16.msra.mxu0 %v2490
    %10474 = vmatprep.subr.bf16.mxu0 %v2475
    %10475 = vmatpush1.bf16.msra.mxu0 %v2474
    %10476 = vmatprep.subr.bf16.mxu0 %v2715
    %10477 = vmatpush2.bf16.msra.mxu0 %v2714
    %10478 = vmatprep.subr.bf16.mxu0 %v2699
    %10479 = vmatpush2.bf16.msra.mxu0 %v2698
    %10480 = vmatprep.subr.bf16.mxu0 %v2683
    %10481 = vmatpush2.bf16.msra.mxu0 %v2682
    %10482 = vmatprep.subr.bf16.mxu0 %v2667
    %10483 = vmatpush2.bf16.msra.mxu0 %v2666
    %10484 = vmatprep.subr.bf16.mxu0 %v2651
    %10485 = vmatpush2.bf16.msra.mxu0 %v2650
    %10486 = vmatprep.subr.bf16.mxu0 %v2635
    %10487 = vmatpush2.bf16.msra.mxu0 %v2634
    %10488 = vmatprep.subr.bf16.mxu0 %v2619
    %10489 = vmatpush2.bf16.msra.mxu0 %v2618
    %10490 = vmatprep.subr.bf16.mxu0 %v2603
    %10491 = vmatpush2.bf16.msra.mxu0 %v2602
    %10492 = vmatprep.mubr.bf16.mxu0 %v9986
    %10493 = vmatmul.mubr.bf16.gmra.mxu0 %v9985
    %v10494 = vpop.f32.mrf.mxu0
    %v10495 = vadd.f32 %v10452, %v10494
    %v10496 = vpop.f32.mrf.mxu0
    %v10497 = vadd.f32 %v10454, %v10496
    %v10498 = vpop.f32.mrf.mxu0
    %v10499 = vadd.f32 %v10456, %v10498
    %v10500 = vpop.f32.mrf.mxu0
    %v10501 = vadd.f32 %v10458, %v10500
    %10502 = vdwg.mxu0
    %10503 = vmatprep.subr.bf16.mxu0 %v2333
    %10504 = vmatpush1.bf16.msra.mxu0 %v2332
    %10505 = vmatprep.subr.bf16.mxu0 %v2317
    %10506 = vmatpush1.bf16.msra.mxu0 %v2316
    %10507 = vmatprep.subr.bf16.mxu0 %v2301
    %10508 = vmatpush1.bf16.msra.mxu0 %v2300
    %10509 = vmatprep.subr.bf16.mxu0 %v2285
    %10510 = vmatpush1.bf16.msra.mxu0 %v2284
    %10511 = vmatprep.subr.bf16.mxu0 %v2269
    %10512 = vmatpush1.bf16.msra.mxu0 %v2268
    %10513 = vmatprep.subr.bf16.mxu0 %v2253
    %10514 = vmatpush1.bf16.msra.mxu0 %v2252
    %10515 = vmatprep.subr.bf16.mxu0 %v2237
    %10516 = vmatpush1.bf16.msra.mxu0 %v2236
    %10517 = vmatprep.subr.bf16.mxu0 %v2221
    %10518 = vmatpush1.bf16.msra.mxu0 %v2220
    %10519 = vmatprep.subr.bf16.mxu0 %v2461
    %10520 = vmatpush2.bf16.msra.mxu0 %v2460
    %10521 = vmatprep.subr.bf16.mxu0 %v2445
    %10522 = vmatpush2.bf16.msra.mxu0 %v2444
    %10523 = vmatprep.subr.bf16.mxu0 %v2429
    %10524 = vmatpush2.bf16.msra.mxu0 %v2428
    %10525 = vmatprep.subr.bf16.mxu0 %v2413
    %10526 = vmatpush2.bf16.msra.mxu0 %v2412
    %10527 = vmatprep.subr.bf16.mxu0 %v2397
    %10528 = vmatpush2.bf16.msra.mxu0 %v2396
    %10529 = vmatprep.subr.bf16.mxu0 %v2381
    %10530 = vmatpush2.bf16.msra.mxu0 %v2380
    %10531 = vmatprep.subr.bf16.mxu0 %v2365
    %10532 = vmatpush2.bf16.msra.mxu0 %v2364
    %10533 = vmatprep.subr.bf16.mxu0 %v2349
    %10534 = vmatpush2.bf16.msra.mxu0 %v2348
    %10535 = vmatprep.mubr.bf16.mxu0 %v9984
    %10536 = vmatmul.mubr.bf16.gmra.mxu0 %v9983
    %v10537 = vpop.f32.mrf.mxu0
    %v10538 = vadd.f32 0.0, %v10537
    %v10539 = vpop.f32.mrf.mxu0
    %v10540 = vadd.f32 0.0, %v10539
    %v10541 = vpop.f32.mrf.mxu0
    %v10542 = vadd.f32 0.0, %v10541
    %v10543 = vpop.f32.mrf.mxu0
    %v10544 = vadd.f32 0.0, %v10543
    %10545 = vdwg.mxu0
    %10546 = vmatprep.subr.bf16.mxu0 %v2589
    %10547 = vmatpush1.bf16.msra.mxu0 %v2588
    %10548 = vmatprep.subr.bf16.mxu0 %v2573
    %10549 = vmatpush1.bf16.msra.mxu0 %v2572
    %10550 = vmatprep.subr.bf16.mxu0 %v2557
    %10551 = vmatpush1.bf16.msra.mxu0 %v2556
    %10552 = vmatprep.subr.bf16.mxu0 %v2541
    %10553 = vmatpush1.bf16.msra.mxu0 %v2540
    %10554 = vmatprep.subr.bf16.mxu0 %v2525
    %10555 = vmatpush1.bf16.msra.mxu0 %v2524
    %10556 = vmatprep.subr.bf16.mxu0 %v2509
    %10557 = vmatpush1.bf16.msra.mxu0 %v2508
    %10558 = vmatprep.subr.bf16.mxu0 %v2493
    %10559 = vmatpush1.bf16.msra.mxu0 %v2492
    %10560 = vmatprep.subr.bf16.mxu0 %v2477
    %10561 = vmatpush1.bf16.msra.mxu0 %v2476
    %10562 = vmatprep.subr.bf16.mxu0 %v2717
    %10563 = vmatpush2.bf16.msra.mxu0 %v2716
    %10564 = vmatprep.subr.bf16.mxu0 %v2701
    %10565 = vmatpush2.bf16.msra.mxu0 %v2700
    %10566 = vmatprep.subr.bf16.mxu0 %v2685
    %10567 = vmatpush2.bf16.msra.mxu0 %v2684
    %10568 = vmatprep.subr.bf16.mxu0 %v2669
    %10569 = vmatpush2.bf16.msra.mxu0 %v2668
    %10570 = vmatprep.subr.bf16.mxu0 %v2653
    %10571 = vmatpush2.bf16.msra.mxu0 %v2652
    %10572 = vmatprep.subr.bf16.mxu0 %v2637
    %10573 = vmatpush2.bf16.msra.mxu0 %v2636
    %10574 = vmatprep.subr.bf16.mxu0 %v2621
    %10575 = vmatpush2.bf16.msra.mxu0 %v2620
    %10576 = vmatprep.subr.bf16.mxu0 %v2605
    %10577 = vmatpush2.bf16.msra.mxu0 %v2604
    %10578 = vmatprep.mubr.bf16.mxu0 %v9986
    %10579 = vmatmul.mubr.bf16.gmra.mxu0 %v9985
    %v10580 = vpop.f32.mrf.mxu0
    %v10581 = vadd.f32 %v10538, %v10580
    %v10582 = vpop.f32.mrf.mxu0
    %v10583 = vadd.f32 %v10540, %v10582
    %v10584 = vpop.f32.mrf.mxu0
    %v10585 = vadd.f32 %v10542, %v10584
    %v10586 = vpop.f32.mrf.mxu0
    %v10587 = vadd.f32 %v10544, %v10586
    %10588 = vdwg.mxu0
    %10589 = vmatprep.subr.bf16.mxu0 %v2335
    %10590 = vmatpush1.bf16.msra.mxu0 %v2334
    %10591 = vmatprep.subr.bf16.mxu0 %v2319
    %10592 = vmatpush1.bf16.msra.mxu0 %v2318
    %10593 = vmatprep.subr.bf16.mxu0 %v2303
    %10594 = vmatpush1.bf16.msra.mxu0 %v2302
    %10595 = vmatprep.subr.bf16.mxu0 %v2287
    %10596 = vmatpush1.bf16.msra.mxu0 %v2286
    %10597 = vmatprep.subr.bf16.mxu0 %v2271
    %10598 = vmatpush1.bf16.msra.mxu0 %v2270
    %10599 = vmatprep.subr.bf16.mxu0 %v2255
    %10600 = vmatpush1.bf16.msra.mxu0 %v2254
    %10601 = vmatprep.subr.bf16.mxu0 %v2239
    %10602 = vmatpush1.bf16.msra.mxu0 %v2238
    %10603 = vmatprep.subr.bf16.mxu0 %v2223
    %10604 = vmatpush1.bf16.msra.mxu0 %v2222
    %10605 = vmatprep.subr.bf16.mxu0 %v2463
    %10606 = vmatpush2.bf16.msra.mxu0 %v2462
    %10607 = vmatprep.subr.bf16.mxu0 %v2447
    %10608 = vmatpush2.bf16.msra.mxu0 %v2446
    %10609 = vmatprep.subr.bf16.mxu0 %v2431
    %10610 = vmatpush2.bf16.msra.mxu0 %v2430
    %10611 = vmatprep.subr.bf16.mxu0 %v2415
    %10612 = vmatpush2.bf16.msra.mxu0 %v2414
    %10613 = vmatprep.subr.bf16.mxu0 %v2399
    %10614 = vmatpush2.bf16.msra.mxu0 %v2398
    %10615 = vmatprep.subr.bf16.mxu0 %v2383
    %10616 = vmatpush2.bf16.msra.mxu0 %v2382
    %10617 = vmatprep.subr.bf16.mxu0 %v2367
    %10618 = vmatpush2.bf16.msra.mxu0 %v2366
    %10619 = vmatprep.subr.bf16.mxu0 %v2351
    %10620 = vmatpush2.bf16.msra.mxu0 %v2350
    %10621 = vmatprep.mubr.bf16.mxu0 %v9984
    %10622 = vmatmul.mubr.bf16.gmra.mxu0 %v9983
    %v10623 = vpop.f32.mrf.mxu0
    %v10624 = vadd.f32 0.0, %v10623
    %v10625 = vpop.f32.mrf.mxu0
    %v10626 = vadd.f32 0.0, %v10625
    %v10627 = vpop.f32.mrf.mxu0
    %v10628 = vadd.f32 0.0, %v10627
    %v10629 = vpop.f32.mrf.mxu0
    %v10630 = vadd.f32 0.0, %v10629
    %10631 = vdwg.mxu0
    %10632 = vmatprep.subr.bf16.mxu0 %v2591
    %10633 = vmatpush1.bf16.msra.mxu0 %v2590
    %10634 = vmatprep.subr.bf16.mxu0 %v2575
    %10635 = vmatpush1.bf16.msra.mxu0 %v2574
    %10636 = vmatprep.subr.bf16.mxu0 %v2559
    %10637 = vmatpush1.bf16.msra.mxu0 %v2558
    %10638 = vmatprep.subr.bf16.mxu0 %v2543
    %10639 = vmatpush1.bf16.msra.mxu0 %v2542
    %10640 = vmatprep.subr.bf16.mxu0 %v2527
    %10641 = vmatpush1.bf16.msra.mxu0 %v2526
    %10642 = vmatprep.subr.bf16.mxu0 %v2511
    %10643 = vmatpush1.bf16.msra.mxu0 %v2510
    %10644 = vmatprep.subr.bf16.mxu0 %v2495
    %10645 = vmatpush1.bf16.msra.mxu0 %v2494
    %10646 = vmatprep.subr.bf16.mxu0 %v2479
    %10647 = vmatpush1.bf16.msra.mxu0 %v2478
    %10648 = vmatprep.subr.bf16.mxu0 %v2719
    %10649 = vmatpush2.bf16.msra.mxu0 %v2718
    %10650 = vmatprep.subr.bf16.mxu0 %v2703
    %10651 = vmatpush2.bf16.msra.mxu0 %v2702
    %10652 = vmatprep.subr.bf16.mxu0 %v2687
    %10653 = vmatpush2.bf16.msra.mxu0 %v2686
    %10654 = vmatprep.subr.bf16.mxu0 %v2671
    %10655 = vmatpush2.bf16.msra.mxu0 %v2670
    %10656 = vmatprep.subr.bf16.mxu0 %v2655
    %10657 = vmatpush2.bf16.msra.mxu0 %v2654
    %10658 = vmatprep.subr.bf16.mxu0 %v2639
    %10659 = vmatpush2.bf16.msra.mxu0 %v2638
    %10660 = vmatprep.subr.bf16.mxu0 %v2623
    %10661 = vmatpush2.bf16.msra.mxu0 %v2622
    %10662 = vmatprep.subr.bf16.mxu0 %v2607
    %10663 = vmatpush2.bf16.msra.mxu0 %v2606
    %10664 = vmatprep.mubr.bf16.mxu0 %v9986
    %10665 = vmatmul.mubr.bf16.gmra.mxu0 %v9985
    %v10666 = vpop.f32.mrf.mxu0
    %v10667 = vadd.f32 %v10624, %v10666
    %v10668 = vpop.f32.mrf.mxu0
    %v10669 = vadd.f32 %v10626, %v10668
    %v10670 = vpop.f32.mrf.mxu0
    %v10671 = vadd.f32 %v10628, %v10670
    %v10672 = vpop.f32.mrf.mxu0
    %v10673 = vadd.f32 %v10630, %v10672
    %10674 = vdwg.mxu0
    %v10675 = vadd.f32 %v9951, %v10065
    %v10676 = vadd.f32 %v9952, %v10067
    %v10677 = vadd.f32 %v9953, %v10151
    %v10678 = vadd.f32 %v9954, %v10153
    %v10679 = vadd.f32 %v9955, %v10237
    %v10680 = vadd.f32 %v9956, %v10239
    %v10681 = vadd.f32 %v9957, %v10323
    %v10682 = vadd.f32 %v9958, %v10325
    %v10683 = vadd.f32 %v9959, %v10409
    %v10684 = vadd.f32 %v9960, %v10411
    %v10685 = vadd.f32 %v9961, %v10495
    %v10686 = vadd.f32 %v9962, %v10497
    %v10687 = vadd.f32 %v9963, %v10581
    %v10688 = vadd.f32 %v9964, %v10583
    %v10689 = vadd.f32 %v9965, %v10667
    %v10690 = vadd.f32 %v9966, %v10669
    %v10691 = vadd.f32 %v9967, %v10069
    %v10692 = vadd.f32 %v9968, %v10071
    %v10693 = vadd.f32 %v9969, %v10155
    %v10694 = vadd.f32 %v9970, %v10157
    %v10695 = vadd.f32 %v9971, %v10241
    %v10696 = vadd.f32 %v9972, %v10243
    %v10697 = vadd.f32 %v9973, %v10327
    %v10698 = vadd.f32 %v9974, %v10329
    %v10699 = vadd.f32 %v9975, %v10413
    %v10700 = vadd.f32 %v9976, %v10415
    %v10701 = vadd.f32 %v9977, %v10499
    %v10702 = vadd.f32 %v9978, %v10501
    %v10703 = vadd.f32 %v9979, %v10585
    %v10704 = vadd.f32 %v9980, %v10587
    %v10705 = vadd.f32 %v9981, %v10671
    %v10706 = vadd.f32 %v9982, %v10673
    %v10707 = vxor.u32 %v10675, 2147483648
    %v10708 = vxor.u32 %v10676, 2147483648
    %v10709 = vxor.u32 %v10677, 2147483648
    %v10710 = vxor.u32 %v10678, 2147483648
    %v10711 = vxor.u32 %v10691, 2147483648
    %v10712 = vxor.u32 %v10692, 2147483648
    %v10713 = vxor.u32 %v10693, 2147483648
    %v10714 = vxor.u32 %v10694, 2147483648
    %v10715 = vmul.f32 %v10707, 1.442695
    %v10716 = vpow.pop %v10715
    %v10717 = vmul.f32 %v10708, 1.442695
    %v10718 = vpow.pop %v10717
    %v10719 = vmul.f32 %v10709, 1.442695
    %v10720 = vpow.pop %v10719
    %v10721 = vmul.f32 %v10710, 1.442695
    %v10722 = vpow.pop %v10721
    %v10723 = vmul.f32 %v10711, 1.442695
    %v10724 = vpow.pop %v10723
    %v10725 = vmul.f32 %v10712, 1.442695
    %v10726 = vpow.pop %v10725
    %v10727 = vmul.f32 %v10713, 1.442695
    %v10728 = vpow.pop %v10727
    %v10729 = vmul.f32 %v10714, 1.442695
    %v10730 = vpow.pop %v10729
    %v10731 = vadd.f32 %v10716, 1.0
    %v10732 = vadd.f32 %v10718, 1.0
    %v10733 = vadd.f32 %v10720, 1.0
    %v10734 = vadd.f32 %v10722, 1.0
    %v10735 = vadd.f32 %v10724, 1.0
    %v10736 = vadd.f32 %v10726, 1.0
    %v10737 = vadd.f32 %v10728, 1.0
    %v10738 = vadd.f32 %v10730, 1.0
    %v10739 = vrcp.pop %v10731
    %v10740 = vmul.f32 1.0, %v10739
    %v10741 = vrcp.pop %v10732
    %v10742 = vmul.f32 1.0, %v10741
    %v10743 = vrcp.pop %v10733
    %v10744 = vmul.f32 1.0, %v10743
    %v10745 = vrcp.pop %v10734
    %v10746 = vmul.f32 1.0, %v10745
    %v10747 = vrcp.pop %v10735
    %v10748 = vmul.f32 1.0, %v10747
    %v10749 = vrcp.pop %v10736
    %v10750 = vmul.f32 1.0, %v10749
    %v10751 = vrcp.pop %v10737
    %v10752 = vmul.f32 1.0, %v10751
    %v10753 = vrcp.pop %v10738
    %v10754 = vmul.f32 1.0, %v10753
    %v10755 = vxor.u32 %v10679, 2147483648
    %v10756 = vxor.u32 %v10680, 2147483648
    %v10757 = vxor.u32 %v10681, 2147483648
    %v10758 = vxor.u32 %v10682, 2147483648
    %v10759 = vxor.u32 %v10695, 2147483648
    %v10760 = vxor.u32 %v10696, 2147483648
    %v10761 = vxor.u32 %v10697, 2147483648
    %v10762 = vxor.u32 %v10698, 2147483648
    %v10763 = vmul.f32 %v10755, 1.442695
    %v10764 = vpow.pop %v10763
    %v10765 = vmul.f32 %v10756, 1.442695
    %v10766 = vpow.pop %v10765
    %v10767 = vmul.f32 %v10757, 1.442695
    %v10768 = vpow.pop %v10767
    %v10769 = vmul.f32 %v10758, 1.442695
    %v10770 = vpow.pop %v10769
    %v10771 = vmul.f32 %v10759, 1.442695
    %v10772 = vpow.pop %v10771
    %v10773 = vmul.f32 %v10760, 1.442695
    %v10774 = vpow.pop %v10773
    %v10775 = vmul.f32 %v10761, 1.442695
    %v10776 = vpow.pop %v10775
    %v10777 = vmul.f32 %v10762, 1.442695
    %v10778 = vpow.pop %v10777
    %v10779 = vadd.f32 %v10764, 1.0
    %v10780 = vadd.f32 %v10766, 1.0
    %v10781 = vadd.f32 %v10768, 1.0
    %v10782 = vadd.f32 %v10770, 1.0
    %v10783 = vadd.f32 %v10772, 1.0
    %v10784 = vadd.f32 %v10774, 1.0
    %v10785 = vadd.f32 %v10776, 1.0
    %v10786 = vadd.f32 %v10778, 1.0
    %v10787 = vrcp.pop %v10779
    %v10788 = vmul.f32 1.0, %v10787
    %v10789 = vrcp.pop %v10780
    %v10790 = vmul.f32 1.0, %v10789
    %v10791 = vrcp.pop %v10781
    %v10792 = vmul.f32 1.0, %v10791
    %v10793 = vrcp.pop %v10782
    %v10794 = vmul.f32 1.0, %v10793
    %v10795 = vrcp.pop %v10783
    %v10796 = vmul.f32 1.0, %v10795
    %v10797 = vrcp.pop %v10784
    %v10798 = vmul.f32 1.0, %v10797
    %v10799 = vrcp.pop %v10785
    %v10800 = vmul.f32 1.0, %v10799
    %v10801 = vrcp.pop %v10786
    %v10802 = vmul.f32 1.0, %v10801
    %v10803 = vtanh.pop %v10683
    %v10804 = vtanh.pop %v10684
    %v10805 = vtanh.pop %v10685
    %v10806 = vtanh.pop %v10686
    %v10807 = vtanh.pop %v10699
    %v10808 = vtanh.pop %v10700
    %v10809 = vtanh.pop %v10701
    %v10810 = vtanh.pop %v10702
    %v10811 = vxor.u32 %v10687, 2147483648
    %v10812 = vxor.u32 %v10688, 2147483648
    %v10813 = vxor.u32 %v10689, 2147483648
    %v10814 = vxor.u32 %v10690, 2147483648
    %v10815 = vxor.u32 %v10703, 2147483648
    %v10816 = vxor.u32 %v10704, 2147483648
    %v10817 = vxor.u32 %v10705, 2147483648
    %v10818 = vxor.u32 %v10706, 2147483648
    %v10819 = vmul.f32 %v10811, 1.442695
    %v10820 = vpow.pop %v10819
    %v10821 = vmul.f32 %v10812, 1.442695
    %v10822 = vpow.pop %v10821
    %v10823 = vmul.f32 %v10813, 1.442695
    %v10824 = vpow.pop %v10823
    %v10825 = vmul.f32 %v10814, 1.442695
    %v10826 = vpow.pop %v10825
    %v10827 = vmul.f32 %v10815, 1.442695
    %v10828 = vpow.pop %v10827
    %v10829 = vmul.f32 %v10816, 1.442695
    %v10830 = vpow.pop %v10829
    %v10831 = vmul.f32 %v10817, 1.442695
    %v10832 = vpow.pop %v10831
    %v10833 = vmul.f32 %v10818, 1.442695
    %v10834 = vpow.pop %v10833
    %v10835 = vadd.f32 %v10820, 1.0
    %v10836 = vadd.f32 %v10822, 1.0
    %v10837 = vadd.f32 %v10824, 1.0
    %v10838 = vadd.f32 %v10826, 1.0
    %v10839 = vadd.f32 %v10828, 1.0
    %v10840 = vadd.f32 %v10830, 1.0
    %v10841 = vadd.f32 %v10832, 1.0
    %v10842 = vadd.f32 %v10834, 1.0
    %v10843 = vrcp.pop %v10835
    %v10844 = vmul.f32 1.0, %v10843
    %v10845 = vrcp.pop %v10836
    %v10846 = vmul.f32 1.0, %v10845
    %v10847 = vrcp.pop %v10837
    %v10848 = vmul.f32 1.0, %v10847
    %v10849 = vrcp.pop %v10838
    %v10850 = vmul.f32 1.0, %v10849
    %v10851 = vrcp.pop %v10839
    %v10852 = vmul.f32 1.0, %v10851
    %v10853 = vrcp.pop %v10840
    %v10854 = vmul.f32 1.0, %v10853
    %v10855 = vrcp.pop %v10841
    %v10856 = vmul.f32 1.0, %v10855
    %v10857 = vrcp.pop %v10842
    %v10858 = vmul.f32 1.0, %v10857
    %v10859 = vmul.f32 %v10788, %v9910
    %v10860 = vmul.f32 %v10790, %v9911
    %v10861 = vmul.f32 %v10792, %v9912
    %v10862 = vmul.f32 %v10794, %v9913
    %v10863 = vmul.f32 %v10796, %v9914
    %v10864 = vmul.f32 %v10798, %v9915
    %v10865 = vmul.f32 %v10800, %v9916
    %v10866 = vmul.f32 %v10802, %v9917
    %v10867 = vmul.f32 %v10740, %v10803
    %v10868 = vmul.f32 %v10742, %v10804
    %v10869 = vmul.f32 %v10744, %v10805
    %v10870 = vmul.f32 %v10746, %v10806
    %v10871 = vmul.f32 %v10748, %v10807
    %v10872 = vmul.f32 %v10750, %v10808
    %v10873 = vmul.f32 %v10752, %v10809
    %v10874 = vmul.f32 %v10754, %v10810
    %v10875 = vadd.f32 %v10859, %v10867
    %v10876 = vadd.f32 %v10860, %v10868
    %v10877 = vadd.f32 %v10861, %v10869
    %v10878 = vadd.f32 %v10862, %v10870
    %v10879 = vadd.f32 %v10863, %v10871
    %v10880 = vadd.f32 %v10864, %v10872
    %v10881 = vadd.f32 %v10865, %v10873
    %v10882 = vadd.f32 %v10866, %v10874
    %v10883 = vtanh.pop %v10875
    %v10884 = vtanh.pop %v10876
    %v10885 = vtanh.pop %v10877
    %v10886 = vtanh.pop %v10878
    %v10887 = vtanh.pop %v10879
    %v10888 = vtanh.pop %v10880
    %v10889 = vtanh.pop %v10881
    %v10890 = vtanh.pop %v10882
    %v10891 = vmul.f32 %v10844, %v10883
    %v10892 = vmul.f32 %v10846, %v10884
    %v10893 = vmul.f32 %v10848, %v10885
    %v10894 = vmul.f32 %v10850, %v10886
    %v10895 = vmul.f32 %v10852, %v10887
    %v10896 = vmul.f32 %v10854, %v10888
    %v10897 = vmul.f32 %v10856, %v10889
    %v10898 = vmul.f32 %v10858, %v10890
    %10899 = vst [vmem:[#allocation2] sm:$0xff] %v10891
    %10900 = vst [vmem:[#allocation2 + $0x8] sm:$0xff] %v10892
    %10901 = vst [vmem:[#allocation2 + $0x10] sm:$0xff] %v10893
    %10902 = vst [vmem:[#allocation2 + $0x18] sm:$0xff] %v10894
    %10903 = vst [vmem:[#allocation2 + $0x20] sm:$0xff] %v10895
    %10904 = vst [vmem:[#allocation2 + $0x28] sm:$0xff] %v10896
    %10905 = vst [vmem:[#allocation2 + $0x30] sm:$0xff] %v10897
    %10906 = vst [vmem:[#allocation2 + $0x38] sm:$0xff] %v10898
    %10907 = vst [vmem:[#allocation3] sm:$0xff] %v10875
    %10908 = vst [vmem:[#allocation3 + $0x8] sm:$0xff] %v10876
    %10909 = vst [vmem:[#allocation3 + $0x10] sm:$0xff] %v10877
    %10910 = vst [vmem:[#allocation3 + $0x18] sm:$0xff] %v10878
    %10911 = vst [vmem:[#allocation3 + $0x20] sm:$0xff] %v10879
    %10912 = vst [vmem:[#allocation3 + $0x28] sm:$0xff] %v10880
    %10913 = vst [vmem:[#allocation3 + $0x30] sm:$0xff] %v10881
    %10914 = vst [vmem:[#allocation3 + $0x38] sm:$0xff] %v10882
    // Predicated region
    $region38: #{tpu_custom_call.1} parent=1 // pred_check
      %p10915 = pneg %p72
    $region39: #{tpu_custom_call.1} parent=1 // pred_check_branch
      %10917 = sbr.rel (%p10915) target = $region41
    $region40: #{tpu_custom_call.1} parent=1 // pred_region
      %v10918 = vpack.c.bf16 %v10895, %v10891
      %v10919 = vpack.c.bf16 %v10896, %v10892
      %v10920 = vpack.c.bf16 %v10897, %v10893
      %v10921 = vpack.c.bf16 %v10898, %v10894
      %v10922 = vld [vmem:[#allocation9] sm:$0xff]
      %v10923 = vld [vmem:[#allocation9 + $0x8] sm:$0xf]
      %v10924 = vld [vmem:[#allocation9 + $0xc] sm:$0xff]
      %v10925 = vld [vmem:[#allocation9 + $0x14] sm:$0xf]
      %v10926 = vld [vmem:[#allocation9 + $0x18] sm:$0xff]
      %v10927 = vld [vmem:[#allocation9 + $0x20] sm:$0xf]
      %v10928 = vld [vmem:[#allocation9 + $0x24] sm:$0xff]
      %v10929 = vld [vmem:[#allocation9 + $0x2c] sm:$0xf]
      %v10930 = vld [vmem:[#allocation9 + $0x30] sm:$0xff]
      %v10931 = vld [vmem:[#allocation9 + $0x38] sm:$0xf]
      %v10932 = vld [vmem:[#allocation9 + $0x3c] sm:$0xff]
      %v10933 = vld [vmem:[#allocation9 + $0x44] sm:$0xf]
      %v10934 = vld [vmem:[#allocation9 + $0x48] sm:$0xff]
      %v10935 = vld [vmem:[#allocation9 + $0x50] sm:$0xf]
      %v10936 = vld [vmem:[#allocation9 + $0x54] sm:$0xff]
      %v10937 = vld [vmem:[#allocation9 + $0x5c] sm:$0xf]
      %v10938 = vld [vmem:[#allocation9 + $0x60] sm:$0xff]
      %v10939 = vld [vmem:[#allocation9 + $0x68] sm:$0xf]
      %v10940 = vld [vmem:[#allocation9 + $0x6c] sm:$0xff]
      %v10941 = vld [vmem:[#allocation9 + $0x74] sm:$0xf]
      %v10942 = vld [vmem:[#allocation9 + $0x78] sm:$0xff]
      %v10943 = vld [vmem:[#allocation9 + $0x80] sm:$0xf]
      %v10944 = vld [vmem:[#allocation9 + $0x84] sm:$0xff]
      %v10945 = vld [vmem:[#allocation9 + $0x8c] sm:$0xf]
      %v10946 = vld [vmem:[#allocation9 + $0x90] sm:$0xff]
      %v10947 = vld [vmem:[#allocation9 + $0x98] sm:$0xf]
      %v10948 = vld [vmem:[#allocation9 + $0x9c] sm:$0xff]
      %v10949 = vld [vmem:[#allocation9 + $0xa4] sm:$0xf]
      %v10950 = vld [vmem:[#allocation9 + $0xa8] sm:$0xff]
      %v10951 = vld [vmem:[#allocation9 + $0xb0] sm:$0xf]
      %v10952 = vld [vmem:[#allocation9 + $0xb4] sm:$0xff]
      %v10953 = vld [vmem:[#allocation9 + $0xbc] sm:$0xf]
      %v10954 = vld [vmem:[#allocation9 + $0xc0] sm:$0xff]
      %v10955 = vld [vmem:[#allocation9 + $0xc8] sm:$0xf]
      %v10956 = vld [vmem:[#allocation9 + $0xcc] sm:$0xff]
      %v10957 = vld [vmem:[#allocation9 + $0xd4] sm:$0xf]
      %v10958 = vld [vmem:[#allocation9 + $0xd8] sm:$0xff]
      %v10959 = vld [vmem:[#allocation9 + $0xe0] sm:$0xf]
      %v10960 = vld [vmem:[#allocation9 + $0xe4] sm:$0xff]
      %v10961 = vld [vmem:[#allocation9 + $0xec] sm:$0xf]
      %v10962 = vld [vmem:[#allocation9 + $0xf0] sm:$0xff]
      %v10963 = vld [vmem:[#allocation9 + $0xf8] sm:$0xf]
      %v10964 = vld [vmem:[#allocation9 + $0xfc] sm:$0xff]
      %v10965 = vld [vmem:[#allocation9 + $0x104] sm:$0xf]
      %v10966 = vld [vmem:[#allocation9 + $0x108] sm:$0xff]
      %v10967 = vld [vmem:[#allocation9 + $0x110] sm:$0xf]
      %v10968 = vld [vmem:[#allocation9 + $0x114] sm:$0xff]
      %v10969 = vld [vmem:[#allocation9 + $0x11c] sm:$0xf]
      %v10970 = vld [vmem:[#allocation9 + $0x120] sm:$0xff]
      %v10971 = vld [vmem:[#allocation9 + $0x128] sm:$0xf]
      %v10972 = vld [vmem:[#allocation9 + $0x12c] sm:$0xff]
      %v10973 = vld [vmem:[#allocation9 + $0x134] sm:$0xf]
      %v10974 = vld [vmem:[#allocation9 + $0x138] sm:$0xff]
      %v10975 = vld [vmem:[#allocation9 + $0x140] sm:$0xf]
      %v10976 = vld [vmem:[#allocation9 + $0x144] sm:$0xff]
      %v10977 = vld [vmem:[#allocation9 + $0x14c] sm:$0xf]
      %v10978 = vld [vmem:[#allocation9 + $0x150] sm:$0xff]
      %v10979 = vld [vmem:[#allocation9 + $0x158] sm:$0xf]
      %v10980 = vld [vmem:[#allocation9 + $0x15c] sm:$0xff]
      %v10981 = vld [vmem:[#allocation9 + $0x164] sm:$0xf]
      %v10982 = vld [vmem:[#allocation9 + $0x168] sm:$0xff]
      %v10983 = vld [vmem:[#allocation9 + $0x170] sm:$0xf]
      %v10984 = vld [vmem:[#allocation9 + $0x174] sm:$0xff]
      %v10985 = vld [vmem:[#allocation9 + $0x17c] sm:$0xf]
      %v10986 = vld [vmem:[#allocation9 + $0x180] sm:$0xff]
      %v10987 = vld [vmem:[#allocation9 + $0x188] sm:$0xf]
      %v10988 = vld [vmem:[#allocation9 + $0x18c] sm:$0xff]
      %v10989 = vld [vmem:[#allocation9 + $0x194] sm:$0xf]
      %v10990 = vld [vmem:[#allocation9 + $0x198] sm:$0xff]
      %v10991 = vld [vmem:[#allocation9 + $0x1a0] sm:$0xf]
      %v10992 = vld [vmem:[#allocation9 + $0x1a4] sm:$0xff]
      %v10993 = vld [vmem:[#allocation9 + $0x1ac] sm:$0xf]
      %v10994 = vld [vmem:[#allocation9 + $0x1b0] sm:$0xff]
      %v10995 = vld [vmem:[#allocation9 + $0x1b8] sm:$0xf]
      %v10996 = vld [vmem:[#allocation9 + $0x1bc] sm:$0xff]
      %v10997 = vld [vmem:[#allocation9 + $0x1c4] sm:$0xf]
      %v10998 = vld [vmem:[#allocation9 + $0x1c8] sm:$0xff]
      %v10999 = vld [vmem:[#allocation9 + $0x1d0] sm:$0xf]
      %v11000 = vld [vmem:[#allocation9 + $0x1d4] sm:$0xff]
      %v11001 = vld [vmem:[#allocation9 + $0x1dc] sm:$0xf]
      %v11002 = vld [vmem:[#allocation9 + $0x1e0] sm:$0xff]
      %v11003 = vld [vmem:[#allocation9 + $0x1e8] sm:$0xf]
      %v11004 = vld [vmem:[#allocation9 + $0x1ec] sm:$0xff]
      %v11005 = vld [vmem:[#allocation9 + $0x1f4] sm:$0xf]
      %v11006 = vld [vmem:[#allocation9 + $0x1f8] sm:$0xff]
      %v11007 = vld [vmem:[#allocation9 + $0x200] sm:$0xf]
      %v11008 = vld [vmem:[#allocation9 + $0x204] sm:$0xff]
      %v11009 = vld [vmem:[#allocation9 + $0x20c] sm:$0xf]
      %v11010 = vld [vmem:[#allocation9 + $0x210] sm:$0xff]
      %v11011 = vld [vmem:[#allocation9 + $0x218] sm:$0xf]
      %v11012 = vld [vmem:[#allocation9 + $0x21c] sm:$0xff]
      %v11013 = vld [vmem:[#allocation9 + $0x224] sm:$0xf]
      %v11014 = vld [vmem:[#allocation9 + $0x228] sm:$0xff]
      %v11015 = vld [vmem:[#allocation9 + $0x230] sm:$0xf]
      %v11016 = vld [vmem:[#allocation9 + $0x234] sm:$0xff]
      %v11017 = vld [vmem:[#allocation9 + $0x23c] sm:$0xf]
      %v11018 = vld [vmem:[#allocation9 + $0x240] sm:$0xff]
      %v11019 = vld [vmem:[#allocation9 + $0x248] sm:$0xf]
      %v11020 = vld [vmem:[#allocation9 + $0x24c] sm:$0xff]
      %v11021 = vld [vmem:[#allocation9 + $0x254] sm:$0xf]
      %v11022 = vld [vmem:[#allocation9 + $0x258] sm:$0xff]
      %v11023 = vld [vmem:[#allocation9 + $0x260] sm:$0xf]
      %v11024 = vld [vmem:[#allocation9 + $0x264] sm:$0xff]
      %v11025 = vld [vmem:[#allocation9 + $0x26c] sm:$0xf]
      %v11026 = vld [vmem:[#allocation9 + $0x270] sm:$0xff]
      %v11027 = vld [vmem:[#allocation9 + $0x278] sm:$0xf]
      %v11028 = vld [vmem:[#allocation9 + $0x27c] sm:$0xff]
      %v11029 = vld [vmem:[#allocation9 + $0x284] sm:$0xf]
      %v11030 = vld [vmem:[#allocation9 + $0x288] sm:$0xff]
      %v11031 = vld [vmem:[#allocation9 + $0x290] sm:$0xf]
      %v11032 = vld [vmem:[#allocation9 + $0x294] sm:$0xff]
      %v11033 = vld [vmem:[#allocation9 + $0x29c] sm:$0xf]
      %v11034 = vld [vmem:[#allocation9 + $0x2a0] sm:$0xff]
      %v11035 = vld [vmem:[#allocation9 + $0x2a8] sm:$0xf]
      %v11036 = vld [vmem:[#allocation9 + $0x2ac] sm:$0xff]
      %v11037 = vld [vmem:[#allocation9 + $0x2b4] sm:$0xf]
      %v11038 = vld [vmem:[#allocation9 + $0x2b8] sm:$0xff]
      %v11039 = vld [vmem:[#allocation9 + $0x2c0] sm:$0xf]
      %v11040 = vld [vmem:[#allocation9 + $0x2c4] sm:$0xff]
      %v11041 = vld [vmem:[#allocation9 + $0x2cc] sm:$0xf]
      %v11042 = vld [vmem:[#allocation9 + $0x2d0] sm:$0xff]
      %v11043 = vld [vmem:[#allocation9 + $0x2d8] sm:$0xf]
      %v11044 = vld [vmem:[#allocation9 + $0x2dc] sm:$0xff]
      %v11045 = vld [vmem:[#allocation9 + $0x2e4] sm:$0xf]
      %v11046 = vld [vmem:[#allocation9 + $0x2e8] sm:$0xff]
      %v11047 = vld [vmem:[#allocation9 + $0x2f0] sm:$0xf]
      %v11048 = vld [vmem:[#allocation9 + $0x2f4] sm:$0xff]
      %v11049 = vld [vmem:[#allocation9 + $0x2fc] sm:$0xf]
      %v11050 = vld [vmem:[#allocation10] sm:$0x7]
      %v11052 = vlaneseq
      %v11053 = vshrl.u32 %v11052, 7
      %v11054 = vsub.s32 0, %v11053
      %v11055 = vrot.slane %v11050, %v11054
      %v11056 = vlaneseq
      %v11057 = vshrl.u32 %v11056, 7
      %v11058 = vsub.s32 1, %v11057
      %v11059 = vrot.slane %v11050, %v11058
      %v11060 = vlaneseq
      %v11061 = vshrl.u32 %v11060, 7
      %v11062 = vsub.s32 2, %v11061
      %v11063 = vrot.slane %v11050, %v11062
      %v11195 = vunpack.c.l.b16 %v10922
      %v11196 = vunpack.c.h.b16 %v10922
      %v11197 = vunpack.c.l.b16 %v10923
      %v11198 = vunpack.c.l.b16 %v10924
      %v11199 = vunpack.c.h.b16 %v10924
      %v11200 = vunpack.c.l.b16 %v10925
      %v11201 = vunpack.c.l.b16 %v10926
      %v11202 = vunpack.c.h.b16 %v10926
      %v11203 = vunpack.c.l.b16 %v10927
      %v11204 = vunpack.c.l.b16 %v10928
      %v11205 = vunpack.c.h.b16 %v10928
      %v11206 = vunpack.c.l.b16 %v10929
      %v11207 = vunpack.c.l.b16 %v10930
      %v11208 = vunpack.c.h.b16 %v10930
      %v11209 = vunpack.c.l.b16 %v10931
      %v11210 = vunpack.c.l.b16 %v10932
      %v11211 = vunpack.c.h.b16 %v10932
      %v11212 = vunpack.c.l.b16 %v10933
      %v11213 = vunpack.c.l.b16 %v10934
      %v11214 = vunpack.c.h.b16 %v10934
      %v11215 = vunpack.c.l.b16 %v10935
      %v11216 = vunpack.c.l.b16 %v10936
      %v11217 = vunpack.c.h.b16 %v10936
      %v11218 = vunpack.c.l.b16 %v10937
      %v11219 = vunpack.c.l.b16 %v10938
      %v11220 = vunpack.c.h.b16 %v10938
      %v11221 = vunpack.c.l.b16 %v10939
      %v11222 = vunpack.c.l.b16 %v10940
      %v11223 = vunpack.c.h.b16 %v10940
      %v11224 = vunpack.c.l.b16 %v10941
      %v11225 = vunpack.c.l.b16 %v10942
      %v11226 = vunpack.c.h.b16 %v10942
      %v11227 = vunpack.c.l.b16 %v10943
      %v11228 = vunpack.c.l.b16 %v10944
      %v11229 = vunpack.c.h.b16 %v10944
      %v11230 = vunpack.c.l.b16 %v10945
      %v11231 = vunpack.c.l.b16 %v10946
      %v11232 = vunpack.c.h.b16 %v10946
      %v11233 = vunpack.c.l.b16 %v10947
      %v11234 = vunpack.c.l.b16 %v10948
      %v11235 = vunpack.c.h.b16 %v10948
      %v11236 = vunpack.c.l.b16 %v10949
      %v11237 = vunpack.c.l.b16 %v10950
      %v11238 = vunpack.c.h.b16 %v10950
      %v11239 = vunpack.c.l.b16 %v10951
      %v11240 = vunpack.c.l.b16 %v10952
      %v11241 = vunpack.c.h.b16 %v10952
      %v11242 = vunpack.c.l.b16 %v10953
      %v11243 = vunpack.c.l.b16 %v10954
      %v11244 = vunpack.c.h.b16 %v10954
      %v11245 = vunpack.c.l.b16 %v10955
      %v11246 = vunpack.c.l.b16 %v10956
      %v11247 = vunpack.c.h.b16 %v10956
      %v11248 = vunpack.c.l.b16 %v10957
      %v11249 = vunpack.c.l.b16 %v10958
      %v11250 = vunpack.c.h.b16 %v10958
      %v11251 = vunpack.c.l.b16 %v10959
      %v11252 = vunpack.c.l.b16 %v10960
      %v11253 = vunpack.c.h.b16 %v10960
      %v11254 = vunpack.c.l.b16 %v10961
      %v11255 = vunpack.c.l.b16 %v10962
      %v11256 = vunpack.c.h.b16 %v10962
      %v11257 = vunpack.c.l.b16 %v10963
      %v11258 = vunpack.c.l.b16 %v10964
      %v11259 = vunpack.c.h.b16 %v10964
      %v11260 = vunpack.c.l.b16 %v10965
      %v11261 = vunpack.c.l.b16 %v10966
      %v11262 = vunpack.c.h.b16 %v10966
      %v11263 = vunpack.c.l.b16 %v10967
      %v11264 = vunpack.c.l.b16 %v10968
      %v11265 = vunpack.c.h.b16 %v10968
      %v11266 = vunpack.c.l.b16 %v10969
      %v11267 = vunpack.c.l.b16 %v10970
      %v11268 = vunpack.c.h.b16 %v10970
      %v11269 = vunpack.c.l.b16 %v10971
      %v11270 = vunpack.c.l.b16 %v10972
      %v11271 = vunpack.c.h.b16 %v10972
      %v11272 = vunpack.c.l.b16 %v10973
      %v11273 = vunpack.c.l.b16 %v10974
      %v11274 = vunpack.c.h.b16 %v10974
      %v11275 = vunpack.c.l.b16 %v10975
      %v11276 = vunpack.c.l.b16 %v10976
      %v11277 = vunpack.c.h.b16 %v10976
      %v11278 = vunpack.c.l.b16 %v10977
      %v11279 = vunpack.c.l.b16 %v10978
      %v11280 = vunpack.c.h.b16 %v10978
      %v11281 = vunpack.c.l.b16 %v10979
      %v11282 = vunpack.c.l.b16 %v10980
      %v11283 = vunpack.c.h.b16 %v10980
      %v11284 = vunpack.c.l.b16 %v10981
      %v11285 = vunpack.c.l.b16 %v10982
      %v11286 = vunpack.c.h.b16 %v10982
      %v11287 = vunpack.c.l.b16 %v10983
      %v11288 = vunpack.c.l.b16 %v10984
      %v11289 = vunpack.c.h.b16 %v10984
      %v11290 = vunpack.c.l.b16 %v10985
      %v11291 = vunpack.c.l.b16 %v10986
      %v11292 = vunpack.c.h.b16 %v10986
      %v11293 = vunpack.c.l.b16 %v10987
      %v11294 = vunpack.c.l.b16 %v10988
      %v11295 = vunpack.c.h.b16 %v10988
      %v11296 = vunpack.c.l.b16 %v10989
      %v11297 = vunpack.c.l.b16 %v10990
      %v11298 = vunpack.c.h.b16 %v10990
      %v11299 = vunpack.c.l.b16 %v10991
      %v11300 = vunpack.c.l.b16 %v10992
      %v11301 = vunpack.c.h.b16 %v10992
      %v11302 = vunpack.c.l.b16 %v10993
      %v11303 = vunpack.c.l.b16 %v10994
      %v11304 = vunpack.c.h.b16 %v10994
      %v11305 = vunpack.c.l.b16 %v10995
      %v11306 = vunpack.c.l.b16 %v10996
      %v11307 = vunpack.c.h.b16 %v10996
      %v11308 = vunpack.c.l.b16 %v10997
      %v11309 = vunpack.c.l.b16 %v10998
      %v11310 = vunpack.c.h.b16 %v10998
      %v11311 = vunpack.c.l.b16 %v10999
      %v11312 = vunpack.c.l.b16 %v11000
      %v11313 = vunpack.c.h.b16 %v11000
      %v11314 = vunpack.c.l.b16 %v11001
      %v11315 = vunpack.c.l.b16 %v11002
      %v11316 = vunpack.c.h.b16 %v11002
      %v11317 = vunpack.c.l.b16 %v11003
      %v11318 = vunpack.c.l.b16 %v11004
      %v11319 = vunpack.c.h.b16 %v11004
      %v11320 = vunpack.c.l.b16 %v11005
      %v11321 = vunpack.c.l.b16 %v11006
      %v11322 = vunpack.c.h.b16 %v11006
      %v11323 = vunpack.c.l.b16 %v11007
      %v11324 = vunpack.c.l.b16 %v11008
      %v11325 = vunpack.c.h.b16 %v11008
      %v11326 = vunpack.c.l.b16 %v11009
      %v11327 = vunpack.c.l.b16 %v11010
      %v11328 = vunpack.c.h.b16 %v11010
      %v11329 = vunpack.c.l.b16 %v11011
      %v11330 = vunpack.c.l.b16 %v11012
      %v11331 = vunpack.c.h.b16 %v11012
      %v11332 = vunpack.c.l.b16 %v11013
      %v11333 = vunpack.c.l.b16 %v11014
      %v11334 = vunpack.c.h.b16 %v11014
      %v11335 = vunpack.c.l.b16 %v11015
      %v11336 = vunpack.c.l.b16 %v11016
      %v11337 = vunpack.c.h.b16 %v11016
      %v11338 = vunpack.c.l.b16 %v11017
      %v11339 = vunpack.c.l.b16 %v11018
      %v11340 = vunpack.c.h.b16 %v11018
      %v11341 = vunpack.c.l.b16 %v11019
      %v11342 = vunpack.c.l.b16 %v11020
      %v11343 = vunpack.c.h.b16 %v11020
      %v11344 = vunpack.c.l.b16 %v11021
      %v11345 = vunpack.c.l.b16 %v11022
      %v11346 = vunpack.c.h.b16 %v11022
      %v11347 = vunpack.c.l.b16 %v11023
      %v11348 = vunpack.c.l.b16 %v11024
      %v11349 = vunpack.c.h.b16 %v11024
      %v11350 = vunpack.c.l.b16 %v11025
      %v11351 = vunpack.c.l.b16 %v11026
      %v11352 = vunpack.c.h.b16 %v11026
      %v11353 = vunpack.c.l.b16 %v11027
      %v11354 = vunpack.c.l.b16 %v11028
      %v11355 = vunpack.c.h.b16 %v11028
      %v11356 = vunpack.c.l.b16 %v11029
      %v11357 = vunpack.c.l.b16 %v11030
      %v11358 = vunpack.c.h.b16 %v11030
      %v11359 = vunpack.c.l.b16 %v11031
      %v11360 = vunpack.c.l.b16 %v11032
      %v11361 = vunpack.c.h.b16 %v11032
      %v11362 = vunpack.c.l.b16 %v11033
      %v11363 = vunpack.c.l.b16 %v11034
      %v11364 = vunpack.c.h.b16 %v11034
      %v11365 = vunpack.c.l.b16 %v11035
      %v11366 = vunpack.c.l.b16 %v11036
      %v11367 = vunpack.c.h.b16 %v11036
      %v11368 = vunpack.c.l.b16 %v11037
      %v11369 = vunpack.c.l.b16 %v11038
      %v11370 = vunpack.c.h.b16 %v11038
      %v11371 = vunpack.c.l.b16 %v11039
      %v11372 = vunpack.c.l.b16 %v11040
      %v11373 = vunpack.c.h.b16 %v11040
      %v11374 = vunpack.c.l.b16 %v11041
      %v11375 = vunpack.c.l.b16 %v11042
      %v11376 = vunpack.c.h.b16 %v11042
      %v11377 = vunpack.c.l.b16 %v11043
      %v11378 = vunpack.c.l.b16 %v11044
      %v11379 = vunpack.c.h.b16 %v11044
      %v11380 = vunpack.c.l.b16 %v11045
      %v11381 = vunpack.c.l.b16 %v11046
      %v11382 = vunpack.c.h.b16 %v11046
      %v11383 = vunpack.c.l.b16 %v11047
      %v11384 = vunpack.c.l.b16 %v11048
      %v11385 = vunpack.c.h.b16 %v11048
      %v11386 = vunpack.c.l.b16 %v11049
      %v11387 = vpack.c.b16 %v11198, %v11195
      %v11388 = vpack.c.b16 %v11199, %v11196
      %v11389 = vpack.c.b16 %v11200, %v11197
      %v11390 = vpack.c.b16 %v11204, %v11201
      %v11391 = vpack.c.b16 %v11205, %v11202
      %v11392 = vpack.c.b16 %v11206, %v11203
      %v11393 = vpack.c.b16 %v11210, %v11207
      %v11394 = vpack.c.b16 %v11211, %v11208
      %v11395 = vpack.c.b16 %v11212, %v11209
      %v11396 = vpack.c.b16 %v11216, %v11213
      %v11397 = vpack.c.b16 %v11217, %v11214
      %v11398 = vpack.c.b16 %v11218, %v11215
      %v11399 = vpack.c.b16 %v11222, %v11219
      %v11400 = vpack.c.b16 %v11223, %v11220
      %v11401 = vpack.c.b16 %v11224, %v11221
      %v11402 = vpack.c.b16 %v11228, %v11225
      %v11403 = vpack.c.b16 %v11229, %v11226
      %v11404 = vpack.c.b16 %v11230, %v11227
      %v11405 = vpack.c.b16 %v11234, %v11231
      %v11406 = vpack.c.b16 %v11235, %v11232
      %v11407 = vpack.c.b16 %v11236, %v11233
      %v11408 = vpack.c.b16 %v11240, %v11237
      %v11409 = vpack.c.b16 %v11241, %v11238
      %v11410 = vpack.c.b16 %v11242, %v11239
      %v11411 = vpack.c.b16 %v11246, %v11243
      %v11412 = vpack.c.b16 %v11247, %v11244
      %v11413 = vpack.c.b16 %v11248, %v11245
      %v11414 = vpack.c.b16 %v11252, %v11249
      %v11415 = vpack.c.b16 %v11253, %v11250
      %v11416 = vpack.c.b16 %v11254, %v11251
      %v11417 = vpack.c.b16 %v11258, %v11255
      %v11418 = vpack.c.b16 %v11259, %v11256
      %v11419 = vpack.c.b16 %v11260, %v11257
      %v11420 = vpack.c.b16 %v11264, %v11261
      %v11421 = vpack.c.b16 %v11265, %v11262
      %v11422 = vpack.c.b16 %v11266, %v11263
      %v11423 = vpack.c.b16 %v11270, %v11267
      %v11424 = vpack.c.b16 %v11271, %v11268
      %v11425 = vpack.c.b16 %v11272, %v11269
      %v11426 = vpack.c.b16 %v11276, %v11273
      %v11427 = vpack.c.b16 %v11277, %v11274
      %v11428 = vpack.c.b16 %v11278, %v11275
      %v11429 = vpack.c.b16 %v11282, %v11279
      %v11430 = vpack.c.b16 %v11283, %v11280
      %v11431 = vpack.c.b16 %v11284, %v11281
      %v11432 = vpack.c.b16 %v11288, %v11285
      %v11433 = vpack.c.b16 %v11289, %v11286
      %v11434 = vpack.c.b16 %v11290, %v11287
      %v11435 = vpack.c.b16 %v11294, %v11291
      %v11436 = vpack.c.b16 %v11295, %v11292
      %v11437 = vpack.c.b16 %v11296, %v11293
      %v11438 = vpack.c.b16 %v11300, %v11297
      %v11439 = vpack.c.b16 %v11301, %v11298
      %v11440 = vpack.c.b16 %v11302, %v11299
      %v11441 = vpack.c.b16 %v11306, %v11303
      %v11442 = vpack.c.b16 %v11307, %v11304
      %v11443 = vpack.c.b16 %v11308, %v11305
      %v11444 = vpack.c.b16 %v11312, %v11309
      %v11445 = vpack.c.b16 %v11313, %v11310
      %v11446 = vpack.c.b16 %v11314, %v11311
      %v11447 = vpack.c.b16 %v11318, %v11315
      %v11448 = vpack.c.b16 %v11319, %v11316
      %v11449 = vpack.c.b16 %v11320, %v11317
      %v11450 = vpack.c.b16 %v11324, %v11321
      %v11451 = vpack.c.b16 %v11325, %v11322
      %v11452 = vpack.c.b16 %v11326, %v11323
      %v11453 = vpack.c.b16 %v11330, %v11327
      %v11454 = vpack.c.b16 %v11331, %v11328
      %v11455 = vpack.c.b16 %v11332, %v11329
      %v11456 = vpack.c.b16 %v11336, %v11333
      %v11457 = vpack.c.b16 %v11337, %v11334
      %v11458 = vpack.c.b16 %v11338, %v11335
      %v11459 = vpack.c.b16 %v11342, %v11339
      %v11460 = vpack.c.b16 %v11343, %v11340
      %v11461 = vpack.c.b16 %v11344, %v11341
      %v11462 = vpack.c.b16 %v11348, %v11345
      %v11463 = vpack.c.b16 %v11349, %v11346
      %v11464 = vpack.c.b16 %v11350, %v11347
      %v11465 = vpack.c.b16 %v11354, %v11351
      %v11466 = vpack.c.b16 %v11355, %v11352
      %v11467 = vpack.c.b16 %v11356, %v11353
      %v11468 = vpack.c.b16 %v11360, %v11357
      %v11469 = vpack.c.b16 %v11361, %v11358
      %v11470 = vpack.c.b16 %v11362, %v11359
      %v11471 = vpack.c.b16 %v11366, %v11363
      %v11472 = vpack.c.b16 %v11367, %v11364
      %v11473 = vpack.c.b16 %v11368, %v11365
      %v11474 = vpack.c.b16 %v11372, %v11369
      %v11475 = vpack.c.b16 %v11373, %v11370
      %v11476 = vpack.c.b16 %v11374, %v11371
      %v11477 = vpack.c.b16 %v11378, %v11375
      %v11478 = vpack.c.b16 %v11379, %v11376
      %v11479 = vpack.c.b16 %v11380, %v11377
      %v11480 = vpack.c.b16 %v11384, %v11381
      %v11481 = vpack.c.b16 %v11385, %v11382
      %v11482 = vpack.c.b16 %v11386, %v11383
      %11579 = vmatprep.subr.bf16.mxu0 %v11409
      %11580 = vmatpush1.bf16.msra.mxu0 %v11408
      %11581 = vmatprep.subr.bf16.mxu0 %v11406
      %11582 = vmatpush1.bf16.msra.mxu0 %v11405
      %11583 = vmatprep.subr.bf16.mxu0 %v11403
      %11584 = vmatpush1.bf16.msra.mxu0 %v11402
      %11585 = vmatprep.subr.bf16.mxu0 %v11400
      %11586 = vmatpush1.bf16.msra.mxu0 %v11399
      %11587 = vmatprep.subr.bf16.mxu0 %v11397
      %11588 = vmatpush1.bf16.msra.mxu0 %v11396
      %11589 = vmatprep.subr.bf16.mxu0 %v11394
      %11590 = vmatpush1.bf16.msra.mxu0 %v11393
      %11591 = vmatprep.subr.bf16.mxu0 %v11391
      %11592 = vmatpush1.bf16.msra.mxu0 %v11390
      %11593 = vmatprep.subr.bf16.mxu0 %v11388
      %11594 = vmatpush1.bf16.msra.mxu0 %v11387
      %11595 = vmatprep.subr.bf16.mxu0 %v11433
      %11596 = vmatpush2.bf16.msra.mxu0 %v11432
      %11597 = vmatprep.subr.bf16.mxu0 %v11430
      %11598 = vmatpush2.bf16.msra.mxu0 %v11429
      %11599 = vmatprep.subr.bf16.mxu0 %v11427
      %11600 = vmatpush2.bf16.msra.mxu0 %v11426
      %11601 = vmatprep.subr.bf16.mxu0 %v11424
      %11602 = vmatpush2.bf16.msra.mxu0 %v11423
      %11603 = vmatprep.subr.bf16.mxu0 %v11421
      %11604 = vmatpush2.bf16.msra.mxu0 %v11420
      %11605 = vmatprep.subr.bf16.mxu0 %v11418
      %11606 = vmatpush2.bf16.msra.mxu0 %v11417
      %11607 = vmatprep.subr.bf16.mxu0 %v11415
      %11608 = vmatpush2.bf16.msra.mxu0 %v11414
      %11609 = vmatprep.subr.bf16.mxu0 %v11412
      %11610 = vmatpush2.bf16.msra.mxu0 %v11411
      %11611 = vmatprep.mubr.bf16.mxu0 %v10919
      %11612 = vmatmul.mubr.bf16.gmra.mxu0 %v10918
      %v11613 = vpop.f32.mrf.mxu0
      %v11614 = vadd.f32 %v11055, %v11613
      %v11615 = vpop.f32.mrf.mxu0
      %v11616 = vadd.f32 %v11059, %v11615
      %v11617 = vpop.f32.mrf.mxu0
      %v11618 = vadd.f32 %v11055, %v11617
      %v11619 = vpop.f32.mrf.mxu0
      %v11620 = vadd.f32 %v11059, %v11619
      %11621 = vdwg.mxu0
      %11622 = vmatprep.subr.bf16.mxu0 %v11457
      %11623 = vmatpush1.bf16.msra.mxu0 %v11456
      %11624 = vmatprep.subr.bf16.mxu0 %v11454
      %11625 = vmatpush1.bf16.msra.mxu0 %v11453
      %11626 = vmatprep.subr.bf16.mxu0 %v11451
      %11627 = vmatpush1.bf16.msra.mxu0 %v11450
      %11628 = vmatprep.subr.bf16.mxu0 %v11448
      %11629 = vmatpush1.bf16.msra.mxu0 %v11447
      %11630 = vmatprep.subr.bf16.mxu0 %v11445
      %11631 = vmatpush1.bf16.msra.mxu0 %v11444
      %11632 = vmatprep.subr.bf16.mxu0 %v11442
      %11633 = vmatpush1.bf16.msra.mxu0 %v11441
      %11634 = vmatprep.subr.bf16.mxu0 %v11439
      %11635 = vmatpush1.bf16.msra.mxu0 %v11438
      %11636 = vmatprep.subr.bf16.mxu0 %v11436
      %11637 = vmatpush1.bf16.msra.mxu0 %v11435
      %11638 = vmatprep.subr.bf16.mxu0 %v11481
      %11639 = vmatpush2.bf16.msra.mxu0 %v11480
      %11640 = vmatprep.subr.bf16.mxu0 %v11478
      %11641 = vmatpush2.bf16.msra.mxu0 %v11477
      %11642 = vmatprep.subr.bf16.mxu0 %v11475
      %11643 = vmatpush2.bf16.msra.mxu0 %v11474
      %11644 = vmatprep.subr.bf16.mxu0 %v11472
      %11645 = vmatpush2.bf16.msra.mxu0 %v11471
      %11646 = vmatprep.subr.bf16.mxu0 %v11469
      %11647 = vmatpush2.bf16.msra.mxu0 %v11468
      %11648 = vmatprep.subr.bf16.mxu0 %v11466
      %11649 = vmatpush2.bf16.msra.mxu0 %v11465
      %11650 = vmatprep.subr.bf16.mxu0 %v11463
      %11651 = vmatpush2.bf16.msra.mxu0 %v11462
      %11652 = vmatprep.subr.bf16.mxu0 %v11460
      %11653 = vmatpush2.bf16.msra.mxu0 %v11459
      %11654 = vmatprep.mubr.bf16.mxu0 %v10921
      %11655 = vmatmul.mubr.bf16.gmra.mxu0 %v10920
      %v11656 = vpop.f32.mrf.mxu0
      %v11657 = vadd.f32 %v11614, %v11656
      %v11658 = vpop.f32.mrf.mxu0
      %v11659 = vadd.f32 %v11616, %v11658
      %v11660 = vpop.f32.mrf.mxu0
      %v11661 = vadd.f32 %v11618, %v11660
      %v11662 = vpop.f32.mrf.mxu0
      %v11663 = vadd.f32 %v11620, %v11662
      %11664 = vdwg.mxu0
      %11665 = vmatprep.subr.bf16.mxu0 0
      %11666 = vmatpush1.bf16.msra.mxu0 %v11410
      %11667 = vmatprep.subr.bf16.mxu0 0
      %11668 = vmatpush1.bf16.msra.mxu0 %v11407
      %11669 = vmatprep.subr.bf16.mxu0 0
      %11670 = vmatpush1.bf16.msra.mxu0 %v11404
      %11671 = vmatprep.subr.bf16.mxu0 0
      %11672 = vmatpush1.bf16.msra.mxu0 %v11401
      %11673 = vmatprep.subr.bf16.mxu0 0
      %11674 = vmatpush1.bf16.msra.mxu0 %v11398
      %11675 = vmatprep.subr.bf16.mxu0 0
      %11676 = vmatpush1.bf16.msra.mxu0 %v11395
      %11677 = vmatprep.subr.bf16.mxu0 0
      %11678 = vmatpush1.bf16.msra.mxu0 %v11392
      %11679 = vmatprep.subr.bf16.mxu0 0
      %11680 = vmatpush1.bf16.msra.mxu0 %v11389
      %11681 = vmatprep.subr.bf16.mxu0 0
      %11682 = vmatpush2.bf16.msra.mxu0 %v11434
      %11683 = vmatprep.subr.bf16.mxu0 0
      %11684 = vmatpush2.bf16.msra.mxu0 %v11431
      %11685 = vmatprep.subr.bf16.mxu0 0
      %11686 = vmatpush2.bf16.msra.mxu0 %v11428
      %11687 = vmatprep.subr.bf16.mxu0 0
      %11688 = vmatpush2.bf16.msra.mxu0 %v11425
      %11689 = vmatprep.subr.bf16.mxu0 0
      %11690 = vmatpush2.bf16.msra.mxu0 %v11422
      %11691 = vmatprep.subr.bf16.mxu0 0
      %11692 = vmatpush2.bf16.msra.mxu0 %v11419
      %11693 = vmatprep.subr.bf16.mxu0 0
      %11694 = vmatpush2.bf16.msra.mxu0 %v11416
      %11695 = vmatprep.subr.bf16.mxu0 0
      %11696 = vmatpush2.bf16.msra.mxu0 %v11413
      %11697 = vmatprep.mubr.bf16.mxu0 %v10919
      %11698 = vmatmul.mubr.bf16.gmra.mxu0 %v10918
      %v11699 = vpop.f32.mrf.mxu0
      %v11700 = vadd.f32 %v11063, %v11699
      %v11701 = vpop.f32.mrf.mxu0
      %v11702 = vpop.f32.mrf.mxu0
      %v11703 = vadd.f32 %v11063, %v11702
      %v11704 = vpop.f32.mrf.mxu0
      %11705 = vdwg.mxu0
      %11706 = vmatprep.subr.bf16.mxu0 0
      %11707 = vmatpush1.bf16.msra.mxu0 %v11458
      %11708 = vmatprep.subr.bf16.mxu0 0
      %11709 = vmatpush1.bf16.msra.mxu0 %v11455
      %11710 = vmatprep.subr.bf16.mxu0 0
      %11711 = vmatpush1.bf16.msra.mxu0 %v11452
      %11712 = vmatprep.subr.bf16.mxu0 0
      %11713 = vmatpush1.bf16.msra.mxu0 %v11449
      %11714 = vmatprep.subr.bf16.mxu0 0
      %11715 = vmatpush1.bf16.msra.mxu0 %v11446
      %11716 = vmatprep.subr.bf16.mxu0 0
      %11717 = vmatpush1.bf16.msra.mxu0 %v11443
      %11718 = vmatprep.subr.bf16.mxu0 0
      %11719 = vmatpush1.bf16.msra.mxu0 %v11440
      %11720 = vmatprep.subr.bf16.mxu0 0
      %11721 = vmatpush1.bf16.msra.mxu0 %v11437
      %11722 = vmatprep.subr.bf16.mxu0 0
      %11723 = vmatpush2.bf16.msra.mxu0 %v11482
      %11724 = vmatprep.subr.bf16.mxu0 0
      %11725 = vmatpush2.bf16.msra.mxu0 %v11479
      %11726 = vmatprep.subr.bf16.mxu0 0
      %11727 = vmatpush2.bf16.msra.mxu0 %v11476
      %11728 = vmatprep.subr.bf16.mxu0 0
      %11729 = vmatpush2.bf16.msra.mxu0 %v11473
      %11730 = vmatprep.subr.bf16.mxu0 0
      %11731 = vmatpush2.bf16.msra.mxu0 %v11470
      %11732 = vmatprep.subr.bf16.mxu0 0
      %11733 = vmatpush2.bf16.msra.mxu0 %v11467
      %11734 = vmatprep.subr.bf16.mxu0 0
      %11735 = vmatpush2.bf16.msra.mxu0 %v11464
      %11736 = vmatprep.subr.bf16.mxu0 0
      %11737 = vmatpush2.bf16.msra.mxu0 %v11461
      %11738 = vmatprep.mubr.bf16.mxu0 %v10921
      %11739 = vmatmul.mubr.bf16.gmra.mxu0 %v10920
      %v11740 = vpop.f32.mrf.mxu0
      %v11741 = vadd.f32 %v11700, %v11740
      %v11742 = vpop.f32.mrf.mxu0
      %v11743 = vpop.f32.mrf.mxu0
      %v11744 = vadd.f32 %v11703, %v11743
      %v11745 = vpop.f32.mrf.mxu0
      %11746 = vdwg.mxu0
      %11747 = vst [vmem:[#allocation12] sm:$0xff] %v11657
      %11748 = vst [vmem:[#allocation12 + $0x8] sm:$0xff] %v11659
      %11749 = vst [vmem:[#allocation12 + $0x10] sm:$0xff] %v11741
      %11750 = vst [vmem:[#allocation12 + $0x18] sm:$0xff] %v11661
      %11751 = vst [vmem:[#allocation12 + $0x20] sm:$0xff] %v11663
      %11752 = vst [vmem:[#allocation12 + $0x28] sm:$0xff] %v11744
    $region41: #{tpu_custom_call.1} parent=1 // pred_fallthru
      _
    // Predicated region
    $region42: #{tpu_custom_call.1} parent=1 // pred_check
      _
    $region43: #{tpu_custom_call.1} parent=1 // pred_check_branch
      %11754 = sbr.rel (0) target = $region45
    $region44: #{tpu_custom_call.1} parent=1 // pred_region
      %s11756 = ssub.s32 768, 768
      %11757 = vsyncadd [#allocation6], %s11756
      %s11758 = sshll.u32 [#allocation12], 4
      %s11759 = int_to_ptr.vmem [resolvable:$true] %s11758
      %11764 = dma.vmem_to_hbm [thread:$0]  %s11759, 768, %s4, [#allocation6], 384, 384, 24
    $region45: #{tpu_custom_call.1} parent=1 // pred_fallthru
      _
    // Predicated region
    $region46: #{tpu_custom_call.1} parent=1 // pred_check
      _
    $region47: #{tpu_custom_call.1} parent=1 // pred_check_branch
      %11766 = sbr.rel (0) target = $region49
    $region48: #{tpu_custom_call.1} parent=1 // pred_region
      %11767 = dma.done [#allocation6], 768
    $region49: #{tpu_custom_call.1} parent=1 // pred_fallthru
      _
    %11768 = vsyncpa [#allocation5], 1
    %11769 = vsyncpa [#allocation8], 1
    %11770 = vsyncpa [#allocation11], 1
    %11771 = vsyncpa [#allocation6], 1

</llo_original>
